<compile_context>
chip_gen: v7x
topology: tpu7x:2x2x1
jax: 0.10.0
libtpu: 0.0.40
codegen_flags: <defaults>
</compile_context>

<pallas_src>
import jax
import jax.numpy as jnp
from jax.experimental import pallas as pl
from jax.experimental.pallas import tpu as pltpu

# ---- module hyper-parameters (from the PyTorch source) ----
N_EMBD = 384
BLOCK_SIZE = 256          # max context; we only require T <= BLOCK_SIZE
NUM_HEADS = 6
HEAD_SIZE = 64            # num_heads * head_size == n_embd
HHS = NUM_HEADS * HEAD_SIZE
SCALE = HEAD_SIZE ** (-0.5)
LN_EPS = 1e-5


def mha_kernel(x_ref, wqkv_ref, wp_ref, bp_ref, gamma_ref, o_ref, cat_ref):
    """Fused MHA + proj + LayerNorm for one block of BB batch elements.

    x_ref:     (BB, T, C)     bf16 input slab
    wqkv_ref:  (C, 3*H*hs)    bf16 fused [Wq*scale | Wk | Wv] (already W^T)
    wp_ref:    (H*hs, C)      bf16 output projection weight (W^T)
    bp_ref:    (1, C)         f32 output projection bias
    gamma_ref: (1, C)         f32 LayerNorm weight (no bias)
    o_ref:     (BB, T, C)     output slab
    cat_ref:   (BB*T, H*hs)   bf16 VMEM scratch holding concatenated head outputs
    """
    BB, T, C = x_ref.shape

    x2 = x_ref[...].reshape(BB * T, C)                     # (BB*T, C) bf16

    # Fused QKV projection: one wide matmul, f32 accumulate, bf16 for attention.
    qkv = jnp.dot(x2, wqkv_ref[...],
                  preferred_element_type=jnp.float32).astype(jnp.bfloat16)
    q = qkv[:, 0:HHS]                                      # 128-aligned lane slices
    k = qkv[:, HHS:2 * HHS]
    v = qkv[:, 2 * HHS:3 * HHS]

    # causal mask (tril): keep col <= row. Built once, reused for every (bb, head).
    row = jax.lax.broadcasted_iota(jnp.int32, (T, T), 0)
    col = jax.lax.broadcasted_iota(jnp.int32, (T, T), 1)
    causal = col <= row

    for bb in range(BB):                                   # static loops, traced once
        r0 = bb * T
        r1 = r0 + T
        for h in range(NUM_HEADS):
            lo = h * HEAD_SIZE
            hi = lo + HEAD_SIZE
            qh = q[r0:r1, lo:hi]                           # (T, hs) bf16 (pre-scaled)
            kh = k[r0:r1, lo:hi]
            vh = v[r0:r1, lo:hi]

            # scores: contract last dims (no explicit transpose through the XLU)
            s = jax.lax.dot_general(
                qh, kh, dimension_numbers=(((1,), (1,)), ((), ())),
                preferred_element_type=jnp.float32)        # (T, T) f32
            s = jnp.where(causal, s, -jnp.inf)
            s = s - jnp.max(s, axis=-1, keepdims=True)
            p = jnp.exp(s)
            p = p * pl.reciprocal(jnp.sum(p, axis=-1, keepdims=True), approx=True)

            head_out = jnp.dot(p.astype(jnp.bfloat16), vh,
                               preferred_element_type=jnp.float32)   # (T, hs) f32
            cat_ref[r0:r1, lo:hi] = head_out.astype(cat_ref.dtype)

    # output projection (with bias), f32 accumulator
    y = jnp.dot(cat_ref[...], wp_ref[...],
                preferred_element_type=jnp.float32) + bp_ref[...]     # (BB*T, C)

    # LayerNorm over last dim, weight only (bias=False), eps=1e-5.
    # one-pass variance: E[y^2] - mean^2
    mean = jnp.mean(y, axis=-1, keepdims=True)
    var = jnp.mean(y * y, axis=-1, keepdims=True) - mean * mean
    yn = (y - mean) * jax.lax.rsqrt(var + LN_EPS) * gamma_ref[...]

    o_ref[...] = yn.reshape(BB, T, C).astype(o_ref.dtype)


def _pick_bb(B, max_bb=4):
    """Largest batch-block <= max_bb that divides B while keeping >=2 grid steps."""
    for bb in range(min(max_bb, B), 0, -1):
        if B % bb == 0 and (B // bb >= 2 or bb == 1):
            return bb
    return 1


@jax.jit
def multi_head_attention(x, wq, wk, wv, wp_t, bp, gamma):
    B, T, C = x.shape
    BB = _pick_bb(B)

    # bf16 matmul inputs; fold the softmax scale into Wq and fuse QKV (done once on host).
    x_bf = x.astype(jnp.bfloat16)
    wqkv_bf = jnp.concatenate([wq * SCALE, wk, wv], axis=1).astype(jnp.bfloat16)
    wp_bf = wp_t.astype(jnp.bfloat16)
    bp_f = bp.astype(jnp.float32)
    gamma_f = gamma.astype(jnp.float32)

    return pl.pallas_call(
        mha_kernel,
        out_shape=jax.ShapeDtypeStruct((B, T, C), x.dtype),
        grid_spec=pltpu.PrefetchScalarGridSpec(
            num_scalar_prefetch=0,
            grid=(B // BB,),
            in_specs=[
                pl.BlockSpec((BB, T, C), lambda b: (b, 0, 0)),      # x (bf16)
                pl.BlockSpec((C, 3 * HHS), lambda b: (0, 0)),       # [Wq*scale|Wk|Wv]^T
                pl.BlockSpec((HHS, C), lambda b: (0, 0)),           # Wproj^T
                pl.BlockSpec((1, C), lambda b: (0, 0)),             # proj bias
                pl.BlockSpec((1, C), lambda b: (0, 0)),             # LN gamma
            ],
            out_specs=pl.BlockSpec((BB, T, C), lambda b: (b, 0, 0)),
            scratch_shapes=[pltpu.VMEM((BB * T, HHS), jnp.bfloat16)],
        ),
        compiler_params=pltpu.CompilerParams(
            dimension_semantics=("parallel",)),
    )(x_bf, wqkv_bf, wp_bf, bp_f, gamma_f)


def reference_mha(x, wq, wk, wv, wp_t, bp, gamma):
    """Pure-JAX f32 reference matching the PyTorch forward (eval mode)."""
    B, T, C = x.shape
    q = x @ wq
    k = x @ wk
    v = x @ wv
    outs = []
    mask = jnp.tril(jnp.ones((T, T), bool))
    for h in range(NUM_HEADS):
        lo, hi = h * HEAD_SIZE, (h + 1) * HEAD_SIZE
        s = (q[..., lo:hi] @ jnp.swapaxes(k[..., lo:hi], -2, -1)) * SCALE
        s = jnp.where(mask, s, -jnp.inf)
        p = jax.nn.softmax(s, axis=-1)
        outs.append(p @ v[..., lo:hi])
    cat = jnp.concatenate(outs, axis=-1)
    y = cat @ wp_t + bp
    mean = jnp.mean(y, axis=-1, keepdims=True)
    var = jnp.mean((y - mean) ** 2, axis=-1, keepdims=True)
    return (y - mean) * jax.lax.rsqrt(var + LN_EPS) * gamma


if __name__ == "__main__":
    key = jax.random.PRNGKey(0)
    B, T, C = 2, 128, N_EMBD

    kx, kq, kk, kv, kp, kb = jax.random.split(key, 6)
    x = jax.random.normal(kx, (B, T, C), jnp.float32)

    # deterministic small-uniform init, already transposed to (in, out)
    def init_w(k, shape, fan_in):
        bound = fan_in ** -0.5
        return jax.random.uniform(k, shape, jnp.float32, -bound, bound)

    wq = init_w(kq, (C, HHS), C)        # stacked per-head query weights (W^T)
    wk = init_w(kk, (C, HHS), C)
    wv = init_w(kv, (C, HHS), C)
    wp_t = init_w(kp, (HHS, C), HHS)    # proj weight, transposed
    bp = init_w(kb, (1, C), HHS)        # proj bias
    gamma = jnp.ones((1, C), jnp.float32)   # LayerNorm weight (bias=False)

    out = multi_head_attention(x, wq, wk, wv, wp_t, bp, gamma)
    out = jax.block_until_ready(out)

    ref = reference_mha(x, wq, wk, wv, wp_t, bp, gamma)
    # bf16 matmul inputs -> loosen tolerance vs. the fp32 reference
    err = jnp.max(jnp.abs(out - ref))
    assert jnp.allclose(out, ref, atol=3e-2, rtol=3e-2), f"mismatch vs reference, max abs err={err}"

    print("KERNEL_OK")
</pallas_src>

<mosaic_0001>
module attributes {stable_mosaic.version = 11 : i64} {
  func.func @mha_kernel(%arg0: i32, %arg1: memref<1x128x384xbf16, #tpu.memory_space<vmem>>, %arg2: memref<384x1152xbf16, #tpu.memory_space<vmem>>, %arg3: memref<384x384xbf16, #tpu.memory_space<vmem>>, %arg4: memref<1x384xf32, #tpu.memory_space<vmem>>, %arg5: memref<1x384xf32, #tpu.memory_space<vmem>>, %arg6: memref<1x128x384xf32, #tpu.memory_space<vmem>>, %arg7: memref<128x384xbf16, #tpu.memory_space<vmem>>) attributes {dimension_semantics = [#tpu.dimension_semantics<parallel>], iteration_bounds = array<i64: 2>, scalar_prefetch = 0 : i64, scratch_operands = 1 : i64, tpu.core_type = #tpu.core_type<tc>, window_params = [{transform_indices = @transform_0, window_bounds = array<i64: 1, 128, 384>}, {pipeline_mode = #tpu.pipeline_mode<synchronous>, transform_indices = @transform_1, window_bounds = array<i64: 384, 1152>}, {pipeline_mode = #tpu.pipeline_mode<synchronous>, transform_indices = @transform_2, window_bounds = array<i64: 384, 384>}, {pipeline_mode = #tpu.pipeline_mode<synchronous>, transform_indices = @transform_3, window_bounds = array<i64: 1, 384>}, {pipeline_mode = #tpu.pipeline_mode<synchronous>, transform_indices = @transform_4, window_bounds = array<i64: 1, 384>}, {transform_indices = @transform_5, window_bounds = array<i64: 1, 128, 384>}]} {
    %c0 = arith.constant 0 : index
    %c0_0 = arith.constant 0 : index
    %c0_1 = arith.constant 0 : index
    %0 = vector.load %arg1[%c0, %c0_0, %c0_1] : memref<1x128x384xbf16, #tpu.memory_space<vmem>>, vector<1x128x384xbf16>
    %1 = vector.shape_cast %0 : vector<1x128x384xbf16> to vector<128x384xbf16>
    %c0_2 = arith.constant 0 : index
    %c0_3 = arith.constant 0 : index
    %2 = vector.load %arg2[%c0_2, %c0_3] : memref<384x1152xbf16, #tpu.memory_space<vmem>>, vector<384x1152xbf16>
    %cst = arith.constant dense<0.000000e+00> : vector<128x1152xf32>
    %3 = tpu.matmul %1, %2, %cst {dimension_numbers = #tpu.dot_dimension_numbers<[1], [0], [0], [1], [0, 0, 1, 1], [], []>} : vector<128x384xbf16>, vector<384x1152xbf16>, vector<128x1152xf32> -> vector<128x1152xf32>
    %4 = arith.truncf %3 : vector<128x1152xf32> to vector<128x1152xbf16>
    %5 = vector.extract_strided_slice %4 {offsets = [0, 0], sizes = [128, 384], strides = [1, 1]} : vector<128x1152xbf16> to vector<128x384xbf16>
    %6 = vector.extract_strided_slice %4 {offsets = [0, 384], sizes = [128, 384], strides = [1, 1]} : vector<128x1152xbf16> to vector<128x384xbf16>
    %7 = vector.extract_strided_slice %4 {offsets = [0, 768], sizes = [128, 384], strides = [1, 1]} : vector<128x1152xbf16> to vector<128x384xbf16>
    %8 = tpu.iota {dimensions = array<i32: 0>} : vector<128x128xi32>
    %9 = tpu.iota {dimensions = array<i32: 1>} : vector<128x128xi32>
    %10 = arith.cmpi sle, %9, %8 : vector<128x128xi32>
    %11 = vector.extract_strided_slice %5 {offsets = [0, 0], sizes = [128, 64], strides = [1, 1]} : vector<128x384xbf16> to vector<128x64xbf16>
    %12 = vector.extract_strided_slice %6 {offsets = [0, 0], sizes = [128, 64], strides = [1, 1]} : vector<128x384xbf16> to vector<128x64xbf16>
    %13 = vector.extract_strided_slice %7 {offsets = [0, 0], sizes = [128, 64], strides = [1, 1]} : vector<128x384xbf16> to vector<128x64xbf16>
    %cst_4 = arith.constant dense<0.000000e+00> : vector<128x128xf32>
    %14 = tpu.matmul %11, %12, %cst_4 {dimension_numbers = #tpu.dot_dimension_numbers<[1], [1], [0], [0], [0, 0, 1, 0], [], []>} : vector<128x64xbf16>, vector<128x64xbf16>, vector<128x128xf32> -> vector<128x128xf32>
    %cst_5 = arith.constant 0xFF800000 : f32
    %15 = vector.broadcast %cst_5 : f32 to vector<128x128xf32>
    %16 = arith.select %10, %14, %15 : vector<128x128xi1>, vector<128x128xf32>
    %cst_6 = arith.constant dense<0xFF800000> : vector<128xf32>
    %17 = vector.multi_reduction <maximumf>, %16, %cst_6 [1] : vector<128x128xf32> to vector<128xf32>
    %18 = vector.shape_cast %17 : vector<128xf32> to vector<128x1xf32>
    %19 = vector.broadcast %18 : vector<128x1xf32> to vector<128x128xf32>
    %20 = arith.subf %16, %19 : vector<128x128xf32>
    %21 = math.exp %20 : vector<128x128xf32>
    %cst_7 = arith.constant dense<0.000000e+00> : vector<128xf32>
    %22 = vector.multi_reduction <add>, %21, %cst_7 [1] : vector<128x128xf32> to vector<128xf32>
    %23 = vector.shape_cast %22 : vector<128xf32> to vector<128x1xf32>
    %24 = tpu.reciprocal %23 {approx = true} : vector<128x1xf32> -> vector<128x1xf32>
    %25 = vector.broadcast %24 : vector<128x1xf32> to vector<128x128xf32>
    %26 = arith.mulf %21, %25 : vector<128x128xf32>
    %27 = arith.truncf %26 : vector<128x128xf32> to vector<128x128xbf16>
    %cst_8 = arith.constant dense<0.000000e+00> : vector<128x64xf32>
    %28 = tpu.matmul %27, %13, %cst_8 {dimension_numbers = #tpu.dot_dimension_numbers<[1], [0], [0], [1], [0, 0, 1, 1], [], []>} : vector<128x128xbf16>, vector<128x64xbf16>, vector<128x64xf32> -> vector<128x64xf32>
    %29 = arith.truncf %28 : vector<128x64xf32> to vector<128x64xbf16>
    %c0_9 = arith.constant 0 : index
    %c0_10 = arith.constant 0 : index
    %30 = vector.load %arg7[%c0_9, %c0_10] : memref<128x384xbf16, #tpu.memory_space<vmem>>, vector<128x64xbf16>
    tpu.vector_store %arg7[%c0_9, %c0_10], %29 {strides = array<i32>} : memref<128x384xbf16, #tpu.memory_space<vmem>>, vector<128x64xbf16>,
    %31 = vector.extract_strided_slice %5 {offsets = [0, 64], sizes = [128, 64], strides = [1, 1]} : vector<128x384xbf16> to vector<128x64xbf16>
    %32 = vector.extract_strided_slice %6 {offsets = [0, 64], sizes = [128, 64], strides = [1, 1]} : vector<128x384xbf16> to vector<128x64xbf16>
    %33 = vector.extract_strided_slice %7 {offsets = [0, 64], sizes = [128, 64], strides = [1, 1]} : vector<128x384xbf16> to vector<128x64xbf16>
    %cst_11 = arith.constant dense<0.000000e+00> : vector<128x128xf32>
    %34 = tpu.matmul %31, %32, %cst_11 {dimension_numbers = #tpu.dot_dimension_numbers<[1], [1], [0], [0], [0, 0, 1, 0], [], []>} : vector<128x64xbf16>, vector<128x64xbf16>, vector<128x128xf32> -> vector<128x128xf32>
    %cst_12 = arith.constant 0xFF800000 : f32
    %35 = vector.broadcast %cst_12 : f32 to vector<128x128xf32>
    %36 = arith.select %10, %34, %35 : vector<128x128xi1>, vector<128x128xf32>
    %cst_13 = arith.constant dense<0xFF800000> : vector<128xf32>
    %37 = vector.multi_reduction <maximumf>, %36, %cst_13 [1] : vector<128x128xf32> to vector<128xf32>
    %38 = vector.shape_cast %37 : vector<128xf32> to vector<128x1xf32>
    %39 = vector.broadcast %38 : vector<128x1xf32> to vector<128x128xf32>
    %40 = arith.subf %36, %39 : vector<128x128xf32>
    %41 = math.exp %40 : vector<128x128xf32>
    %cst_14 = arith.constant dense<0.000000e+00> : vector<128xf32>
    %42 = vector.multi_reduction <add>, %41, %cst_14 [1] : vector<128x128xf32> to vector<128xf32>
    %43 = vector.shape_cast %42 : vector<128xf32> to vector<128x1xf32>
    %44 = tpu.reciprocal %43 {approx = true} : vector<128x1xf32> -> vector<128x1xf32>
    %45 = vector.broadcast %44 : vector<128x1xf32> to vector<128x128xf32>
    %46 = arith.mulf %41, %45 : vector<128x128xf32>
    %47 = arith.truncf %46 : vector<128x128xf32> to vector<128x128xbf16>
    %cst_15 = arith.constant dense<0.000000e+00> : vector<128x64xf32>
    %48 = tpu.matmul %47, %33, %cst_15 {dimension_numbers = #tpu.dot_dimension_numbers<[1], [0], [0], [1], [0, 0, 1, 1], [], []>} : vector<128x128xbf16>, vector<128x64xbf16>, vector<128x64xf32> -> vector<128x64xf32>
    %49 = arith.truncf %48 : vector<128x64xf32> to vector<128x64xbf16>
    %c0_16 = arith.constant 0 : index
    %c64 = arith.constant 64 : index
    %50 = vector.load %arg7[%c0_16, %c64] : memref<128x384xbf16, #tpu.memory_space<vmem>>, vector<128x64xbf16>
    tpu.vector_store %arg7[%c0_16, %c64], %49 {strides = array<i32>} : memref<128x384xbf16, #tpu.memory_space<vmem>>, vector<128x64xbf16>,
    %51 = vector.extract_strided_slice %5 {offsets = [0, 128], sizes = [128, 64], strides = [1, 1]} : vector<128x384xbf16> to vector<128x64xbf16>
    %52 = vector.extract_strided_slice %6 {offsets = [0, 128], sizes = [128, 64], strides = [1, 1]} : vector<128x384xbf16> to vector<128x64xbf16>
    %53 = vector.extract_strided_slice %7 {offsets = [0, 128], sizes = [128, 64], strides = [1, 1]} : vector<128x384xbf16> to vector<128x64xbf16>
    %cst_17 = arith.constant dense<0.000000e+00> : vector<128x128xf32>
    %54 = tpu.matmul %51, %52, %cst_17 {dimension_numbers = #tpu.dot_dimension_numbers<[1], [1], [0], [0], [0, 0, 1, 0], [], []>} : vector<128x64xbf16>, vector<128x64xbf16>, vector<128x128xf32> -> vector<128x128xf32>
    %cst_18 = arith.constant 0xFF800000 : f32
    %55 = vector.broadcast %cst_18 : f32 to vector<128x128xf32>
    %56 = arith.select %10, %54, %55 : vector<128x128xi1>, vector<128x128xf32>
    %cst_19 = arith.constant dense<0xFF800000> : vector<128xf32>
    %57 = vector.multi_reduction <maximumf>, %56, %cst_19 [1] : vector<128x128xf32> to vector<128xf32>
    %58 = vector.shape_cast %57 : vector<128xf32> to vector<128x1xf32>
    %59 = vector.broadcast %58 : vector<128x1xf32> to vector<128x128xf32>
    %60 = arith.subf %56, %59 : vector<128x128xf32>
    %61 = math.exp %60 : vector<128x128xf32>
    %cst_20 = arith.constant dense<0.000000e+00> : vector<128xf32>
    %62 = vector.multi_reduction <add>, %61, %cst_20 [1] : vector<128x128xf32> to vector<128xf32>
    %63 = vector.shape_cast %62 : vector<128xf32> to vector<128x1xf32>
    %64 = tpu.reciprocal %63 {approx = true} : vector<128x1xf32> -> vector<128x1xf32>
    %65 = vector.broadcast %64 : vector<128x1xf32> to vector<128x128xf32>
    %66 = arith.mulf %61, %65 : vector<128x128xf32>
    %67 = arith.truncf %66 : vector<128x128xf32> to vector<128x128xbf16>
    %cst_21 = arith.constant dense<0.000000e+00> : vector<128x64xf32>
    %68 = tpu.matmul %67, %53, %cst_21 {dimension_numbers = #tpu.dot_dimension_numbers<[1], [0], [0], [1], [0, 0, 1, 1], [], []>} : vector<128x128xbf16>, vector<128x64xbf16>, vector<128x64xf32> -> vector<128x64xf32>
    %69 = arith.truncf %68 : vector<128x64xf32> to vector<128x64xbf16>
    %c0_22 = arith.constant 0 : index
    %c128 = arith.constant 128 : index
    %70 = vector.load %arg7[%c0_22, %c128] : memref<128x384xbf16, #tpu.memory_space<vmem>>, vector<128x64xbf16>
    tpu.vector_store %arg7[%c0_22, %c128], %69 {strides = array<i32>} : memref<128x384xbf16, #tpu.memory_space<vmem>>, vector<128x64xbf16>,
    %71 = vector.extract_strided_slice %5 {offsets = [0, 192], sizes = [128, 64], strides = [1, 1]} : vector<128x384xbf16> to vector<128x64xbf16>
    %72 = vector.extract_strided_slice %6 {offsets = [0, 192], sizes = [128, 64], strides = [1, 1]} : vector<128x384xbf16> to vector<128x64xbf16>
    %73 = vector.extract_strided_slice %7 {offsets = [0, 192], sizes = [128, 64], strides = [1, 1]} : vector<128x384xbf16> to vector<128x64xbf16>
    %cst_23 = arith.constant dense<0.000000e+00> : vector<128x128xf32>
    %74 = tpu.matmul %71, %72, %cst_23 {dimension_numbers = #tpu.dot_dimension_numbers<[1], [1], [0], [0], [0, 0, 1, 0], [], []>} : vector<128x64xbf16>, vector<128x64xbf16>, vector<128x128xf32> -> vector<128x128xf32>
    %cst_24 = arith.constant 0xFF800000 : f32
    %75 = vector.broadcast %cst_24 : f32 to vector<128x128xf32>
    %76 = arith.select %10, %74, %75 : vector<128x128xi1>, vector<128x128xf32>
    %cst_25 = arith.constant dense<0xFF800000> : vector<128xf32>
    %77 = vector.multi_reduction <maximumf>, %76, %cst_25 [1] : vector<128x128xf32> to vector<128xf32>
    %78 = vector.shape_cast %77 : vector<128xf32> to vector<128x1xf32>
    %79 = vector.broadcast %78 : vector<128x1xf32> to vector<128x128xf32>
    %80 = arith.subf %76, %79 : vector<128x128xf32>
    %81 = math.exp %80 : vector<128x128xf32>
    %cst_26 = arith.constant dense<0.000000e+00> : vector<128xf32>
    %82 = vector.multi_reduction <add>, %81, %cst_26 [1] : vector<128x128xf32> to vector<128xf32>
    %83 = vector.shape_cast %82 : vector<128xf32> to vector<128x1xf32>
    %84 = tpu.reciprocal %83 {approx = true} : vector<128x1xf32> -> vector<128x1xf32>
    %85 = vector.broadcast %84 : vector<128x1xf32> to vector<128x128xf32>
    %86 = arith.mulf %81, %85 : vector<128x128xf32>
    %87 = arith.truncf %86 : vector<128x128xf32> to vector<128x128xbf16>
    %cst_27 = arith.constant dense<0.000000e+00> : vector<128x64xf32>
    %88 = tpu.matmul %87, %73, %cst_27 {dimension_numbers = #tpu.dot_dimension_numbers<[1], [0], [0], [1], [0, 0, 1, 1], [], []>} : vector<128x128xbf16>, vector<128x64xbf16>, vector<128x64xf32> -> vector<128x64xf32>
    %89 = arith.truncf %88 : vector<128x64xf32> to vector<128x64xbf16>
    %c0_28 = arith.constant 0 : index
    %c192 = arith.constant 192 : index
    %90 = vector.load %arg7[%c0_28, %c192] : memref<128x384xbf16, #tpu.memory_space<vmem>>, vector<128x64xbf16>
    tpu.vector_store %arg7[%c0_28, %c192], %89 {strides = array<i32>} : memref<128x384xbf16, #tpu.memory_space<vmem>>, vector<128x64xbf16>,
    %91 = vector.extract_strided_slice %5 {offsets = [0, 256], sizes = [128, 64], strides = [1, 1]} : vector<128x384xbf16> to vector<128x64xbf16>
    %92 = vector.extract_strided_slice %6 {offsets = [0, 256], sizes = [128, 64], strides = [1, 1]} : vector<128x384xbf16> to vector<128x64xbf16>
    %93 = vector.extract_strided_slice %7 {offsets = [0, 256], sizes = [128, 64], strides = [1, 1]} : vector<128x384xbf16> to vector<128x64xbf16>
    %cst_29 = arith.constant dense<0.000000e+00> : vector<128x128xf32>
    %94 = tpu.matmul %91, %92, %cst_29 {dimension_numbers = #tpu.dot_dimension_numbers<[1], [1], [0], [0], [0, 0, 1, 0], [], []>} : vector<128x64xbf16>, vector<128x64xbf16>, vector<128x128xf32> -> vector<128x128xf32>
    %cst_30 = arith.constant 0xFF800000 : f32
    %95 = vector.broadcast %cst_30 : f32 to vector<128x128xf32>
    %96 = arith.select %10, %94, %95 : vector<128x128xi1>, vector<128x128xf32>
    %cst_31 = arith.constant dense<0xFF800000> : vector<128xf32>
    %97 = vector.multi_reduction <maximumf>, %96, %cst_31 [1] : vector<128x128xf32> to vector<128xf32>
    %98 = vector.shape_cast %97 : vector<128xf32> to vector<128x1xf32>
    %99 = vector.broadcast %98 : vector<128x1xf32> to vector<128x128xf32>
    %100 = arith.subf %96, %99 : vector<128x128xf32>
    %101 = math.exp %100 : vector<128x128xf32>
    %cst_32 = arith.constant dense<0.000000e+00> : vector<128xf32>
    %102 = vector.multi_reduction <add>, %101, %cst_32 [1] : vector<128x128xf32> to vector<128xf32>
    %103 = vector.shape_cast %102 : vector<128xf32> to vector<128x1xf32>
    %104 = tpu.reciprocal %103 {approx = true} : vector<128x1xf32> -> vector<128x1xf32>
    %105 = vector.broadcast %104 : vector<128x1xf32> to vector<128x128xf32>
    %106 = arith.mulf %101, %105 : vector<128x128xf32>
    %107 = arith.truncf %106 : vector<128x128xf32> to vector<128x128xbf16>
    %cst_33 = arith.constant dense<0.000000e+00> : vector<128x64xf32>
    %108 = tpu.matmul %107, %93, %cst_33 {dimension_numbers = #tpu.dot_dimension_numbers<[1], [0], [0], [1], [0, 0, 1, 1], [], []>} : vector<128x128xbf16>, vector<128x64xbf16>, vector<128x64xf32> -> vector<128x64xf32>
    %109 = arith.truncf %108 : vector<128x64xf32> to vector<128x64xbf16>
    %c0_34 = arith.constant 0 : index
    %c256 = arith.constant 256 : index
    %110 = vector.load %arg7[%c0_34, %c256] : memref<128x384xbf16, #tpu.memory_space<vmem>>, vector<128x64xbf16>
    tpu.vector_store %arg7[%c0_34, %c256], %109 {strides = array<i32>} : memref<128x384xbf16, #tpu.memory_space<vmem>>, vector<128x64xbf16>,
    %111 = vector.extract_strided_slice %5 {offsets = [0, 320], sizes = [128, 64], strides = [1, 1]} : vector<128x384xbf16> to vector<128x64xbf16>
    %112 = vector.extract_strided_slice %6 {offsets = [0, 320], sizes = [128, 64], strides = [1, 1]} : vector<128x384xbf16> to vector<128x64xbf16>
    %113 = vector.extract_strided_slice %7 {offsets = [0, 320], sizes = [128, 64], strides = [1, 1]} : vector<128x384xbf16> to vector<128x64xbf16>
    %cst_35 = arith.constant dense<0.000000e+00> : vector<128x128xf32>
    %114 = tpu.matmul %111, %112, %cst_35 {dimension_numbers = #tpu.dot_dimension_numbers<[1], [1], [0], [0], [0, 0, 1, 0], [], []>} : vector<128x64xbf16>, vector<128x64xbf16>, vector<128x128xf32> -> vector<128x128xf32>
    %cst_36 = arith.constant 0xFF800000 : f32
    %115 = vector.broadcast %cst_36 : f32 to vector<128x128xf32>
    %116 = arith.select %10, %114, %115 : vector<128x128xi1>, vector<128x128xf32>
    %cst_37 = arith.constant dense<0xFF800000> : vector<128xf32>
    %117 = vector.multi_reduction <maximumf>, %116, %cst_37 [1] : vector<128x128xf32> to vector<128xf32>
    %118 = vector.shape_cast %117 : vector<128xf32> to vector<128x1xf32>
    %119 = vector.broadcast %118 : vector<128x1xf32> to vector<128x128xf32>
    %120 = arith.subf %116, %119 : vector<128x128xf32>
    %121 = math.exp %120 : vector<128x128xf32>
    %cst_38 = arith.constant dense<0.000000e+00> : vector<128xf32>
    %122 = vector.multi_reduction <add>, %121, %cst_38 [1] : vector<128x128xf32> to vector<128xf32>
    %123 = vector.shape_cast %122 : vector<128xf32> to vector<128x1xf32>
    %124 = tpu.reciprocal %123 {approx = true} : vector<128x1xf32> -> vector<128x1xf32>
    %125 = vector.broadcast %124 : vector<128x1xf32> to vector<128x128xf32>
    %126 = arith.mulf %121, %125 : vector<128x128xf32>
    %127 = arith.truncf %126 : vector<128x128xf32> to vector<128x128xbf16>
    %cst_39 = arith.constant dense<0.000000e+00> : vector<128x64xf32>
    %128 = tpu.matmul %127, %113, %cst_39 {dimension_numbers = #tpu.dot_dimension_numbers<[1], [0], [0], [1], [0, 0, 1, 1], [], []>} : vector<128x128xbf16>, vector<128x64xbf16>, vector<128x64xf32> -> vector<128x64xf32>
    %129 = arith.truncf %128 : vector<128x64xf32> to vector<128x64xbf16>
    %c0_40 = arith.constant 0 : index
    %c320 = arith.constant 320 : index
    %130 = vector.load %arg7[%c0_40, %c320] : memref<128x384xbf16, #tpu.memory_space<vmem>>, vector<128x64xbf16>
    tpu.vector_store %arg7[%c0_40, %c320], %129 {strides = array<i32>} : memref<128x384xbf16, #tpu.memory_space<vmem>>, vector<128x64xbf16>,
    %c0_41 = arith.constant 0 : index
    %c0_42 = arith.constant 0 : index
    %131 = vector.load %arg7[%c0_41, %c0_42] : memref<128x384xbf16, #tpu.memory_space<vmem>>, vector<128x384xbf16>
    %c0_43 = arith.constant 0 : index
    %c0_44 = arith.constant 0 : index
    %132 = vector.load %arg3[%c0_43, %c0_44] : memref<384x384xbf16, #tpu.memory_space<vmem>>, vector<384x384xbf16>
    %cst_45 = arith.constant dense<0.000000e+00> : vector<128x384xf32>
    %133 = tpu.matmul %131, %132, %cst_45 {dimension_numbers = #tpu.dot_dimension_numbers<[1], [0], [0], [1], [0, 0, 1, 1], [], []>} : vector<128x384xbf16>, vector<384x384xbf16>, vector<128x384xf32> -> vector<128x384xf32>
    %c0_46 = arith.constant 0 : index
    %c0_47 = arith.constant 0 : index
    %134 = vector.load %arg4[%c0_46, %c0_47] : memref<1x384xf32, #tpu.memory_space<vmem>>, vector<1x384xf32>
    %135 = vector.broadcast %134 : vector<1x384xf32> to vector<128x384xf32>
    %136 = arith.addf %133, %135 : vector<128x384xf32>
    %cst_48 = arith.constant dense<0.000000e+00> : vector<128xf32>
    %137 = vector.multi_reduction <add>, %136, %cst_48 [1] : vector<128x384xf32> to vector<128xf32>
    %138 = vector.shape_cast %137 : vector<128xf32> to vector<128x1xf32>
    %cst_49 = arith.constant 3.840000e+02 : f32
    %139 = vector.broadcast %cst_49 : f32 to vector<128x1xf32>
    %140 = arith.divf %138, %139 : vector<128x1xf32>
    %141 = arith.mulf %136, %136 : vector<128x384xf32>
    %cst_50 = arith.constant dense<0.000000e+00> : vector<128xf32>
    %142 = vector.multi_reduction <add>, %141, %cst_50 [1] : vector<128x384xf32> to vector<128xf32>
    %143 = vector.shape_cast %142 : vector<128xf32> to vector<128x1xf32>
    %cst_51 = arith.constant 3.840000e+02 : f32
    %144 = vector.broadcast %cst_51 : f32 to vector<128x1xf32>
    %145 = arith.divf %143, %144 : vector<128x1xf32>
    %146 = arith.mulf %140, %140 : vector<128x1xf32>
    %147 = arith.subf %145, %146 : vector<128x1xf32>
    %148 = vector.broadcast %140 : vector<128x1xf32> to vector<128x384xf32>
    %149 = arith.subf %136, %148 : vector<128x384xf32>
    %cst_52 = arith.constant 9.99999974E-6 : f32
    %150 = vector.broadcast %cst_52 : f32 to vector<128x1xf32>
    %151 = arith.addf %147, %150 : vector<128x1xf32>
    %152 = math.rsqrt %151 : vector<128x1xf32>
    %153 = vector.broadcast %152 : vector<128x1xf32> to vector<128x384xf32>
    %154 = arith.mulf %149, %153 : vector<128x384xf32>
    %c0_53 = arith.constant 0 : index
    %c0_54 = arith.constant 0 : index
    %155 = vector.load %arg5[%c0_53, %c0_54] : memref<1x384xf32, #tpu.memory_space<vmem>>, vector<1x384xf32>
    %156 = vector.broadcast %155 : vector<1x384xf32> to vector<128x384xf32>
    %157 = arith.mulf %154, %156 : vector<128x384xf32>
    %158 = vector.shape_cast %157 : vector<128x384xf32> to vector<1x128x384xf32>
    %c0_55 = arith.constant 0 : index
    %c0_56 = arith.constant 0 : index
    %c0_57 = arith.constant 0 : index
    %159 = vector.load %arg6[%c0_55, %c0_56, %c0_57] : memref<1x128x384xf32, #tpu.memory_space<vmem>>, vector<1x128x384xf32>
    tpu.vector_store %arg6[%c0_55, %c0_56, %c0_57], %158 {strides = array<i32>} : memref<1x128x384xf32, #tpu.memory_space<vmem>>, vector<1x128x384xf32>,
    return
  }
  func.func @transform_0(%arg0: i32) -> (i32, i32, i32) {
    %c0_i32 = arith.constant 0 : i32
    %c0_i32_0 = arith.constant 0 : i32
    %c0_i32_1 = arith.constant 0 : i32
    return %arg0, %c0_i32, %c0_i32_0 : i32, i32, i32
  }
  func.func @transform_1(%arg0: i32) -> (i32, i32) {
    %c0_i32 = arith.constant 0 : i32
    %c0_i32_0 = arith.constant 0 : i32
    %c0_i32_1 = arith.constant 0 : i32
    return %c0_i32, %c0_i32_0 : i32, i32
  }
  func.func @transform_2(%arg0: i32) -> (i32, i32) {
    %c0_i32 = arith.constant 0 : i32
    %c0_i32_0 = arith.constant 0 : i32
    %c0_i32_1 = arith.constant 0 : i32
    return %c0_i32, %c0_i32_0 : i32, i32
  }
  func.func @transform_3(%arg0: i32) -> (i32, i32) {
    %c0_i32 = arith.constant 0 : i32
    %c0_i32_0 = arith.constant 0 : i32
    %c0_i32_1 = arith.constant 0 : i32
    return %c0_i32, %c0_i32_0 : i32, i32
  }
  func.func @transform_4(%arg0: i32) -> (i32, i32) {
    %c0_i32 = arith.constant 0 : i32
    %c0_i32_0 = arith.constant 0 : i32
    %c0_i32_1 = arith.constant 0 : i32
    return %c0_i32, %c0_i32_0 : i32, i32
  }
  func.func @transform_5(%arg0: i32) -> (i32, i32, i32) {
    %c0_i32 = arith.constant 0 : i32
    %c0_i32_0 = arith.constant 0 : i32
    %c0_i32_1 = arith.constant 0 : i32
    return %arg0, %c0_i32, %c0_i32_0 : i32, i32, i32
  }
}

</mosaic_0001>

<llo_original>
// kernel: multi_head_attention.1
$region0: #{multi_head_attention.1}
  #allocation0 [shape = 'u32[]', space=smem, size = 0x4, offset = 0x4, fixed_abs, tag = 'smem constant byte address 0x4 - core index']
  #allocation1 [shape = 'u32[144,128]{1,0:T(1,128)}', space=vmem, size = 0x12000, scoped, tag = 'internal scratch']
  #allocation2 [shape = 'bf16[128,384]{1,0:T(16,128)(2,1)}', space=vmem, size = 0x18000, scoped, tag = 'scratch operand']
  %s0 = inlined_call_operand.vmem [shape: bf16[2,128,384], index: 0, kind: input, shape index: {}]
  %s1 = inlined_call_operand.vmem [shape: bf16[384,1152], index: 1, kind: input, shape index: {}]
  %s2 = inlined_call_operand.vmem [shape: bf16[384,384], index: 2, kind: input, shape index: {}]
  %s3 = inlined_call_operand.vmem [shape: f32[1,384], index: 3, kind: input, shape index: {}]
  %s4 = inlined_call_operand.vmem [shape: f32[1,384], index: 4, kind: input, shape index: {}]
  %s5 = inlined_call_operand.hbm [shape: f32[2,128,384], index: 5, kind: output, shape index: {}]
  %s6 = sld [smem:[#allocation0]]
  $region53: #{multi_head_attention.1} parent=0
    _
  %s8 = ssub.s32 1, %s6
  %s9 = scalar_select 0, %s8, %s6
  $region1: #{multi_head_attention.1} parent=0
    #allocation3 [shape = 'u8[393216]{0}', space=vmem, size = 0x60000, scoped, tag = 'output window, operand 0']
    #allocation4 [shape = 's32[2]{0}', space=sflag, size = 0x8, scoped, tag = 'scoped memory for multi_head_attention.1']
    %10 = vsyncpa [#allocation4], 0
    %s11 = scalar_lea.sflag [#allocation4], 1
    %12 = vsyncpa %s11, 0
    loop: start=0, step=1, limit=4
    $region2: #{multi_head_attention.1} parent=1 // loop_pre_header
      _
    $region3: #{multi_head_attention.1} parent=1 // loop_header
      %s14 = sphi 0, %s18
      %p15 = scmp.ge.s32.totalorder %s14, 4
      %s24 = sphi 0, %s26
      %s27 = sphi 0, %s24
      %s28 = sphi 0, %s27
      %s44 = sphi 0, %s28
      %s48 = sphi 0, %s48
      %s50 = sphi 0, %s48
      %s51 = sphi 0, %s50
      %s65 = sphi 0, %s51
      %s69 = sphi 0, %s69
      %s71 = sphi 0, %s69
      %s72 = sphi 0, %s71
      %s86 = sphi 0, %s72
      %s90 = sphi 0, %s90
      %s92 = sphi 0, %s90
      %s93 = sphi 0, %s92
      %s107 = sphi 0, %s93
      %s111 = sphi 0, %s111
      %s113 = sphi 0, %s111
      %s114 = sphi 0, %s113
      %s128 = sphi 0, %s114
      %s134 = sphi 0, %s136
      %s137 = sphi 0, %s134
      %s138 = sphi 0, %s137
      %s154 = sphi 0, %s138
    $region4: #{multi_head_attention.1} parent=1 // loop_header_branch
      %17 = sbr.rel (%p15) target = $region8
    $region5: #{multi_head_attention.1} parent=1 // loop_body
      %s19 = ssub.s32 %s14, 1
      %s20 = ssub.s32 %s14, 2
      %s21 = sadd.s32 %s14, 1
      %s22 = ssub.s32 %s14, %s21
      %p23 = scmp.eq.s32.totalorder %s22, 0
      %s25 = sadd.s32 %s24, 1
      %s26 = scalar_select %p23, %s24, %s25
      %p29 = pneg %p23
      %p30 = scmp.eq.s32.totalorder %s14, 1
      %p31 = por %p29, %p30
      %p32 = scmp.ne.s32.totalorder %s24, %s27
      %p33 = scmp.eq.s32.totalorder %s14, 0
      %p34 = por %p32, %p33
      %p35 = scmp.ne.s32.totalorder %s24, %s27
      %p36 = scmp.eq.s32.totalorder %s19, 1
      %p37 = por %p35, %p36
      %p38 = scmp.ne.s32.totalorder %s27, %s28
      %p39 = scmp.eq.s32.totalorder %s19, 0
      %p40 = por %p38, %p39
      %p41 = scmp.ne.s32.totalorder %s27, %s28
      %p42 = scmp.eq.s32.totalorder %s20, 1
      %p43 = por %p41, %p42
      %p45 = scmp.ne.s32.totalorder %s28, %s44
      %p46 = scmp.eq.s32.totalorder %s20, 0
      %p47 = por %p45, %p46
      %s49 = sadd.s32 %s48, 1
      %p52 = scmp.eq.s32.totalorder %s14, 1
      %p53 = scmp.ne.s32.totalorder %s48, %s50
      %p54 = scmp.eq.s32.totalorder %s14, 0
      %p55 = por %p53, %p54
      %p56 = scmp.ne.s32.totalorder %s48, %s50
      %p57 = scmp.eq.s32.totalorder %s19, 1
      %p58 = por %p56, %p57
      %p59 = scmp.ne.s32.totalorder %s50, %s51
      %p60 = scmp.eq.s32.totalorder %s19, 0
      %p61 = por %p59, %p60
      %p62 = scmp.ne.s32.totalorder %s50, %s51
      %p63 = scmp.eq.s32.totalorder %s20, 1
      %p64 = por %p62, %p63
      %p66 = scmp.ne.s32.totalorder %s51, %s65
      %p67 = scmp.eq.s32.totalorder %s20, 0
      %p68 = por %p66, %p67
      %s70 = sadd.s32 %s69, 1
      %p73 = scmp.eq.s32.totalorder %s14, 1
      %p74 = scmp.ne.s32.totalorder %s69, %s71
      %p75 = scmp.eq.s32.totalorder %s14, 0
      %p76 = por %p74, %p75
      %p77 = scmp.ne.s32.totalorder %s69, %s71
      %p78 = scmp.eq.s32.totalorder %s19, 1
      %p79 = por %p77, %p78
      %p80 = scmp.ne.s32.totalorder %s71, %s72
      %p81 = scmp.eq.s32.totalorder %s19, 0
      %p82 = por %p80, %p81
      %p83 = scmp.ne.s32.totalorder %s71, %s72
      %p84 = scmp.eq.s32.totalorder %s20, 1
      %p85 = por %p83, %p84
      %p87 = scmp.ne.s32.totalorder %s72, %s86
      %p88 = scmp.eq.s32.totalorder %s20, 0
      %p89 = por %p87, %p88
      %s91 = sadd.s32 %s90, 1
      %p94 = scmp.eq.s32.totalorder %s14, 1
      %p95 = scmp.ne.s32.totalorder %s90, %s92
      %p96 = scmp.eq.s32.totalorder %s14, 0
      %p97 = por %p95, %p96
      %p98 = scmp.ne.s32.totalorder %s90, %s92
      %p99 = scmp.eq.s32.totalorder %s19, 1
      %p100 = por %p98, %p99
      %p101 = scmp.ne.s32.totalorder %s92, %s93
      %p102 = scmp.eq.s32.totalorder %s19, 0
      %p103 = por %p101, %p102
      %p104 = scmp.ne.s32.totalorder %s92, %s93
      %p105 = scmp.eq.s32.totalorder %s20, 1
      %p106 = por %p104, %p105
      %p108 = scmp.ne.s32.totalorder %s93, %s107
      %p109 = scmp.eq.s32.totalorder %s20, 0
      %p110 = por %p108, %p109
      %s112 = sadd.s32 %s111, 1
      %p115 = scmp.eq.s32.totalorder %s14, 1
      %p116 = scmp.ne.s32.totalorder %s111, %s113
      %p117 = scmp.eq.s32.totalorder %s14, 0
      %p118 = por %p116, %p117
      %p119 = scmp.ne.s32.totalorder %s111, %s113
      %p120 = scmp.eq.s32.totalorder %s19, 1
      %p121 = por %p119, %p120
      %p122 = scmp.ne.s32.totalorder %s113, %s114
      %p123 = scmp.eq.s32.totalorder %s19, 0
      %p124 = por %p122, %p123
      %p125 = scmp.ne.s32.totalorder %s113, %s114
      %p126 = scmp.eq.s32.totalorder %s20, 1
      %p127 = por %p125, %p126
      %p129 = scmp.ne.s32.totalorder %s114, %s128
      %p130 = scmp.eq.s32.totalorder %s20, 0
      %p131 = por %p129, %p130
      %s132 = ssub.s32 %s14, %s21
      %p133 = scmp.eq.s32.totalorder %s132, 0
      %s135 = sadd.s32 %s134, 1
      %s136 = scalar_select %p133, %s134, %s135
      %p139 = pneg %p133
      %p140 = scmp.eq.s32.totalorder %s14, 1
      %p141 = por %p139, %p140
      %p142 = scmp.ne.s32.totalorder %s134, %s137
      %p143 = scmp.eq.s32.totalorder %s14, 0
      %p144 = por %p142, %p143
      %p145 = scmp.ne.s32.totalorder %s134, %s137
      %p146 = scmp.eq.s32.totalorder %s19, 1
      %p147 = por %p145, %p146
      %p148 = scmp.ne.s32.totalorder %s137, %s138
      %p149 = scmp.eq.s32.totalorder %s19, 0
      %p150 = por %p148, %p149
      %p151 = scmp.ne.s32.totalorder %s137, %s138
      %p152 = scmp.eq.s32.totalorder %s20, 1
      %p153 = por %p151, %p152
      %p155 = scmp.ne.s32.totalorder %s138, %s154
      %p156 = scmp.eq.s32.totalorder %s20, 0
      %p157 = por %p155, %p156
      %p158 = scmp.le.s32.totalorder 1, %s14
      %p159 = scmp.lt.s32.totalorder %s14, 3
      %p160 = pnand %p158, %p159
      %p161 = pneg %p160
      // Predicated region
      $region9: #{multi_head_attention.1} parent=5 // pred_check
        _
      $region10: #{multi_head_attention.1} parent=5 // pred_check_branch
        %163 = sbr.rel (%p160) target = $region12
      $region11: #{multi_head_attention.1} parent=5 // pred_region
        %s164 = ssub.s32 %s14, 1
        // Predicated region
        $region13: #{multi_head_attention.1} parent=11 // pred_check
          %p165 = pneg %p61
        $region14: #{multi_head_attention.1} parent=11 // pred_check_branch
          %167 = sbr.rel (%p165) target = $region16
        $region15: #{multi_head_attention.1} parent=11 // pred_region
          _
        $region16: #{multi_head_attention.1} parent=11 // pred_fallthru
          _
        // Predicated region
        $region17: #{multi_head_attention.1} parent=11 // pred_check
          %p168 = pneg %p82
        $region18: #{multi_head_attention.1} parent=11 // pred_check_branch
          %170 = sbr.rel (%p168) target = $region20
        $region19: #{multi_head_attention.1} parent=11 // pred_region
          _
        $region20: #{multi_head_attention.1} parent=11 // pred_fallthru
          _
        // Predicated region
        $region21: #{multi_head_attention.1} parent=11 // pred_check
          %p171 = pneg %p103
        $region22: #{multi_head_attention.1} parent=11 // pred_check_branch
          %173 = sbr.rel (%p171) target = $region24
        $region23: #{multi_head_attention.1} parent=11 // pred_region
          _
        $region24: #{multi_head_attention.1} parent=11 // pred_fallthru
          _
        // Predicated region
        $region25: #{multi_head_attention.1} parent=11 // pred_check
          %p174 = pneg %p124
        $region26: #{multi_head_attention.1} parent=11 // pred_check_branch
          %176 = sbr.rel (%p174) target = $region28
        $region27: #{multi_head_attention.1} parent=11 // pred_region
          _
        $region28: #{multi_head_attention.1} parent=11 // pred_fallthru
          _
      $region12: #{multi_head_attention.1} parent=5 // pred_fallthru
        _
      %p177 = scmp.lt.s32.totalorder %s14, 2
      // Predicated region
      $region29: #{multi_head_attention.1} parent=5 // pred_check
        %p178 = pneg %p177
      $region30: #{multi_head_attention.1} parent=5 // pred_check_branch
        %180 = sbr.rel (%p178) target = $region32
      $region31: #{multi_head_attention.1} parent=5 // pred_region
        // Predicated region
        $region33: #{multi_head_attention.1} parent=31 // pred_check
          %p181 = pneg %p34
        $region34: #{multi_head_attention.1} parent=31 // pred_check_branch
          %183 = sbr.rel (%p181) target = $region36
        $region35: #{multi_head_attention.1} parent=31 // pred_region
          %p184 = scmp.lt.s32.totalorder %s14, 1
          %s185 = scalar_select %p184, %s14, 1
          %s186 = smul.addr %s185, 48
          %s187 = smul.addr %s186, 4
          %s188 = scalar_lea.vmem %s0, %s187
        $region36: #{multi_head_attention.1} parent=31 // pred_fallthru
          _
      $region32: #{multi_head_attention.1} parent=5 // pred_fallthru
        _
      %p189 = scmp.le.s32.totalorder 1, %s14
      %p190 = scmp.lt.s32.totalorder %s14, 3
      %p191 = pnand %p189, %p190
      %p192 = pneg %p191
      // Predicated region
      $region37: #{multi_head_attention.1} parent=5 // pred_check
        _
      $region38: #{multi_head_attention.1} parent=5 // pred_check_branch
        %194 = sbr.rel (%p191) target = $region40
      $region39: #{multi_head_attention.1} parent=5 // pred_region
        %s195 = ssub.s32 %s14, 1
        %p196 = scmp.lt.s32.totalorder %s19, 1
        %s197 = scalar_select %p196, %s19, 1
        %s198 = smul.addr %s197, 48
        %s199 = smul.addr %s198, 4
        %s200 = scalar_lea.vmem %s0, %s199
        %p201 = pneg %p40
        %p202 = pneg %p37
        %p203 = pneg %p61
        %p204 = pneg %p58
        %p205 = pneg %p82
        %p206 = pneg %p79
        %p207 = pneg %p103
        %p208 = pneg %p100
        %p209 = pneg %p124
        %p210 = pneg %p121
        %p211 = pneg %p150
        %p212 = pneg %p147
        %s213 = sand.u32 %s137, 1
        %s214 = scalar_lea.sflag [#allocation4], %s213
        %s215 = sand.u32 %s137, 1
        %s216 = smul.addr %s215, 384
        %s217 = scalar_lea.vmem [#allocation3], %s216
        %p218 = scmp.lt.s32.totalorder %s19, 1
        %s219 = scalar_select %p218, %s19, 1
        %s220 = smul.addr %s219, 48
        %s221 = smul.addr %s220, 4
        %s222 = scalar_lea.vmem %s0, %s221
        %v224 = vld [vmem:[%s222] sm:$0xff]
        %v225 = vld [vmem:[%s222 + $0x8] sm:$0xf]
        %v226 = vld [vmem:[%s222 + $0xc] sm:$0xff]
        %v227 = vld [vmem:[%s222 + $0x14] sm:$0xf]
        %v228 = vld [vmem:[%s222 + $0x18] sm:$0xff]
        %v229 = vld [vmem:[%s222 + $0x20] sm:$0xf]
        %v230 = vld [vmem:[%s222 + $0x24] sm:$0xff]
        %v231 = vld [vmem:[%s222 + $0x2c] sm:$0xf]
        %v232 = vld [vmem:[%s222 + $0x30] sm:$0xff]
        %v233 = vld [vmem:[%s222 + $0x38] sm:$0xf]
        %v234 = vld [vmem:[%s222 + $0x3c] sm:$0xff]
        %v235 = vld [vmem:[%s222 + $0x44] sm:$0xf]
        %v236 = vld [vmem:[%s222 + $0x48] sm:$0xff]
        %v237 = vld [vmem:[%s222 + $0x50] sm:$0xf]
        %v238 = vld [vmem:[%s222 + $0x54] sm:$0xff]
        %v239 = vld [vmem:[%s222 + $0x5c] sm:$0xf]
        %v240 = vld [vmem:[%s222 + $0x60] sm:$0xff]
        %v241 = vld [vmem:[%s222 + $0x68] sm:$0xf]
        %v242 = vld [vmem:[%s222 + $0x6c] sm:$0xff]
        %v243 = vld [vmem:[%s222 + $0x74] sm:$0xf]
        %v244 = vld [vmem:[%s222 + $0x78] sm:$0xff]
        %v245 = vld [vmem:[%s222 + $0x80] sm:$0xf]
        %v246 = vld [vmem:[%s222 + $0x84] sm:$0xff]
        %v247 = vld [vmem:[%s222 + $0x8c] sm:$0xf]
        %v248 = vld [vmem:[%s222 + $0x90] sm:$0xff]
        %v249 = vld [vmem:[%s222 + $0x98] sm:$0xf]
        %v250 = vld [vmem:[%s222 + $0x9c] sm:$0xff]
        %v251 = vld [vmem:[%s222 + $0xa4] sm:$0xf]
        %v252 = vld [vmem:[%s222 + $0xa8] sm:$0xff]
        %v253 = vld [vmem:[%s222 + $0xb0] sm:$0xf]
        %v254 = vld [vmem:[%s222 + $0xb4] sm:$0xff]
        %v255 = vld [vmem:[%s222 + $0xbc] sm:$0xf]
        %v256 = vld [vmem:[%s1] sm:$0xff]
        %v257 = vld [vmem:[%s1 + $0x8] sm:$0xff]
        %v258 = vld [vmem:[%s1 + $0x10] sm:$0xff]
        %v259 = vld [vmem:[%s1 + $0x18] sm:$0xff]
        %v260 = vld [vmem:[%s1 + $0x20] sm:$0xf]
        %v261 = vld [vmem:[%s1 + $0x24] sm:$0xff]
        %v262 = vld [vmem:[%s1 + $0x2c] sm:$0xff]
        %v263 = vld [vmem:[%s1 + $0x34] sm:$0xff]
        %v264 = vld [vmem:[%s1 + $0x3c] sm:$0xff]
        %v265 = vld [vmem:[%s1 + $0x44] sm:$0xf]
        %v266 = vld [vmem:[%s1 + $0x48] sm:$0xff]
        %v267 = vld [vmem:[%s1 + $0x50] sm:$0xff]
        %v268 = vld [vmem:[%s1 + $0x58] sm:$0xff]
        %v269 = vld [vmem:[%s1 + $0x60] sm:$0xff]
        %v270 = vld [vmem:[%s1 + $0x68] sm:$0xf]
        %v271 = vld [vmem:[%s1 + $0x6c] sm:$0xff]
        %v272 = vld [vmem:[%s1 + $0x74] sm:$0xff]
        %v273 = vld [vmem:[%s1 + $0x7c] sm:$0xff]
        %v274 = vld [vmem:[%s1 + $0x84] sm:$0xff]
        %v275 = vld [vmem:[%s1 + $0x8c] sm:$0xf]
        %v276 = vld [vmem:[%s1 + $0x90] sm:$0xff]
        %v277 = vld [vmem:[%s1 + $0x98] sm:$0xff]
        %v278 = vld [vmem:[%s1 + $0xa0] sm:$0xff]
        %v279 = vld [vmem:[%s1 + $0xa8] sm:$0xff]
        %v280 = vld [vmem:[%s1 + $0xb0] sm:$0xf]
        %v281 = vld [vmem:[%s1 + $0xb4] sm:$0xff]
        %v282 = vld [vmem:[%s1 + $0xbc] sm:$0xff]
        %v283 = vld [vmem:[%s1 + $0xc4] sm:$0xff]
        %v284 = vld [vmem:[%s1 + $0xcc] sm:$0xff]
        %v285 = vld [vmem:[%s1 + $0xd4] sm:$0xf]
        %v286 = vld [vmem:[%s1 + $0xd8] sm:$0xff]
        %v287 = vld [vmem:[%s1 + $0xe0] sm:$0xff]
        %v288 = vld [vmem:[%s1 + $0xe8] sm:$0xff]
        %v289 = vld [vmem:[%s1 + $0xf0] sm:$0xff]
        %v290 = vld [vmem:[%s1 + $0xf8] sm:$0xf]
        %v291 = vld [vmem:[%s1 + $0xfc] sm:$0xff]
        %v292 = vld [vmem:[%s1 + $0x104] sm:$0xff]
        %v293 = vld [vmem:[%s1 + $0x10c] sm:$0xff]
        %v294 = vld [vmem:[%s1 + $0x114] sm:$0xff]
        %v295 = vld [vmem:[%s1 + $0x11c] sm:$0xf]
        %v296 = vld [vmem:[%s1 + $0x120] sm:$0xff]
        %v297 = vld [vmem:[%s1 + $0x128] sm:$0xff]
        %v298 = vld [vmem:[%s1 + $0x130] sm:$0xff]
        %v299 = vld [vmem:[%s1 + $0x138] sm:$0xff]
        %v300 = vld [vmem:[%s1 + $0x140] sm:$0xf]
        %v301 = vld [vmem:[%s1 + $0x144] sm:$0xff]
        %v302 = vld [vmem:[%s1 + $0x14c] sm:$0xff]
        %v303 = vld [vmem:[%s1 + $0x154] sm:$0xff]
        %v304 = vld [vmem:[%s1 + $0x15c] sm:$0xff]
        %v305 = vld [vmem:[%s1 + $0x164] sm:$0xf]
        %v306 = vld [vmem:[%s1 + $0x168] sm:$0xff]
        %v307 = vld [vmem:[%s1 + $0x170] sm:$0xff]
        %v308 = vld [vmem:[%s1 + $0x178] sm:$0xff]
        %v309 = vld [vmem:[%s1 + $0x180] sm:$0xff]
        %v310 = vld [vmem:[%s1 + $0x188] sm:$0xf]
        %v311 = vld [vmem:[%s1 + $0x18c] sm:$0xff]
        %v312 = vld [vmem:[%s1 + $0x194] sm:$0xff]
        %v313 = vld [vmem:[%s1 + $0x19c] sm:$0xff]
        %v314 = vld [vmem:[%s1 + $0x1a4] sm:$0xff]
        %v315 = vld [vmem:[%s1 + $0x1ac] sm:$0xf]
        %v316 = vld [vmem:[%s1 + $0x1b0] sm:$0xff]
        %v317 = vld [vmem:[%s1 + $0x1b8] sm:$0xff]
        %v318 = vld [vmem:[%s1 + $0x1c0] sm:$0xff]
        %v319 = vld [vmem:[%s1 + $0x1c8] sm:$0xff]
        %v320 = vld [vmem:[%s1 + $0x1d0] sm:$0xf]
        %v321 = vld [vmem:[%s1 + $0x1d4] sm:$0xff]
        %v322 = vld [vmem:[%s1 + $0x1dc] sm:$0xff]
        %v323 = vld [vmem:[%s1 + $0x1e4] sm:$0xff]
        %v324 = vld [vmem:[%s1 + $0x1ec] sm:$0xff]
        %v325 = vld [vmem:[%s1 + $0x1f4] sm:$0xf]
        %v326 = vld [vmem:[%s1 + $0x1f8] sm:$0xff]
        %v327 = vld [vmem:[%s1 + $0x200] sm:$0xff]
        %v328 = vld [vmem:[%s1 + $0x208] sm:$0xff]
        %v329 = vld [vmem:[%s1 + $0x210] sm:$0xff]
        %v330 = vld [vmem:[%s1 + $0x218] sm:$0xf]
        %v331 = vld [vmem:[%s1 + $0x21c] sm:$0xff]
        %v332 = vld [vmem:[%s1 + $0x224] sm:$0xff]
        %v333 = vld [vmem:[%s1 + $0x22c] sm:$0xff]
        %v334 = vld [vmem:[%s1 + $0x234] sm:$0xff]
        %v335 = vld [vmem:[%s1 + $0x23c] sm:$0xf]
        %v336 = vld [vmem:[%s1 + $0x240] sm:$0xff]
        %v337 = vld [vmem:[%s1 + $0x248] sm:$0xff]
        %v338 = vld [vmem:[%s1 + $0x250] sm:$0xff]
        %v339 = vld [vmem:[%s1 + $0x258] sm:$0xff]
        %v340 = vld [vmem:[%s1 + $0x260] sm:$0xf]
        %v341 = vld [vmem:[%s1 + $0x264] sm:$0xff]
        %v342 = vld [vmem:[%s1 + $0x26c] sm:$0xff]
        %v343 = vld [vmem:[%s1 + $0x274] sm:$0xff]
        %v344 = vld [vmem:[%s1 + $0x27c] sm:$0xff]
        %v345 = vld [vmem:[%s1 + $0x284] sm:$0xf]
        %v346 = vld [vmem:[%s1 + $0x288] sm:$0xff]
        %v347 = vld [vmem:[%s1 + $0x290] sm:$0xff]
        %v348 = vld [vmem:[%s1 + $0x298] sm:$0xff]
        %v349 = vld [vmem:[%s1 + $0x2a0] sm:$0xff]
        %v350 = vld [vmem:[%s1 + $0x2a8] sm:$0xf]
        %v351 = vld [vmem:[%s1 + $0x2ac] sm:$0xff]
        %v352 = vld [vmem:[%s1 + $0x2b4] sm:$0xff]
        %v353 = vld [vmem:[%s1 + $0x2bc] sm:$0xff]
        %v354 = vld [vmem:[%s1 + $0x2c4] sm:$0xff]
        %v355 = vld [vmem:[%s1 + $0x2cc] sm:$0xf]
        %v356 = vld [vmem:[%s1 + $0x2d0] sm:$0xff]
        %v357 = vld [vmem:[%s1 + $0x2d8] sm:$0xff]
        %v358 = vld [vmem:[%s1 + $0x2e0] sm:$0xff]
        %v359 = vld [vmem:[%s1 + $0x2e8] sm:$0xff]
        %v360 = vld [vmem:[%s1 + $0x2f0] sm:$0xf]
        %v361 = vld [vmem:[%s1 + $0x2f4] sm:$0xff]
        %v362 = vld [vmem:[%s1 + $0x2fc] sm:$0xff]
        %v363 = vld [vmem:[%s1 + $0x304] sm:$0xff]
        %v364 = vld [vmem:[%s1 + $0x30c] sm:$0xff]
        %v365 = vld [vmem:[%s1 + $0x314] sm:$0xf]
        %v366 = vld [vmem:[%s1 + $0x318] sm:$0xff]
        %v367 = vld [vmem:[%s1 + $0x320] sm:$0xff]
        %v368 = vld [vmem:[%s1 + $0x328] sm:$0xff]
        %v369 = vld [vmem:[%s1 + $0x330] sm:$0xff]
        %v370 = vld [vmem:[%s1 + $0x338] sm:$0xf]
        %v371 = vld [vmem:[%s1 + $0x33c] sm:$0xff]
        %v372 = vld [vmem:[%s1 + $0x344] sm:$0xff]
        %v373 = vld [vmem:[%s1 + $0x34c] sm:$0xff]
        %v374 = vld [vmem:[%s1 + $0x354] sm:$0xff]
        %v375 = vld [vmem:[%s1 + $0x35c] sm:$0xf]
        %v376 = vld [vmem:[%s1 + $0x360] sm:$0xff]
        %v377 = vld [vmem:[%s1 + $0x368] sm:$0xff]
        %v378 = vld [vmem:[%s1 + $0x370] sm:$0xff]
        %v379 = vld [vmem:[%s1 + $0x378] sm:$0xff]
        %v380 = vld [vmem:[%s1 + $0x380] sm:$0xf]
        %v381 = vld [vmem:[%s1 + $0x384] sm:$0xff]
        %v382 = vld [vmem:[%s1 + $0x38c] sm:$0xff]
        %v383 = vld [vmem:[%s1 + $0x394] sm:$0xff]
        %v384 = vld [vmem:[%s1 + $0x39c] sm:$0xff]
        %v385 = vld [vmem:[%s1 + $0x3a4] sm:$0xf]
        %v386 = vld [vmem:[%s1 + $0x3a8] sm:$0xff]
        %v387 = vld [vmem:[%s1 + $0x3b0] sm:$0xff]
        %v388 = vld [vmem:[%s1 + $0x3b8] sm:$0xff]
        %v389 = vld [vmem:[%s1 + $0x3c0] sm:$0xff]
        %v390 = vld [vmem:[%s1 + $0x3c8] sm:$0xf]
        %v391 = vld [vmem:[%s1 + $0x3cc] sm:$0xff]
        %v392 = vld [vmem:[%s1 + $0x3d4] sm:$0xff]
        %v393 = vld [vmem:[%s1 + $0x3dc] sm:$0xff]
        %v394 = vld [vmem:[%s1 + $0x3e4] sm:$0xff]
        %v395 = vld [vmem:[%s1 + $0x3ec] sm:$0xf]
        %v396 = vld [vmem:[%s1 + $0x3f0] sm:$0xff]
        %v397 = vld [vmem:[%s1 + $0x3f8] sm:$0xff]
        %v398 = vld [vmem:[%s1 + $0x400] sm:$0xff]
        %v399 = vld [vmem:[%s1 + $0x408] sm:$0xff]
        %v400 = vld [vmem:[%s1 + $0x410] sm:$0xf]
        %v401 = vld [vmem:[%s1 + $0x414] sm:$0xff]
        %v402 = vld [vmem:[%s1 + $0x41c] sm:$0xff]
        %v403 = vld [vmem:[%s1 + $0x424] sm:$0xff]
        %v404 = vld [vmem:[%s1 + $0x42c] sm:$0xff]
        %v405 = vld [vmem:[%s1 + $0x434] sm:$0xf]
        %v406 = vld [vmem:[%s1 + $0x438] sm:$0xff]
        %v407 = vld [vmem:[%s1 + $0x440] sm:$0xff]
        %v408 = vld [vmem:[%s1 + $0x448] sm:$0xff]
        %v409 = vld [vmem:[%s1 + $0x450] sm:$0xff]
        %v410 = vld [vmem:[%s1 + $0x458] sm:$0xf]
        %v411 = vld [vmem:[%s1 + $0x45c] sm:$0xff]
        %v412 = vld [vmem:[%s1 + $0x464] sm:$0xff]
        %v413 = vld [vmem:[%s1 + $0x46c] sm:$0xff]
        %v414 = vld [vmem:[%s1 + $0x474] sm:$0xff]
        %v415 = vld [vmem:[%s1 + $0x47c] sm:$0xf]
        %v416 = vld [vmem:[%s1 + $0x480] sm:$0xff]
        %v417 = vld [vmem:[%s1 + $0x488] sm:$0xff]
        %v418 = vld [vmem:[%s1 + $0x490] sm:$0xff]
        %v419 = vld [vmem:[%s1 + $0x498] sm:$0xff]
        %v420 = vld [vmem:[%s1 + $0x4a0] sm:$0xf]
        %v421 = vld [vmem:[%s1 + $0x4a4] sm:$0xff]
        %v422 = vld [vmem:[%s1 + $0x4ac] sm:$0xff]
        %v423 = vld [vmem:[%s1 + $0x4b4] sm:$0xff]
        %v424 = vld [vmem:[%s1 + $0x4bc] sm:$0xff]
        %v425 = vld [vmem:[%s1 + $0x4c4] sm:$0xf]
        %v426 = vld [vmem:[%s1 + $0x4c8] sm:$0xff]
        %v427 = vld [vmem:[%s1 + $0x4d0] sm:$0xff]
        %v428 = vld [vmem:[%s1 + $0x4d8] sm:$0xff]
        %v429 = vld [vmem:[%s1 + $0x4e0] sm:$0xff]
        %v430 = vld [vmem:[%s1 + $0x4e8] sm:$0xf]
        %v431 = vld [vmem:[%s1 + $0x4ec] sm:$0xff]
        %v432 = vld [vmem:[%s1 + $0x4f4] sm:$0xff]
        %v433 = vld [vmem:[%s1 + $0x4fc] sm:$0xff]
        %v434 = vld [vmem:[%s1 + $0x504] sm:$0xff]
        %v435 = vld [vmem:[%s1 + $0x50c] sm:$0xf]
        %v436 = vld [vmem:[%s1 + $0x510] sm:$0xff]
        %v437 = vld [vmem:[%s1 + $0x518] sm:$0xff]
        %v438 = vld [vmem:[%s1 + $0x520] sm:$0xff]
        %v439 = vld [vmem:[%s1 + $0x528] sm:$0xff]
        %v440 = vld [vmem:[%s1 + $0x530] sm:$0xf]
        %v441 = vld [vmem:[%s1 + $0x534] sm:$0xff]
        %v442 = vld [vmem:[%s1 + $0x53c] sm:$0xff]
        %v443 = vld [vmem:[%s1 + $0x544] sm:$0xff]
        %v444 = vld [vmem:[%s1 + $0x54c] sm:$0xff]
        %v445 = vld [vmem:[%s1 + $0x554] sm:$0xf]
        %v446 = vld [vmem:[%s1 + $0x558] sm:$0xff]
        %v447 = vld [vmem:[%s1 + $0x560] sm:$0xff]
        %v448 = vld [vmem:[%s1 + $0x568] sm:$0xff]
        %v449 = vld [vmem:[%s1 + $0x570] sm:$0xff]
        %v450 = vld [vmem:[%s1 + $0x578] sm:$0xf]
        %v451 = vld [vmem:[%s1 + $0x57c] sm:$0xff]
        %v452 = vld [vmem:[%s1 + $0x584] sm:$0xff]
        %v453 = vld [vmem:[%s1 + $0x58c] sm:$0xff]
        %v454 = vld [vmem:[%s1 + $0x594] sm:$0xff]
        %v455 = vld [vmem:[%s1 + $0x59c] sm:$0xf]
        %v456 = vld [vmem:[%s1 + $0x5a0] sm:$0xff]
        %v457 = vld [vmem:[%s1 + $0x5a8] sm:$0xff]
        %v458 = vld [vmem:[%s1 + $0x5b0] sm:$0xff]
        %v459 = vld [vmem:[%s1 + $0x5b8] sm:$0xff]
        %v460 = vld [vmem:[%s1 + $0x5c0] sm:$0xf]
        %v461 = vld [vmem:[%s1 + $0x5c4] sm:$0xff]
        %v462 = vld [vmem:[%s1 + $0x5cc] sm:$0xff]
        %v463 = vld [vmem:[%s1 + $0x5d4] sm:$0xff]
        %v464 = vld [vmem:[%s1 + $0x5dc] sm:$0xff]
        %v465 = vld [vmem:[%s1 + $0x5e4] sm:$0xf]
        %v466 = vld [vmem:[%s1 + $0x5e8] sm:$0xff]
        %v467 = vld [vmem:[%s1 + $0x5f0] sm:$0xff]
        %v468 = vld [vmem:[%s1 + $0x5f8] sm:$0xff]
        %v469 = vld [vmem:[%s1 + $0x600] sm:$0xff]
        %v470 = vld [vmem:[%s1 + $0x608] sm:$0xf]
        %v471 = vld [vmem:[%s1 + $0x60c] sm:$0xff]
        %v472 = vld [vmem:[%s1 + $0x614] sm:$0xff]
        %v473 = vld [vmem:[%s1 + $0x61c] sm:$0xff]
        %v474 = vld [vmem:[%s1 + $0x624] sm:$0xff]
        %v475 = vld [vmem:[%s1 + $0x62c] sm:$0xf]
        %v476 = vld [vmem:[%s1 + $0x630] sm:$0xff]
        %v477 = vld [vmem:[%s1 + $0x638] sm:$0xff]
        %v478 = vld [vmem:[%s1 + $0x640] sm:$0xff]
        %v479 = vld [vmem:[%s1 + $0x648] sm:$0xff]
        %v480 = vld [vmem:[%s1 + $0x650] sm:$0xf]
        %v481 = vld [vmem:[%s1 + $0x654] sm:$0xff]
        %v482 = vld [vmem:[%s1 + $0x65c] sm:$0xff]
        %v483 = vld [vmem:[%s1 + $0x664] sm:$0xff]
        %v484 = vld [vmem:[%s1 + $0x66c] sm:$0xff]
        %v485 = vld [vmem:[%s1 + $0x674] sm:$0xf]
        %v486 = vld [vmem:[%s1 + $0x678] sm:$0xff]
        %v487 = vld [vmem:[%s1 + $0x680] sm:$0xff]
        %v488 = vld [vmem:[%s1 + $0x688] sm:$0xff]
        %v489 = vld [vmem:[%s1 + $0x690] sm:$0xff]
        %v490 = vld [vmem:[%s1 + $0x698] sm:$0xf]
        %v491 = vld [vmem:[%s1 + $0x69c] sm:$0xff]
        %v492 = vld [vmem:[%s1 + $0x6a4] sm:$0xff]
        %v493 = vld [vmem:[%s1 + $0x6ac] sm:$0xff]
        %v494 = vld [vmem:[%s1 + $0x6b4] sm:$0xff]
        %v495 = vld [vmem:[%s1 + $0x6bc] sm:$0xf]
        %v528 = vunpack.c.l.b16 %v224
        %v529 = vunpack.c.h.b16 %v224
        %v530 = vunpack.c.l.b16 %v225
        %v531 = vunpack.c.l.b16 %v226
        %v532 = vunpack.c.h.b16 %v226
        %v533 = vunpack.c.l.b16 %v227
        %v534 = vunpack.c.l.b16 %v228
        %v535 = vunpack.c.h.b16 %v228
        %v536 = vunpack.c.l.b16 %v229
        %v537 = vunpack.c.l.b16 %v230
        %v538 = vunpack.c.h.b16 %v230
        %v539 = vunpack.c.l.b16 %v231
        %v540 = vunpack.c.l.b16 %v232
        %v541 = vunpack.c.h.b16 %v232
        %v542 = vunpack.c.l.b16 %v233
        %v543 = vunpack.c.l.b16 %v234
        %v544 = vunpack.c.h.b16 %v234
        %v545 = vunpack.c.l.b16 %v235
        %v546 = vunpack.c.l.b16 %v236
        %v547 = vunpack.c.h.b16 %v236
        %v548 = vunpack.c.l.b16 %v237
        %v549 = vunpack.c.l.b16 %v238
        %v550 = vunpack.c.h.b16 %v238
        %v551 = vunpack.c.l.b16 %v239
        %v552 = vunpack.c.l.b16 %v240
        %v553 = vunpack.c.h.b16 %v240
        %v554 = vunpack.c.l.b16 %v241
        %v555 = vunpack.c.l.b16 %v242
        %v556 = vunpack.c.h.b16 %v242
        %v557 = vunpack.c.l.b16 %v243
        %v558 = vunpack.c.l.b16 %v244
        %v559 = vunpack.c.h.b16 %v244
        %v560 = vunpack.c.l.b16 %v245
        %v561 = vunpack.c.l.b16 %v246
        %v562 = vunpack.c.h.b16 %v246
        %v563 = vunpack.c.l.b16 %v247
        %v564 = vunpack.c.l.b16 %v248
        %v565 = vunpack.c.h.b16 %v248
        %v566 = vunpack.c.l.b16 %v249
        %v567 = vunpack.c.l.b16 %v250
        %v568 = vunpack.c.h.b16 %v250
        %v569 = vunpack.c.l.b16 %v251
        %v570 = vunpack.c.l.b16 %v252
        %v571 = vunpack.c.h.b16 %v252
        %v572 = vunpack.c.l.b16 %v253
        %v573 = vunpack.c.l.b16 %v254
        %v574 = vunpack.c.h.b16 %v254
        %v575 = vunpack.c.l.b16 %v255
        %v576 = vpack.c.b16 %v531, %v528
        %v577 = vpack.c.b16 %v532, %v529
        %v578 = vpack.c.b16 %v533, %v530
        %v579 = vpack.c.b16 %v537, %v534
        %v580 = vpack.c.b16 %v538, %v535
        %v581 = vpack.c.b16 %v539, %v536
        %v582 = vpack.c.b16 %v543, %v540
        %v583 = vpack.c.b16 %v544, %v541
        %v584 = vpack.c.b16 %v545, %v542
        %v585 = vpack.c.b16 %v549, %v546
        %v586 = vpack.c.b16 %v550, %v547
        %v587 = vpack.c.b16 %v551, %v548
        %v588 = vpack.c.b16 %v555, %v552
        %v589 = vpack.c.b16 %v556, %v553
        %v590 = vpack.c.b16 %v557, %v554
        %v591 = vpack.c.b16 %v561, %v558
        %v592 = vpack.c.b16 %v562, %v559
        %v593 = vpack.c.b16 %v563, %v560
        %v594 = vpack.c.b16 %v567, %v564
        %v595 = vpack.c.b16 %v568, %v565
        %v596 = vpack.c.b16 %v569, %v566
        %v597 = vpack.c.b16 %v573, %v570
        %v598 = vpack.c.b16 %v574, %v571
        %v599 = vpack.c.b16 %v575, %v572
        %v864 = vunpack.c.l.b16 %v256
        %v865 = vunpack.c.h.b16 %v256
        %v866 = vunpack.c.l.b16 %v257
        %v867 = vunpack.c.h.b16 %v257
        %v868 = vunpack.c.l.b16 %v258
        %v869 = vunpack.c.h.b16 %v258
        %v870 = vunpack.c.l.b16 %v259
        %v871 = vunpack.c.h.b16 %v259
        %v872 = vunpack.c.l.b16 %v260
        %v873 = vunpack.c.l.b16 %v261
        %v874 = vunpack.c.h.b16 %v261
        %v875 = vunpack.c.l.b16 %v262
        %v876 = vunpack.c.h.b16 %v262
        %v877 = vunpack.c.l.b16 %v263
        %v878 = vunpack.c.h.b16 %v263
        %v879 = vunpack.c.l.b16 %v264
        %v880 = vunpack.c.h.b16 %v264
        %v881 = vunpack.c.l.b16 %v265
        %v882 = vunpack.c.l.b16 %v266
        %v883 = vunpack.c.h.b16 %v266
        %v884 = vunpack.c.l.b16 %v267
        %v885 = vunpack.c.h.b16 %v267
        %v886 = vunpack.c.l.b16 %v268
        %v887 = vunpack.c.h.b16 %v268
        %v888 = vunpack.c.l.b16 %v269
        %v889 = vunpack.c.h.b16 %v269
        %v890 = vunpack.c.l.b16 %v270
        %v891 = vunpack.c.l.b16 %v271
        %v892 = vunpack.c.h.b16 %v271
        %v893 = vunpack.c.l.b16 %v272
        %v894 = vunpack.c.h.b16 %v272
        %v895 = vunpack.c.l.b16 %v273
        %v896 = vunpack.c.h.b16 %v273
        %v897 = vunpack.c.l.b16 %v274
        %v898 = vunpack.c.h.b16 %v274
        %v899 = vunpack.c.l.b16 %v275
        %v900 = vunpack.c.l.b16 %v276
        %v901 = vunpack.c.h.b16 %v276
        %v902 = vunpack.c.l.b16 %v277
        %v903 = vunpack.c.h.b16 %v277
        %v904 = vunpack.c.l.b16 %v278
        %v905 = vunpack.c.h.b16 %v278
        %v906 = vunpack.c.l.b16 %v279
        %v907 = vunpack.c.h.b16 %v279
        %v908 = vunpack.c.l.b16 %v280
        %v909 = vunpack.c.l.b16 %v281
        %v910 = vunpack.c.h.b16 %v281
        %v911 = vunpack.c.l.b16 %v282
        %v912 = vunpack.c.h.b16 %v282
        %v913 = vunpack.c.l.b16 %v283
        %v914 = vunpack.c.h.b16 %v283
        %v915 = vunpack.c.l.b16 %v284
        %v916 = vunpack.c.h.b16 %v284
        %v917 = vunpack.c.l.b16 %v285
        %v918 = vunpack.c.l.b16 %v286
        %v919 = vunpack.c.h.b16 %v286
        %v920 = vunpack.c.l.b16 %v287
        %v921 = vunpack.c.h.b16 %v287
        %v922 = vunpack.c.l.b16 %v288
        %v923 = vunpack.c.h.b16 %v288
        %v924 = vunpack.c.l.b16 %v289
        %v925 = vunpack.c.h.b16 %v289
        %v926 = vunpack.c.l.b16 %v290
        %v927 = vunpack.c.l.b16 %v291
        %v928 = vunpack.c.h.b16 %v291
        %v929 = vunpack.c.l.b16 %v292
        %v930 = vunpack.c.h.b16 %v292
        %v931 = vunpack.c.l.b16 %v293
        %v932 = vunpack.c.h.b16 %v293
        %v933 = vunpack.c.l.b16 %v294
        %v934 = vunpack.c.h.b16 %v294
        %v935 = vunpack.c.l.b16 %v295
        %v936 = vunpack.c.l.b16 %v296
        %v937 = vunpack.c.h.b16 %v296
        %v938 = vunpack.c.l.b16 %v297
        %v939 = vunpack.c.h.b16 %v297
        %v940 = vunpack.c.l.b16 %v298
        %v941 = vunpack.c.h.b16 %v298
        %v942 = vunpack.c.l.b16 %v299
        %v943 = vunpack.c.h.b16 %v299
        %v944 = vunpack.c.l.b16 %v300
        %v945 = vunpack.c.l.b16 %v301
        %v946 = vunpack.c.h.b16 %v301
        %v947 = vunpack.c.l.b16 %v302
        %v948 = vunpack.c.h.b16 %v302
        %v949 = vunpack.c.l.b16 %v303
        %v950 = vunpack.c.h.b16 %v303
        %v951 = vunpack.c.l.b16 %v304
        %v952 = vunpack.c.h.b16 %v304
        %v953 = vunpack.c.l.b16 %v305
        %v954 = vunpack.c.l.b16 %v306
        %v955 = vunpack.c.h.b16 %v306
        %v956 = vunpack.c.l.b16 %v307
        %v957 = vunpack.c.h.b16 %v307
        %v958 = vunpack.c.l.b16 %v308
        %v959 = vunpack.c.h.b16 %v308
        %v960 = vunpack.c.l.b16 %v309
        %v961 = vunpack.c.h.b16 %v309
        %v962 = vunpack.c.l.b16 %v310
        %v963 = vunpack.c.l.b16 %v311
        %v964 = vunpack.c.h.b16 %v311
        %v965 = vunpack.c.l.b16 %v312
        %v966 = vunpack.c.h.b16 %v312
        %v967 = vunpack.c.l.b16 %v313
        %v968 = vunpack.c.h.b16 %v313
        %v969 = vunpack.c.l.b16 %v314
        %v970 = vunpack.c.h.b16 %v314
        %v971 = vunpack.c.l.b16 %v315
        %v972 = vunpack.c.l.b16 %v316
        %v973 = vunpack.c.h.b16 %v316
        %v974 = vunpack.c.l.b16 %v317
        %v975 = vunpack.c.h.b16 %v317
        %v976 = vunpack.c.l.b16 %v318
        %v977 = vunpack.c.h.b16 %v318
        %v978 = vunpack.c.l.b16 %v319
        %v979 = vunpack.c.h.b16 %v319
        %v980 = vunpack.c.l.b16 %v320
        %v981 = vunpack.c.l.b16 %v321
        %v982 = vunpack.c.h.b16 %v321
        %v983 = vunpack.c.l.b16 %v322
        %v984 = vunpack.c.h.b16 %v322
        %v985 = vunpack.c.l.b16 %v323
        %v986 = vunpack.c.h.b16 %v323
        %v987 = vunpack.c.l.b16 %v324
        %v988 = vunpack.c.h.b16 %v324
        %v989 = vunpack.c.l.b16 %v325
        %v990 = vunpack.c.l.b16 %v326
        %v991 = vunpack.c.h.b16 %v326
        %v992 = vunpack.c.l.b16 %v327
        %v993 = vunpack.c.h.b16 %v327
        %v994 = vunpack.c.l.b16 %v328
        %v995 = vunpack.c.h.b16 %v328
        %v996 = vunpack.c.l.b16 %v329
        %v997 = vunpack.c.h.b16 %v329
        %v998 = vunpack.c.l.b16 %v330
        %v999 = vunpack.c.l.b16 %v331
        %v1000 = vunpack.c.h.b16 %v331
        %v1001 = vunpack.c.l.b16 %v332
        %v1002 = vunpack.c.h.b16 %v332
        %v1003 = vunpack.c.l.b16 %v333
        %v1004 = vunpack.c.h.b16 %v333
        %v1005 = vunpack.c.l.b16 %v334
        %v1006 = vunpack.c.h.b16 %v334
        %v1007 = vunpack.c.l.b16 %v335
        %v1008 = vunpack.c.l.b16 %v336
        %v1009 = vunpack.c.h.b16 %v336
        %v1010 = vunpack.c.l.b16 %v337
        %v1011 = vunpack.c.h.b16 %v337
        %v1012 = vunpack.c.l.b16 %v338
        %v1013 = vunpack.c.h.b16 %v338
        %v1014 = vunpack.c.l.b16 %v339
        %v1015 = vunpack.c.h.b16 %v339
        %v1016 = vunpack.c.l.b16 %v340
        %v1017 = vunpack.c.l.b16 %v341
        %v1018 = vunpack.c.h.b16 %v341
        %v1019 = vunpack.c.l.b16 %v342
        %v1020 = vunpack.c.h.b16 %v342
        %v1021 = vunpack.c.l.b16 %v343
        %v1022 = vunpack.c.h.b16 %v343
        %v1023 = vunpack.c.l.b16 %v344
        %v1024 = vunpack.c.h.b16 %v344
        %v1025 = vunpack.c.l.b16 %v345
        %v1026 = vunpack.c.l.b16 %v346
        %v1027 = vunpack.c.h.b16 %v346
        %v1028 = vunpack.c.l.b16 %v347
        %v1029 = vunpack.c.h.b16 %v347
        %v1030 = vunpack.c.l.b16 %v348
        %v1031 = vunpack.c.h.b16 %v348
        %v1032 = vunpack.c.l.b16 %v349
        %v1033 = vunpack.c.h.b16 %v349
        %v1034 = vunpack.c.l.b16 %v350
        %v1035 = vunpack.c.l.b16 %v351
        %v1036 = vunpack.c.h.b16 %v351
        %v1037 = vunpack.c.l.b16 %v352
        %v1038 = vunpack.c.h.b16 %v352
        %v1039 = vunpack.c.l.b16 %v353
        %v1040 = vunpack.c.h.b16 %v353
        %v1041 = vunpack.c.l.b16 %v354
        %v1042 = vunpack.c.h.b16 %v354
        %v1043 = vunpack.c.l.b16 %v355
        %v1044 = vunpack.c.l.b16 %v356
        %v1045 = vunpack.c.h.b16 %v356
        %v1046 = vunpack.c.l.b16 %v357
        %v1047 = vunpack.c.h.b16 %v357
        %v1048 = vunpack.c.l.b16 %v358
        %v1049 = vunpack.c.h.b16 %v358
        %v1050 = vunpack.c.l.b16 %v359
        %v1051 = vunpack.c.h.b16 %v359
        %v1052 = vunpack.c.l.b16 %v360
        %v1053 = vunpack.c.l.b16 %v361
        %v1054 = vunpack.c.h.b16 %v361
        %v1055 = vunpack.c.l.b16 %v362
        %v1056 = vunpack.c.h.b16 %v362
        %v1057 = vunpack.c.l.b16 %v363
        %v1058 = vunpack.c.h.b16 %v363
        %v1059 = vunpack.c.l.b16 %v364
        %v1060 = vunpack.c.h.b16 %v364
        %v1061 = vunpack.c.l.b16 %v365
        %v1062 = vunpack.c.l.b16 %v366
        %v1063 = vunpack.c.h.b16 %v366
        %v1064 = vunpack.c.l.b16 %v367
        %v1065 = vunpack.c.h.b16 %v367
        %v1066 = vunpack.c.l.b16 %v368
        %v1067 = vunpack.c.h.b16 %v368
        %v1068 = vunpack.c.l.b16 %v369
        %v1069 = vunpack.c.h.b16 %v369
        %v1070 = vunpack.c.l.b16 %v370
        %v1071 = vunpack.c.l.b16 %v371
        %v1072 = vunpack.c.h.b16 %v371
        %v1073 = vunpack.c.l.b16 %v372
        %v1074 = vunpack.c.h.b16 %v372
        %v1075 = vunpack.c.l.b16 %v373
        %v1076 = vunpack.c.h.b16 %v373
        %v1077 = vunpack.c.l.b16 %v374
        %v1078 = vunpack.c.h.b16 %v374
        %v1079 = vunpack.c.l.b16 %v375
        %v1080 = vunpack.c.l.b16 %v376
        %v1081 = vunpack.c.h.b16 %v376
        %v1082 = vunpack.c.l.b16 %v377
        %v1083 = vunpack.c.h.b16 %v377
        %v1084 = vunpack.c.l.b16 %v378
        %v1085 = vunpack.c.h.b16 %v378
        %v1086 = vunpack.c.l.b16 %v379
        %v1087 = vunpack.c.h.b16 %v379
        %v1088 = vunpack.c.l.b16 %v380
        %v1089 = vunpack.c.l.b16 %v381
        %v1090 = vunpack.c.h.b16 %v381
        %v1091 = vunpack.c.l.b16 %v382
        %v1092 = vunpack.c.h.b16 %v382
        %v1093 = vunpack.c.l.b16 %v383
        %v1094 = vunpack.c.h.b16 %v383
        %v1095 = vunpack.c.l.b16 %v384
        %v1096 = vunpack.c.h.b16 %v384
        %v1097 = vunpack.c.l.b16 %v385
        %v1098 = vunpack.c.l.b16 %v386
        %v1099 = vunpack.c.h.b16 %v386
        %v1100 = vunpack.c.l.b16 %v387
        %v1101 = vunpack.c.h.b16 %v387
        %v1102 = vunpack.c.l.b16 %v388
        %v1103 = vunpack.c.h.b16 %v388
        %v1104 = vunpack.c.l.b16 %v389
        %v1105 = vunpack.c.h.b16 %v389
        %v1106 = vunpack.c.l.b16 %v390
        %v1107 = vunpack.c.l.b16 %v391
        %v1108 = vunpack.c.h.b16 %v391
        %v1109 = vunpack.c.l.b16 %v392
        %v1110 = vunpack.c.h.b16 %v392
        %v1111 = vunpack.c.l.b16 %v393
        %v1112 = vunpack.c.h.b16 %v393
        %v1113 = vunpack.c.l.b16 %v394
        %v1114 = vunpack.c.h.b16 %v394
        %v1115 = vunpack.c.l.b16 %v395
        %v1116 = vunpack.c.l.b16 %v396
        %v1117 = vunpack.c.h.b16 %v396
        %v1118 = vunpack.c.l.b16 %v397
        %v1119 = vunpack.c.h.b16 %v397
        %v1120 = vunpack.c.l.b16 %v398
        %v1121 = vunpack.c.h.b16 %v398
        %v1122 = vunpack.c.l.b16 %v399
        %v1123 = vunpack.c.h.b16 %v399
        %v1124 = vunpack.c.l.b16 %v400
        %v1125 = vunpack.c.l.b16 %v401
        %v1126 = vunpack.c.h.b16 %v401
        %v1127 = vunpack.c.l.b16 %v402
        %v1128 = vunpack.c.h.b16 %v402
        %v1129 = vunpack.c.l.b16 %v403
        %v1130 = vunpack.c.h.b16 %v403
        %v1131 = vunpack.c.l.b16 %v404
        %v1132 = vunpack.c.h.b16 %v404
        %v1133 = vunpack.c.l.b16 %v405
        %v1134 = vunpack.c.l.b16 %v406
        %v1135 = vunpack.c.h.b16 %v406
        %v1136 = vunpack.c.l.b16 %v407
        %v1137 = vunpack.c.h.b16 %v407
        %v1138 = vunpack.c.l.b16 %v408
        %v1139 = vunpack.c.h.b16 %v408
        %v1140 = vunpack.c.l.b16 %v409
        %v1141 = vunpack.c.h.b16 %v409
        %v1142 = vunpack.c.l.b16 %v410
        %v1143 = vunpack.c.l.b16 %v411
        %v1144 = vunpack.c.h.b16 %v411
        %v1145 = vunpack.c.l.b16 %v412
        %v1146 = vunpack.c.h.b16 %v412
        %v1147 = vunpack.c.l.b16 %v413
        %v1148 = vunpack.c.h.b16 %v413
        %v1149 = vunpack.c.l.b16 %v414
        %v1150 = vunpack.c.h.b16 %v414
        %v1151 = vunpack.c.l.b16 %v415
        %v1152 = vunpack.c.l.b16 %v416
        %v1153 = vunpack.c.h.b16 %v416
        %v1154 = vunpack.c.l.b16 %v417
        %v1155 = vunpack.c.h.b16 %v417
        %v1156 = vunpack.c.l.b16 %v418
        %v1157 = vunpack.c.h.b16 %v418
        %v1158 = vunpack.c.l.b16 %v419
        %v1159 = vunpack.c.h.b16 %v419
        %v1160 = vunpack.c.l.b16 %v420
        %v1161 = vunpack.c.l.b16 %v421
        %v1162 = vunpack.c.h.b16 %v421
        %v1163 = vunpack.c.l.b16 %v422
        %v1164 = vunpack.c.h.b16 %v422
        %v1165 = vunpack.c.l.b16 %v423
        %v1166 = vunpack.c.h.b16 %v423
        %v1167 = vunpack.c.l.b16 %v424
        %v1168 = vunpack.c.h.b16 %v424
        %v1169 = vunpack.c.l.b16 %v425
        %v1170 = vunpack.c.l.b16 %v426
        %v1171 = vunpack.c.h.b16 %v426
        %v1172 = vunpack.c.l.b16 %v427
        %v1173 = vunpack.c.h.b16 %v427
        %v1174 = vunpack.c.l.b16 %v428
        %v1175 = vunpack.c.h.b16 %v428
        %v1176 = vunpack.c.l.b16 %v429
        %v1177 = vunpack.c.h.b16 %v429
        %v1178 = vunpack.c.l.b16 %v430
        %v1179 = vunpack.c.l.b16 %v431
        %v1180 = vunpack.c.h.b16 %v431
        %v1181 = vunpack.c.l.b16 %v432
        %v1182 = vunpack.c.h.b16 %v432
        %v1183 = vunpack.c.l.b16 %v433
        %v1184 = vunpack.c.h.b16 %v433
        %v1185 = vunpack.c.l.b16 %v434
        %v1186 = vunpack.c.h.b16 %v434
        %v1187 = vunpack.c.l.b16 %v435
        %v1188 = vunpack.c.l.b16 %v436
        %v1189 = vunpack.c.h.b16 %v436
        %v1190 = vunpack.c.l.b16 %v437
        %v1191 = vunpack.c.h.b16 %v437
        %v1192 = vunpack.c.l.b16 %v438
        %v1193 = vunpack.c.h.b16 %v438
        %v1194 = vunpack.c.l.b16 %v439
        %v1195 = vunpack.c.h.b16 %v439
        %v1196 = vunpack.c.l.b16 %v440
        %v1197 = vunpack.c.l.b16 %v441
        %v1198 = vunpack.c.h.b16 %v441
        %v1199 = vunpack.c.l.b16 %v442
        %v1200 = vunpack.c.h.b16 %v442
        %v1201 = vunpack.c.l.b16 %v443
        %v1202 = vunpack.c.h.b16 %v443
        %v1203 = vunpack.c.l.b16 %v444
        %v1204 = vunpack.c.h.b16 %v444
        %v1205 = vunpack.c.l.b16 %v445
        %v1206 = vunpack.c.l.b16 %v446
        %v1207 = vunpack.c.h.b16 %v446
        %v1208 = vunpack.c.l.b16 %v447
        %v1209 = vunpack.c.h.b16 %v447
        %v1210 = vunpack.c.l.b16 %v448
        %v1211 = vunpack.c.h.b16 %v448
        %v1212 = vunpack.c.l.b16 %v449
        %v1213 = vunpack.c.h.b16 %v449
        %v1214 = vunpack.c.l.b16 %v450
        %v1215 = vunpack.c.l.b16 %v451
        %v1216 = vunpack.c.h.b16 %v451
        %v1217 = vunpack.c.l.b16 %v452
        %v1218 = vunpack.c.h.b16 %v452
        %v1219 = vunpack.c.l.b16 %v453
        %v1220 = vunpack.c.h.b16 %v453
        %v1221 = vunpack.c.l.b16 %v454
        %v1222 = vunpack.c.h.b16 %v454
        %v1223 = vunpack.c.l.b16 %v455
        %v1224 = vunpack.c.l.b16 %v456
        %v1225 = vunpack.c.h.b16 %v456
        %v1226 = vunpack.c.l.b16 %v457
        %v1227 = vunpack.c.h.b16 %v457
        %v1228 = vunpack.c.l.b16 %v458
        %v1229 = vunpack.c.h.b16 %v458
        %v1230 = vunpack.c.l.b16 %v459
        %v1231 = vunpack.c.h.b16 %v459
        %v1232 = vunpack.c.l.b16 %v460
        %v1233 = vunpack.c.l.b16 %v461
        %v1234 = vunpack.c.h.b16 %v461
        %v1235 = vunpack.c.l.b16 %v462
        %v1236 = vunpack.c.h.b16 %v462
        %v1237 = vunpack.c.l.b16 %v463
        %v1238 = vunpack.c.h.b16 %v463
        %v1239 = vunpack.c.l.b16 %v464
        %v1240 = vunpack.c.h.b16 %v464
        %v1241 = vunpack.c.l.b16 %v465
        %v1242 = vunpack.c.l.b16 %v466
        %v1243 = vunpack.c.h.b16 %v466
        %v1244 = vunpack.c.l.b16 %v467
        %v1245 = vunpack.c.h.b16 %v467
        %v1246 = vunpack.c.l.b16 %v468
        %v1247 = vunpack.c.h.b16 %v468
        %v1248 = vunpack.c.l.b16 %v469
        %v1249 = vunpack.c.h.b16 %v469
        %v1250 = vunpack.c.l.b16 %v470
        %v1251 = vunpack.c.l.b16 %v471
        %v1252 = vunpack.c.h.b16 %v471
        %v1253 = vunpack.c.l.b16 %v472
        %v1254 = vunpack.c.h.b16 %v472
        %v1255 = vunpack.c.l.b16 %v473
        %v1256 = vunpack.c.h.b16 %v473
        %v1257 = vunpack.c.l.b16 %v474
        %v1258 = vunpack.c.h.b16 %v474
        %v1259 = vunpack.c.l.b16 %v475
        %v1260 = vunpack.c.l.b16 %v476
        %v1261 = vunpack.c.h.b16 %v476
        %v1262 = vunpack.c.l.b16 %v477
        %v1263 = vunpack.c.h.b16 %v477
        %v1264 = vunpack.c.l.b16 %v478
        %v1265 = vunpack.c.h.b16 %v478
        %v1266 = vunpack.c.l.b16 %v479
        %v1267 = vunpack.c.h.b16 %v479
        %v1268 = vunpack.c.l.b16 %v480
        %v1269 = vunpack.c.l.b16 %v481
        %v1270 = vunpack.c.h.b16 %v481
        %v1271 = vunpack.c.l.b16 %v482
        %v1272 = vunpack.c.h.b16 %v482
        %v1273 = vunpack.c.l.b16 %v483
        %v1274 = vunpack.c.h.b16 %v483
        %v1275 = vunpack.c.l.b16 %v484
        %v1276 = vunpack.c.h.b16 %v484
        %v1277 = vunpack.c.l.b16 %v485
        %v1278 = vunpack.c.l.b16 %v486
        %v1279 = vunpack.c.h.b16 %v486
        %v1280 = vunpack.c.l.b16 %v487
        %v1281 = vunpack.c.h.b16 %v487
        %v1282 = vunpack.c.l.b16 %v488
        %v1283 = vunpack.c.h.b16 %v488
        %v1284 = vunpack.c.l.b16 %v489
        %v1285 = vunpack.c.h.b16 %v489
        %v1286 = vunpack.c.l.b16 %v490
        %v1287 = vunpack.c.l.b16 %v491
        %v1288 = vunpack.c.h.b16 %v491
        %v1289 = vunpack.c.l.b16 %v492
        %v1290 = vunpack.c.h.b16 %v492
        %v1291 = vunpack.c.l.b16 %v493
        %v1292 = vunpack.c.h.b16 %v493
        %v1293 = vunpack.c.l.b16 %v494
        %v1294 = vunpack.c.h.b16 %v494
        %v1295 = vunpack.c.l.b16 %v495
        %v1296 = vpack.c.b16 %v873, %v864
        %v1297 = vpack.c.b16 %v874, %v865
        %v1298 = vpack.c.b16 %v875, %v866
        %v1299 = vpack.c.b16 %v876, %v867
        %v1300 = vpack.c.b16 %v877, %v868
        %v1301 = vpack.c.b16 %v878, %v869
        %v1302 = vpack.c.b16 %v879, %v870
        %v1303 = vpack.c.b16 %v880, %v871
        %v1304 = vpack.c.b16 %v881, %v872
        %v1305 = vpack.c.b16 %v891, %v882
        %v1306 = vpack.c.b16 %v892, %v883
        %v1307 = vpack.c.b16 %v893, %v884
        %v1308 = vpack.c.b16 %v894, %v885
        %v1309 = vpack.c.b16 %v895, %v886
        %v1310 = vpack.c.b16 %v896, %v887
        %v1311 = vpack.c.b16 %v897, %v888
        %v1312 = vpack.c.b16 %v898, %v889
        %v1313 = vpack.c.b16 %v899, %v890
        %v1314 = vpack.c.b16 %v909, %v900
        %v1315 = vpack.c.b16 %v910, %v901
        %v1316 = vpack.c.b16 %v911, %v902
        %v1317 = vpack.c.b16 %v912, %v903
        %v1318 = vpack.c.b16 %v913, %v904
        %v1319 = vpack.c.b16 %v914, %v905
        %v1320 = vpack.c.b16 %v915, %v906
        %v1321 = vpack.c.b16 %v916, %v907
        %v1322 = vpack.c.b16 %v917, %v908
        %v1323 = vpack.c.b16 %v927, %v918
        %v1324 = vpack.c.b16 %v928, %v919
        %v1325 = vpack.c.b16 %v929, %v920
        %v1326 = vpack.c.b16 %v930, %v921
        %v1327 = vpack.c.b16 %v931, %v922
        %v1328 = vpack.c.b16 %v932, %v923
        %v1329 = vpack.c.b16 %v933, %v924
        %v1330 = vpack.c.b16 %v934, %v925
        %v1331 = vpack.c.b16 %v935, %v926
        %v1332 = vpack.c.b16 %v945, %v936
        %v1333 = vpack.c.b16 %v946, %v937
        %v1334 = vpack.c.b16 %v947, %v938
        %v1335 = vpack.c.b16 %v948, %v939
        %v1336 = vpack.c.b16 %v949, %v940
        %v1337 = vpack.c.b16 %v950, %v941
        %v1338 = vpack.c.b16 %v951, %v942
        %v1339 = vpack.c.b16 %v952, %v943
        %v1340 = vpack.c.b16 %v953, %v944
        %v1341 = vpack.c.b16 %v963, %v954
        %v1342 = vpack.c.b16 %v964, %v955
        %v1343 = vpack.c.b16 %v965, %v956
        %v1344 = vpack.c.b16 %v966, %v957
        %v1345 = vpack.c.b16 %v967, %v958
        %v1346 = vpack.c.b16 %v968, %v959
        %v1347 = vpack.c.b16 %v969, %v960
        %v1348 = vpack.c.b16 %v970, %v961
        %v1349 = vpack.c.b16 %v971, %v962
        %v1350 = vpack.c.b16 %v981, %v972
        %v1351 = vpack.c.b16 %v982, %v973
        %v1352 = vpack.c.b16 %v983, %v974
        %v1353 = vpack.c.b16 %v984, %v975
        %v1354 = vpack.c.b16 %v985, %v976
        %v1355 = vpack.c.b16 %v986, %v977
        %v1356 = vpack.c.b16 %v987, %v978
        %v1357 = vpack.c.b16 %v988, %v979
        %v1358 = vpack.c.b16 %v989, %v980
        %v1359 = vpack.c.b16 %v999, %v990
        %v1360 = vpack.c.b16 %v1000, %v991
        %v1361 = vpack.c.b16 %v1001, %v992
        %v1362 = vpack.c.b16 %v1002, %v993
        %v1363 = vpack.c.b16 %v1003, %v994
        %v1364 = vpack.c.b16 %v1004, %v995
        %v1365 = vpack.c.b16 %v1005, %v996
        %v1366 = vpack.c.b16 %v1006, %v997
        %v1367 = vpack.c.b16 %v1007, %v998
        %v1368 = vpack.c.b16 %v1017, %v1008
        %v1369 = vpack.c.b16 %v1018, %v1009
        %v1370 = vpack.c.b16 %v1019, %v1010
        %v1371 = vpack.c.b16 %v1020, %v1011
        %v1372 = vpack.c.b16 %v1021, %v1012
        %v1373 = vpack.c.b16 %v1022, %v1013
        %v1374 = vpack.c.b16 %v1023, %v1014
        %v1375 = vpack.c.b16 %v1024, %v1015
        %v1376 = vpack.c.b16 %v1025, %v1016
        %v1377 = vpack.c.b16 %v1035, %v1026
        %v1378 = vpack.c.b16 %v1036, %v1027
        %v1379 = vpack.c.b16 %v1037, %v1028
        %v1380 = vpack.c.b16 %v1038, %v1029
        %v1381 = vpack.c.b16 %v1039, %v1030
        %v1382 = vpack.c.b16 %v1040, %v1031
        %v1383 = vpack.c.b16 %v1041, %v1032
        %v1384 = vpack.c.b16 %v1042, %v1033
        %v1385 = vpack.c.b16 %v1043, %v1034
        %v1386 = vpack.c.b16 %v1053, %v1044
        %v1387 = vpack.c.b16 %v1054, %v1045
        %v1388 = vpack.c.b16 %v1055, %v1046
        %v1389 = vpack.c.b16 %v1056, %v1047
        %v1390 = vpack.c.b16 %v1057, %v1048
        %v1391 = vpack.c.b16 %v1058, %v1049
        %v1392 = vpack.c.b16 %v1059, %v1050
        %v1393 = vpack.c.b16 %v1060, %v1051
        %v1394 = vpack.c.b16 %v1061, %v1052
        %v1395 = vpack.c.b16 %v1071, %v1062
        %v1396 = vpack.c.b16 %v1072, %v1063
        %v1397 = vpack.c.b16 %v1073, %v1064
        %v1398 = vpack.c.b16 %v1074, %v1065
        %v1399 = vpack.c.b16 %v1075, %v1066
        %v1400 = vpack.c.b16 %v1076, %v1067
        %v1401 = vpack.c.b16 %v1077, %v1068
        %v1402 = vpack.c.b16 %v1078, %v1069
        %v1403 = vpack.c.b16 %v1079, %v1070
        %v1404 = vpack.c.b16 %v1089, %v1080
        %v1405 = vpack.c.b16 %v1090, %v1081
        %v1406 = vpack.c.b16 %v1091, %v1082
        %v1407 = vpack.c.b16 %v1092, %v1083
        %v1408 = vpack.c.b16 %v1093, %v1084
        %v1409 = vpack.c.b16 %v1094, %v1085
        %v1410 = vpack.c.b16 %v1095, %v1086
        %v1411 = vpack.c.b16 %v1096, %v1087
        %v1412 = vpack.c.b16 %v1097, %v1088
        %v1413 = vpack.c.b16 %v1107, %v1098
        %v1414 = vpack.c.b16 %v1108, %v1099
        %v1415 = vpack.c.b16 %v1109, %v1100
        %v1416 = vpack.c.b16 %v1110, %v1101
        %v1417 = vpack.c.b16 %v1111, %v1102
        %v1418 = vpack.c.b16 %v1112, %v1103
        %v1419 = vpack.c.b16 %v1113, %v1104
        %v1420 = vpack.c.b16 %v1114, %v1105
        %v1421 = vpack.c.b16 %v1115, %v1106
        %v1422 = vpack.c.b16 %v1125, %v1116
        %v1423 = vpack.c.b16 %v1126, %v1117
        %v1424 = vpack.c.b16 %v1127, %v1118
        %v1425 = vpack.c.b16 %v1128, %v1119
        %v1426 = vpack.c.b16 %v1129, %v1120
        %v1427 = vpack.c.b16 %v1130, %v1121
        %v1428 = vpack.c.b16 %v1131, %v1122
        %v1429 = vpack.c.b16 %v1132, %v1123
        %v1430 = vpack.c.b16 %v1133, %v1124
        %v1431 = vpack.c.b16 %v1143, %v1134
        %v1432 = vpack.c.b16 %v1144, %v1135
        %v1433 = vpack.c.b16 %v1145, %v1136
        %v1434 = vpack.c.b16 %v1146, %v1137
        %v1435 = vpack.c.b16 %v1147, %v1138
        %v1436 = vpack.c.b16 %v1148, %v1139
        %v1437 = vpack.c.b16 %v1149, %v1140
        %v1438 = vpack.c.b16 %v1150, %v1141
        %v1439 = vpack.c.b16 %v1151, %v1142
        %v1440 = vpack.c.b16 %v1161, %v1152
        %v1441 = vpack.c.b16 %v1162, %v1153
        %v1442 = vpack.c.b16 %v1163, %v1154
        %v1443 = vpack.c.b16 %v1164, %v1155
        %v1444 = vpack.c.b16 %v1165, %v1156
        %v1445 = vpack.c.b16 %v1166, %v1157
        %v1446 = vpack.c.b16 %v1167, %v1158
        %v1447 = vpack.c.b16 %v1168, %v1159
        %v1448 = vpack.c.b16 %v1169, %v1160
        %v1449 = vpack.c.b16 %v1179, %v1170
        %v1450 = vpack.c.b16 %v1180, %v1171
        %v1451 = vpack.c.b16 %v1181, %v1172
        %v1452 = vpack.c.b16 %v1182, %v1173
        %v1453 = vpack.c.b16 %v1183, %v1174
        %v1454 = vpack.c.b16 %v1184, %v1175
        %v1455 = vpack.c.b16 %v1185, %v1176
        %v1456 = vpack.c.b16 %v1186, %v1177
        %v1457 = vpack.c.b16 %v1187, %v1178
        %v1458 = vpack.c.b16 %v1197, %v1188
        %v1459 = vpack.c.b16 %v1198, %v1189
        %v1460 = vpack.c.b16 %v1199, %v1190
        %v1461 = vpack.c.b16 %v1200, %v1191
        %v1462 = vpack.c.b16 %v1201, %v1192
        %v1463 = vpack.c.b16 %v1202, %v1193
        %v1464 = vpack.c.b16 %v1203, %v1194
        %v1465 = vpack.c.b16 %v1204, %v1195
        %v1466 = vpack.c.b16 %v1205, %v1196
        %v1467 = vpack.c.b16 %v1215, %v1206
        %v1468 = vpack.c.b16 %v1216, %v1207
        %v1469 = vpack.c.b16 %v1217, %v1208
        %v1470 = vpack.c.b16 %v1218, %v1209
        %v1471 = vpack.c.b16 %v1219, %v1210
        %v1472 = vpack.c.b16 %v1220, %v1211
        %v1473 = vpack.c.b16 %v1221, %v1212
        %v1474 = vpack.c.b16 %v1222, %v1213
        %v1475 = vpack.c.b16 %v1223, %v1214
        %v1476 = vpack.c.b16 %v1233, %v1224
        %v1477 = vpack.c.b16 %v1234, %v1225
        %v1478 = vpack.c.b16 %v1235, %v1226
        %v1479 = vpack.c.b16 %v1236, %v1227
        %v1480 = vpack.c.b16 %v1237, %v1228
        %v1481 = vpack.c.b16 %v1238, %v1229
        %v1482 = vpack.c.b16 %v1239, %v1230
        %v1483 = vpack.c.b16 %v1240, %v1231
        %v1484 = vpack.c.b16 %v1241, %v1232
        %v1485 = vpack.c.b16 %v1251, %v1242
        %v1486 = vpack.c.b16 %v1252, %v1243
        %v1487 = vpack.c.b16 %v1253, %v1244
        %v1488 = vpack.c.b16 %v1254, %v1245
        %v1489 = vpack.c.b16 %v1255, %v1246
        %v1490 = vpack.c.b16 %v1256, %v1247
        %v1491 = vpack.c.b16 %v1257, %v1248
        %v1492 = vpack.c.b16 %v1258, %v1249
        %v1493 = vpack.c.b16 %v1259, %v1250
        %v1494 = vpack.c.b16 %v1269, %v1260
        %v1495 = vpack.c.b16 %v1270, %v1261
        %v1496 = vpack.c.b16 %v1271, %v1262
        %v1497 = vpack.c.b16 %v1272, %v1263
        %v1498 = vpack.c.b16 %v1273, %v1264
        %v1499 = vpack.c.b16 %v1274, %v1265
        %v1500 = vpack.c.b16 %v1275, %v1266
        %v1501 = vpack.c.b16 %v1276, %v1267
        %v1502 = vpack.c.b16 %v1277, %v1268
        %v1503 = vpack.c.b16 %v1287, %v1278
        %v1504 = vpack.c.b16 %v1288, %v1279
        %v1505 = vpack.c.b16 %v1289, %v1280
        %v1506 = vpack.c.b16 %v1290, %v1281
        %v1507 = vpack.c.b16 %v1291, %v1282
        %v1508 = vpack.c.b16 %v1292, %v1283
        %v1509 = vpack.c.b16 %v1293, %v1284
        %v1510 = vpack.c.b16 %v1294, %v1285
        %v1511 = vpack.c.b16 %v1295, %v1286
        %1728 = vmatprep.subr.bf16.mxu0 %v1297
        %1729 = vmatpush1.bf16.msra.mxu0 %v1296
        %1730 = vmatprep.subr.bf16.mxu0 %v1306
        %1731 = vmatpush1.bf16.msra.mxu0 %v1305
        %1732 = vmatprep.subr.bf16.mxu0 %v1315
        %1733 = vmatpush1.bf16.msra.mxu0 %v1314
        %1734 = vmatprep.subr.bf16.mxu0 %v1324
        %1735 = vmatpush1.bf16.msra.mxu0 %v1323
        %1736 = vmatprep.subr.bf16.mxu0 %v1333
        %1737 = vmatpush1.bf16.msra.mxu0 %v1332
        %1738 = vmatprep.subr.bf16.mxu0 %v1342
        %1739 = vmatpush1.bf16.msra.mxu0 %v1341
        %1740 = vmatprep.subr.bf16.mxu0 %v1351
        %1741 = vmatpush1.bf16.msra.mxu0 %v1350
        %1742 = vmatprep.subr.bf16.mxu0 %v1360
        %1743 = vmatpush1.bf16.msra.mxu0 %v1359
        %1744 = vmatprep.subr.bf16.mxu0 %v1369
        %1745 = vmatpush1.bf16.msra.mxu0 %v1368
        %1746 = vmatprep.subr.bf16.mxu0 %v1378
        %1747 = vmatpush1.bf16.msra.mxu0 %v1377
        %1748 = vmatprep.subr.bf16.mxu0 %v1387
        %1749 = vmatpush1.bf16.msra.mxu0 %v1386
        %1750 = vmatprep.subr.bf16.mxu0 %v1396
        %1751 = vmatpush1.bf16.msra.mxu0 %v1395
        %1752 = vmatprep.subr.bf16.mxu0 %v1405
        %1753 = vmatpush1.bf16.msra.mxu0 %v1404
        %1754 = vmatprep.subr.bf16.mxu0 %v1414
        %1755 = vmatpush1.bf16.msra.mxu0 %v1413
        %1756 = vmatprep.subr.bf16.mxu0 %v1423
        %1757 = vmatpush1.bf16.msra.mxu0 %v1422
        %1758 = vmatprep.subr.bf16.mxu0 %v1432
        %1759 = vmatpush1.bf16.msra.mxu0 %v1431
        %1760 = vmatprep.mubr.bf16.mxu0 %v577
        %1761 = vmatmul.mubr.bf16.gmra.mrb[0].mxu0 %v576
        %v1762 = vpop.f32.mrb[0].mxu0
        %v1763 = vadd.f32 0.0, %v1762
        %v1764 = vpop.f32.mrb[0].mxu0
        %v1765 = vadd.f32 0.0, %v1764
        %v1766 = vpop.f32.mrb[0].mxu0
        %v1767 = vadd.f32 0.0, %v1766
        %v1768 = vpop.f32.mrb[0].mxu0
        %v1769 = vadd.f32 0.0, %v1768
        %1770 = vmatprep.mubr.bf16.mxu0 %v580
        %1771 = vmatmul.mubr.bf16.gmra.mrb[0].mxu0 %v579
        %v1772 = vpop.f32.mrb[0].mxu0
        %v1773 = vadd.f32 0.0, %v1772
        %v1774 = vpop.f32.mrb[0].mxu0
        %v1775 = vadd.f32 0.0, %v1774
        %v1776 = vpop.f32.mrb[0].mxu0
        %v1777 = vadd.f32 0.0, %v1776
        %v1778 = vpop.f32.mrb[0].mxu0
        %v1779 = vadd.f32 0.0, %v1778
        %1780 = vmatprep.mubr.bf16.mxu0 %v583
        %1781 = vmatmul.mubr.bf16.gmra.mrb[0].mxu0 %v582
        %v1782 = vpop.f32.mrb[0].mxu0
        %v1783 = vadd.f32 0.0, %v1782
        %v1784 = vpop.f32.mrb[0].mxu0
        %v1785 = vadd.f32 0.0, %v1784
        %v1786 = vpop.f32.mrb[0].mxu0
        %v1787 = vadd.f32 0.0, %v1786
        %v1788 = vpop.f32.mrb[0].mxu0
        %v1789 = vadd.f32 0.0, %v1788
        %1790 = vmatprep.mubr.bf16.mxu0 %v586
        %1791 = vmatmul.mubr.bf16.gmra.mrb[0].mxu0 %v585
        %v1792 = vpop.f32.mrb[0].mxu0
        %v1793 = vadd.f32 0.0, %v1792
        %v1794 = vpop.f32.mrb[0].mxu0
        %v1795 = vadd.f32 0.0, %v1794
        %v1796 = vpop.f32.mrb[0].mxu0
        %v1797 = vadd.f32 0.0, %v1796
        %v1798 = vpop.f32.mrb[0].mxu0
        %v1799 = vadd.f32 0.0, %v1798
        %1800 = vmatprep.mubr.bf16.mxu0 %v589
        %1801 = vmatmul.mubr.bf16.gmra.mrb[0].mxu0 %v588
        %v1802 = vpop.f32.mrb[0].mxu0
        %v1803 = vadd.f32 0.0, %v1802
        %v1804 = vpop.f32.mrb[0].mxu0
        %v1805 = vadd.f32 0.0, %v1804
        %v1806 = vpop.f32.mrb[0].mxu0
        %v1807 = vadd.f32 0.0, %v1806
        %v1808 = vpop.f32.mrb[0].mxu0
        %v1809 = vadd.f32 0.0, %v1808
        %1810 = vmatprep.mubr.bf16.mxu0 %v592
        %1811 = vmatmul.mubr.bf16.gmra.mrb[0].mxu0 %v591
        %v1812 = vpop.f32.mrb[0].mxu0
        %v1813 = vadd.f32 0.0, %v1812
        %v1814 = vpop.f32.mrb[0].mxu0
        %v1815 = vadd.f32 0.0, %v1814
        %v1816 = vpop.f32.mrb[0].mxu0
        %v1817 = vadd.f32 0.0, %v1816
        %v1818 = vpop.f32.mrb[0].mxu0
        %v1819 = vadd.f32 0.0, %v1818
        %1820 = vmatprep.mubr.bf16.mxu0 %v595
        %1821 = vmatmul.mubr.bf16.gmra.mrb[0].mxu0 %v594
        %v1822 = vpop.f32.mrb[0].mxu0
        %v1823 = vadd.f32 0.0, %v1822
        %v1824 = vpop.f32.mrb[0].mxu0
        %v1825 = vadd.f32 0.0, %v1824
        %v1826 = vpop.f32.mrb[0].mxu0
        %v1827 = vadd.f32 0.0, %v1826
        %v1828 = vpop.f32.mrb[0].mxu0
        %v1829 = vadd.f32 0.0, %v1828
        %1830 = vmatprep.mubr.bf16.mxu0 %v598
        %1831 = vmatmul.mubr.bf16.gmra.mrb[0].mxu0 %v597
        %v1832 = vpop.f32.mrb[0].mxu0
        %v1833 = vadd.f32 0.0, %v1832
        %v1834 = vpop.f32.mrb[0].mxu0
        %v1835 = vadd.f32 0.0, %v1834
        %v1836 = vpop.f32.mrb[0].mxu0
        %v1837 = vadd.f32 0.0, %v1836
        %v1838 = vpop.f32.mrb[0].mxu0
        %v1839 = vadd.f32 0.0, %v1838
        %1840 = vdwg.mxu0
        %1841 = vmatprep.subr.bf16.mxu0 %v1441
        %1842 = vmatpush1.bf16.msra.mxu0 %v1440
        %1843 = vmatprep.subr.bf16.mxu0 %v1450
        %1844 = vmatpush1.bf16.msra.mxu0 %v1449
        %1845 = vmatprep.subr.bf16.mxu0 %v1459
        %1846 = vmatpush1.bf16.msra.mxu0 %v1458
        %1847 = vmatprep.subr.bf16.mxu0 %v1468
        %1848 = vmatpush1.bf16.msra.mxu0 %v1467
        %1849 = vmatprep.subr.bf16.mxu0 %v1477
        %1850 = vmatpush1.bf16.msra.mxu0 %v1476
        %1851 = vmatprep.subr.bf16.mxu0 %v1486
        %1852 = vmatpush1.bf16.msra.mxu0 %v1485
        %1853 = vmatprep.subr.bf16.mxu0 %v1495
        %1854 = vmatpush1.bf16.msra.mxu0 %v1494
        %1855 = vmatprep.subr.bf16.mxu0 %v1504
        %1856 = vmatpush1.bf16.msra.mxu0 %v1503
        %1857 = vmatprep.subr.bf16.mxu0 0
        %1858 = vmatpush1.bf16.msra.mxu0 0
        %1859 = vmatprep.subr.bf16.mxu0 0
        %1860 = vmatpush1.bf16.msra.mxu0 0
        %1861 = vmatprep.subr.bf16.mxu0 0
        %1862 = vmatpush1.bf16.msra.mxu0 0
        %1863 = vmatprep.subr.bf16.mxu0 0
        %1864 = vmatpush1.bf16.msra.mxu0 0
        %1865 = vmatprep.subr.bf16.mxu0 0
        %1866 = vmatpush1.bf16.msra.mxu0 0
        %1867 = vmatprep.subr.bf16.mxu0 0
        %1868 = vmatpush1.bf16.msra.mxu0 0
        %1869 = vmatprep.subr.bf16.mxu0 0
        %1870 = vmatpush1.bf16.msra.mxu0 0
        %1871 = vmatprep.subr.bf16.mxu0 0
        %1872 = vmatpush1.bf16.msra.mxu0 0
        %1873 = vmatprep.mubr.bf16.mxu0 0
        %1874 = vmatmul.mubr.bf16.gmra.mrb[0].mxu0 %v578
        %v1875 = vpop.f32.mrb[0].mxu0
        %v1876 = vadd.f32 %v1763, %v1875
        %v1877 = vpop.f32.mrb[0].mxu0
        %v1878 = vadd.f32 %v1765, %v1877
        %v1879 = vpop.f32.mrb[0].mxu0
        %v1880 = vadd.f32 %v1767, %v1879
        %v1881 = vpop.f32.mrb[0].mxu0
        %v1882 = vadd.f32 %v1769, %v1881
        %1883 = vmatprep.mubr.bf16.mxu0 0
        %1884 = vmatmul.mubr.bf16.gmra.mrb[0].mxu0 %v581
        %v1885 = vpop.f32.mrb[0].mxu0
        %v1886 = vadd.f32 %v1773, %v1885
        %v1887 = vpop.f32.mrb[0].mxu0
        %v1888 = vadd.f32 %v1775, %v1887
        %v1889 = vpop.f32.mrb[0].mxu0
        %v1890 = vadd.f32 %v1777, %v1889
        %v1891 = vpop.f32.mrb[0].mxu0
        %v1892 = vadd.f32 %v1779, %v1891
        %1893 = vmatprep.mubr.bf16.mxu0 0
        %1894 = vmatmul.mubr.bf16.gmra.mrb[0].mxu0 %v584
        %v1895 = vpop.f32.mrb[0].mxu0
        %v1896 = vadd.f32 %v1783, %v1895
        %v1897 = vpop.f32.mrb[0].mxu0
        %v1898 = vadd.f32 %v1785, %v1897
        %v1899 = vpop.f32.mrb[0].mxu0
        %v1900 = vadd.f32 %v1787, %v1899
        %v1901 = vpop.f32.mrb[0].mxu0
        %v1902 = vadd.f32 %v1789, %v1901
        %1903 = vmatprep.mubr.bf16.mxu0 0
        %1904 = vmatmul.mubr.bf16.gmra.mrb[0].mxu0 %v587
        %v1905 = vpop.f32.mrb[0].mxu0
        %v1906 = vadd.f32 %v1793, %v1905
        %v1907 = vpop.f32.mrb[0].mxu0
        %v1908 = vadd.f32 %v1795, %v1907
        %v1909 = vpop.f32.mrb[0].mxu0
        %v1910 = vadd.f32 %v1797, %v1909
        %v1911 = vpop.f32.mrb[0].mxu0
        %v1912 = vadd.f32 %v1799, %v1911
        %1913 = vmatprep.mubr.bf16.mxu0 0
        %1914 = vmatmul.mubr.bf16.gmra.mrb[0].mxu0 %v590
        %v1915 = vpop.f32.mrb[0].mxu0
        %v1916 = vadd.f32 %v1803, %v1915
        %v1917 = vpop.f32.mrb[0].mxu0
        %v1918 = vadd.f32 %v1805, %v1917
        %v1919 = vpop.f32.mrb[0].mxu0
        %v1920 = vadd.f32 %v1807, %v1919
        %v1921 = vpop.f32.mrb[0].mxu0
        %v1922 = vadd.f32 %v1809, %v1921
        %1923 = vmatprep.mubr.bf16.mxu0 0
        %1924 = vmatmul.mubr.bf16.gmra.mrb[0].mxu0 %v593
        %v1925 = vpop.f32.mrb[0].mxu0
        %v1926 = vadd.f32 %v1813, %v1925
        %v1927 = vpop.f32.mrb[0].mxu0
        %v1928 = vadd.f32 %v1815, %v1927
        %v1929 = vpop.f32.mrb[0].mxu0
        %v1930 = vadd.f32 %v1817, %v1929
        %v1931 = vpop.f32.mrb[0].mxu0
        %v1932 = vadd.f32 %v1819, %v1931
        %1933 = vmatprep.mubr.bf16.mxu0 0
        %1934 = vmatmul.mubr.bf16.gmra.mrb[0].mxu0 %v596
        %v1935 = vpop.f32.mrb[0].mxu0
        %v1936 = vadd.f32 %v1823, %v1935
        %v1937 = vpop.f32.mrb[0].mxu0
        %v1938 = vadd.f32 %v1825, %v1937
        %v1939 = vpop.f32.mrb[0].mxu0
        %v1940 = vadd.f32 %v1827, %v1939
        %v1941 = vpop.f32.mrb[0].mxu0
        %v1942 = vadd.f32 %v1829, %v1941
        %1943 = vmatprep.mubr.bf16.mxu0 0
        %1944 = vmatmul.mubr.bf16.gmra.mrb[0].mxu0 %v599
        %v1945 = vpop.f32.mrb[0].mxu0
        %v1946 = vadd.f32 %v1833, %v1945
        %v1947 = vpop.f32.mrb[0].mxu0
        %v1948 = vadd.f32 %v1835, %v1947
        %v1949 = vpop.f32.mrb[0].mxu0
        %v1950 = vadd.f32 %v1837, %v1949
        %v1951 = vpop.f32.mrb[0].mxu0
        %v1952 = vadd.f32 %v1839, %v1951
        %1953 = vdwg.mxu0
        %1954 = vmatprep.subr.bf16.mxu0 %v1299
        %1955 = vmatpush1.bf16.msra.mxu0 %v1298
        %1956 = vmatprep.subr.bf16.mxu0 %v1308
        %1957 = vmatpush1.bf16.msra.mxu0 %v1307
        %1958 = vmatprep.subr.bf16.mxu0 %v1317
        %1959 = vmatpush1.bf16.msra.mxu0 %v1316
        %1960 = vmatprep.subr.bf16.mxu0 %v1326
        %1961 = vmatpush1.bf16.msra.mxu0 %v1325
        %1962 = vmatprep.subr.bf16.mxu0 %v1335
        %1963 = vmatpush1.bf16.msra.mxu0 %v1334
        %1964 = vmatprep.subr.bf16.mxu0 %v1344
        %1965 = vmatpush1.bf16.msra.mxu0 %v1343
        %1966 = vmatprep.subr.bf16.mxu0 %v1353
        %1967 = vmatpush1.bf16.msra.mxu0 %v1352
        %1968 = vmatprep.subr.bf16.mxu0 %v1362
        %1969 = vmatpush1.bf16.msra.mxu0 %v1361
        %1970 = vmatprep.subr.bf16.mxu0 %v1371
        %1971 = vmatpush1.bf16.msra.mxu0 %v1370
        %1972 = vmatprep.subr.bf16.mxu0 %v1380
        %1973 = vmatpush1.bf16.msra.mxu0 %v1379
        %1974 = vmatprep.subr.bf16.mxu0 %v1389
        %1975 = vmatpush1.bf16.msra.mxu0 %v1388
        %1976 = vmatprep.subr.bf16.mxu0 %v1398
        %1977 = vmatpush1.bf16.msra.mxu0 %v1397
        %1978 = vmatprep.subr.bf16.mxu0 %v1407
        %1979 = vmatpush1.bf16.msra.mxu0 %v1406
        %1980 = vmatprep.subr.bf16.mxu0 %v1416
        %1981 = vmatpush1.bf16.msra.mxu0 %v1415
        %1982 = vmatprep.subr.bf16.mxu0 %v1425
        %1983 = vmatpush1.bf16.msra.mxu0 %v1424
        %1984 = vmatprep.subr.bf16.mxu0 %v1434
        %1985 = vmatpush1.bf16.msra.mxu0 %v1433
        %1986 = vmatprep.mubr.bf16.mxu0 %v577
        %1987 = vmatmul.mubr.bf16.gmra.mrb[0].mxu0 %v576
        %v1988 = vpop.f32.mrb[0].mxu0
        %v1989 = vadd.f32 0.0, %v1988
        %v1990 = vpop.f32.mrb[0].mxu0
        %v1991 = vadd.f32 0.0, %v1990
        %v1992 = vpop.f32.mrb[0].mxu0
        %v1993 = vadd.f32 0.0, %v1992
        %v1994 = vpop.f32.mrb[0].mxu0
        %v1995 = vadd.f32 0.0, %v1994
        %1996 = vmatprep.mubr.bf16.mxu0 %v580
        %1997 = vmatmul.mubr.bf16.gmra.mrb[0].mxu0 %v579
        %v1998 = vpop.f32.mrb[0].mxu0
        %v1999 = vadd.f32 0.0, %v1998
        %v2000 = vpop.f32.mrb[0].mxu0
        %v2001 = vadd.f32 0.0, %v2000
        %v2002 = vpop.f32.mrb[0].mxu0
        %v2003 = vadd.f32 0.0, %v2002
        %v2004 = vpop.f32.mrb[0].mxu0
        %v2005 = vadd.f32 0.0, %v2004
        %2006 = vmatprep.mubr.bf16.mxu0 %v583
        %2007 = vmatmul.mubr.bf16.gmra.mrb[0].mxu0 %v582
        %v2008 = vpop.f32.mrb[0].mxu0
        %v2009 = vadd.f32 0.0, %v2008
        %v2010 = vpop.f32.mrb[0].mxu0
        %v2011 = vadd.f32 0.0, %v2010
        %v2012 = vpop.f32.mrb[0].mxu0
        %v2013 = vadd.f32 0.0, %v2012
        %v2014 = vpop.f32.mrb[0].mxu0
        %v2015 = vadd.f32 0.0, %v2014
        %2016 = vmatprep.mubr.bf16.mxu0 %v586
        %2017 = vmatmul.mubr.bf16.gmra.mrb[0].mxu0 %v585
        %v2018 = vpop.f32.mrb[0].mxu0
        %v2019 = vadd.f32 0.0, %v2018
        %v2020 = vpop.f32.mrb[0].mxu0
        %v2021 = vadd.f32 0.0, %v2020
        %v2022 = vpop.f32.mrb[0].mxu0
        %v2023 = vadd.f32 0.0, %v2022
        %v2024 = vpop.f32.mrb[0].mxu0
        %v2025 = vadd.f32 0.0, %v2024
        %2026 = vmatprep.mubr.bf16.mxu0 %v589
        %2027 = vmatmul.mubr.bf16.gmra.mrb[0].mxu0 %v588
        %v2028 = vpop.f32.mrb[0].mxu0
        %v2029 = vadd.f32 0.0, %v2028
        %v2030 = vpop.f32.mrb[0].mxu0
        %v2031 = vadd.f32 0.0, %v2030
        %v2032 = vpop.f32.mrb[0].mxu0
        %v2033 = vadd.f32 0.0, %v2032
        %v2034 = vpop.f32.mrb[0].mxu0
        %v2035 = vadd.f32 0.0, %v2034
        %2036 = vmatprep.mubr.bf16.mxu0 %v592
        %2037 = vmatmul.mubr.bf16.gmra.mrb[0].mxu0 %v591
        %v2038 = vpop.f32.mrb[0].mxu0
        %v2039 = vadd.f32 0.0, %v2038
        %v2040 = vpop.f32.mrb[0].mxu0
        %v2041 = vadd.f32 0.0, %v2040
        %v2042 = vpop.f32.mrb[0].mxu0
        %v2043 = vadd.f32 0.0, %v2042
        %v2044 = vpop.f32.mrb[0].mxu0
        %v2045 = vadd.f32 0.0, %v2044
        %2046 = vmatprep.mubr.bf16.mxu0 %v595
        %2047 = vmatmul.mubr.bf16.gmra.mrb[0].mxu0 %v594
        %v2048 = vpop.f32.mrb[0].mxu0
        %v2049 = vadd.f32 0.0, %v2048
        %v2050 = vpop.f32.mrb[0].mxu0
        %v2051 = vadd.f32 0.0, %v2050
        %v2052 = vpop.f32.mrb[0].mxu0
        %v2053 = vadd.f32 0.0, %v2052
        %v2054 = vpop.f32.mrb[0].mxu0
        %v2055 = vadd.f32 0.0, %v2054
        %2056 = vmatprep.mubr.bf16.mxu0 %v598
        %2057 = vmatmul.mubr.bf16.gmra.mrb[0].mxu0 %v597
        %v2058 = vpop.f32.mrb[0].mxu0
        %v2059 = vadd.f32 0.0, %v2058
        %v2060 = vpop.f32.mrb[0].mxu0
        %v2061 = vadd.f32 0.0, %v2060
        %v2062 = vpop.f32.mrb[0].mxu0
        %v2063 = vadd.f32 0.0, %v2062
        %v2064 = vpop.f32.mrb[0].mxu0
        %v2065 = vadd.f32 0.0, %v2064
        %2066 = vdwg.mxu0
        %2067 = vmatprep.subr.bf16.mxu0 %v1443
        %2068 = vmatpush1.bf16.msra.mxu0 %v1442
        %2069 = vmatprep.subr.bf16.mxu0 %v1452
        %2070 = vmatpush1.bf16.msra.mxu0 %v1451
        %2071 = vmatprep.subr.bf16.mxu0 %v1461
        %2072 = vmatpush1.bf16.msra.mxu0 %v1460
        %2073 = vmatprep.subr.bf16.mxu0 %v1470
        %2074 = vmatpush1.bf16.msra.mxu0 %v1469
        %2075 = vmatprep.subr.bf16.mxu0 %v1479
        %2076 = vmatpush1.bf16.msra.mxu0 %v1478
        %2077 = vmatprep.subr.bf16.mxu0 %v1488
        %2078 = vmatpush1.bf16.msra.mxu0 %v1487
        %2079 = vmatprep.subr.bf16.mxu0 %v1497
        %2080 = vmatpush1.bf16.msra.mxu0 %v1496
        %2081 = vmatprep.subr.bf16.mxu0 %v1506
        %2082 = vmatpush1.bf16.msra.mxu0 %v1505
        %2083 = vmatprep.subr.bf16.mxu0 0
        %2084 = vmatpush1.bf16.msra.mxu0 0
        %2085 = vmatprep.subr.bf16.mxu0 0
        %2086 = vmatpush1.bf16.msra.mxu0 0
        %2087 = vmatprep.subr.bf16.mxu0 0
        %2088 = vmatpush1.bf16.msra.mxu0 0
        %2089 = vmatprep.subr.bf16.mxu0 0
        %2090 = vmatpush1.bf16.msra.mxu0 0
        %2091 = vmatprep.subr.bf16.mxu0 0
        %2092 = vmatpush1.bf16.msra.mxu0 0
        %2093 = vmatprep.subr.bf16.mxu0 0
        %2094 = vmatpush1.bf16.msra.mxu0 0
        %2095 = vmatprep.subr.bf16.mxu0 0
        %2096 = vmatpush1.bf16.msra.mxu0 0
        %2097 = vmatprep.subr.bf16.mxu0 0
        %2098 = vmatpush1.bf16.msra.mxu0 0
        %2099 = vmatprep.mubr.bf16.mxu0 0
        %2100 = vmatmul.mubr.bf16.gmra.mrb[0].mxu0 %v578
        %v2101 = vpop.f32.mrb[0].mxu0
        %v2102 = vadd.f32 %v1989, %v2101
        %v2103 = vpop.f32.mrb[0].mxu0
        %v2104 = vadd.f32 %v1991, %v2103
        %v2105 = vpop.f32.mrb[0].mxu0
        %v2106 = vadd.f32 %v1993, %v2105
        %v2107 = vpop.f32.mrb[0].mxu0
        %v2108 = vadd.f32 %v1995, %v2107
        %2109 = vmatprep.mubr.bf16.mxu0 0
        %2110 = vmatmul.mubr.bf16.gmra.mrb[0].mxu0 %v581
        %v2111 = vpop.f32.mrb[0].mxu0
        %v2112 = vadd.f32 %v1999, %v2111
        %v2113 = vpop.f32.mrb[0].mxu0
        %v2114 = vadd.f32 %v2001, %v2113
        %v2115 = vpop.f32.mrb[0].mxu0
        %v2116 = vadd.f32 %v2003, %v2115
        %v2117 = vpop.f32.mrb[0].mxu0
        %v2118 = vadd.f32 %v2005, %v2117
        %2119 = vmatprep.mubr.bf16.mxu0 0
        %2120 = vmatmul.mubr.bf16.gmra.mrb[0].mxu0 %v584
        %v2121 = vpop.f32.mrb[0].mxu0
        %v2122 = vadd.f32 %v2009, %v2121
        %v2123 = vpop.f32.mrb[0].mxu0
        %v2124 = vadd.f32 %v2011, %v2123
        %v2125 = vpop.f32.mrb[0].mxu0
        %v2126 = vadd.f32 %v2013, %v2125
        %v2127 = vpop.f32.mrb[0].mxu0
        %v2128 = vadd.f32 %v2015, %v2127
        %2129 = vmatprep.mubr.bf16.mxu0 0
        %2130 = vmatmul.mubr.bf16.gmra.mrb[0].mxu0 %v587
        %v2131 = vpop.f32.mrb[0].mxu0
        %v2132 = vadd.f32 %v2019, %v2131
        %v2133 = vpop.f32.mrb[0].mxu0
        %v2134 = vadd.f32 %v2021, %v2133
        %v2135 = vpop.f32.mrb[0].mxu0
        %v2136 = vadd.f32 %v2023, %v2135
        %v2137 = vpop.f32.mrb[0].mxu0
        %v2138 = vadd.f32 %v2025, %v2137
        %2139 = vmatprep.mubr.bf16.mxu0 0
        %2140 = vmatmul.mubr.bf16.gmra.mrb[0].mxu0 %v590
        %v2141 = vpop.f32.mrb[0].mxu0
        %v2142 = vadd.f32 %v2029, %v2141
        %v2143 = vpop.f32.mrb[0].mxu0
        %v2144 = vadd.f32 %v2031, %v2143
        %v2145 = vpop.f32.mrb[0].mxu0
        %v2146 = vadd.f32 %v2033, %v2145
        %v2147 = vpop.f32.mrb[0].mxu0
        %v2148 = vadd.f32 %v2035, %v2147
        %2149 = vmatprep.mubr.bf16.mxu0 0
        %2150 = vmatmul.mubr.bf16.gmra.mrb[0].mxu0 %v593
        %v2151 = vpop.f32.mrb[0].mxu0
        %v2152 = vadd.f32 %v2039, %v2151
        %v2153 = vpop.f32.mrb[0].mxu0
        %v2154 = vadd.f32 %v2041, %v2153
        %v2155 = vpop.f32.mrb[0].mxu0
        %v2156 = vadd.f32 %v2043, %v2155
        %v2157 = vpop.f32.mrb[0].mxu0
        %v2158 = vadd.f32 %v2045, %v2157
        %2159 = vmatprep.mubr.bf16.mxu0 0
        %2160 = vmatmul.mubr.bf16.gmra.mrb[0].mxu0 %v596
        %v2161 = vpop.f32.mrb[0].mxu0
        %v2162 = vadd.f32 %v2049, %v2161
        %v2163 = vpop.f32.mrb[0].mxu0
        %v2164 = vadd.f32 %v2051, %v2163
        %v2165 = vpop.f32.mrb[0].mxu0
        %v2166 = vadd.f32 %v2053, %v2165
        %v2167 = vpop.f32.mrb[0].mxu0
        %v2168 = vadd.f32 %v2055, %v2167
        %2169 = vmatprep.mubr.bf16.mxu0 0
        %2170 = vmatmul.mubr.bf16.gmra.mrb[0].mxu0 %v599
        %v2171 = vpop.f32.mrb[0].mxu0
        %v2172 = vadd.f32 %v2059, %v2171
        %v2173 = vpop.f32.mrb[0].mxu0
        %v2174 = vadd.f32 %v2061, %v2173
        %v2175 = vpop.f32.mrb[0].mxu0
        %v2176 = vadd.f32 %v2063, %v2175
        %v2177 = vpop.f32.mrb[0].mxu0
        %v2178 = vadd.f32 %v2065, %v2177
        %2179 = vdwg.mxu0
        %2180 = vmatprep.subr.bf16.mxu0 %v1301
        %2181 = vmatpush1.bf16.msra.mxu0 %v1300
        %2182 = vmatprep.subr.bf16.mxu0 %v1310
        %2183 = vmatpush1.bf16.msra.mxu0 %v1309
        %2184 = vmatprep.subr.bf16.mxu0 %v1319
        %2185 = vmatpush1.bf16.msra.mxu0 %v1318
        %2186 = vmatprep.subr.bf16.mxu0 %v1328
        %2187 = vmatpush1.bf16.msra.mxu0 %v1327
        %2188 = vmatprep.subr.bf16.mxu0 %v1337
        %2189 = vmatpush1.bf16.msra.mxu0 %v1336
        %2190 = vmatprep.subr.bf16.mxu0 %v1346
        %2191 = vmatpush1.bf16.msra.mxu0 %v1345
        %2192 = vmatprep.subr.bf16.mxu0 %v1355
        %2193 = vmatpush1.bf16.msra.mxu0 %v1354
        %2194 = vmatprep.subr.bf16.mxu0 %v1364
        %2195 = vmatpush1.bf16.msra.mxu0 %v1363
        %2196 = vmatprep.subr.bf16.mxu0 %v1373
        %2197 = vmatpush1.bf16.msra.mxu0 %v1372
        %2198 = vmatprep.subr.bf16.mxu0 %v1382
        %2199 = vmatpush1.bf16.msra.mxu0 %v1381
        %2200 = vmatprep.subr.bf16.mxu0 %v1391
        %2201 = vmatpush1.bf16.msra.mxu0 %v1390
        %2202 = vmatprep.subr.bf16.mxu0 %v1400
        %2203 = vmatpush1.bf16.msra.mxu0 %v1399
        %2204 = vmatprep.subr.bf16.mxu0 %v1409
        %2205 = vmatpush1.bf16.msra.mxu0 %v1408
        %2206 = vmatprep.subr.bf16.mxu0 %v1418
        %2207 = vmatpush1.bf16.msra.mxu0 %v1417
        %2208 = vmatprep.subr.bf16.mxu0 %v1427
        %2209 = vmatpush1.bf16.msra.mxu0 %v1426
        %2210 = vmatprep.subr.bf16.mxu0 %v1436
        %2211 = vmatpush1.bf16.msra.mxu0 %v1435
        %2212 = vmatprep.mubr.bf16.mxu0 %v577
        %2213 = vmatmul.mubr.bf16.gmra.mrb[0].mxu0 %v576
        %v2214 = vpop.f32.mrb[0].mxu0
        %v2215 = vadd.f32 0.0, %v2214
        %v2216 = vpop.f32.mrb[0].mxu0
        %v2217 = vadd.f32 0.0, %v2216
        %v2218 = vpop.f32.mrb[0].mxu0
        %v2219 = vadd.f32 0.0, %v2218
        %v2220 = vpop.f32.mrb[0].mxu0
        %v2221 = vadd.f32 0.0, %v2220
        %2222 = vmatprep.mubr.bf16.mxu0 %v580
        %2223 = vmatmul.mubr.bf16.gmra.mrb[0].mxu0 %v579
        %v2224 = vpop.f32.mrb[0].mxu0
        %v2225 = vadd.f32 0.0, %v2224
        %v2226 = vpop.f32.mrb[0].mxu0
        %v2227 = vadd.f32 0.0, %v2226
        %v2228 = vpop.f32.mrb[0].mxu0
        %v2229 = vadd.f32 0.0, %v2228
        %v2230 = vpop.f32.mrb[0].mxu0
        %v2231 = vadd.f32 0.0, %v2230
        %2232 = vmatprep.mubr.bf16.mxu0 %v583
        %2233 = vmatmul.mubr.bf16.gmra.mrb[0].mxu0 %v582
        %v2234 = vpop.f32.mrb[0].mxu0
        %v2235 = vadd.f32 0.0, %v2234
        %v2236 = vpop.f32.mrb[0].mxu0
        %v2237 = vadd.f32 0.0, %v2236
        %v2238 = vpop.f32.mrb[0].mxu0
        %v2239 = vadd.f32 0.0, %v2238
        %v2240 = vpop.f32.mrb[0].mxu0
        %v2241 = vadd.f32 0.0, %v2240
        %2242 = vmatprep.mubr.bf16.mxu0 %v586
        %2243 = vmatmul.mubr.bf16.gmra.mrb[0].mxu0 %v585
        %v2244 = vpop.f32.mrb[0].mxu0
        %v2245 = vadd.f32 0.0, %v2244
        %v2246 = vpop.f32.mrb[0].mxu0
        %v2247 = vadd.f32 0.0, %v2246
        %v2248 = vpop.f32.mrb[0].mxu0
        %v2249 = vadd.f32 0.0, %v2248
        %v2250 = vpop.f32.mrb[0].mxu0
        %v2251 = vadd.f32 0.0, %v2250
        %2252 = vmatprep.mubr.bf16.mxu0 %v589
        %2253 = vmatmul.mubr.bf16.gmra.mrb[0].mxu0 %v588
        %v2254 = vpop.f32.mrb[0].mxu0
        %v2255 = vadd.f32 0.0, %v2254
        %v2256 = vpop.f32.mrb[0].mxu0
        %v2257 = vadd.f32 0.0, %v2256
        %v2258 = vpop.f32.mrb[0].mxu0
        %v2259 = vadd.f32 0.0, %v2258
        %v2260 = vpop.f32.mrb[0].mxu0
        %v2261 = vadd.f32 0.0, %v2260
        %2262 = vmatprep.mubr.bf16.mxu0 %v592
        %2263 = vmatmul.mubr.bf16.gmra.mrb[0].mxu0 %v591
        %v2264 = vpop.f32.mrb[0].mxu0
        %v2265 = vadd.f32 0.0, %v2264
        %v2266 = vpop.f32.mrb[0].mxu0
        %v2267 = vadd.f32 0.0, %v2266
        %v2268 = vpop.f32.mrb[0].mxu0
        %v2269 = vadd.f32 0.0, %v2268
        %v2270 = vpop.f32.mrb[0].mxu0
        %v2271 = vadd.f32 0.0, %v2270
        %2272 = vmatprep.mubr.bf16.mxu0 %v595
        %2273 = vmatmul.mubr.bf16.gmra.mrb[0].mxu0 %v594
        %v2274 = vpop.f32.mrb[0].mxu0
        %v2275 = vadd.f32 0.0, %v2274
        %v2276 = vpop.f32.mrb[0].mxu0
        %v2277 = vadd.f32 0.0, %v2276
        %v2278 = vpop.f32.mrb[0].mxu0
        %v2279 = vadd.f32 0.0, %v2278
        %v2280 = vpop.f32.mrb[0].mxu0
        %v2281 = vadd.f32 0.0, %v2280
        %2282 = vmatprep.mubr.bf16.mxu0 %v598
        %2283 = vmatmul.mubr.bf16.gmra.mrb[0].mxu0 %v597
        %v2284 = vpop.f32.mrb[0].mxu0
        %v2285 = vadd.f32 0.0, %v2284
        %v2286 = vpop.f32.mrb[0].mxu0
        %v2287 = vadd.f32 0.0, %v2286
        %v2288 = vpop.f32.mrb[0].mxu0
        %v2289 = vadd.f32 0.0, %v2288
        %v2290 = vpop.f32.mrb[0].mxu0
        %v2291 = vadd.f32 0.0, %v2290
        %2292 = vdwg.mxu0
        %2293 = vmatprep.subr.bf16.mxu0 %v1445
        %2294 = vmatpush1.bf16.msra.mxu0 %v1444
        %2295 = vmatprep.subr.bf16.mxu0 %v1454
        %2296 = vmatpush1.bf16.msra.mxu0 %v1453
        %2297 = vmatprep.subr.bf16.mxu0 %v1463
        %2298 = vmatpush1.bf16.msra.mxu0 %v1462
        %2299 = vmatprep.subr.bf16.mxu0 %v1472
        %2300 = vmatpush1.bf16.msra.mxu0 %v1471
        %2301 = vmatprep.subr.bf16.mxu0 %v1481
        %2302 = vmatpush1.bf16.msra.mxu0 %v1480
        %2303 = vmatprep.subr.bf16.mxu0 %v1490
        %2304 = vmatpush1.bf16.msra.mxu0 %v1489
        %2305 = vmatprep.subr.bf16.mxu0 %v1499
        %2306 = vmatpush1.bf16.msra.mxu0 %v1498
        %2307 = vmatprep.subr.bf16.mxu0 %v1508
        %2308 = vmatpush1.bf16.msra.mxu0 %v1507
        %2309 = vmatprep.subr.bf16.mxu0 0
        %2310 = vmatpush1.bf16.msra.mxu0 0
        %2311 = vmatprep.subr.bf16.mxu0 0
        %2312 = vmatpush1.bf16.msra.mxu0 0
        %2313 = vmatprep.subr.bf16.mxu0 0
        %2314 = vmatpush1.bf16.msra.mxu0 0
        %2315 = vmatprep.subr.bf16.mxu0 0
        %2316 = vmatpush1.bf16.msra.mxu0 0
        %2317 = vmatprep.subr.bf16.mxu0 0
        %2318 = vmatpush1.bf16.msra.mxu0 0
        %2319 = vmatprep.subr.bf16.mxu0 0
        %2320 = vmatpush1.bf16.msra.mxu0 0
        %2321 = vmatprep.subr.bf16.mxu0 0
        %2322 = vmatpush1.bf16.msra.mxu0 0
        %2323 = vmatprep.subr.bf16.mxu0 0
        %2324 = vmatpush1.bf16.msra.mxu0 0
        %2325 = vmatprep.mubr.bf16.mxu0 0
        %2326 = vmatmul.mubr.bf16.gmra.mrb[0].mxu0 %v578
        %v2327 = vpop.f32.mrb[0].mxu0
        %v2328 = vadd.f32 %v2215, %v2327
        %v2329 = vpop.f32.mrb[0].mxu0
        %v2330 = vadd.f32 %v2217, %v2329
        %v2331 = vpop.f32.mrb[0].mxu0
        %v2332 = vadd.f32 %v2219, %v2331
        %v2333 = vpop.f32.mrb[0].mxu0
        %v2334 = vadd.f32 %v2221, %v2333
        %2335 = vmatprep.mubr.bf16.mxu0 0
        %2336 = vmatmul.mubr.bf16.gmra.mrb[0].mxu0 %v581
        %v2337 = vpop.f32.mrb[0].mxu0
        %v2338 = vadd.f32 %v2225, %v2337
        %v2339 = vpop.f32.mrb[0].mxu0
        %v2340 = vadd.f32 %v2227, %v2339
        %v2341 = vpop.f32.mrb[0].mxu0
        %v2342 = vadd.f32 %v2229, %v2341
        %v2343 = vpop.f32.mrb[0].mxu0
        %v2344 = vadd.f32 %v2231, %v2343
        %2345 = vmatprep.mubr.bf16.mxu0 0
        %2346 = vmatmul.mubr.bf16.gmra.mrb[0].mxu0 %v584
        %v2347 = vpop.f32.mrb[0].mxu0
        %v2348 = vadd.f32 %v2235, %v2347
        %v2349 = vpop.f32.mrb[0].mxu0
        %v2350 = vadd.f32 %v2237, %v2349
        %v2351 = vpop.f32.mrb[0].mxu0
        %v2352 = vadd.f32 %v2239, %v2351
        %v2353 = vpop.f32.mrb[0].mxu0
        %v2354 = vadd.f32 %v2241, %v2353
        %2355 = vmatprep.mubr.bf16.mxu0 0
        %2356 = vmatmul.mubr.bf16.gmra.mrb[0].mxu0 %v587
        %v2357 = vpop.f32.mrb[0].mxu0
        %v2358 = vadd.f32 %v2245, %v2357
        %v2359 = vpop.f32.mrb[0].mxu0
        %v2360 = vadd.f32 %v2247, %v2359
        %v2361 = vpop.f32.mrb[0].mxu0
        %v2362 = vadd.f32 %v2249, %v2361
        %v2363 = vpop.f32.mrb[0].mxu0
        %v2364 = vadd.f32 %v2251, %v2363
        %2365 = vmatprep.mubr.bf16.mxu0 0
        %2366 = vmatmul.mubr.bf16.gmra.mrb[0].mxu0 %v590
        %v2367 = vpop.f32.mrb[0].mxu0
        %v2368 = vadd.f32 %v2255, %v2367
        %v2369 = vpop.f32.mrb[0].mxu0
        %v2370 = vadd.f32 %v2257, %v2369
        %v2371 = vpop.f32.mrb[0].mxu0
        %v2372 = vadd.f32 %v2259, %v2371
        %v2373 = vpop.f32.mrb[0].mxu0
        %v2374 = vadd.f32 %v2261, %v2373
        %2375 = vmatprep.mubr.bf16.mxu0 0
        %2376 = vmatmul.mubr.bf16.gmra.mrb[0].mxu0 %v593
        %v2377 = vpop.f32.mrb[0].mxu0
        %v2378 = vadd.f32 %v2265, %v2377
        %v2379 = vpop.f32.mrb[0].mxu0
        %v2380 = vadd.f32 %v2267, %v2379
        %v2381 = vpop.f32.mrb[0].mxu0
        %v2382 = vadd.f32 %v2269, %v2381
        %v2383 = vpop.f32.mrb[0].mxu0
        %v2384 = vadd.f32 %v2271, %v2383
        %2385 = vmatprep.mubr.bf16.mxu0 0
        %2386 = vmatmul.mubr.bf16.gmra.mrb[0].mxu0 %v596
        %v2387 = vpop.f32.mrb[0].mxu0
        %v2388 = vadd.f32 %v2275, %v2387
        %v2389 = vpop.f32.mrb[0].mxu0
        %v2390 = vadd.f32 %v2277, %v2389
        %v2391 = vpop.f32.mrb[0].mxu0
        %v2392 = vadd.f32 %v2279, %v2391
        %v2393 = vpop.f32.mrb[0].mxu0
        %v2394 = vadd.f32 %v2281, %v2393
        %2395 = vmatprep.mubr.bf16.mxu0 0
        %2396 = vmatmul.mubr.bf16.gmra.mrb[0].mxu0 %v599
        %v2397 = vpop.f32.mrb[0].mxu0
        %v2398 = vadd.f32 %v2285, %v2397
        %v2399 = vpop.f32.mrb[0].mxu0
        %v2400 = vadd.f32 %v2287, %v2399
        %v2401 = vpop.f32.mrb[0].mxu0
        %v2402 = vadd.f32 %v2289, %v2401
        %v2403 = vpop.f32.mrb[0].mxu0
        %v2404 = vadd.f32 %v2291, %v2403
        %2405 = vdwg.mxu0
        %2406 = vmatprep.subr.bf16.mxu0 %v1303
        %2407 = vmatpush1.bf16.msra.mxu0 %v1302
        %2408 = vmatprep.subr.bf16.mxu0 %v1312
        %2409 = vmatpush1.bf16.msra.mxu0 %v1311
        %2410 = vmatprep.subr.bf16.mxu0 %v1321
        %2411 = vmatpush1.bf16.msra.mxu0 %v1320
        %2412 = vmatprep.subr.bf16.mxu0 %v1330
        %2413 = vmatpush1.bf16.msra.mxu0 %v1329
        %2414 = vmatprep.subr.bf16.mxu0 %v1339
        %2415 = vmatpush1.bf16.msra.mxu0 %v1338
        %2416 = vmatprep.subr.bf16.mxu0 %v1348
        %2417 = vmatpush1.bf16.msra.mxu0 %v1347
        %2418 = vmatprep.subr.bf16.mxu0 %v1357
        %2419 = vmatpush1.bf16.msra.mxu0 %v1356
        %2420 = vmatprep.subr.bf16.mxu0 %v1366
        %2421 = vmatpush1.bf16.msra.mxu0 %v1365
        %2422 = vmatprep.subr.bf16.mxu0 %v1375
        %2423 = vmatpush1.bf16.msra.mxu0 %v1374
        %2424 = vmatprep.subr.bf16.mxu0 %v1384
        %2425 = vmatpush1.bf16.msra.mxu0 %v1383
        %2426 = vmatprep.subr.bf16.mxu0 %v1393
        %2427 = vmatpush1.bf16.msra.mxu0 %v1392
        %2428 = vmatprep.subr.bf16.mxu0 %v1402
        %2429 = vmatpush1.bf16.msra.mxu0 %v1401
        %2430 = vmatprep.subr.bf16.mxu0 %v1411
        %2431 = vmatpush1.bf16.msra.mxu0 %v1410
        %2432 = vmatprep.subr.bf16.mxu0 %v1420
        %2433 = vmatpush1.bf16.msra.mxu0 %v1419
        %2434 = vmatprep.subr.bf16.mxu0 %v1429
        %2435 = vmatpush1.bf16.msra.mxu0 %v1428
        %2436 = vmatprep.subr.bf16.mxu0 %v1438
        %2437 = vmatpush1.bf16.msra.mxu0 %v1437
        %2438 = vmatprep.mubr.bf16.mxu0 %v577
        %2439 = vmatmul.mubr.bf16.gmra.mrb[0].mxu0 %v576
        %v2440 = vpop.f32.mrb[0].mxu0
        %v2441 = vadd.f32 0.0, %v2440
        %v2442 = vpop.f32.mrb[0].mxu0
        %v2443 = vadd.f32 0.0, %v2442
        %v2444 = vpop.f32.mrb[0].mxu0
        %v2445 = vadd.f32 0.0, %v2444
        %v2446 = vpop.f32.mrb[0].mxu0
        %v2447 = vadd.f32 0.0, %v2446
        %2448 = vmatprep.mubr.bf16.mxu0 %v580
        %2449 = vmatmul.mubr.bf16.gmra.mrb[0].mxu0 %v579
        %v2450 = vpop.f32.mrb[0].mxu0
        %v2451 = vadd.f32 0.0, %v2450
        %v2452 = vpop.f32.mrb[0].mxu0
        %v2453 = vadd.f32 0.0, %v2452
        %v2454 = vpop.f32.mrb[0].mxu0
        %v2455 = vadd.f32 0.0, %v2454
        %v2456 = vpop.f32.mrb[0].mxu0
        %v2457 = vadd.f32 0.0, %v2456
        %2458 = vmatprep.mubr.bf16.mxu0 %v583
        %2459 = vmatmul.mubr.bf16.gmra.mrb[0].mxu0 %v582
        %v2460 = vpop.f32.mrb[0].mxu0
        %v2461 = vadd.f32 0.0, %v2460
        %v2462 = vpop.f32.mrb[0].mxu0
        %v2463 = vadd.f32 0.0, %v2462
        %v2464 = vpop.f32.mrb[0].mxu0
        %v2465 = vadd.f32 0.0, %v2464
        %v2466 = vpop.f32.mrb[0].mxu0
        %v2467 = vadd.f32 0.0, %v2466
        %2468 = vmatprep.mubr.bf16.mxu0 %v586
        %2469 = vmatmul.mubr.bf16.gmra.mrb[0].mxu0 %v585
        %v2470 = vpop.f32.mrb[0].mxu0
        %v2471 = vadd.f32 0.0, %v2470
        %v2472 = vpop.f32.mrb[0].mxu0
        %v2473 = vadd.f32 0.0, %v2472
        %v2474 = vpop.f32.mrb[0].mxu0
        %v2475 = vadd.f32 0.0, %v2474
        %v2476 = vpop.f32.mrb[0].mxu0
        %v2477 = vadd.f32 0.0, %v2476
        %2478 = vmatprep.mubr.bf16.mxu0 %v589
        %2479 = vmatmul.mubr.bf16.gmra.mrb[0].mxu0 %v588
        %v2480 = vpop.f32.mrb[0].mxu0
        %v2481 = vadd.f32 0.0, %v2480
        %v2482 = vpop.f32.mrb[0].mxu0
        %v2483 = vadd.f32 0.0, %v2482
        %v2484 = vpop.f32.mrb[0].mxu0
        %v2485 = vadd.f32 0.0, %v2484
        %v2486 = vpop.f32.mrb[0].mxu0
        %v2487 = vadd.f32 0.0, %v2486
        %2488 = vmatprep.mubr.bf16.mxu0 %v592
        %2489 = vmatmul.mubr.bf16.gmra.mrb[0].mxu0 %v591
        %v2490 = vpop.f32.mrb[0].mxu0
        %v2491 = vadd.f32 0.0, %v2490
        %v2492 = vpop.f32.mrb[0].mxu0
        %v2493 = vadd.f32 0.0, %v2492
        %v2494 = vpop.f32.mrb[0].mxu0
        %v2495 = vadd.f32 0.0, %v2494
        %v2496 = vpop.f32.mrb[0].mxu0
        %v2497 = vadd.f32 0.0, %v2496
        %2498 = vmatprep.mubr.bf16.mxu0 %v595
        %2499 = vmatmul.mubr.bf16.gmra.mrb[0].mxu0 %v594
        %v2500 = vpop.f32.mrb[0].mxu0
        %v2501 = vadd.f32 0.0, %v2500
        %v2502 = vpop.f32.mrb[0].mxu0
        %v2503 = vadd.f32 0.0, %v2502
        %v2504 = vpop.f32.mrb[0].mxu0
        %v2505 = vadd.f32 0.0, %v2504
        %v2506 = vpop.f32.mrb[0].mxu0
        %v2507 = vadd.f32 0.0, %v2506
        %2508 = vmatprep.mubr.bf16.mxu0 %v598
        %2509 = vmatmul.mubr.bf16.gmra.mrb[0].mxu0 %v597
        %v2510 = vpop.f32.mrb[0].mxu0
        %v2511 = vadd.f32 0.0, %v2510
        %v2512 = vpop.f32.mrb[0].mxu0
        %v2513 = vadd.f32 0.0, %v2512
        %v2514 = vpop.f32.mrb[0].mxu0
        %v2515 = vadd.f32 0.0, %v2514
        %v2516 = vpop.f32.mrb[0].mxu0
        %v2517 = vadd.f32 0.0, %v2516
        %2518 = vdwg.mxu0
        %2519 = vmatprep.subr.bf16.mxu0 %v1447
        %2520 = vmatpush1.bf16.msra.mxu0 %v1446
        %2521 = vmatprep.subr.bf16.mxu0 %v1456
        %2522 = vmatpush1.bf16.msra.mxu0 %v1455
        %2523 = vmatprep.subr.bf16.mxu0 %v1465
        %2524 = vmatpush1.bf16.msra.mxu0 %v1464
        %2525 = vmatprep.subr.bf16.mxu0 %v1474
        %2526 = vmatpush1.bf16.msra.mxu0 %v1473
        %2527 = vmatprep.subr.bf16.mxu0 %v1483
        %2528 = vmatpush1.bf16.msra.mxu0 %v1482
        %2529 = vmatprep.subr.bf16.mxu0 %v1492
        %2530 = vmatpush1.bf16.msra.mxu0 %v1491
        %2531 = vmatprep.subr.bf16.mxu0 %v1501
        %2532 = vmatpush1.bf16.msra.mxu0 %v1500
        %2533 = vmatprep.subr.bf16.mxu0 %v1510
        %2534 = vmatpush1.bf16.msra.mxu0 %v1509
        %2535 = vmatprep.subr.bf16.mxu0 0
        %2536 = vmatpush1.bf16.msra.mxu0 0
        %2537 = vmatprep.subr.bf16.mxu0 0
        %2538 = vmatpush1.bf16.msra.mxu0 0
        %2539 = vmatprep.subr.bf16.mxu0 0
        %2540 = vmatpush1.bf16.msra.mxu0 0
        %2541 = vmatprep.subr.bf16.mxu0 0
        %2542 = vmatpush1.bf16.msra.mxu0 0
        %2543 = vmatprep.subr.bf16.mxu0 0
        %2544 = vmatpush1.bf16.msra.mxu0 0
        %2545 = vmatprep.subr.bf16.mxu0 0
        %2546 = vmatpush1.bf16.msra.mxu0 0
        %2547 = vmatprep.subr.bf16.mxu0 0
        %2548 = vmatpush1.bf16.msra.mxu0 0
        %2549 = vmatprep.subr.bf16.mxu0 0
        %2550 = vmatpush1.bf16.msra.mxu0 0
        %2551 = vmatprep.mubr.bf16.mxu0 0
        %2552 = vmatmul.mubr.bf16.gmra.mrb[0].mxu0 %v578
        %v2553 = vpop.f32.mrb[0].mxu0
        %v2554 = vadd.f32 %v2441, %v2553
        %v2555 = vpop.f32.mrb[0].mxu0
        %v2556 = vadd.f32 %v2443, %v2555
        %v2557 = vpop.f32.mrb[0].mxu0
        %v2558 = vadd.f32 %v2445, %v2557
        %v2559 = vpop.f32.mrb[0].mxu0
        %v2560 = vadd.f32 %v2447, %v2559
        %2561 = vmatprep.mubr.bf16.mxu0 0
        %2562 = vmatmul.mubr.bf16.gmra.mrb[0].mxu0 %v581
        %v2563 = vpop.f32.mrb[0].mxu0
        %v2564 = vadd.f32 %v2451, %v2563
        %v2565 = vpop.f32.mrb[0].mxu0
        %v2566 = vadd.f32 %v2453, %v2565
        %v2567 = vpop.f32.mrb[0].mxu0
        %v2568 = vadd.f32 %v2455, %v2567
        %v2569 = vpop.f32.mrb[0].mxu0
        %v2570 = vadd.f32 %v2457, %v2569
        %2571 = vmatprep.mubr.bf16.mxu0 0
        %2572 = vmatmul.mubr.bf16.gmra.mrb[0].mxu0 %v584
        %v2573 = vpop.f32.mrb[0].mxu0
        %v2574 = vadd.f32 %v2461, %v2573
        %v2575 = vpop.f32.mrb[0].mxu0
        %v2576 = vadd.f32 %v2463, %v2575
        %v2577 = vpop.f32.mrb[0].mxu0
        %v2578 = vadd.f32 %v2465, %v2577
        %v2579 = vpop.f32.mrb[0].mxu0
        %v2580 = vadd.f32 %v2467, %v2579
        %2581 = vmatprep.mubr.bf16.mxu0 0
        %2582 = vmatmul.mubr.bf16.gmra.mrb[0].mxu0 %v587
        %v2583 = vpop.f32.mrb[0].mxu0
        %v2584 = vadd.f32 %v2471, %v2583
        %v2585 = vpop.f32.mrb[0].mxu0
        %v2586 = vadd.f32 %v2473, %v2585
        %v2587 = vpop.f32.mrb[0].mxu0
        %v2588 = vadd.f32 %v2475, %v2587
        %v2589 = vpop.f32.mrb[0].mxu0
        %v2590 = vadd.f32 %v2477, %v2589
        %2591 = vmatprep.mubr.bf16.mxu0 0
        %2592 = vmatmul.mubr.bf16.gmra.mrb[0].mxu0 %v590
        %v2593 = vpop.f32.mrb[0].mxu0
        %v2594 = vadd.f32 %v2481, %v2593
        %v2595 = vpop.f32.mrb[0].mxu0
        %v2596 = vadd.f32 %v2483, %v2595
        %v2597 = vpop.f32.mrb[0].mxu0
        %v2598 = vadd.f32 %v2485, %v2597
        %v2599 = vpop.f32.mrb[0].mxu0
        %v2600 = vadd.f32 %v2487, %v2599
        %2601 = vmatprep.mubr.bf16.mxu0 0
        %2602 = vmatmul.mubr.bf16.gmra.mrb[0].mxu0 %v593
        %v2603 = vpop.f32.mrb[0].mxu0
        %v2604 = vadd.f32 %v2491, %v2603
        %v2605 = vpop.f32.mrb[0].mxu0
        %v2606 = vadd.f32 %v2493, %v2605
        %v2607 = vpop.f32.mrb[0].mxu0
        %v2608 = vadd.f32 %v2495, %v2607
        %v2609 = vpop.f32.mrb[0].mxu0
        %v2610 = vadd.f32 %v2497, %v2609
        %2611 = vmatprep.mubr.bf16.mxu0 0
        %2612 = vmatmul.mubr.bf16.gmra.mrb[0].mxu0 %v596
        %v2613 = vpop.f32.mrb[0].mxu0
        %v2614 = vadd.f32 %v2501, %v2613
        %v2615 = vpop.f32.mrb[0].mxu0
        %v2616 = vadd.f32 %v2503, %v2615
        %v2617 = vpop.f32.mrb[0].mxu0
        %v2618 = vadd.f32 %v2505, %v2617
        %v2619 = vpop.f32.mrb[0].mxu0
        %v2620 = vadd.f32 %v2507, %v2619
        %2621 = vmatprep.mubr.bf16.mxu0 0
        %2622 = vmatmul.mubr.bf16.gmra.mrb[0].mxu0 %v599
        %v2623 = vpop.f32.mrb[0].mxu0
        %v2624 = vadd.f32 %v2511, %v2623
        %v2625 = vpop.f32.mrb[0].mxu0
        %v2626 = vadd.f32 %v2513, %v2625
        %v2627 = vpop.f32.mrb[0].mxu0
        %v2628 = vadd.f32 %v2515, %v2627
        %v2629 = vpop.f32.mrb[0].mxu0
        %v2630 = vadd.f32 %v2517, %v2629
        %2631 = vdwg.mxu0
        %2632 = vmatprep.subr.bf16.mxu0 0
        %2633 = vmatpush1.bf16.msra.mxu0 %v1304
        %2634 = vmatprep.subr.bf16.mxu0 0
        %2635 = vmatpush1.bf16.msra.mxu0 %v1313
        %2636 = vmatprep.subr.bf16.mxu0 0
        %2637 = vmatpush1.bf16.msra.mxu0 %v1322
        %2638 = vmatprep.subr.bf16.mxu0 0
        %2639 = vmatpush1.bf16.msra.mxu0 %v1331
        %2640 = vmatprep.subr.bf16.mxu0 0
        %2641 = vmatpush1.bf16.msra.mxu0 %v1340
        %2642 = vmatprep.subr.bf16.mxu0 0
        %2643 = vmatpush1.bf16.msra.mxu0 %v1349
        %2644 = vmatprep.subr.bf16.mxu0 0
        %2645 = vmatpush1.bf16.msra.mxu0 %v1358
        %2646 = vmatprep.subr.bf16.mxu0 0
        %2647 = vmatpush1.bf16.msra.mxu0 %v1367
        %2648 = vmatprep.subr.bf16.mxu0 0
        %2649 = vmatpush1.bf16.msra.mxu0 %v1376
        %2650 = vmatprep.subr.bf16.mxu0 0
        %2651 = vmatpush1.bf16.msra.mxu0 %v1385
        %2652 = vmatprep.subr.bf16.mxu0 0
        %2653 = vmatpush1.bf16.msra.mxu0 %v1394
        %2654 = vmatprep.subr.bf16.mxu0 0
        %2655 = vmatpush1.bf16.msra.mxu0 %v1403
        %2656 = vmatprep.subr.bf16.mxu0 0
        %2657 = vmatpush1.bf16.msra.mxu0 %v1412
        %2658 = vmatprep.subr.bf16.mxu0 0
        %2659 = vmatpush1.bf16.msra.mxu0 %v1421
        %2660 = vmatprep.subr.bf16.mxu0 0
        %2661 = vmatpush1.bf16.msra.mxu0 %v1430
        %2662 = vmatprep.subr.bf16.mxu0 0
        %2663 = vmatpush1.bf16.msra.mxu0 %v1439
        %2664 = vmatprep.mubr.bf16.mxu0 %v577
        %2665 = vmatmul.mubr.bf16.gmra.mrb[0].mxu0 %v576
        %v2666 = vpop.f32.mrb[0].mxu0
        %v2667 = vadd.f32 0.0, %v2666
        %v2668 = vpop.f32.mrb[0].mxu0
        %v2669 = vpop.f32.mrb[0].mxu0
        %v2670 = vadd.f32 0.0, %v2669
        %v2671 = vpop.f32.mrb[0].mxu0
        %2672 = vmatprep.mubr.bf16.mxu0 %v580
        %2673 = vmatmul.mubr.bf16.gmra.mrb[0].mxu0 %v579
        %v2674 = vpop.f32.mrb[0].mxu0
        %v2675 = vadd.f32 0.0, %v2674
        %v2676 = vpop.f32.mrb[0].mxu0
        %v2677 = vpop.f32.mrb[0].mxu0
        %v2678 = vadd.f32 0.0, %v2677
        %v2679 = vpop.f32.mrb[0].mxu0
        %2680 = vmatprep.mubr.bf16.mxu0 %v583
        %2681 = vmatmul.mubr.bf16.gmra.mrb[0].mxu0 %v582
        %v2682 = vpop.f32.mrb[0].mxu0
        %v2683 = vadd.f32 0.0, %v2682
        %v2684 = vpop.f32.mrb[0].mxu0
        %v2685 = vpop.f32.mrb[0].mxu0
        %v2686 = vadd.f32 0.0, %v2685
        %v2687 = vpop.f32.mrb[0].mxu0
        %2688 = vmatprep.mubr.bf16.mxu0 %v586
        %2689 = vmatmul.mubr.bf16.gmra.mrb[0].mxu0 %v585
        %v2690 = vpop.f32.mrb[0].mxu0
        %v2691 = vadd.f32 0.0, %v2690
        %v2692 = vpop.f32.mrb[0].mxu0
        %v2693 = vpop.f32.mrb[0].mxu0
        %v2694 = vadd.f32 0.0, %v2693
        %v2695 = vpop.f32.mrb[0].mxu0
        %2696 = vmatprep.mubr.bf16.mxu0 %v589
        %2697 = vmatmul.mubr.bf16.gmra.mrb[0].mxu0 %v588
        %v2698 = vpop.f32.mrb[0].mxu0
        %v2699 = vadd.f32 0.0, %v2698
        %v2700 = vpop.f32.mrb[0].mxu0
        %v2701 = vpop.f32.mrb[0].mxu0
        %v2702 = vadd.f32 0.0, %v2701
        %v2703 = vpop.f32.mrb[0].mxu0
        %2704 = vmatprep.mubr.bf16.mxu0 %v592
        %2705 = vmatmul.mubr.bf16.gmra.mrb[0].mxu0 %v591
        %v2706 = vpop.f32.mrb[0].mxu0
        %v2707 = vadd.f32 0.0, %v2706
        %v2708 = vpop.f32.mrb[0].mxu0
        %v2709 = vpop.f32.mrb[0].mxu0
        %v2710 = vadd.f32 0.0, %v2709
        %v2711 = vpop.f32.mrb[0].mxu0
        %2712 = vmatprep.mubr.bf16.mxu0 %v595
        %2713 = vmatmul.mubr.bf16.gmra.mrb[0].mxu0 %v594
        %v2714 = vpop.f32.mrb[0].mxu0
        %v2715 = vadd.f32 0.0, %v2714
        %v2716 = vpop.f32.mrb[0].mxu0
        %v2717 = vpop.f32.mrb[0].mxu0
        %v2718 = vadd.f32 0.0, %v2717
        %v2719 = vpop.f32.mrb[0].mxu0
        %2720 = vmatprep.mubr.bf16.mxu0 %v598
        %2721 = vmatmul.mubr.bf16.gmra.mrb[0].mxu0 %v597
        %v2722 = vpop.f32.mrb[0].mxu0
        %v2723 = vadd.f32 0.0, %v2722
        %v2724 = vpop.f32.mrb[0].mxu0
        %v2725 = vpop.f32.mrb[0].mxu0
        %v2726 = vadd.f32 0.0, %v2725
        %v2727 = vpop.f32.mrb[0].mxu0
        %2728 = vdwg.mxu0
        %2729 = vmatprep.subr.bf16.mxu0 0
        %2730 = vmatpush1.bf16.msra.mxu0 %v1448
        %2731 = vmatprep.subr.bf16.mxu0 0
        %2732 = vmatpush1.bf16.msra.mxu0 %v1457
        %2733 = vmatprep.subr.bf16.mxu0 0
        %2734 = vmatpush1.bf16.msra.mxu0 %v1466
        %2735 = vmatprep.subr.bf16.mxu0 0
        %2736 = vmatpush1.bf16.msra.mxu0 %v1475
        %2737 = vmatprep.subr.bf16.mxu0 0
        %2738 = vmatpush1.bf16.msra.mxu0 %v1484
        %2739 = vmatprep.subr.bf16.mxu0 0
        %2740 = vmatpush1.bf16.msra.mxu0 %v1493
        %2741 = vmatprep.subr.bf16.mxu0 0
        %2742 = vmatpush1.bf16.msra.mxu0 %v1502
        %2743 = vmatprep.subr.bf16.mxu0 0
        %2744 = vmatpush1.bf16.msra.mxu0 %v1511
        %2745 = vmatprep.subr.bf16.mxu0 0
        %2746 = vmatpush1.bf16.msra.mxu0 0
        %2747 = vmatprep.subr.bf16.mxu0 0
        %2748 = vmatpush1.bf16.msra.mxu0 0
        %2749 = vmatprep.subr.bf16.mxu0 0
        %2750 = vmatpush1.bf16.msra.mxu0 0
        %2751 = vmatprep.subr.bf16.mxu0 0
        %2752 = vmatpush1.bf16.msra.mxu0 0
        %2753 = vmatprep.subr.bf16.mxu0 0
        %2754 = vmatpush1.bf16.msra.mxu0 0
        %2755 = vmatprep.subr.bf16.mxu0 0
        %2756 = vmatpush1.bf16.msra.mxu0 0
        %2757 = vmatprep.subr.bf16.mxu0 0
        %2758 = vmatpush1.bf16.msra.mxu0 0
        %2759 = vmatprep.subr.bf16.mxu0 0
        %2760 = vmatpush1.bf16.msra.mxu0 0
        %2761 = vmatprep.mubr.bf16.mxu0 0
        %2762 = vmatmul.mubr.bf16.gmra.mrb[0].mxu0 %v578
        %v2763 = vpop.f32.mrb[0].mxu0
        %v2764 = vadd.f32 %v2667, %v2763
        %v2765 = vpop.f32.mrb[0].mxu0
        %v2766 = vpop.f32.mrb[0].mxu0
        %v2767 = vadd.f32 %v2670, %v2766
        %v2768 = vpop.f32.mrb[0].mxu0
        %2769 = vmatprep.mubr.bf16.mxu0 0
        %2770 = vmatmul.mubr.bf16.gmra.mrb[0].mxu0 %v581
        %v2771 = vpop.f32.mrb[0].mxu0
        %v2772 = vadd.f32 %v2675, %v2771
        %v2773 = vpop.f32.mrb[0].mxu0
        %v2774 = vpop.f32.mrb[0].mxu0
        %v2775 = vadd.f32 %v2678, %v2774
        %v2776 = vpop.f32.mrb[0].mxu0
        %2777 = vmatprep.mubr.bf16.mxu0 0
        %2778 = vmatmul.mubr.bf16.gmra.mrb[0].mxu0 %v584
        %v2779 = vpop.f32.mrb[0].mxu0
        %v2780 = vadd.f32 %v2683, %v2779
        %v2781 = vpop.f32.mrb[0].mxu0
        %v2782 = vpop.f32.mrb[0].mxu0
        %v2783 = vadd.f32 %v2686, %v2782
        %v2784 = vpop.f32.mrb[0].mxu0
        %2785 = vmatprep.mubr.bf16.mxu0 0
        %2786 = vmatmul.mubr.bf16.gmra.mrb[0].mxu0 %v587
        %v2787 = vpop.f32.mrb[0].mxu0
        %v2788 = vadd.f32 %v2691, %v2787
        %v2789 = vpop.f32.mrb[0].mxu0
        %v2790 = vpop.f32.mrb[0].mxu0
        %v2791 = vadd.f32 %v2694, %v2790
        %v2792 = vpop.f32.mrb[0].mxu0
        %2793 = vmatprep.mubr.bf16.mxu0 0
        %2794 = vmatmul.mubr.bf16.gmra.mrb[0].mxu0 %v590
        %v2795 = vpop.f32.mrb[0].mxu0
        %v2796 = vadd.f32 %v2699, %v2795
        %v2797 = vpop.f32.mrb[0].mxu0
        %v2798 = vpop.f32.mrb[0].mxu0
        %v2799 = vadd.f32 %v2702, %v2798
        %v2800 = vpop.f32.mrb[0].mxu0
        %2801 = vmatprep.mubr.bf16.mxu0 0
        %2802 = vmatmul.mubr.bf16.gmra.mrb[0].mxu0 %v593
        %v2803 = vpop.f32.mrb[0].mxu0
        %v2804 = vadd.f32 %v2707, %v2803
        %v2805 = vpop.f32.mrb[0].mxu0
        %v2806 = vpop.f32.mrb[0].mxu0
        %v2807 = vadd.f32 %v2710, %v2806
        %v2808 = vpop.f32.mrb[0].mxu0
        %2809 = vmatprep.mubr.bf16.mxu0 0
        %2810 = vmatmul.mubr.bf16.gmra.mrb[0].mxu0 %v596
        %v2811 = vpop.f32.mrb[0].mxu0
        %v2812 = vadd.f32 %v2715, %v2811
        %v2813 = vpop.f32.mrb[0].mxu0
        %v2814 = vpop.f32.mrb[0].mxu0
        %v2815 = vadd.f32 %v2718, %v2814
        %v2816 = vpop.f32.mrb[0].mxu0
        %2817 = vmatprep.mubr.bf16.mxu0 0
        %2818 = vmatmul.mubr.bf16.gmra.mrb[0].mxu0 %v599
        %v2819 = vpop.f32.mrb[0].mxu0
        %v2820 = vadd.f32 %v2723, %v2819
        %v2821 = vpop.f32.mrb[0].mxu0
        %v2822 = vpop.f32.mrb[0].mxu0
        %v2823 = vadd.f32 %v2726, %v2822
        %v2824 = vpop.f32.mrb[0].mxu0
        %2825 = vdwg.mxu0
        %v2826 = vpack.c.bf16 %v1880, %v1876
        %v2827 = vpack.c.bf16 %v1882, %v1878
        %v2828 = vpack.c.bf16 %v2106, %v2102
        %v2829 = vpack.c.bf16 %v2108, %v2104
        %v2830 = vpack.c.bf16 %v2332, %v2328
        %v2831 = vpack.c.bf16 %v2334, %v2330
        %v2832 = vpack.c.bf16 %v2558, %v2554
        %v2833 = vpack.c.bf16 %v2560, %v2556
        %v2834 = vpack.c.bf16 %v2767, %v2764
        %v2835 = vpack.c.bf16 %v1890, %v1886
        %v2836 = vpack.c.bf16 %v1892, %v1888
        %v2837 = vpack.c.bf16 %v2116, %v2112
        %v2838 = vpack.c.bf16 %v2118, %v2114
        %v2839 = vpack.c.bf16 %v2342, %v2338
        %v2840 = vpack.c.bf16 %v2344, %v2340
        %v2841 = vpack.c.bf16 %v2568, %v2564
        %v2842 = vpack.c.bf16 %v2570, %v2566
        %v2843 = vpack.c.bf16 %v2775, %v2772
        %v2844 = vpack.c.bf16 %v1900, %v1896
        %v2845 = vpack.c.bf16 %v1902, %v1898
        %v2846 = vpack.c.bf16 %v2126, %v2122
        %v2847 = vpack.c.bf16 %v2128, %v2124
        %v2848 = vpack.c.bf16 %v2352, %v2348
        %v2849 = vpack.c.bf16 %v2354, %v2350
        %v2850 = vpack.c.bf16 %v2578, %v2574
        %v2851 = vpack.c.bf16 %v2580, %v2576
        %v2852 = vpack.c.bf16 %v2783, %v2780
        %v2853 = vpack.c.bf16 %v1910, %v1906
        %v2854 = vpack.c.bf16 %v1912, %v1908
        %v2855 = vpack.c.bf16 %v2136, %v2132
        %v2856 = vpack.c.bf16 %v2138, %v2134
        %v2857 = vpack.c.bf16 %v2362, %v2358
        %v2858 = vpack.c.bf16 %v2364, %v2360
        %v2859 = vpack.c.bf16 %v2588, %v2584
        %v2860 = vpack.c.bf16 %v2590, %v2586
        %v2861 = vpack.c.bf16 %v2791, %v2788
        %v2862 = vpack.c.bf16 %v1920, %v1916
        %v2863 = vpack.c.bf16 %v1922, %v1918
        %v2864 = vpack.c.bf16 %v2146, %v2142
        %v2865 = vpack.c.bf16 %v2148, %v2144
        %v2866 = vpack.c.bf16 %v2372, %v2368
        %v2867 = vpack.c.bf16 %v2374, %v2370
        %v2868 = vpack.c.bf16 %v2598, %v2594
        %v2869 = vpack.c.bf16 %v2600, %v2596
        %v2870 = vpack.c.bf16 %v2799, %v2796
        %v2871 = vpack.c.bf16 %v1930, %v1926
        %v2872 = vpack.c.bf16 %v1932, %v1928
        %v2873 = vpack.c.bf16 %v2156, %v2152
        %v2874 = vpack.c.bf16 %v2158, %v2154
        %v2875 = vpack.c.bf16 %v2382, %v2378
        %v2876 = vpack.c.bf16 %v2384, %v2380
        %v2877 = vpack.c.bf16 %v2608, %v2604
        %v2878 = vpack.c.bf16 %v2610, %v2606
        %v2879 = vpack.c.bf16 %v2807, %v2804
        %v2880 = vpack.c.bf16 %v1940, %v1936
        %v2881 = vpack.c.bf16 %v1942, %v1938
        %v2882 = vpack.c.bf16 %v2166, %v2162
        %v2883 = vpack.c.bf16 %v2168, %v2164
        %v2884 = vpack.c.bf16 %v2392, %v2388
        %v2885 = vpack.c.bf16 %v2394, %v2390
        %v2886 = vpack.c.bf16 %v2618, %v2614
        %v2887 = vpack.c.bf16 %v2620, %v2616
        %v2888 = vpack.c.bf16 %v2815, %v2812
        %v2889 = vpack.c.bf16 %v1950, %v1946
        %v2890 = vpack.c.bf16 %v1952, %v1948
        %v2891 = vpack.c.bf16 %v2176, %v2172
        %v2892 = vpack.c.bf16 %v2178, %v2174
        %v2893 = vpack.c.bf16 %v2402, %v2398
        %v2894 = vpack.c.bf16 %v2404, %v2400
        %v2895 = vpack.c.bf16 %v2628, %v2624
        %v2896 = vpack.c.bf16 %v2630, %v2626
        %v2897 = vpack.c.bf16 %v2823, %v2820
        %v2898 = vlaneseq
        %v2899 = vshrl.u32 %v2898, 7
        %v2900 = vadd.s32 %v2899, 8
        %v2901 = vadd.s32 %v2899, 16
        %v2902 = vadd.s32 %v2899, 24
        %v2903 = vadd.s32 %v2899, 32
        %v2904 = vadd.s32 %v2899, 40
        %v2905 = vadd.s32 %v2899, 48
        %v2906 = vadd.s32 %v2899, 56
        %v2907 = vadd.s32 %v2899, 64
        %v2908 = vadd.s32 %v2899, 72
        %v2909 = vadd.s32 %v2899, 80
        %v2910 = vadd.s32 %v2899, 88
        %v2911 = vadd.s32 %v2899, 96
        %v2912 = vadd.s32 %v2899, 104
        %v2913 = vadd.s32 %v2899, 112
        %v2914 = vadd.s32 %v2899, 120
        %v2915 = vlaneseq
        %v2916 = vand.u32 %v2915, 127
        %vm2917 = vcmp.le.s32.totalorder %v2916, %v2899
        %vm2918 = vcmp.le.s32.totalorder %v2916, %v2900
        %vm2919 = vcmp.le.s32.totalorder %v2916, %v2901
        %vm2920 = vcmp.le.s32.totalorder %v2916, %v2902
        %vm2921 = vcmp.le.s32.totalorder %v2916, %v2903
        %vm2922 = vcmp.le.s32.totalorder %v2916, %v2904
        %vm2923 = vcmp.le.s32.totalorder %v2916, %v2905
        %vm2924 = vcmp.le.s32.totalorder %v2916, %v2906
        %vm2925 = vcmp.le.s32.totalorder %v2916, %v2907
        %vm2926 = vcmp.le.s32.totalorder %v2916, %v2908
        %vm2927 = vcmp.le.s32.totalorder %v2916, %v2909
        %vm2928 = vcmp.le.s32.totalorder %v2916, %v2910
        %vm2929 = vcmp.le.s32.totalorder %v2916, %v2911
        %vm2930 = vcmp.le.s32.totalorder %v2916, %v2912
        %vm2931 = vcmp.le.s32.totalorder %v2916, %v2913
        %vm2932 = vcmp.le.s32.totalorder %v2916, %v2914
        %vm2933 = vcmask 523264
        %v2935 = vsel %vm2933, %v2826, 0
        %v2938 = vsel %vm2933, %v2835, 0
        %v2941 = vsel %vm2933, %v2844, 0
        %v2944 = vsel %vm2933, %v2853, 0
        %v2947 = vsel %vm2933, %v2862, 0
        %v2950 = vsel %vm2933, %v2871, 0
        %v2953 = vsel %vm2933, %v2880, 0
        %v2956 = vsel %vm2933, %v2889, 0
        %v2959 = vsel %vm2933, %v2829, 0
        %v2962 = vsel %vm2933, %v2838, 0
        %v2965 = vsel %vm2933, %v2847, 0
        %v2968 = vsel %vm2933, %v2856, 0
        %v2971 = vsel %vm2933, %v2865, 0
        %v2974 = vsel %vm2933, %v2874, 0
        %v2977 = vsel %vm2933, %v2883, 0
        %v2980 = vsel %vm2933, %v2892, 0
        %2982 = vmatprep.subr.bf16.mxu0 0
        %2983 = vmatpush1.bf16.xpose.msra.mxu0 %v2959
        %2984 = vmatprep.subr.bf16.mxu0 0
        %2985 = vmatpush1.bf16.xpose.msra.mxu0 %v2962
        %2986 = vmatprep.subr.bf16.mxu0 0
        %2987 = vmatpush1.bf16.xpose.msra.mxu0 %v2965
        %2988 = vmatprep.subr.bf16.mxu0 0
        %2989 = vmatpush1.bf16.xpose.msra.mxu0 %v2968
        %2990 = vmatprep.subr.bf16.mxu0 0
        %2991 = vmatpush1.bf16.xpose.msra.mxu0 %v2971
        %2992 = vmatprep.subr.bf16.mxu0 0
        %2993 = vmatpush1.bf16.xpose.msra.mxu0 %v2974
        %2994 = vmatprep.subr.bf16.mxu0 0
        %2995 = vmatpush1.bf16.xpose.msra.mxu0 %v2977
        %2996 = vmatprep.subr.bf16.mxu0 0
        %2997 = vmatpush1.bf16.xpose.msra.mxu0 %v2980
        %2998 = vmatprep.subr.bf16.mxu0 0
        %2999 = vmatpush1.bf16.xpose.msra.mxu0 0
        %3000 = vmatprep.subr.bf16.mxu0 0
        %3001 = vmatpush1.bf16.xpose.msra.mxu0 0
        %3002 = vmatprep.subr.bf16.mxu0 0
        %3003 = vmatpush1.bf16.xpose.msra.mxu0 0
        %3004 = vmatprep.subr.bf16.mxu0 0
        %3005 = vmatpush1.bf16.xpose.msra.mxu0 0
        %3006 = vmatprep.subr.bf16.mxu0 0
        %3007 = vmatpush1.bf16.xpose.msra.mxu0 0
        %3008 = vmatprep.subr.bf16.mxu0 0
        %3009 = vmatpush1.bf16.xpose.msra.mxu0 0
        %3010 = vmatprep.subr.bf16.mxu0 0
        %3011 = vmatpush1.bf16.xpose.msra.mxu0 0
        %3012 = vmatprep.subr.bf16.mxu0 0
        %3013 = vmatpush1.bf16.xpose.msra.mxu0 0
        %3014 = vmatprep.mubr.bf16.mxu0 0
        %3015 = vmatmul.mubr.bf16.gmra.mrb[0].mxu0 %v2935
        %v3016 = vpop.f32.mrb[0].mxu0
        %v3017 = vadd.f32 0.0, %v3016
        %v3018 = vpop.f32.mrb[0].mxu0
        %v3019 = vpop.f32.mrb[0].mxu0
        %v3020 = vadd.f32 0.0, %v3019
        %v3021 = vpop.f32.mrb[0].mxu0
        %3022 = vmatprep.mubr.bf16.mxu0 0
        %3023 = vmatmul.mubr.bf16.gmra.mrb[0].mxu0 %v2938
        %v3024 = vpop.f32.mrb[0].mxu0
        %v3025 = vadd.f32 0.0, %v3024
        %v3026 = vpop.f32.mrb[0].mxu0
        %v3027 = vpop.f32.mrb[0].mxu0
        %v3028 = vadd.f32 0.0, %v3027
        %v3029 = vpop.f32.mrb[0].mxu0
        %3030 = vmatprep.mubr.bf16.mxu0 0
        %3031 = vmatmul.mubr.bf16.gmra.mrb[0].mxu0 %v2941
        %v3032 = vpop.f32.mrb[0].mxu0
        %v3033 = vadd.f32 0.0, %v3032
        %v3034 = vpop.f32.mrb[0].mxu0
        %v3035 = vpop.f32.mrb[0].mxu0
        %v3036 = vadd.f32 0.0, %v3035
        %v3037 = vpop.f32.mrb[0].mxu0
        %3038 = vmatprep.mubr.bf16.mxu0 0
        %3039 = vmatmul.mubr.bf16.gmra.mrb[0].mxu0 %v2944
        %v3040 = vpop.f32.mrb[0].mxu0
        %v3041 = vadd.f32 0.0, %v3040
        %v3042 = vpop.f32.mrb[0].mxu0
        %v3043 = vpop.f32.mrb[0].mxu0
        %v3044 = vadd.f32 0.0, %v3043
        %v3045 = vpop.f32.mrb[0].mxu0
        %3046 = vmatprep.mubr.bf16.mxu0 0
        %3047 = vmatmul.mubr.bf16.gmra.mrb[0].mxu0 %v2947
        %v3048 = vpop.f32.mrb[0].mxu0
        %v3049 = vadd.f32 0.0, %v3048
        %v3050 = vpop.f32.mrb[0].mxu0
        %v3051 = vpop.f32.mrb[0].mxu0
        %v3052 = vadd.f32 0.0, %v3051
        %v3053 = vpop.f32.mrb[0].mxu0
        %3054 = vmatprep.mubr.bf16.mxu0 0
        %3055 = vmatmul.mubr.bf16.gmra.mrb[0].mxu0 %v2950
        %v3056 = vpop.f32.mrb[0].mxu0
        %v3057 = vadd.f32 0.0, %v3056
        %v3058 = vpop.f32.mrb[0].mxu0
        %v3059 = vpop.f32.mrb[0].mxu0
        %v3060 = vadd.f32 0.0, %v3059
        %v3061 = vpop.f32.mrb[0].mxu0
        %3062 = vmatprep.mubr.bf16.mxu0 0
        %3063 = vmatmul.mubr.bf16.gmra.mrb[0].mxu0 %v2953
        %v3064 = vpop.f32.mrb[0].mxu0
        %v3065 = vadd.f32 0.0, %v3064
        %v3066 = vpop.f32.mrb[0].mxu0
        %v3067 = vpop.f32.mrb[0].mxu0
        %v3068 = vadd.f32 0.0, %v3067
        %v3069 = vpop.f32.mrb[0].mxu0
        %3070 = vmatprep.mubr.bf16.mxu0 0
        %3071 = vmatmul.mubr.bf16.gmra.mrb[0].mxu0 %v2956
        %v3072 = vpop.f32.mrb[0].mxu0
        %v3073 = vadd.f32 0.0, %v3072
        %v3074 = vpop.f32.mrb[0].mxu0
        %v3075 = vpop.f32.mrb[0].mxu0
        %v3076 = vadd.f32 0.0, %v3075
        %v3077 = vpop.f32.mrb[0].mxu0
        %3078 = vdwg.mxu0
        %v3079 = vsel %vm2917, %v3017, -inf
        %v3080 = vsel %vm2918, %v3020, -inf
        %v3081 = vsel %vm2919, %v3025, -inf
        %v3082 = vsel %vm2920, %v3028, -inf
        %v3083 = vsel %vm2921, %v3033, -inf
        %v3084 = vsel %vm2922, %v3036, -inf
        %v3085 = vsel %vm2923, %v3041, -inf
        %v3086 = vsel %vm2924, %v3044, -inf
        %v3087 = vsel %vm2925, %v3049, -inf
        %v3088 = vsel %vm2926, %v3052, -inf
        %v3089 = vsel %vm2927, %v3057, -inf
        %v3090 = vsel %vm2928, %v3060, -inf
        %v3091 = vsel %vm2929, %v3065, -inf
        %v3092 = vsel %vm2930, %v3068, -inf
        %v3093 = vsel %vm2931, %v3073, -inf
        %v3094 = vsel %vm2932, %v3076, -inf
        %3095 = vmax.xlane.f32.xlu0 %v3079
        %v3096 = vpop.xlane.xlu0 %3095
        %3097 = vmax.xlane.f32.xlu0 %v3080
        %v3098 = vpop.xlane.xlu0 %3097
        %3099 = vmax.xlane.f32.xlu0 %v3081
        %v3100 = vpop.xlane.xlu0 %3099
        %3101 = vmax.xlane.f32.xlu0 %v3082
        %v3102 = vpop.xlane.xlu0 %3101
        %3103 = vmax.xlane.f32.xlu0 %v3083
        %v3104 = vpop.xlane.xlu0 %3103
        %3105 = vmax.xlane.f32.xlu0 %v3084
        %v3106 = vpop.xlane.xlu0 %3105
        %3107 = vmax.xlane.f32.xlu0 %v3085
        %v3108 = vpop.xlane.xlu0 %3107
        %3109 = vmax.xlane.f32.xlu0 %v3086
        %v3110 = vpop.xlane.xlu0 %3109
        %3111 = vmax.xlane.f32.xlu0 %v3087
        %v3112 = vpop.xlane.xlu0 %3111
        %3113 = vmax.xlane.f32.xlu0 %v3088
        %v3114 = vpop.xlane.xlu0 %3113
        %3115 = vmax.xlane.f32.xlu0 %v3089
        %v3116 = vpop.xlane.xlu0 %3115
        %3117 = vmax.xlane.f32.xlu0 %v3090
        %v3118 = vpop.xlane.xlu0 %3117
        %3119 = vmax.xlane.f32.xlu0 %v3091
        %v3120 = vpop.xlane.xlu0 %3119
        %3121 = vmax.xlane.f32.xlu0 %v3092
        %v3122 = vpop.xlane.xlu0 %3121
        %3123 = vmax.xlane.f32.xlu0 %v3093
        %v3124 = vpop.xlane.xlu0 %3123
        %3125 = vmax.xlane.f32.xlu0 %v3094
        %v3126 = vpop.xlane.xlu0 %3125
        %v3127 = vsub.f32 %v3079, %v3096
        %v3128 = vsub.f32 %v3080, %v3098
        %v3129 = vsub.f32 %v3081, %v3100
        %v3130 = vsub.f32 %v3082, %v3102
        %v3131 = vsub.f32 %v3083, %v3104
        %v3132 = vsub.f32 %v3084, %v3106
        %v3133 = vsub.f32 %v3085, %v3108
        %v3134 = vsub.f32 %v3086, %v3110
        %v3135 = vsub.f32 %v3087, %v3112
        %v3136 = vsub.f32 %v3088, %v3114
        %v3137 = vsub.f32 %v3089, %v3116
        %v3138 = vsub.f32 %v3090, %v3118
        %v3139 = vsub.f32 %v3091, %v3120
        %v3140 = vsub.f32 %v3092, %v3122
        %v3141 = vsub.f32 %v3093, %v3124
        %v3142 = vsub.f32 %v3094, %v3126
        %v3143 = vmul.f32 %v3127, 1.442695
        %v3144 = vpow.pop %v3143
        %v3145 = vmul.f32 %v3128, 1.442695
        %v3146 = vpow.pop %v3145
        %v3147 = vmul.f32 %v3129, 1.442695
        %v3148 = vpow.pop %v3147
        %v3149 = vmul.f32 %v3130, 1.442695
        %v3150 = vpow.pop %v3149
        %v3151 = vmul.f32 %v3131, 1.442695
        %v3152 = vpow.pop %v3151
        %v3153 = vmul.f32 %v3132, 1.442695
        %v3154 = vpow.pop %v3153
        %v3155 = vmul.f32 %v3133, 1.442695
        %v3156 = vpow.pop %v3155
        %v3157 = vmul.f32 %v3134, 1.442695
        %v3158 = vpow.pop %v3157
        %v3159 = vmul.f32 %v3135, 1.442695
        %v3160 = vpow.pop %v3159
        %v3161 = vmul.f32 %v3136, 1.442695
        %v3162 = vpow.pop %v3161
        %v3163 = vmul.f32 %v3137, 1.442695
        %v3164 = vpow.pop %v3163
        %v3165 = vmul.f32 %v3138, 1.442695
        %v3166 = vpow.pop %v3165
        %v3167 = vmul.f32 %v3139, 1.442695
        %v3168 = vpow.pop %v3167
        %v3169 = vmul.f32 %v3140, 1.442695
        %v3170 = vpow.pop %v3169
        %v3171 = vmul.f32 %v3141, 1.442695
        %v3172 = vpow.pop %v3171
        %v3173 = vmul.f32 %v3142, 1.442695
        %v3174 = vpow.pop %v3173
        %3175 = vadd.xlane.f32.xlu0 %v3144
        %v3176 = vpop.xlane.xlu0 %3175
        %3177 = vadd.xlane.f32.xlu0 %v3146
        %v3178 = vpop.xlane.xlu0 %3177
        %3179 = vadd.xlane.f32.xlu0 %v3148
        %v3180 = vpop.xlane.xlu0 %3179
        %3181 = vadd.xlane.f32.xlu0 %v3150
        %v3182 = vpop.xlane.xlu0 %3181
        %3183 = vadd.xlane.f32.xlu0 %v3152
        %v3184 = vpop.xlane.xlu0 %3183
        %3185 = vadd.xlane.f32.xlu0 %v3154
        %v3186 = vpop.xlane.xlu0 %3185
        %3187 = vadd.xlane.f32.xlu0 %v3156
        %v3188 = vpop.xlane.xlu0 %3187
        %3189 = vadd.xlane.f32.xlu0 %v3158
        %v3190 = vpop.xlane.xlu0 %3189
        %3191 = vadd.xlane.f32.xlu0 %v3160
        %v3192 = vpop.xlane.xlu0 %3191
        %3193 = vadd.xlane.f32.xlu0 %v3162
        %v3194 = vpop.xlane.xlu0 %3193
        %3195 = vadd.xlane.f32.xlu0 %v3164
        %v3196 = vpop.xlane.xlu0 %3195
        %3197 = vadd.xlane.f32.xlu0 %v3166
        %v3198 = vpop.xlane.xlu0 %3197
        %3199 = vadd.xlane.f32.xlu0 %v3168
        %v3200 = vpop.xlane.xlu0 %3199
        %3201 = vadd.xlane.f32.xlu0 %v3170
        %v3202 = vpop.xlane.xlu0 %3201
        %3203 = vadd.xlane.f32.xlu0 %v3172
        %v3204 = vpop.xlane.xlu0 %3203
        %3205 = vadd.xlane.f32.xlu0 %v3174
        %v3206 = vpop.xlane.xlu0 %3205
        %v3207 = vrcp.pop %v3176
        %v3208 = vrcp.pop %v3178
        %v3209 = vrcp.pop %v3180
        %v3210 = vrcp.pop %v3182
        %v3211 = vrcp.pop %v3184
        %v3212 = vrcp.pop %v3186
        %v3213 = vrcp.pop %v3188
        %v3214 = vrcp.pop %v3190
        %v3215 = vrcp.pop %v3192
        %v3216 = vrcp.pop %v3194
        %v3217 = vrcp.pop %v3196
        %v3218 = vrcp.pop %v3198
        %v3219 = vrcp.pop %v3200
        %v3220 = vrcp.pop %v3202
        %v3221 = vrcp.pop %v3204
        %v3222 = vrcp.pop %v3206
        %v3223 = vmul.f32 %v3144, %v3207
        %v3224 = vmul.f32 %v3146, %v3208
        %v3225 = vmul.f32 %v3148, %v3209
        %v3226 = vmul.f32 %v3150, %v3210
        %v3227 = vmul.f32 %v3152, %v3211
        %v3228 = vmul.f32 %v3154, %v3212
        %v3229 = vmul.f32 %v3156, %v3213
        %v3230 = vmul.f32 %v3158, %v3214
        %v3231 = vmul.f32 %v3160, %v3215
        %v3232 = vmul.f32 %v3162, %v3216
        %v3233 = vmul.f32 %v3164, %v3217
        %v3234 = vmul.f32 %v3166, %v3218
        %v3235 = vmul.f32 %v3168, %v3219
        %v3236 = vmul.f32 %v3170, %v3220
        %v3237 = vmul.f32 %v3172, %v3221
        %v3238 = vmul.f32 %v3174, %v3222
        %v3239 = vpack.c.bf16 %v3224, %v3223
        %v3240 = vpack.c.bf16 %v3226, %v3225
        %v3241 = vpack.c.bf16 %v3228, %v3227
        %v3242 = vpack.c.bf16 %v3230, %v3229
        %v3243 = vpack.c.bf16 %v3232, %v3231
        %v3244 = vpack.c.bf16 %v3234, %v3233
        %v3245 = vpack.c.bf16 %v3236, %v3235
        %v3246 = vpack.c.bf16 %v3238, %v3237
        %3247 = vmatprep.subr.bf16.mxu0 0
        %3248 = vmatpush1.bf16.msra.mxu0 %v2832
        %3249 = vmatprep.subr.bf16.mxu0 0
        %3250 = vmatpush1.bf16.msra.mxu0 %v2841
        %3251 = vmatprep.subr.bf16.mxu0 0
        %3252 = vmatpush1.bf16.msra.mxu0 %v2850
        %3253 = vmatprep.subr.bf16.mxu0 0
        %3254 = vmatpush1.bf16.msra.mxu0 %v2859
        %3255 = vmatprep.subr.bf16.mxu0 0
        %3256 = vmatpush1.bf16.msra.mxu0 %v2868
        %3257 = vmatprep.subr.bf16.mxu0 0
        %3258 = vmatpush1.bf16.msra.mxu0 %v2877
        %3259 = vmatprep.subr.bf16.mxu0 0
        %3260 = vmatpush1.bf16.msra.mxu0 %v2886
        %3261 = vmatprep.subr.bf16.mxu0 0
        %3262 = vmatpush1.bf16.msra.mxu0 %v2895
        %3263 = vmatprep.subr.bf16.mxu0 0
        %3264 = vmatpush1.bf16.msra.mxu0 0
        %3265 = vmatprep.subr.bf16.mxu0 0
        %3266 = vmatpush1.bf16.msra.mxu0 0
        %3267 = vmatprep.subr.bf16.mxu0 0
        %3268 = vmatpush1.bf16.msra.mxu0 0
        %3269 = vmatprep.subr.bf16.mxu0 0
        %3270 = vmatpush1.bf16.msra.mxu0 0
        %3271 = vmatprep.subr.bf16.mxu0 0
        %3272 = vmatpush1.bf16.msra.mxu0 0
        %3273 = vmatprep.subr.bf16.mxu0 0
        %3274 = vmatpush1.bf16.msra.mxu0 0
        %3275 = vmatprep.subr.bf16.mxu0 0
        %3276 = vmatpush1.bf16.msra.mxu0 0
        %3277 = vmatprep.subr.bf16.mxu0 0
        %3278 = vmatpush1.bf16.msra.mxu0 0
        %3279 = vmatprep.mubr.bf16.mxu0 0
        %3280 = vmatmul.mubr.bf16.gmra.mrb[0].mxu0 %v3239
        %v3281 = vpop.f32.mrb[0].mxu0
        %v3282 = vadd.f32 0.0, %v3281
        %v3283 = vpop.f32.mrb[0].mxu0
        %v3284 = vpop.f32.mrb[0].mxu0
        %v3285 = vadd.f32 0.0, %v3284
        %v3286 = vpop.f32.mrb[0].mxu0
        %3287 = vmatprep.mubr.bf16.mxu0 0
        %3288 = vmatmul.mubr.bf16.gmra.mrb[0].mxu0 %v3240
        %v3289 = vpop.f32.mrb[0].mxu0
        %v3290 = vadd.f32 0.0, %v3289
        %v3291 = vpop.f32.mrb[0].mxu0
        %v3292 = vpop.f32.mrb[0].mxu0
        %v3293 = vadd.f32 0.0, %v3292
        %v3294 = vpop.f32.mrb[0].mxu0
        %3295 = vmatprep.mubr.bf16.mxu0 0
        %3296 = vmatmul.mubr.bf16.gmra.mrb[0].mxu0 %v3241
        %v3297 = vpop.f32.mrb[0].mxu0
        %v3298 = vadd.f32 0.0, %v3297
        %v3299 = vpop.f32.mrb[0].mxu0
        %v3300 = vpop.f32.mrb[0].mxu0
        %v3301 = vadd.f32 0.0, %v3300
        %v3302 = vpop.f32.mrb[0].mxu0
        %3303 = vmatprep.mubr.bf16.mxu0 0
        %3304 = vmatmul.mubr.bf16.gmra.mrb[0].mxu0 %v3242
        %v3305 = vpop.f32.mrb[0].mxu0
        %v3306 = vadd.f32 0.0, %v3305
        %v3307 = vpop.f32.mrb[0].mxu0
        %v3308 = vpop.f32.mrb[0].mxu0
        %v3309 = vadd.f32 0.0, %v3308
        %v3310 = vpop.f32.mrb[0].mxu0
        %3311 = vmatprep.mubr.bf16.mxu0 0
        %3312 = vmatmul.mubr.bf16.gmra.mrb[0].mxu0 %v3243
        %v3313 = vpop.f32.mrb[0].mxu0
        %v3314 = vadd.f32 0.0, %v3313
        %v3315 = vpop.f32.mrb[0].mxu0
        %v3316 = vpop.f32.mrb[0].mxu0
        %v3317 = vadd.f32 0.0, %v3316
        %v3318 = vpop.f32.mrb[0].mxu0
        %3319 = vmatprep.mubr.bf16.mxu0 0
        %3320 = vmatmul.mubr.bf16.gmra.mrb[0].mxu0 %v3244
        %v3321 = vpop.f32.mrb[0].mxu0
        %v3322 = vadd.f32 0.0, %v3321
        %v3323 = vpop.f32.mrb[0].mxu0
        %v3324 = vpop.f32.mrb[0].mxu0
        %v3325 = vadd.f32 0.0, %v3324
        %v3326 = vpop.f32.mrb[0].mxu0
        %3327 = vmatprep.mubr.bf16.mxu0 0
        %3328 = vmatmul.mubr.bf16.gmra.mrb[0].mxu0 %v3245
        %v3329 = vpop.f32.mrb[0].mxu0
        %v3330 = vadd.f32 0.0, %v3329
        %v3331 = vpop.f32.mrb[0].mxu0
        %v3332 = vpop.f32.mrb[0].mxu0
        %v3333 = vadd.f32 0.0, %v3332
        %v3334 = vpop.f32.mrb[0].mxu0
        %3335 = vmatprep.mubr.bf16.mxu0 0
        %3336 = vmatmul.mubr.bf16.gmra.mrb[0].mxu0 %v3246
        %v3337 = vpop.f32.mrb[0].mxu0
        %v3338 = vadd.f32 0.0, %v3337
        %v3339 = vpop.f32.mrb[0].mxu0
        %v3340 = vpop.f32.mrb[0].mxu0
        %v3341 = vadd.f32 0.0, %v3340
        %v3342 = vpop.f32.mrb[0].mxu0
        %3343 = vdwg.mxu0
        %v3344 = vpack.c.bf16 %v3285, %v3282
        %v3345 = vpack.c.bf16 %v3293, %v3290
        %v3346 = vpack.c.bf16 %v3301, %v3298
        %v3347 = vpack.c.bf16 %v3309, %v3306
        %v3348 = vpack.c.bf16 %v3317, %v3314
        %v3349 = vpack.c.bf16 %v3325, %v3322
        %v3350 = vpack.c.bf16 %v3333, %v3330
        %v3351 = vpack.c.bf16 %v3341, %v3338
        %3352 = vst.msk [vmem:[#allocation2] sm:$0xff] %vm2933, %v3344
        %3353 = vst.msk [vmem:[#allocation2 + $0x18] sm:$0xff] %vm2933, %v3345
        %3354 = vst.msk [vmem:[#allocation2 + $0x30] sm:$0xff] %vm2933, %v3346
        %3355 = vst.msk [vmem:[#allocation2 + $0x48] sm:$0xff] %vm2933, %v3347
        %3356 = vst.msk [vmem:[#allocation2 + $0x60] sm:$0xff] %vm2933, %v3348
        %3357 = vst.msk [vmem:[#allocation2 + $0x78] sm:$0xff] %vm2933, %v3349
        %3358 = vst.msk [vmem:[#allocation2 + $0x90] sm:$0xff] %vm2933, %v3350
        %3359 = vst.msk [vmem:[#allocation2 + $0xa8] sm:$0xff] %vm2933, %v3351
        %3368 = vrot.lane.b32.xlu0 %v2826, 64
        %v3369 = vpop.permute.xlu0 %3368
        %3370 = vrot.lane.b32.xlu0 %v2835, 64
        %v3371 = vpop.permute.xlu0 %3370
        %3372 = vrot.lane.b32.xlu0 %v2844, 64
        %v3373 = vpop.permute.xlu0 %3372
        %3374 = vrot.lane.b32.xlu0 %v2853, 64
        %v3375 = vpop.permute.xlu0 %3374
        %3376 = vrot.lane.b32.xlu0 %v2862, 64
        %v3377 = vpop.permute.xlu0 %3376
        %3378 = vrot.lane.b32.xlu0 %v2871, 64
        %v3379 = vpop.permute.xlu0 %3378
        %3380 = vrot.lane.b32.xlu0 %v2880, 64
        %v3381 = vpop.permute.xlu0 %3380
        %3382 = vrot.lane.b32.xlu0 %v2889, 64
        %v3383 = vpop.permute.xlu0 %3382
        %3392 = vrot.lane.b32.xlu0 %v2829, 64
        %v3393 = vpop.permute.xlu0 %3392
        %3394 = vrot.lane.b32.xlu0 %v2838, 64
        %v3395 = vpop.permute.xlu0 %3394
        %3396 = vrot.lane.b32.xlu0 %v2847, 64
        %v3397 = vpop.permute.xlu0 %3396
        %3398 = vrot.lane.b32.xlu0 %v2856, 64
        %v3399 = vpop.permute.xlu0 %3398
        %3400 = vrot.lane.b32.xlu0 %v2865, 64
        %v3401 = vpop.permute.xlu0 %3400
        %3402 = vrot.lane.b32.xlu0 %v2874, 64
        %v3403 = vpop.permute.xlu0 %3402
        %3404 = vrot.lane.b32.xlu0 %v2883, 64
        %v3405 = vpop.permute.xlu0 %3404
        %3406 = vrot.lane.b32.xlu0 %v2892, 64
        %v3407 = vpop.permute.xlu0 %3406
        %v3409 = vsel %vm2933, %v3369, 0
        %v3412 = vsel %vm2933, %v3371, 0
        %v3415 = vsel %vm2933, %v3373, 0
        %v3418 = vsel %vm2933, %v3375, 0
        %v3421 = vsel %vm2933, %v3377, 0
        %v3424 = vsel %vm2933, %v3379, 0
        %v3427 = vsel %vm2933, %v3381, 0
        %v3430 = vsel %vm2933, %v3383, 0
        %v3433 = vsel %vm2933, %v3393, 0
        %v3436 = vsel %vm2933, %v3395, 0
        %v3439 = vsel %vm2933, %v3397, 0
        %v3442 = vsel %vm2933, %v3399, 0
        %v3445 = vsel %vm2933, %v3401, 0
        %v3448 = vsel %vm2933, %v3403, 0
        %v3451 = vsel %vm2933, %v3405, 0
        %v3454 = vsel %vm2933, %v3407, 0
        %3456 = vmatprep.subr.bf16.mxu0 0
        %3457 = vmatpush1.bf16.xpose.msra.mxu0 %v3433
        %3458 = vmatprep.subr.bf16.mxu0 0
        %3459 = vmatpush1.bf16.xpose.msra.mxu0 %v3436
        %3460 = vmatprep.subr.bf16.mxu0 0
        %3461 = vmatpush1.bf16.xpose.msra.mxu0 %v3439
        %3462 = vmatprep.subr.bf16.mxu0 0
        %3463 = vmatpush1.bf16.xpose.msra.mxu0 %v3442
        %3464 = vmatprep.subr.bf16.mxu0 0
        %3465 = vmatpush1.bf16.xpose.msra.mxu0 %v3445
        %3466 = vmatprep.subr.bf16.mxu0 0
        %3467 = vmatpush1.bf16.xpose.msra.mxu0 %v3448
        %3468 = vmatprep.subr.bf16.mxu0 0
        %3469 = vmatpush1.bf16.xpose.msra.mxu0 %v3451
        %3470 = vmatprep.subr.bf16.mxu0 0
        %3471 = vmatpush1.bf16.xpose.msra.mxu0 %v3454
        %3472 = vmatprep.subr.bf16.mxu0 0
        %3473 = vmatpush1.bf16.xpose.msra.mxu0 0
        %3474 = vmatprep.subr.bf16.mxu0 0
        %3475 = vmatpush1.bf16.xpose.msra.mxu0 0
        %3476 = vmatprep.subr.bf16.mxu0 0
        %3477 = vmatpush1.bf16.xpose.msra.mxu0 0
        %3478 = vmatprep.subr.bf16.mxu0 0
        %3479 = vmatpush1.bf16.xpose.msra.mxu0 0
        %3480 = vmatprep.subr.bf16.mxu0 0
        %3481 = vmatpush1.bf16.xpose.msra.mxu0 0
        %3482 = vmatprep.subr.bf16.mxu0 0
        %3483 = vmatpush1.bf16.xpose.msra.mxu0 0
        %3484 = vmatprep.subr.bf16.mxu0 0
        %3485 = vmatpush1.bf16.xpose.msra.mxu0 0
        %3486 = vmatprep.subr.bf16.mxu0 0
        %3487 = vmatpush1.bf16.xpose.msra.mxu0 0
        %3488 = vmatprep.mubr.bf16.mxu0 0
        %3489 = vmatmul.mubr.bf16.gmra.mrb[0].mxu0 %v3409
        %v3490 = vpop.f32.mrb[0].mxu0
        %v3491 = vadd.f32 0.0, %v3490
        %v3492 = vpop.f32.mrb[0].mxu0
        %v3493 = vpop.f32.mrb[0].mxu0
        %v3494 = vadd.f32 0.0, %v3493
        %v3495 = vpop.f32.mrb[0].mxu0
        %3496 = vmatprep.mubr.bf16.mxu0 0
        %3497 = vmatmul.mubr.bf16.gmra.mrb[0].mxu0 %v3412
        %v3498 = vpop.f32.mrb[0].mxu0
        %v3499 = vadd.f32 0.0, %v3498
        %v3500 = vpop.f32.mrb[0].mxu0
        %v3501 = vpop.f32.mrb[0].mxu0
        %v3502 = vadd.f32 0.0, %v3501
        %v3503 = vpop.f32.mrb[0].mxu0
        %3504 = vmatprep.mubr.bf16.mxu0 0
        %3505 = vmatmul.mubr.bf16.gmra.mrb[0].mxu0 %v3415
        %v3506 = vpop.f32.mrb[0].mxu0
        %v3507 = vadd.f32 0.0, %v3506
        %v3508 = vpop.f32.mrb[0].mxu0
        %v3509 = vpop.f32.mrb[0].mxu0
        %v3510 = vadd.f32 0.0, %v3509
        %v3511 = vpop.f32.mrb[0].mxu0
        %3512 = vmatprep.mubr.bf16.mxu0 0
        %3513 = vmatmul.mubr.bf16.gmra.mrb[0].mxu0 %v3418
        %v3514 = vpop.f32.mrb[0].mxu0
        %v3515 = vadd.f32 0.0, %v3514
        %v3516 = vpop.f32.mrb[0].mxu0
        %v3517 = vpop.f32.mrb[0].mxu0
        %v3518 = vadd.f32 0.0, %v3517
        %v3519 = vpop.f32.mrb[0].mxu0
        %3520 = vmatprep.mubr.bf16.mxu0 0
        %3521 = vmatmul.mubr.bf16.gmra.mrb[0].mxu0 %v3421
        %v3522 = vpop.f32.mrb[0].mxu0
        %v3523 = vadd.f32 0.0, %v3522
        %v3524 = vpop.f32.mrb[0].mxu0
        %v3525 = vpop.f32.mrb[0].mxu0
        %v3526 = vadd.f32 0.0, %v3525
        %v3527 = vpop.f32.mrb[0].mxu0
        %3528 = vmatprep.mubr.bf16.mxu0 0
        %3529 = vmatmul.mubr.bf16.gmra.mrb[0].mxu0 %v3424
        %v3530 = vpop.f32.mrb[0].mxu0
        %v3531 = vadd.f32 0.0, %v3530
        %v3532 = vpop.f32.mrb[0].mxu0
        %v3533 = vpop.f32.mrb[0].mxu0
        %v3534 = vadd.f32 0.0, %v3533
        %v3535 = vpop.f32.mrb[0].mxu0
        %3536 = vmatprep.mubr.bf16.mxu0 0
        %3537 = vmatmul.mubr.bf16.gmra.mrb[0].mxu0 %v3427
        %v3538 = vpop.f32.mrb[0].mxu0
        %v3539 = vadd.f32 0.0, %v3538
        %v3540 = vpop.f32.mrb[0].mxu0
        %v3541 = vpop.f32.mrb[0].mxu0
        %v3542 = vadd.f32 0.0, %v3541
        %v3543 = vpop.f32.mrb[0].mxu0
        %3544 = vmatprep.mubr.bf16.mxu0 0
        %3545 = vmatmul.mubr.bf16.gmra.mrb[0].mxu0 %v3430
        %v3546 = vpop.f32.mrb[0].mxu0
        %v3547 = vadd.f32 0.0, %v3546
        %v3548 = vpop.f32.mrb[0].mxu0
        %v3549 = vpop.f32.mrb[0].mxu0
        %v3550 = vadd.f32 0.0, %v3549
        %v3551 = vpop.f32.mrb[0].mxu0
        %3552 = vdwg.mxu0
        %v3553 = vsel %vm2917, %v3491, -inf
        %v3554 = vsel %vm2918, %v3494, -inf
        %v3555 = vsel %vm2919, %v3499, -inf
        %v3556 = vsel %vm2920, %v3502, -inf
        %v3557 = vsel %vm2921, %v3507, -inf
        %v3558 = vsel %vm2922, %v3510, -inf
        %v3559 = vsel %vm2923, %v3515, -inf
        %v3560 = vsel %vm2924, %v3518, -inf
        %v3561 = vsel %vm2925, %v3523, -inf
        %v3562 = vsel %vm2926, %v3526, -inf
        %v3563 = vsel %vm2927, %v3531, -inf
        %v3564 = vsel %vm2928, %v3534, -inf
        %v3565 = vsel %vm2929, %v3539, -inf
        %v3566 = vsel %vm2930, %v3542, -inf
        %v3567 = vsel %vm2931, %v3547, -inf
        %v3568 = vsel %vm2932, %v3550, -inf
        %3569 = vmax.xlane.f32.xlu0 %v3553
        %v3570 = vpop.xlane.xlu0 %3569
        %3571 = vmax.xlane.f32.xlu0 %v3554
        %v3572 = vpop.xlane.xlu0 %3571
        %3573 = vmax.xlane.f32.xlu0 %v3555
        %v3574 = vpop.xlane.xlu0 %3573
        %3575 = vmax.xlane.f32.xlu0 %v3556
        %v3576 = vpop.xlane.xlu0 %3575
        %3577 = vmax.xlane.f32.xlu0 %v3557
        %v3578 = vpop.xlane.xlu0 %3577
        %3579 = vmax.xlane.f32.xlu0 %v3558
        %v3580 = vpop.xlane.xlu0 %3579
        %3581 = vmax.xlane.f32.xlu0 %v3559
        %v3582 = vpop.xlane.xlu0 %3581
        %3583 = vmax.xlane.f32.xlu0 %v3560
        %v3584 = vpop.xlane.xlu0 %3583
        %3585 = vmax.xlane.f32.xlu0 %v3561
        %v3586 = vpop.xlane.xlu0 %3585
        %3587 = vmax.xlane.f32.xlu0 %v3562
        %v3588 = vpop.xlane.xlu0 %3587
        %3589 = vmax.xlane.f32.xlu0 %v3563
        %v3590 = vpop.xlane.xlu0 %3589
        %3591 = vmax.xlane.f32.xlu0 %v3564
        %v3592 = vpop.xlane.xlu0 %3591
        %3593 = vmax.xlane.f32.xlu0 %v3565
        %v3594 = vpop.xlane.xlu0 %3593
        %3595 = vmax.xlane.f32.xlu0 %v3566
        %v3596 = vpop.xlane.xlu0 %3595
        %3597 = vmax.xlane.f32.xlu0 %v3567
        %v3598 = vpop.xlane.xlu0 %3597
        %3599 = vmax.xlane.f32.xlu0 %v3568
        %v3600 = vpop.xlane.xlu0 %3599
        %v3601 = vsub.f32 %v3553, %v3570
        %v3602 = vsub.f32 %v3554, %v3572
        %v3603 = vsub.f32 %v3555, %v3574
        %v3604 = vsub.f32 %v3556, %v3576
        %v3605 = vsub.f32 %v3557, %v3578
        %v3606 = vsub.f32 %v3558, %v3580
        %v3607 = vsub.f32 %v3559, %v3582
        %v3608 = vsub.f32 %v3560, %v3584
        %v3609 = vsub.f32 %v3561, %v3586
        %v3610 = vsub.f32 %v3562, %v3588
        %v3611 = vsub.f32 %v3563, %v3590
        %v3612 = vsub.f32 %v3564, %v3592
        %v3613 = vsub.f32 %v3565, %v3594
        %v3614 = vsub.f32 %v3566, %v3596
        %v3615 = vsub.f32 %v3567, %v3598
        %v3616 = vsub.f32 %v3568, %v3600
        %v3617 = vmul.f32 %v3601, 1.442695
        %v3618 = vpow.pop %v3617
        %v3619 = vmul.f32 %v3602, 1.442695
        %v3620 = vpow.pop %v3619
        %v3621 = vmul.f32 %v3603, 1.442695
        %v3622 = vpow.pop %v3621
        %v3623 = vmul.f32 %v3604, 1.442695
        %v3624 = vpow.pop %v3623
        %v3625 = vmul.f32 %v3605, 1.442695
        %v3626 = vpow.pop %v3625
        %v3627 = vmul.f32 %v3606, 1.442695
        %v3628 = vpow.pop %v3627
        %v3629 = vmul.f32 %v3607, 1.442695
        %v3630 = vpow.pop %v3629
        %v3631 = vmul.f32 %v3608, 1.442695
        %v3632 = vpow.pop %v3631
        %v3633 = vmul.f32 %v3609, 1.442695
        %v3634 = vpow.pop %v3633
        %v3635 = vmul.f32 %v3610, 1.442695
        %v3636 = vpow.pop %v3635
        %v3637 = vmul.f32 %v3611, 1.442695
        %v3638 = vpow.pop %v3637
        %v3639 = vmul.f32 %v3612, 1.442695
        %v3640 = vpow.pop %v3639
        %v3641 = vmul.f32 %v3613, 1.442695
        %v3642 = vpow.pop %v3641
        %v3643 = vmul.f32 %v3614, 1.442695
        %v3644 = vpow.pop %v3643
        %v3645 = vmul.f32 %v3615, 1.442695
        %v3646 = vpow.pop %v3645
        %v3647 = vmul.f32 %v3616, 1.442695
        %v3648 = vpow.pop %v3647
        %3649 = vadd.xlane.f32.xlu0 %v3618
        %v3650 = vpop.xlane.xlu0 %3649
        %3651 = vadd.xlane.f32.xlu0 %v3620
        %v3652 = vpop.xlane.xlu0 %3651
        %3653 = vadd.xlane.f32.xlu0 %v3622
        %v3654 = vpop.xlane.xlu0 %3653
        %3655 = vadd.xlane.f32.xlu0 %v3624
        %v3656 = vpop.xlane.xlu0 %3655
        %3657 = vadd.xlane.f32.xlu0 %v3626
        %v3658 = vpop.xlane.xlu0 %3657
        %3659 = vadd.xlane.f32.xlu0 %v3628
        %v3660 = vpop.xlane.xlu0 %3659
        %3661 = vadd.xlane.f32.xlu0 %v3630
        %v3662 = vpop.xlane.xlu0 %3661
        %3663 = vadd.xlane.f32.xlu0 %v3632
        %v3664 = vpop.xlane.xlu0 %3663
        %3665 = vadd.xlane.f32.xlu0 %v3634
        %v3666 = vpop.xlane.xlu0 %3665
        %3667 = vadd.xlane.f32.xlu0 %v3636
        %v3668 = vpop.xlane.xlu0 %3667
        %3669 = vadd.xlane.f32.xlu0 %v3638
        %v3670 = vpop.xlane.xlu0 %3669
        %3671 = vadd.xlane.f32.xlu0 %v3640
        %v3672 = vpop.xlane.xlu0 %3671
        %3673 = vadd.xlane.f32.xlu0 %v3642
        %v3674 = vpop.xlane.xlu0 %3673
        %3675 = vadd.xlane.f32.xlu0 %v3644
        %v3676 = vpop.xlane.xlu0 %3675
        %3677 = vadd.xlane.f32.xlu0 %v3646
        %v3678 = vpop.xlane.xlu0 %3677
        %3679 = vadd.xlane.f32.xlu0 %v3648
        %v3680 = vpop.xlane.xlu0 %3679
        %v3681 = vrcp.pop %v3650
        %v3682 = vrcp.pop %v3652
        %v3683 = vrcp.pop %v3654
        %v3684 = vrcp.pop %v3656
        %v3685 = vrcp.pop %v3658
        %v3686 = vrcp.pop %v3660
        %v3687 = vrcp.pop %v3662
        %v3688 = vrcp.pop %v3664
        %v3689 = vrcp.pop %v3666
        %v3690 = vrcp.pop %v3668
        %v3691 = vrcp.pop %v3670
        %v3692 = vrcp.pop %v3672
        %v3693 = vrcp.pop %v3674
        %v3694 = vrcp.pop %v3676
        %v3695 = vrcp.pop %v3678
        %v3696 = vrcp.pop %v3680
        %v3697 = vmul.f32 %v3618, %v3681
        %v3698 = vmul.f32 %v3620, %v3682
        %v3699 = vmul.f32 %v3622, %v3683
        %v3700 = vmul.f32 %v3624, %v3684
        %v3701 = vmul.f32 %v3626, %v3685
        %v3702 = vmul.f32 %v3628, %v3686
        %v3703 = vmul.f32 %v3630, %v3687
        %v3704 = vmul.f32 %v3632, %v3688
        %v3705 = vmul.f32 %v3634, %v3689
        %v3706 = vmul.f32 %v3636, %v3690
        %v3707 = vmul.f32 %v3638, %v3691
        %v3708 = vmul.f32 %v3640, %v3692
        %v3709 = vmul.f32 %v3642, %v3693
        %v3710 = vmul.f32 %v3644, %v3694
        %v3711 = vmul.f32 %v3646, %v3695
        %v3712 = vmul.f32 %v3648, %v3696
        %v3713 = vpack.c.bf16 %v3698, %v3697
        %v3714 = vpack.c.bf16 %v3700, %v3699
        %v3715 = vpack.c.bf16 %v3702, %v3701
        %v3716 = vpack.c.bf16 %v3704, %v3703
        %v3717 = vpack.c.bf16 %v3706, %v3705
        %v3718 = vpack.c.bf16 %v3708, %v3707
        %v3719 = vpack.c.bf16 %v3710, %v3709
        %v3720 = vpack.c.bf16 %v3712, %v3711
        %3729 = vrot.lane.b32.xlu0 %v2832, 64
        %v3730 = vpop.permute.xlu0 %3729
        %3731 = vrot.lane.b32.xlu0 %v2841, 64
        %v3732 = vpop.permute.xlu0 %3731
        %3733 = vrot.lane.b32.xlu0 %v2850, 64
        %v3734 = vpop.permute.xlu0 %3733
        %3735 = vrot.lane.b32.xlu0 %v2859, 64
        %v3736 = vpop.permute.xlu0 %3735
        %3737 = vrot.lane.b32.xlu0 %v2868, 64
        %v3738 = vpop.permute.xlu0 %3737
        %3739 = vrot.lane.b32.xlu0 %v2877, 64
        %v3740 = vpop.permute.xlu0 %3739
        %3741 = vrot.lane.b32.xlu0 %v2886, 64
        %v3742 = vpop.permute.xlu0 %3741
        %3743 = vrot.lane.b32.xlu0 %v2895, 64
        %v3744 = vpop.permute.xlu0 %3743
        %3753 = vmatprep.subr.bf16.mxu0 0
        %3754 = vmatpush1.bf16.msra.mxu0 %v3730
        %3755 = vmatprep.subr.bf16.mxu0 0
        %3756 = vmatpush1.bf16.msra.mxu0 %v3732
        %3757 = vmatprep.subr.bf16.mxu0 0
        %3758 = vmatpush1.bf16.msra.mxu0 %v3734
        %3759 = vmatprep.subr.bf16.mxu0 0
        %3760 = vmatpush1.bf16.msra.mxu0 %v3736
        %3761 = vmatprep.subr.bf16.mxu0 0
        %3762 = vmatpush1.bf16.msra.mxu0 %v3738
        %3763 = vmatprep.subr.bf16.mxu0 0
        %3764 = vmatpush1.bf16.msra.mxu0 %v3740
        %3765 = vmatprep.subr.bf16.mxu0 0
        %3766 = vmatpush1.bf16.msra.mxu0 %v3742
        %3767 = vmatprep.subr.bf16.mxu0 0
        %3768 = vmatpush1.bf16.msra.mxu0 %v3744
        %3769 = vmatprep.subr.bf16.mxu0 0
        %3770 = vmatpush1.bf16.msra.mxu0 0
        %3771 = vmatprep.subr.bf16.mxu0 0
        %3772 = vmatpush1.bf16.msra.mxu0 0
        %3773 = vmatprep.subr.bf16.mxu0 0
        %3774 = vmatpush1.bf16.msra.mxu0 0
        %3775 = vmatprep.subr.bf16.mxu0 0
        %3776 = vmatpush1.bf16.msra.mxu0 0
        %3777 = vmatprep.subr.bf16.mxu0 0
        %3778 = vmatpush1.bf16.msra.mxu0 0
        %3779 = vmatprep.subr.bf16.mxu0 0
        %3780 = vmatpush1.bf16.msra.mxu0 0
        %3781 = vmatprep.subr.bf16.mxu0 0
        %3782 = vmatpush1.bf16.msra.mxu0 0
        %3783 = vmatprep.subr.bf16.mxu0 0
        %3784 = vmatpush1.bf16.msra.mxu0 0
        %3785 = vmatprep.mubr.bf16.mxu0 0
        %3786 = vmatmul.mubr.bf16.gmra.mrb[0].mxu0 %v3713
        %v3787 = vpop.f32.mrb[0].mxu0
        %v3788 = vadd.f32 0.0, %v3787
        %v3789 = vpop.f32.mrb[0].mxu0
        %v3790 = vpop.f32.mrb[0].mxu0
        %v3791 = vadd.f32 0.0, %v3790
        %v3792 = vpop.f32.mrb[0].mxu0
        %3793 = vmatprep.mubr.bf16.mxu0 0
        %3794 = vmatmul.mubr.bf16.gmra.mrb[0].mxu0 %v3714
        %v3795 = vpop.f32.mrb[0].mxu0
        %v3796 = vadd.f32 0.0, %v3795
        %v3797 = vpop.f32.mrb[0].mxu0
        %v3798 = vpop.f32.mrb[0].mxu0
        %v3799 = vadd.f32 0.0, %v3798
        %v3800 = vpop.f32.mrb[0].mxu0
        %3801 = vmatprep.mubr.bf16.mxu0 0
        %3802 = vmatmul.mubr.bf16.gmra.mrb[0].mxu0 %v3715
        %v3803 = vpop.f32.mrb[0].mxu0
        %v3804 = vadd.f32 0.0, %v3803
        %v3805 = vpop.f32.mrb[0].mxu0
        %v3806 = vpop.f32.mrb[0].mxu0
        %v3807 = vadd.f32 0.0, %v3806
        %v3808 = vpop.f32.mrb[0].mxu0
        %3809 = vmatprep.mubr.bf16.mxu0 0
        %3810 = vmatmul.mubr.bf16.gmra.mrb[0].mxu0 %v3716
        %v3811 = vpop.f32.mrb[0].mxu0
        %v3812 = vadd.f32 0.0, %v3811
        %v3813 = vpop.f32.mrb[0].mxu0
        %v3814 = vpop.f32.mrb[0].mxu0
        %v3815 = vadd.f32 0.0, %v3814
        %v3816 = vpop.f32.mrb[0].mxu0
        %3817 = vmatprep.mubr.bf16.mxu0 0
        %3818 = vmatmul.mubr.bf16.gmra.mrb[0].mxu0 %v3717
        %v3819 = vpop.f32.mrb[0].mxu0
        %v3820 = vadd.f32 0.0, %v3819
        %v3821 = vpop.f32.mrb[0].mxu0
        %v3822 = vpop.f32.mrb[0].mxu0
        %v3823 = vadd.f32 0.0, %v3822
        %v3824 = vpop.f32.mrb[0].mxu0
        %3825 = vmatprep.mubr.bf16.mxu0 0
        %3826 = vmatmul.mubr.bf16.gmra.mrb[0].mxu0 %v3718
        %v3827 = vpop.f32.mrb[0].mxu0
        %v3828 = vadd.f32 0.0, %v3827
        %v3829 = vpop.f32.mrb[0].mxu0
        %v3830 = vpop.f32.mrb[0].mxu0
        %v3831 = vadd.f32 0.0, %v3830
        %v3832 = vpop.f32.mrb[0].mxu0
        %3833 = vmatprep.mubr.bf16.mxu0 0
        %3834 = vmatmul.mubr.bf16.gmra.mrb[0].mxu0 %v3719
        %v3835 = vpop.f32.mrb[0].mxu0
        %v3836 = vadd.f32 0.0, %v3835
        %v3837 = vpop.f32.mrb[0].mxu0
        %v3838 = vpop.f32.mrb[0].mxu0
        %v3839 = vadd.f32 0.0, %v3838
        %v3840 = vpop.f32.mrb[0].mxu0
        %3841 = vmatprep.mubr.bf16.mxu0 0
        %3842 = vmatmul.mubr.bf16.gmra.mrb[0].mxu0 %v3720
        %v3843 = vpop.f32.mrb[0].mxu0
        %v3844 = vadd.f32 0.0, %v3843
        %v3845 = vpop.f32.mrb[0].mxu0
        %v3846 = vpop.f32.mrb[0].mxu0
        %v3847 = vadd.f32 0.0, %v3846
        %v3848 = vpop.f32.mrb[0].mxu0
        %3849 = vdwg.mxu0
        %v3850 = vpack.c.bf16 %v3791, %v3788
        %v3851 = vpack.c.bf16 %v3799, %v3796
        %v3852 = vpack.c.bf16 %v3807, %v3804
        %v3853 = vpack.c.bf16 %v3815, %v3812
        %v3854 = vpack.c.bf16 %v3823, %v3820
        %v3855 = vpack.c.bf16 %v3831, %v3828
        %v3856 = vpack.c.bf16 %v3839, %v3836
        %v3857 = vpack.c.bf16 %v3847, %v3844
        %3866 = vrot.lane.b32.xlu0 %v3850, 64
        %v3867 = vpop.permute.xlu0 %3866
        %3868 = vrot.lane.b32.xlu0 %v3851, 64
        %v3869 = vpop.permute.xlu0 %3868
        %3870 = vrot.lane.b32.xlu0 %v3852, 64
        %v3871 = vpop.permute.xlu0 %3870
        %3872 = vrot.lane.b32.xlu0 %v3853, 64
        %v3873 = vpop.permute.xlu0 %3872
        %3874 = vrot.lane.b32.xlu0 %v3854, 64
        %v3875 = vpop.permute.xlu0 %3874
        %3876 = vrot.lane.b32.xlu0 %v3855, 64
        %v3877 = vpop.permute.xlu0 %3876
        %3878 = vrot.lane.b32.xlu0 %v3856, 64
        %v3879 = vpop.permute.xlu0 %3878
        %3880 = vrot.lane.b32.xlu0 %v3857, 64
        %v3881 = vpop.permute.xlu0 %3880
        %vm3890 = vcmask 1048064
        %3891 = vst.msk [vmem:[#allocation2] sm:$0xff] %vm3890, %v3867
        %3892 = vst.msk [vmem:[#allocation2 + $0x18] sm:$0xff] %vm3890, %v3869
        %3893 = vst.msk [vmem:[#allocation2 + $0x30] sm:$0xff] %vm3890, %v3871
        %3894 = vst.msk [vmem:[#allocation2 + $0x48] sm:$0xff] %vm3890, %v3873
        %3895 = vst.msk [vmem:[#allocation2 + $0x60] sm:$0xff] %vm3890, %v3875
        %3896 = vst.msk [vmem:[#allocation2 + $0x78] sm:$0xff] %vm3890, %v3877
        %3897 = vst.msk [vmem:[#allocation2 + $0x90] sm:$0xff] %vm3890, %v3879
        %3898 = vst.msk [vmem:[#allocation2 + $0xa8] sm:$0xff] %vm3890, %v3881
        %v3900 = vsel %vm2933, %v2827, 0
        %v3903 = vsel %vm2933, %v2836, 0
        %v3906 = vsel %vm2933, %v2845, 0
        %v3909 = vsel %vm2933, %v2854, 0
        %v3912 = vsel %vm2933, %v2863, 0
        %v3915 = vsel %vm2933, %v2872, 0
        %v3918 = vsel %vm2933, %v2881, 0
        %v3921 = vsel %vm2933, %v2890, 0
        %v3924 = vsel %vm2933, %v2830, 0
        %v3927 = vsel %vm2933, %v2839, 0
        %v3930 = vsel %vm2933, %v2848, 0
        %v3933 = vsel %vm2933, %v2857, 0
        %v3936 = vsel %vm2933, %v2866, 0
        %v3939 = vsel %vm2933, %v2875, 0
        %v3942 = vsel %vm2933, %v2884, 0
        %v3945 = vsel %vm2933, %v2893, 0
        %3947 = vmatprep.subr.bf16.mxu0 0
        %3948 = vmatpush1.bf16.xpose.msra.mxu0 %v3924
        %3949 = vmatprep.subr.bf16.mxu0 0
        %3950 = vmatpush1.bf16.xpose.msra.mxu0 %v3927
        %3951 = vmatprep.subr.bf16.mxu0 0
        %3952 = vmatpush1.bf16.xpose.msra.mxu0 %v3930
        %3953 = vmatprep.subr.bf16.mxu0 0
        %3954 = vmatpush1.bf16.xpose.msra.mxu0 %v3933
        %3955 = vmatprep.subr.bf16.mxu0 0
        %3956 = vmatpush1.bf16.xpose.msra.mxu0 %v3936
        %3957 = vmatprep.subr.bf16.mxu0 0
        %3958 = vmatpush1.bf16.xpose.msra.mxu0 %v3939
        %3959 = vmatprep.subr.bf16.mxu0 0
        %3960 = vmatpush1.bf16.xpose.msra.mxu0 %v3942
        %3961 = vmatprep.subr.bf16.mxu0 0
        %3962 = vmatpush1.bf16.xpose.msra.mxu0 %v3945
        %3963 = vmatprep.subr.bf16.mxu0 0
        %3964 = vmatpush1.bf16.xpose.msra.mxu0 0
        %3965 = vmatprep.subr.bf16.mxu0 0
        %3966 = vmatpush1.bf16.xpose.msra.mxu0 0
        %3967 = vmatprep.subr.bf16.mxu0 0
        %3968 = vmatpush1.bf16.xpose.msra.mxu0 0
        %3969 = vmatprep.subr.bf16.mxu0 0
        %3970 = vmatpush1.bf16.xpose.msra.mxu0 0
        %3971 = vmatprep.subr.bf16.mxu0 0
        %3972 = vmatpush1.bf16.xpose.msra.mxu0 0
        %3973 = vmatprep.subr.bf16.mxu0 0
        %3974 = vmatpush1.bf16.xpose.msra.mxu0 0
        %3975 = vmatprep.subr.bf16.mxu0 0
        %3976 = vmatpush1.bf16.xpose.msra.mxu0 0
        %3977 = vmatprep.subr.bf16.mxu0 0
        %3978 = vmatpush1.bf16.xpose.msra.mxu0 0
        %3979 = vmatprep.mubr.bf16.mxu0 0
        %3980 = vmatmul.mubr.bf16.gmra.mrb[0].mxu0 %v3900
        %v3981 = vpop.f32.mrb[0].mxu0
        %v3982 = vadd.f32 0.0, %v3981
        %v3983 = vpop.f32.mrb[0].mxu0
        %v3984 = vpop.f32.mrb[0].mxu0
        %v3985 = vadd.f32 0.0, %v3984
        %v3986 = vpop.f32.mrb[0].mxu0
        %3987 = vmatprep.mubr.bf16.mxu0 0
        %3988 = vmatmul.mubr.bf16.gmra.mrb[0].mxu0 %v3903
        %v3989 = vpop.f32.mrb[0].mxu0
        %v3990 = vadd.f32 0.0, %v3989
        %v3991 = vpop.f32.mrb[0].mxu0
        %v3992 = vpop.f32.mrb[0].mxu0
        %v3993 = vadd.f32 0.0, %v3992
        %v3994 = vpop.f32.mrb[0].mxu0
        %3995 = vmatprep.mubr.bf16.mxu0 0
        %3996 = vmatmul.mubr.bf16.gmra.mrb[0].mxu0 %v3906
        %v3997 = vpop.f32.mrb[0].mxu0
        %v3998 = vadd.f32 0.0, %v3997
        %v3999 = vpop.f32.mrb[0].mxu0
        %v4000 = vpop.f32.mrb[0].mxu0
        %v4001 = vadd.f32 0.0, %v4000
        %v4002 = vpop.f32.mrb[0].mxu0
        %4003 = vmatprep.mubr.bf16.mxu0 0
        %4004 = vmatmul.mubr.bf16.gmra.mrb[0].mxu0 %v3909
        %v4005 = vpop.f32.mrb[0].mxu0
        %v4006 = vadd.f32 0.0, %v4005
        %v4007 = vpop.f32.mrb[0].mxu0
        %v4008 = vpop.f32.mrb[0].mxu0
        %v4009 = vadd.f32 0.0, %v4008
        %v4010 = vpop.f32.mrb[0].mxu0
        %4011 = vmatprep.mubr.bf16.mxu0 0
        %4012 = vmatmul.mubr.bf16.gmra.mrb[0].mxu0 %v3912
        %v4013 = vpop.f32.mrb[0].mxu0
        %v4014 = vadd.f32 0.0, %v4013
        %v4015 = vpop.f32.mrb[0].mxu0
        %v4016 = vpop.f32.mrb[0].mxu0
        %v4017 = vadd.f32 0.0, %v4016
        %v4018 = vpop.f32.mrb[0].mxu0
        %4019 = vmatprep.mubr.bf16.mxu0 0
        %4020 = vmatmul.mubr.bf16.gmra.mrb[0].mxu0 %v3915
        %v4021 = vpop.f32.mrb[0].mxu0
        %v4022 = vadd.f32 0.0, %v4021
        %v4023 = vpop.f32.mrb[0].mxu0
        %v4024 = vpop.f32.mrb[0].mxu0
        %v4025 = vadd.f32 0.0, %v4024
        %v4026 = vpop.f32.mrb[0].mxu0
        %4027 = vmatprep.mubr.bf16.mxu0 0
        %4028 = vmatmul.mubr.bf16.gmra.mrb[0].mxu0 %v3918
        %v4029 = vpop.f32.mrb[0].mxu0
        %v4030 = vadd.f32 0.0, %v4029
        %v4031 = vpop.f32.mrb[0].mxu0
        %v4032 = vpop.f32.mrb[0].mxu0
        %v4033 = vadd.f32 0.0, %v4032
        %v4034 = vpop.f32.mrb[0].mxu0
        %4035 = vmatprep.mubr.bf16.mxu0 0
        %4036 = vmatmul.mubr.bf16.gmra.mrb[0].mxu0 %v3921
        %v4037 = vpop.f32.mrb[0].mxu0
        %v4038 = vadd.f32 0.0, %v4037
        %v4039 = vpop.f32.mrb[0].mxu0
        %v4040 = vpop.f32.mrb[0].mxu0
        %v4041 = vadd.f32 0.0, %v4040
        %v4042 = vpop.f32.mrb[0].mxu0
        %4043 = vdwg.mxu0
        %v4044 = vsel %vm2917, %v3982, -inf
        %v4045 = vsel %vm2918, %v3985, -inf
        %v4046 = vsel %vm2919, %v3990, -inf
        %v4047 = vsel %vm2920, %v3993, -inf
        %v4048 = vsel %vm2921, %v3998, -inf
        %v4049 = vsel %vm2922, %v4001, -inf
        %v4050 = vsel %vm2923, %v4006, -inf
        %v4051 = vsel %vm2924, %v4009, -inf
        %v4052 = vsel %vm2925, %v4014, -inf
        %v4053 = vsel %vm2926, %v4017, -inf
        %v4054 = vsel %vm2927, %v4022, -inf
        %v4055 = vsel %vm2928, %v4025, -inf
        %v4056 = vsel %vm2929, %v4030, -inf
        %v4057 = vsel %vm2930, %v4033, -inf
        %v4058 = vsel %vm2931, %v4038, -inf
        %v4059 = vsel %vm2932, %v4041, -inf
        %4060 = vmax.xlane.f32.xlu0 %v4044
        %v4061 = vpop.xlane.xlu0 %4060
        %4062 = vmax.xlane.f32.xlu0 %v4045
        %v4063 = vpop.xlane.xlu0 %4062
        %4064 = vmax.xlane.f32.xlu0 %v4046
        %v4065 = vpop.xlane.xlu0 %4064
        %4066 = vmax.xlane.f32.xlu0 %v4047
        %v4067 = vpop.xlane.xlu0 %4066
        %4068 = vmax.xlane.f32.xlu0 %v4048
        %v4069 = vpop.xlane.xlu0 %4068
        %4070 = vmax.xlane.f32.xlu0 %v4049
        %v4071 = vpop.xlane.xlu0 %4070
        %4072 = vmax.xlane.f32.xlu0 %v4050
        %v4073 = vpop.xlane.xlu0 %4072
        %4074 = vmax.xlane.f32.xlu0 %v4051
        %v4075 = vpop.xlane.xlu0 %4074
        %4076 = vmax.xlane.f32.xlu0 %v4052
        %v4077 = vpop.xlane.xlu0 %4076
        %4078 = vmax.xlane.f32.xlu0 %v4053
        %v4079 = vpop.xlane.xlu0 %4078
        %4080 = vmax.xlane.f32.xlu0 %v4054
        %v4081 = vpop.xlane.xlu0 %4080
        %4082 = vmax.xlane.f32.xlu0 %v4055
        %v4083 = vpop.xlane.xlu0 %4082
        %4084 = vmax.xlane.f32.xlu0 %v4056
        %v4085 = vpop.xlane.xlu0 %4084
        %4086 = vmax.xlane.f32.xlu0 %v4057
        %v4087 = vpop.xlane.xlu0 %4086
        %4088 = vmax.xlane.f32.xlu0 %v4058
        %v4089 = vpop.xlane.xlu0 %4088
        %4090 = vmax.xlane.f32.xlu0 %v4059
        %v4091 = vpop.xlane.xlu0 %4090
        %v4092 = vsub.f32 %v4044, %v4061
        %v4093 = vsub.f32 %v4045, %v4063
        %v4094 = vsub.f32 %v4046, %v4065
        %v4095 = vsub.f32 %v4047, %v4067
        %v4096 = vsub.f32 %v4048, %v4069
        %v4097 = vsub.f32 %v4049, %v4071
        %v4098 = vsub.f32 %v4050, %v4073
        %v4099 = vsub.f32 %v4051, %v4075
        %v4100 = vsub.f32 %v4052, %v4077
        %v4101 = vsub.f32 %v4053, %v4079
        %v4102 = vsub.f32 %v4054, %v4081
        %v4103 = vsub.f32 %v4055, %v4083
        %v4104 = vsub.f32 %v4056, %v4085
        %v4105 = vsub.f32 %v4057, %v4087
        %v4106 = vsub.f32 %v4058, %v4089
        %v4107 = vsub.f32 %v4059, %v4091
        %v4108 = vmul.f32 %v4092, 1.442695
        %v4109 = vpow.pop %v4108
        %v4110 = vmul.f32 %v4093, 1.442695
        %v4111 = vpow.pop %v4110
        %v4112 = vmul.f32 %v4094, 1.442695
        %v4113 = vpow.pop %v4112
        %v4114 = vmul.f32 %v4095, 1.442695
        %v4115 = vpow.pop %v4114
        %v4116 = vmul.f32 %v4096, 1.442695
        %v4117 = vpow.pop %v4116
        %v4118 = vmul.f32 %v4097, 1.442695
        %v4119 = vpow.pop %v4118
        %v4120 = vmul.f32 %v4098, 1.442695
        %v4121 = vpow.pop %v4120
        %v4122 = vmul.f32 %v4099, 1.442695
        %v4123 = vpow.pop %v4122
        %v4124 = vmul.f32 %v4100, 1.442695
        %v4125 = vpow.pop %v4124
        %v4126 = vmul.f32 %v4101, 1.442695
        %v4127 = vpow.pop %v4126
        %v4128 = vmul.f32 %v4102, 1.442695
        %v4129 = vpow.pop %v4128
        %v4130 = vmul.f32 %v4103, 1.442695
        %v4131 = vpow.pop %v4130
        %v4132 = vmul.f32 %v4104, 1.442695
        %v4133 = vpow.pop %v4132
        %v4134 = vmul.f32 %v4105, 1.442695
        %v4135 = vpow.pop %v4134
        %v4136 = vmul.f32 %v4106, 1.442695
        %v4137 = vpow.pop %v4136
        %v4138 = vmul.f32 %v4107, 1.442695
        %v4139 = vpow.pop %v4138
        %4140 = vadd.xlane.f32.xlu0 %v4109
        %v4141 = vpop.xlane.xlu0 %4140
        %4142 = vadd.xlane.f32.xlu0 %v4111
        %v4143 = vpop.xlane.xlu0 %4142
        %4144 = vadd.xlane.f32.xlu0 %v4113
        %v4145 = vpop.xlane.xlu0 %4144
        %4146 = vadd.xlane.f32.xlu0 %v4115
        %v4147 = vpop.xlane.xlu0 %4146
        %4148 = vadd.xlane.f32.xlu0 %v4117
        %v4149 = vpop.xlane.xlu0 %4148
        %4150 = vadd.xlane.f32.xlu0 %v4119
        %v4151 = vpop.xlane.xlu0 %4150
        %4152 = vadd.xlane.f32.xlu0 %v4121
        %v4153 = vpop.xlane.xlu0 %4152
        %4154 = vadd.xlane.f32.xlu0 %v4123
        %v4155 = vpop.xlane.xlu0 %4154
        %4156 = vadd.xlane.f32.xlu0 %v4125
        %v4157 = vpop.xlane.xlu0 %4156
        %4158 = vadd.xlane.f32.xlu0 %v4127
        %v4159 = vpop.xlane.xlu0 %4158
        %4160 = vadd.xlane.f32.xlu0 %v4129
        %v4161 = vpop.xlane.xlu0 %4160
        %4162 = vadd.xlane.f32.xlu0 %v4131
        %v4163 = vpop.xlane.xlu0 %4162
        %4164 = vadd.xlane.f32.xlu0 %v4133
        %v4165 = vpop.xlane.xlu0 %4164
        %4166 = vadd.xlane.f32.xlu0 %v4135
        %v4167 = vpop.xlane.xlu0 %4166
        %4168 = vadd.xlane.f32.xlu0 %v4137
        %v4169 = vpop.xlane.xlu0 %4168
        %4170 = vadd.xlane.f32.xlu0 %v4139
        %v4171 = vpop.xlane.xlu0 %4170
        %v4172 = vrcp.pop %v4141
        %v4173 = vrcp.pop %v4143
        %v4174 = vrcp.pop %v4145
        %v4175 = vrcp.pop %v4147
        %v4176 = vrcp.pop %v4149
        %v4177 = vrcp.pop %v4151
        %v4178 = vrcp.pop %v4153
        %v4179 = vrcp.pop %v4155
        %v4180 = vrcp.pop %v4157
        %v4181 = vrcp.pop %v4159
        %v4182 = vrcp.pop %v4161
        %v4183 = vrcp.pop %v4163
        %v4184 = vrcp.pop %v4165
        %v4185 = vrcp.pop %v4167
        %v4186 = vrcp.pop %v4169
        %v4187 = vrcp.pop %v4171
        %v4188 = vmul.f32 %v4109, %v4172
        %v4189 = vmul.f32 %v4111, %v4173
        %v4190 = vmul.f32 %v4113, %v4174
        %v4191 = vmul.f32 %v4115, %v4175
        %v4192 = vmul.f32 %v4117, %v4176
        %v4193 = vmul.f32 %v4119, %v4177
        %v4194 = vmul.f32 %v4121, %v4178
        %v4195 = vmul.f32 %v4123, %v4179
        %v4196 = vmul.f32 %v4125, %v4180
        %v4197 = vmul.f32 %v4127, %v4181
        %v4198 = vmul.f32 %v4129, %v4182
        %v4199 = vmul.f32 %v4131, %v4183
        %v4200 = vmul.f32 %v4133, %v4184
        %v4201 = vmul.f32 %v4135, %v4185
        %v4202 = vmul.f32 %v4137, %v4186
        %v4203 = vmul.f32 %v4139, %v4187
        %v4204 = vpack.c.bf16 %v4189, %v4188
        %v4205 = vpack.c.bf16 %v4191, %v4190
        %v4206 = vpack.c.bf16 %v4193, %v4192
        %v4207 = vpack.c.bf16 %v4195, %v4194
        %v4208 = vpack.c.bf16 %v4197, %v4196
        %v4209 = vpack.c.bf16 %v4199, %v4198
        %v4210 = vpack.c.bf16 %v4201, %v4200
        %v4211 = vpack.c.bf16 %v4203, %v4202
        %4212 = vmatprep.subr.bf16.mxu0 0
        %4213 = vmatpush1.bf16.msra.mxu0 %v2833
        %4214 = vmatprep.subr.bf16.mxu0 0
        %4215 = vmatpush1.bf16.msra.mxu0 %v2842
        %4216 = vmatprep.subr.bf16.mxu0 0
        %4217 = vmatpush1.bf16.msra.mxu0 %v2851
        %4218 = vmatprep.subr.bf16.mxu0 0
        %4219 = vmatpush1.bf16.msra.mxu0 %v2860
        %4220 = vmatprep.subr.bf16.mxu0 0
        %4221 = vmatpush1.bf16.msra.mxu0 %v2869
        %4222 = vmatprep.subr.bf16.mxu0 0
        %4223 = vmatpush1.bf16.msra.mxu0 %v2878
        %4224 = vmatprep.subr.bf16.mxu0 0
        %4225 = vmatpush1.bf16.msra.mxu0 %v2887
        %4226 = vmatprep.subr.bf16.mxu0 0
        %4227 = vmatpush1.bf16.msra.mxu0 %v2896
        %4228 = vmatprep.subr.bf16.mxu0 0
        %4229 = vmatpush1.bf16.msra.mxu0 0
        %4230 = vmatprep.subr.bf16.mxu0 0
        %4231 = vmatpush1.bf16.msra.mxu0 0
        %4232 = vmatprep.subr.bf16.mxu0 0
        %4233 = vmatpush1.bf16.msra.mxu0 0
        %4234 = vmatprep.subr.bf16.mxu0 0
        %4235 = vmatpush1.bf16.msra.mxu0 0
        %4236 = vmatprep.subr.bf16.mxu0 0
        %4237 = vmatpush1.bf16.msra.mxu0 0
        %4238 = vmatprep.subr.bf16.mxu0 0
        %4239 = vmatpush1.bf16.msra.mxu0 0
        %4240 = vmatprep.subr.bf16.mxu0 0
        %4241 = vmatpush1.bf16.msra.mxu0 0
        %4242 = vmatprep.subr.bf16.mxu0 0
        %4243 = vmatpush1.bf16.msra.mxu0 0
        %4244 = vmatprep.mubr.bf16.mxu0 0
        %4245 = vmatmul.mubr.bf16.gmra.mrb[0].mxu0 %v4204
        %v4246 = vpop.f32.mrb[0].mxu0
        %v4247 = vadd.f32 0.0, %v4246
        %v4248 = vpop.f32.mrb[0].mxu0
        %v4249 = vpop.f32.mrb[0].mxu0
        %v4250 = vadd.f32 0.0, %v4249
        %v4251 = vpop.f32.mrb[0].mxu0
        %4252 = vmatprep.mubr.bf16.mxu0 0
        %4253 = vmatmul.mubr.bf16.gmra.mrb[0].mxu0 %v4205
        %v4254 = vpop.f32.mrb[0].mxu0
        %v4255 = vadd.f32 0.0, %v4254
        %v4256 = vpop.f32.mrb[0].mxu0
        %v4257 = vpop.f32.mrb[0].mxu0
        %v4258 = vadd.f32 0.0, %v4257
        %v4259 = vpop.f32.mrb[0].mxu0
        %4260 = vmatprep.mubr.bf16.mxu0 0
        %4261 = vmatmul.mubr.bf16.gmra.mrb[0].mxu0 %v4206
        %v4262 = vpop.f32.mrb[0].mxu0
        %v4263 = vadd.f32 0.0, %v4262
        %v4264 = vpop.f32.mrb[0].mxu0
        %v4265 = vpop.f32.mrb[0].mxu0
        %v4266 = vadd.f32 0.0, %v4265
        %v4267 = vpop.f32.mrb[0].mxu0
        %4268 = vmatprep.mubr.bf16.mxu0 0
        %4269 = vmatmul.mubr.bf16.gmra.mrb[0].mxu0 %v4207
        %v4270 = vpop.f32.mrb[0].mxu0
        %v4271 = vadd.f32 0.0, %v4270
        %v4272 = vpop.f32.mrb[0].mxu0
        %v4273 = vpop.f32.mrb[0].mxu0
        %v4274 = vadd.f32 0.0, %v4273
        %v4275 = vpop.f32.mrb[0].mxu0
        %4276 = vmatprep.mubr.bf16.mxu0 0
        %4277 = vmatmul.mubr.bf16.gmra.mrb[0].mxu0 %v4208
        %v4278 = vpop.f32.mrb[0].mxu0
        %v4279 = vadd.f32 0.0, %v4278
        %v4280 = vpop.f32.mrb[0].mxu0
        %v4281 = vpop.f32.mrb[0].mxu0
        %v4282 = vadd.f32 0.0, %v4281
        %v4283 = vpop.f32.mrb[0].mxu0
        %4284 = vmatprep.mubr.bf16.mxu0 0
        %4285 = vmatmul.mubr.bf16.gmra.mrb[0].mxu0 %v4209
        %v4286 = vpop.f32.mrb[0].mxu0
        %v4287 = vadd.f32 0.0, %v4286
        %v4288 = vpop.f32.mrb[0].mxu0
        %v4289 = vpop.f32.mrb[0].mxu0
        %v4290 = vadd.f32 0.0, %v4289
        %v4291 = vpop.f32.mrb[0].mxu0
        %4292 = vmatprep.mubr.bf16.mxu0 0
        %4293 = vmatmul.mubr.bf16.gmra.mrb[0].mxu0 %v4210
        %v4294 = vpop.f32.mrb[0].mxu0
        %v4295 = vadd.f32 0.0, %v4294
        %v4296 = vpop.f32.mrb[0].mxu0
        %v4297 = vpop.f32.mrb[0].mxu0
        %v4298 = vadd.f32 0.0, %v4297
        %v4299 = vpop.f32.mrb[0].mxu0
        %4300 = vmatprep.mubr.bf16.mxu0 0
        %4301 = vmatmul.mubr.bf16.gmra.mrb[0].mxu0 %v4211
        %v4302 = vpop.f32.mrb[0].mxu0
        %v4303 = vadd.f32 0.0, %v4302
        %v4304 = vpop.f32.mrb[0].mxu0
        %v4305 = vpop.f32.mrb[0].mxu0
        %v4306 = vadd.f32 0.0, %v4305
        %v4307 = vpop.f32.mrb[0].mxu0
        %4308 = vdwg.mxu0
        %v4309 = vpack.c.bf16 %v4250, %v4247
        %v4310 = vpack.c.bf16 %v4258, %v4255
        %v4311 = vpack.c.bf16 %v4266, %v4263
        %v4312 = vpack.c.bf16 %v4274, %v4271
        %v4313 = vpack.c.bf16 %v4282, %v4279
        %v4314 = vpack.c.bf16 %v4290, %v4287
        %v4315 = vpack.c.bf16 %v4298, %v4295
        %v4316 = vpack.c.bf16 %v4306, %v4303
        %4317 = vst.msk [vmem:[#allocation2 + $0x8] sm:$0xff] %vm2933, %v4309
        %4318 = vst.msk [vmem:[#allocation2 + $0x20] sm:$0xff] %vm2933, %v4310
        %4319 = vst.msk [vmem:[#allocation2 + $0x38] sm:$0xff] %vm2933, %v4311
        %4320 = vst.msk [vmem:[#allocation2 + $0x50] sm:$0xff] %vm2933, %v4312
        %4321 = vst.msk [vmem:[#allocation2 + $0x68] sm:$0xff] %vm2933, %v4313
        %4322 = vst.msk [vmem:[#allocation2 + $0x80] sm:$0xff] %vm2933, %v4314
        %4323 = vst.msk [vmem:[#allocation2 + $0x98] sm:$0xff] %vm2933, %v4315
        %4324 = vst.msk [vmem:[#allocation2 + $0xb0] sm:$0xff] %vm2933, %v4316
        %4333 = vrot.lane.b32.xlu0 %v2827, 64
        %v4334 = vpop.permute.xlu0 %4333
        %4335 = vrot.lane.b32.xlu0 %v2836, 64
        %v4336 = vpop.permute.xlu0 %4335
        %4337 = vrot.lane.b32.xlu0 %v2845, 64
        %v4338 = vpop.permute.xlu0 %4337
        %4339 = vrot.lane.b32.xlu0 %v2854, 64
        %v4340 = vpop.permute.xlu0 %4339
        %4341 = vrot.lane.b32.xlu0 %v2863, 64
        %v4342 = vpop.permute.xlu0 %4341
        %4343 = vrot.lane.b32.xlu0 %v2872, 64
        %v4344 = vpop.permute.xlu0 %4343
        %4345 = vrot.lane.b32.xlu0 %v2881, 64
        %v4346 = vpop.permute.xlu0 %4345
        %4347 = vrot.lane.b32.xlu0 %v2890, 64
        %v4348 = vpop.permute.xlu0 %4347
        %4357 = vrot.lane.b32.xlu0 %v2830, 64
        %v4358 = vpop.permute.xlu0 %4357
        %4359 = vrot.lane.b32.xlu0 %v2839, 64
        %v4360 = vpop.permute.xlu0 %4359
        %4361 = vrot.lane.b32.xlu0 %v2848, 64
        %v4362 = vpop.permute.xlu0 %4361
        %4363 = vrot.lane.b32.xlu0 %v2857, 64
        %v4364 = vpop.permute.xlu0 %4363
        %4365 = vrot.lane.b32.xlu0 %v2866, 64
        %v4366 = vpop.permute.xlu0 %4365
        %4367 = vrot.lane.b32.xlu0 %v2875, 64
        %v4368 = vpop.permute.xlu0 %4367
        %4369 = vrot.lane.b32.xlu0 %v2884, 64
        %v4370 = vpop.permute.xlu0 %4369
        %4371 = vrot.lane.b32.xlu0 %v2893, 64
        %v4372 = vpop.permute.xlu0 %4371
        %v4374 = vsel %vm2933, %v4334, 0
        %v4377 = vsel %vm2933, %v4336, 0
        %v4380 = vsel %vm2933, %v4338, 0
        %v4383 = vsel %vm2933, %v4340, 0
        %v4386 = vsel %vm2933, %v4342, 0
        %v4389 = vsel %vm2933, %v4344, 0
        %v4392 = vsel %vm2933, %v4346, 0
        %v4395 = vsel %vm2933, %v4348, 0
        %v4398 = vsel %vm2933, %v4358, 0
        %v4401 = vsel %vm2933, %v4360, 0
        %v4404 = vsel %vm2933, %v4362, 0
        %v4407 = vsel %vm2933, %v4364, 0
        %v4410 = vsel %vm2933, %v4366, 0
        %v4413 = vsel %vm2933, %v4368, 0
        %v4416 = vsel %vm2933, %v4370, 0
        %v4419 = vsel %vm2933, %v4372, 0
        %4421 = vmatprep.subr.bf16.mxu0 0
        %4422 = vmatpush1.bf16.xpose.msra.mxu0 %v4398
        %4423 = vmatprep.subr.bf16.mxu0 0
        %4424 = vmatpush1.bf16.xpose.msra.mxu0 %v4401
        %4425 = vmatprep.subr.bf16.mxu0 0
        %4426 = vmatpush1.bf16.xpose.msra.mxu0 %v4404
        %4427 = vmatprep.subr.bf16.mxu0 0
        %4428 = vmatpush1.bf16.xpose.msra.mxu0 %v4407
        %4429 = vmatprep.subr.bf16.mxu0 0
        %4430 = vmatpush1.bf16.xpose.msra.mxu0 %v4410
        %4431 = vmatprep.subr.bf16.mxu0 0
        %4432 = vmatpush1.bf16.xpose.msra.mxu0 %v4413
        %4433 = vmatprep.subr.bf16.mxu0 0
        %4434 = vmatpush1.bf16.xpose.msra.mxu0 %v4416
        %4435 = vmatprep.subr.bf16.mxu0 0
        %4436 = vmatpush1.bf16.xpose.msra.mxu0 %v4419
        %4437 = vmatprep.subr.bf16.mxu0 0
        %4438 = vmatpush1.bf16.xpose.msra.mxu0 0
        %4439 = vmatprep.subr.bf16.mxu0 0
        %4440 = vmatpush1.bf16.xpose.msra.mxu0 0
        %4441 = vmatprep.subr.bf16.mxu0 0
        %4442 = vmatpush1.bf16.xpose.msra.mxu0 0
        %4443 = vmatprep.subr.bf16.mxu0 0
        %4444 = vmatpush1.bf16.xpose.msra.mxu0 0
        %4445 = vmatprep.subr.bf16.mxu0 0
        %4446 = vmatpush1.bf16.xpose.msra.mxu0 0
        %4447 = vmatprep.subr.bf16.mxu0 0
        %4448 = vmatpush1.bf16.xpose.msra.mxu0 0
        %4449 = vmatprep.subr.bf16.mxu0 0
        %4450 = vmatpush1.bf16.xpose.msra.mxu0 0
        %4451 = vmatprep.subr.bf16.mxu0 0
        %4452 = vmatpush1.bf16.xpose.msra.mxu0 0
        %4453 = vmatprep.mubr.bf16.mxu0 0
        %4454 = vmatmul.mubr.bf16.gmra.mrb[0].mxu0 %v4374
        %v4455 = vpop.f32.mrb[0].mxu0
        %v4456 = vadd.f32 0.0, %v4455
        %v4457 = vpop.f32.mrb[0].mxu0
        %v4458 = vpop.f32.mrb[0].mxu0
        %v4459 = vadd.f32 0.0, %v4458
        %v4460 = vpop.f32.mrb[0].mxu0
        %4461 = vmatprep.mubr.bf16.mxu0 0
        %4462 = vmatmul.mubr.bf16.gmra.mrb[0].mxu0 %v4377
        %v4463 = vpop.f32.mrb[0].mxu0
        %v4464 = vadd.f32 0.0, %v4463
        %v4465 = vpop.f32.mrb[0].mxu0
        %v4466 = vpop.f32.mrb[0].mxu0
        %v4467 = vadd.f32 0.0, %v4466
        %v4468 = vpop.f32.mrb[0].mxu0
        %4469 = vmatprep.mubr.bf16.mxu0 0
        %4470 = vmatmul.mubr.bf16.gmra.mrb[0].mxu0 %v4380
        %v4471 = vpop.f32.mrb[0].mxu0
        %v4472 = vadd.f32 0.0, %v4471
        %v4473 = vpop.f32.mrb[0].mxu0
        %v4474 = vpop.f32.mrb[0].mxu0
        %v4475 = vadd.f32 0.0, %v4474
        %v4476 = vpop.f32.mrb[0].mxu0
        %4477 = vmatprep.mubr.bf16.mxu0 0
        %4478 = vmatmul.mubr.bf16.gmra.mrb[0].mxu0 %v4383
        %v4479 = vpop.f32.mrb[0].mxu0
        %v4480 = vadd.f32 0.0, %v4479
        %v4481 = vpop.f32.mrb[0].mxu0
        %v4482 = vpop.f32.mrb[0].mxu0
        %v4483 = vadd.f32 0.0, %v4482
        %v4484 = vpop.f32.mrb[0].mxu0
        %4485 = vmatprep.mubr.bf16.mxu0 0
        %4486 = vmatmul.mubr.bf16.gmra.mrb[0].mxu0 %v4386
        %v4487 = vpop.f32.mrb[0].mxu0
        %v4488 = vadd.f32 0.0, %v4487
        %v4489 = vpop.f32.mrb[0].mxu0
        %v4490 = vpop.f32.mrb[0].mxu0
        %v4491 = vadd.f32 0.0, %v4490
        %v4492 = vpop.f32.mrb[0].mxu0
        %4493 = vmatprep.mubr.bf16.mxu0 0
        %4494 = vmatmul.mubr.bf16.gmra.mrb[0].mxu0 %v4389
        %v4495 = vpop.f32.mrb[0].mxu0
        %v4496 = vadd.f32 0.0, %v4495
        %v4497 = vpop.f32.mrb[0].mxu0
        %v4498 = vpop.f32.mrb[0].mxu0
        %v4499 = vadd.f32 0.0, %v4498
        %v4500 = vpop.f32.mrb[0].mxu0
        %4501 = vmatprep.mubr.bf16.mxu0 0
        %4502 = vmatmul.mubr.bf16.gmra.mrb[0].mxu0 %v4392
        %v4503 = vpop.f32.mrb[0].mxu0
        %v4504 = vadd.f32 0.0, %v4503
        %v4505 = vpop.f32.mrb[0].mxu0
        %v4506 = vpop.f32.mrb[0].mxu0
        %v4507 = vadd.f32 0.0, %v4506
        %v4508 = vpop.f32.mrb[0].mxu0
        %4509 = vmatprep.mubr.bf16.mxu0 0
        %4510 = vmatmul.mubr.bf16.gmra.mrb[0].mxu0 %v4395
        %v4511 = vpop.f32.mrb[0].mxu0
        %v4512 = vadd.f32 0.0, %v4511
        %v4513 = vpop.f32.mrb[0].mxu0
        %v4514 = vpop.f32.mrb[0].mxu0
        %v4515 = vadd.f32 0.0, %v4514
        %v4516 = vpop.f32.mrb[0].mxu0
        %4517 = vdwg.mxu0
        %v4518 = vsel %vm2917, %v4456, -inf
        %v4519 = vsel %vm2918, %v4459, -inf
        %v4520 = vsel %vm2919, %v4464, -inf
        %v4521 = vsel %vm2920, %v4467, -inf
        %v4522 = vsel %vm2921, %v4472, -inf
        %v4523 = vsel %vm2922, %v4475, -inf
        %v4524 = vsel %vm2923, %v4480, -inf
        %v4525 = vsel %vm2924, %v4483, -inf
        %v4526 = vsel %vm2925, %v4488, -inf
        %v4527 = vsel %vm2926, %v4491, -inf
        %v4528 = vsel %vm2927, %v4496, -inf
        %v4529 = vsel %vm2928, %v4499, -inf
        %v4530 = vsel %vm2929, %v4504, -inf
        %v4531 = vsel %vm2930, %v4507, -inf
        %v4532 = vsel %vm2931, %v4512, -inf
        %v4533 = vsel %vm2932, %v4515, -inf
        %4534 = vmax.xlane.f32.xlu0 %v4518
        %v4535 = vpop.xlane.xlu0 %4534
        %4536 = vmax.xlane.f32.xlu0 %v4519
        %v4537 = vpop.xlane.xlu0 %4536
        %4538 = vmax.xlane.f32.xlu0 %v4520
        %v4539 = vpop.xlane.xlu0 %4538
        %4540 = vmax.xlane.f32.xlu0 %v4521
        %v4541 = vpop.xlane.xlu0 %4540
        %4542 = vmax.xlane.f32.xlu0 %v4522
        %v4543 = vpop.xlane.xlu0 %4542
        %4544 = vmax.xlane.f32.xlu0 %v4523
        %v4545 = vpop.xlane.xlu0 %4544
        %4546 = vmax.xlane.f32.xlu0 %v4524
        %v4547 = vpop.xlane.xlu0 %4546
        %4548 = vmax.xlane.f32.xlu0 %v4525
        %v4549 = vpop.xlane.xlu0 %4548
        %4550 = vmax.xlane.f32.xlu0 %v4526
        %v4551 = vpop.xlane.xlu0 %4550
        %4552 = vmax.xlane.f32.xlu0 %v4527
        %v4553 = vpop.xlane.xlu0 %4552
        %4554 = vmax.xlane.f32.xlu0 %v4528
        %v4555 = vpop.xlane.xlu0 %4554
        %4556 = vmax.xlane.f32.xlu0 %v4529
        %v4557 = vpop.xlane.xlu0 %4556
        %4558 = vmax.xlane.f32.xlu0 %v4530
        %v4559 = vpop.xlane.xlu0 %4558
        %4560 = vmax.xlane.f32.xlu0 %v4531
        %v4561 = vpop.xlane.xlu0 %4560
        %4562 = vmax.xlane.f32.xlu0 %v4532
        %v4563 = vpop.xlane.xlu0 %4562
        %4564 = vmax.xlane.f32.xlu0 %v4533
        %v4565 = vpop.xlane.xlu0 %4564
        %v4566 = vsub.f32 %v4518, %v4535
        %v4567 = vsub.f32 %v4519, %v4537
        %v4568 = vsub.f32 %v4520, %v4539
        %v4569 = vsub.f32 %v4521, %v4541
        %v4570 = vsub.f32 %v4522, %v4543
        %v4571 = vsub.f32 %v4523, %v4545
        %v4572 = vsub.f32 %v4524, %v4547
        %v4573 = vsub.f32 %v4525, %v4549
        %v4574 = vsub.f32 %v4526, %v4551
        %v4575 = vsub.f32 %v4527, %v4553
        %v4576 = vsub.f32 %v4528, %v4555
        %v4577 = vsub.f32 %v4529, %v4557
        %v4578 = vsub.f32 %v4530, %v4559
        %v4579 = vsub.f32 %v4531, %v4561
        %v4580 = vsub.f32 %v4532, %v4563
        %v4581 = vsub.f32 %v4533, %v4565
        %v4582 = vmul.f32 %v4566, 1.442695
        %v4583 = vpow.pop %v4582
        %v4584 = vmul.f32 %v4567, 1.442695
        %v4585 = vpow.pop %v4584
        %v4586 = vmul.f32 %v4568, 1.442695
        %v4587 = vpow.pop %v4586
        %v4588 = vmul.f32 %v4569, 1.442695
        %v4589 = vpow.pop %v4588
        %v4590 = vmul.f32 %v4570, 1.442695
        %v4591 = vpow.pop %v4590
        %v4592 = vmul.f32 %v4571, 1.442695
        %v4593 = vpow.pop %v4592
        %v4594 = vmul.f32 %v4572, 1.442695
        %v4595 = vpow.pop %v4594
        %v4596 = vmul.f32 %v4573, 1.442695
        %v4597 = vpow.pop %v4596
        %v4598 = vmul.f32 %v4574, 1.442695
        %v4599 = vpow.pop %v4598
        %v4600 = vmul.f32 %v4575, 1.442695
        %v4601 = vpow.pop %v4600
        %v4602 = vmul.f32 %v4576, 1.442695
        %v4603 = vpow.pop %v4602
        %v4604 = vmul.f32 %v4577, 1.442695
        %v4605 = vpow.pop %v4604
        %v4606 = vmul.f32 %v4578, 1.442695
        %v4607 = vpow.pop %v4606
        %v4608 = vmul.f32 %v4579, 1.442695
        %v4609 = vpow.pop %v4608
        %v4610 = vmul.f32 %v4580, 1.442695
        %v4611 = vpow.pop %v4610
        %v4612 = vmul.f32 %v4581, 1.442695
        %v4613 = vpow.pop %v4612
        %4614 = vadd.xlane.f32.xlu0 %v4583
        %v4615 = vpop.xlane.xlu0 %4614
        %4616 = vadd.xlane.f32.xlu0 %v4585
        %v4617 = vpop.xlane.xlu0 %4616
        %4618 = vadd.xlane.f32.xlu0 %v4587
        %v4619 = vpop.xlane.xlu0 %4618
        %4620 = vadd.xlane.f32.xlu0 %v4589
        %v4621 = vpop.xlane.xlu0 %4620
        %4622 = vadd.xlane.f32.xlu0 %v4591
        %v4623 = vpop.xlane.xlu0 %4622
        %4624 = vadd.xlane.f32.xlu0 %v4593
        %v4625 = vpop.xlane.xlu0 %4624
        %4626 = vadd.xlane.f32.xlu0 %v4595
        %v4627 = vpop.xlane.xlu0 %4626
        %4628 = vadd.xlane.f32.xlu0 %v4597
        %v4629 = vpop.xlane.xlu0 %4628
        %4630 = vadd.xlane.f32.xlu0 %v4599
        %v4631 = vpop.xlane.xlu0 %4630
        %4632 = vadd.xlane.f32.xlu0 %v4601
        %v4633 = vpop.xlane.xlu0 %4632
        %4634 = vadd.xlane.f32.xlu0 %v4603
        %v4635 = vpop.xlane.xlu0 %4634
        %4636 = vadd.xlane.f32.xlu0 %v4605
        %v4637 = vpop.xlane.xlu0 %4636
        %4638 = vadd.xlane.f32.xlu0 %v4607
        %v4639 = vpop.xlane.xlu0 %4638
        %4640 = vadd.xlane.f32.xlu0 %v4609
        %v4641 = vpop.xlane.xlu0 %4640
        %4642 = vadd.xlane.f32.xlu0 %v4611
        %v4643 = vpop.xlane.xlu0 %4642
        %4644 = vadd.xlane.f32.xlu0 %v4613
        %v4645 = vpop.xlane.xlu0 %4644
        %v4646 = vrcp.pop %v4615
        %v4647 = vrcp.pop %v4617
        %v4648 = vrcp.pop %v4619
        %v4649 = vrcp.pop %v4621
        %v4650 = vrcp.pop %v4623
        %v4651 = vrcp.pop %v4625
        %v4652 = vrcp.pop %v4627
        %v4653 = vrcp.pop %v4629
        %v4654 = vrcp.pop %v4631
        %v4655 = vrcp.pop %v4633
        %v4656 = vrcp.pop %v4635
        %v4657 = vrcp.pop %v4637
        %v4658 = vrcp.pop %v4639
        %v4659 = vrcp.pop %v4641
        %v4660 = vrcp.pop %v4643
        %v4661 = vrcp.pop %v4645
        %v4662 = vmul.f32 %v4583, %v4646
        %v4663 = vmul.f32 %v4585, %v4647
        %v4664 = vmul.f32 %v4587, %v4648
        %v4665 = vmul.f32 %v4589, %v4649
        %v4666 = vmul.f32 %v4591, %v4650
        %v4667 = vmul.f32 %v4593, %v4651
        %v4668 = vmul.f32 %v4595, %v4652
        %v4669 = vmul.f32 %v4597, %v4653
        %v4670 = vmul.f32 %v4599, %v4654
        %v4671 = vmul.f32 %v4601, %v4655
        %v4672 = vmul.f32 %v4603, %v4656
        %v4673 = vmul.f32 %v4605, %v4657
        %v4674 = vmul.f32 %v4607, %v4658
        %v4675 = vmul.f32 %v4609, %v4659
        %v4676 = vmul.f32 %v4611, %v4660
        %v4677 = vmul.f32 %v4613, %v4661
        %v4678 = vpack.c.bf16 %v4663, %v4662
        %v4679 = vpack.c.bf16 %v4665, %v4664
        %v4680 = vpack.c.bf16 %v4667, %v4666
        %v4681 = vpack.c.bf16 %v4669, %v4668
        %v4682 = vpack.c.bf16 %v4671, %v4670
        %v4683 = vpack.c.bf16 %v4673, %v4672
        %v4684 = vpack.c.bf16 %v4675, %v4674
        %v4685 = vpack.c.bf16 %v4677, %v4676
        %4694 = vrot.lane.b32.xlu0 %v2833, 64
        %v4695 = vpop.permute.xlu0 %4694
        %4696 = vrot.lane.b32.xlu0 %v2842, 64
        %v4697 = vpop.permute.xlu0 %4696
        %4698 = vrot.lane.b32.xlu0 %v2851, 64
        %v4699 = vpop.permute.xlu0 %4698
        %4700 = vrot.lane.b32.xlu0 %v2860, 64
        %v4701 = vpop.permute.xlu0 %4700
        %4702 = vrot.lane.b32.xlu0 %v2869, 64
        %v4703 = vpop.permute.xlu0 %4702
        %4704 = vrot.lane.b32.xlu0 %v2878, 64
        %v4705 = vpop.permute.xlu0 %4704
        %4706 = vrot.lane.b32.xlu0 %v2887, 64
        %v4707 = vpop.permute.xlu0 %4706
        %4708 = vrot.lane.b32.xlu0 %v2896, 64
        %v4709 = vpop.permute.xlu0 %4708
        %4718 = vmatprep.subr.bf16.mxu0 0
        %4719 = vmatpush1.bf16.msra.mxu0 %v4695
        %4720 = vmatprep.subr.bf16.mxu0 0
        %4721 = vmatpush1.bf16.msra.mxu0 %v4697
        %4722 = vmatprep.subr.bf16.mxu0 0
        %4723 = vmatpush1.bf16.msra.mxu0 %v4699
        %4724 = vmatprep.subr.bf16.mxu0 0
        %4725 = vmatpush1.bf16.msra.mxu0 %v4701
        %4726 = vmatprep.subr.bf16.mxu0 0
        %4727 = vmatpush1.bf16.msra.mxu0 %v4703
        %4728 = vmatprep.subr.bf16.mxu0 0
        %4729 = vmatpush1.bf16.msra.mxu0 %v4705
        %4730 = vmatprep.subr.bf16.mxu0 0
        %4731 = vmatpush1.bf16.msra.mxu0 %v4707
        %4732 = vmatprep.subr.bf16.mxu0 0
        %4733 = vmatpush1.bf16.msra.mxu0 %v4709
        %4734 = vmatprep.subr.bf16.mxu0 0
        %4735 = vmatpush1.bf16.msra.mxu0 0
        %4736 = vmatprep.subr.bf16.mxu0 0
        %4737 = vmatpush1.bf16.msra.mxu0 0
        %4738 = vmatprep.subr.bf16.mxu0 0
        %4739 = vmatpush1.bf16.msra.mxu0 0
        %4740 = vmatprep.subr.bf16.mxu0 0
        %4741 = vmatpush1.bf16.msra.mxu0 0
        %4742 = vmatprep.subr.bf16.mxu0 0
        %4743 = vmatpush1.bf16.msra.mxu0 0
        %4744 = vmatprep.subr.bf16.mxu0 0
        %4745 = vmatpush1.bf16.msra.mxu0 0
        %4746 = vmatprep.subr.bf16.mxu0 0
        %4747 = vmatpush1.bf16.msra.mxu0 0
        %4748 = vmatprep.subr.bf16.mxu0 0
        %4749 = vmatpush1.bf16.msra.mxu0 0
        %4750 = vmatprep.mubr.bf16.mxu0 0
        %4751 = vmatmul.mubr.bf16.gmra.mrb[0].mxu0 %v4678
        %v4752 = vpop.f32.mrb[0].mxu0
        %v4753 = vadd.f32 0.0, %v4752
        %v4754 = vpop.f32.mrb[0].mxu0
        %v4755 = vpop.f32.mrb[0].mxu0
        %v4756 = vadd.f32 0.0, %v4755
        %v4757 = vpop.f32.mrb[0].mxu0
        %4758 = vmatprep.mubr.bf16.mxu0 0
        %4759 = vmatmul.mubr.bf16.gmra.mrb[0].mxu0 %v4679
        %v4760 = vpop.f32.mrb[0].mxu0
        %v4761 = vadd.f32 0.0, %v4760
        %v4762 = vpop.f32.mrb[0].mxu0
        %v4763 = vpop.f32.mrb[0].mxu0
        %v4764 = vadd.f32 0.0, %v4763
        %v4765 = vpop.f32.mrb[0].mxu0
        %4766 = vmatprep.mubr.bf16.mxu0 0
        %4767 = vmatmul.mubr.bf16.gmra.mrb[0].mxu0 %v4680
        %v4768 = vpop.f32.mrb[0].mxu0
        %v4769 = vadd.f32 0.0, %v4768
        %v4770 = vpop.f32.mrb[0].mxu0
        %v4771 = vpop.f32.mrb[0].mxu0
        %v4772 = vadd.f32 0.0, %v4771
        %v4773 = vpop.f32.mrb[0].mxu0
        %4774 = vmatprep.mubr.bf16.mxu0 0
        %4775 = vmatmul.mubr.bf16.gmra.mrb[0].mxu0 %v4681
        %v4776 = vpop.f32.mrb[0].mxu0
        %v4777 = vadd.f32 0.0, %v4776
        %v4778 = vpop.f32.mrb[0].mxu0
        %v4779 = vpop.f32.mrb[0].mxu0
        %v4780 = vadd.f32 0.0, %v4779
        %v4781 = vpop.f32.mrb[0].mxu0
        %4782 = vmatprep.mubr.bf16.mxu0 0
        %4783 = vmatmul.mubr.bf16.gmra.mrb[0].mxu0 %v4682
        %v4784 = vpop.f32.mrb[0].mxu0
        %v4785 = vadd.f32 0.0, %v4784
        %v4786 = vpop.f32.mrb[0].mxu0
        %v4787 = vpop.f32.mrb[0].mxu0
        %v4788 = vadd.f32 0.0, %v4787
        %v4789 = vpop.f32.mrb[0].mxu0
        %4790 = vmatprep.mubr.bf16.mxu0 0
        %4791 = vmatmul.mubr.bf16.gmra.mrb[0].mxu0 %v4683
        %v4792 = vpop.f32.mrb[0].mxu0
        %v4793 = vadd.f32 0.0, %v4792
        %v4794 = vpop.f32.mrb[0].mxu0
        %v4795 = vpop.f32.mrb[0].mxu0
        %v4796 = vadd.f32 0.0, %v4795
        %v4797 = vpop.f32.mrb[0].mxu0
        %4798 = vmatprep.mubr.bf16.mxu0 0
        %4799 = vmatmul.mubr.bf16.gmra.mrb[0].mxu0 %v4684
        %v4800 = vpop.f32.mrb[0].mxu0
        %v4801 = vadd.f32 0.0, %v4800
        %v4802 = vpop.f32.mrb[0].mxu0
        %v4803 = vpop.f32.mrb[0].mxu0
        %v4804 = vadd.f32 0.0, %v4803
        %v4805 = vpop.f32.mrb[0].mxu0
        %4806 = vmatprep.mubr.bf16.mxu0 0
        %4807 = vmatmul.mubr.bf16.gmra.mrb[0].mxu0 %v4685
        %v4808 = vpop.f32.mrb[0].mxu0
        %v4809 = vadd.f32 0.0, %v4808
        %v4810 = vpop.f32.mrb[0].mxu0
        %v4811 = vpop.f32.mrb[0].mxu0
        %v4812 = vadd.f32 0.0, %v4811
        %v4813 = vpop.f32.mrb[0].mxu0
        %4814 = vdwg.mxu0
        %v4815 = vpack.c.bf16 %v4756, %v4753
        %v4816 = vpack.c.bf16 %v4764, %v4761
        %v4817 = vpack.c.bf16 %v4772, %v4769
        %v4818 = vpack.c.bf16 %v4780, %v4777
        %v4819 = vpack.c.bf16 %v4788, %v4785
        %v4820 = vpack.c.bf16 %v4796, %v4793
        %v4821 = vpack.c.bf16 %v4804, %v4801
        %v4822 = vpack.c.bf16 %v4812, %v4809
        %4831 = vrot.lane.b32.xlu0 %v4815, 64
        %v4832 = vpop.permute.xlu0 %4831
        %4833 = vrot.lane.b32.xlu0 %v4816, 64
        %v4834 = vpop.permute.xlu0 %4833
        %4835 = vrot.lane.b32.xlu0 %v4817, 64
        %v4836 = vpop.permute.xlu0 %4835
        %4837 = vrot.lane.b32.xlu0 %v4818, 64
        %v4838 = vpop.permute.xlu0 %4837
        %4839 = vrot.lane.b32.xlu0 %v4819, 64
        %v4840 = vpop.permute.xlu0 %4839
        %4841 = vrot.lane.b32.xlu0 %v4820, 64
        %v4842 = vpop.permute.xlu0 %4841
        %4843 = vrot.lane.b32.xlu0 %v4821, 64
        %v4844 = vpop.permute.xlu0 %4843
        %4845 = vrot.lane.b32.xlu0 %v4822, 64
        %v4846 = vpop.permute.xlu0 %4845
        %4855 = vst.msk [vmem:[#allocation2 + $0x8] sm:$0xff] %vm3890, %v4832
        %4856 = vst.msk [vmem:[#allocation2 + $0x20] sm:$0xff] %vm3890, %v4834
        %4857 = vst.msk [vmem:[#allocation2 + $0x38] sm:$0xff] %vm3890, %v4836
        %4858 = vst.msk [vmem:[#allocation2 + $0x50] sm:$0xff] %vm3890, %v4838
        %4859 = vst.msk [vmem:[#allocation2 + $0x68] sm:$0xff] %vm3890, %v4840
        %4860 = vst.msk [vmem:[#allocation2 + $0x80] sm:$0xff] %vm3890, %v4842
        %4861 = vst.msk [vmem:[#allocation2 + $0x98] sm:$0xff] %vm3890, %v4844
        %4862 = vst.msk [vmem:[#allocation2 + $0xb0] sm:$0xff] %vm3890, %v4846
        %v4864 = vsel %vm2933, %v2828, 0
        %v4867 = vsel %vm2933, %v2837, 0
        %v4870 = vsel %vm2933, %v2846, 0
        %v4873 = vsel %vm2933, %v2855, 0
        %v4876 = vsel %vm2933, %v2864, 0
        %v4879 = vsel %vm2933, %v2873, 0
        %v4882 = vsel %vm2933, %v2882, 0
        %v4885 = vsel %vm2933, %v2891, 0
        %v4888 = vsel %vm2933, %v2831, 0
        %v4891 = vsel %vm2933, %v2840, 0
        %v4894 = vsel %vm2933, %v2849, 0
        %v4897 = vsel %vm2933, %v2858, 0
        %v4900 = vsel %vm2933, %v2867, 0
        %v4903 = vsel %vm2933, %v2876, 0
        %v4906 = vsel %vm2933, %v2885, 0
        %v4909 = vsel %vm2933, %v2894, 0
        %4911 = vmatprep.subr.bf16.mxu0 0
        %4912 = vmatpush1.bf16.xpose.msra.mxu0 %v4888
        %4913 = vmatprep.subr.bf16.mxu0 0
        %4914 = vmatpush1.bf16.xpose.msra.mxu0 %v4891
        %4915 = vmatprep.subr.bf16.mxu0 0
        %4916 = vmatpush1.bf16.xpose.msra.mxu0 %v4894
        %4917 = vmatprep.subr.bf16.mxu0 0
        %4918 = vmatpush1.bf16.xpose.msra.mxu0 %v4897
        %4919 = vmatprep.subr.bf16.mxu0 0
        %4920 = vmatpush1.bf16.xpose.msra.mxu0 %v4900
        %4921 = vmatprep.subr.bf16.mxu0 0
        %4922 = vmatpush1.bf16.xpose.msra.mxu0 %v4903
        %4923 = vmatprep.subr.bf16.mxu0 0
        %4924 = vmatpush1.bf16.xpose.msra.mxu0 %v4906
        %4925 = vmatprep.subr.bf16.mxu0 0
        %4926 = vmatpush1.bf16.xpose.msra.mxu0 %v4909
        %4927 = vmatprep.subr.bf16.mxu0 0
        %4928 = vmatpush1.bf16.xpose.msra.mxu0 0
        %4929 = vmatprep.subr.bf16.mxu0 0
        %4930 = vmatpush1.bf16.xpose.msra.mxu0 0
        %4931 = vmatprep.subr.bf16.mxu0 0
        %4932 = vmatpush1.bf16.xpose.msra.mxu0 0
        %4933 = vmatprep.subr.bf16.mxu0 0
        %4934 = vmatpush1.bf16.xpose.msra.mxu0 0
        %4935 = vmatprep.subr.bf16.mxu0 0
        %4936 = vmatpush1.bf16.xpose.msra.mxu0 0
        %4937 = vmatprep.subr.bf16.mxu0 0
        %4938 = vmatpush1.bf16.xpose.msra.mxu0 0
        %4939 = vmatprep.subr.bf16.mxu0 0
        %4940 = vmatpush1.bf16.xpose.msra.mxu0 0
        %4941 = vmatprep.subr.bf16.mxu0 0
        %4942 = vmatpush1.bf16.xpose.msra.mxu0 0
        %4943 = vmatprep.mubr.bf16.mxu0 0
        %4944 = vmatmul.mubr.bf16.gmra.mrb[0].mxu0 %v4864
        %v4945 = vpop.f32.mrb[0].mxu0
        %v4946 = vadd.f32 0.0, %v4945
        %v4947 = vpop.f32.mrb[0].mxu0
        %v4948 = vpop.f32.mrb[0].mxu0
        %v4949 = vadd.f32 0.0, %v4948
        %v4950 = vpop.f32.mrb[0].mxu0
        %4951 = vmatprep.mubr.bf16.mxu0 0
        %4952 = vmatmul.mubr.bf16.gmra.mrb[0].mxu0 %v4867
        %v4953 = vpop.f32.mrb[0].mxu0
        %v4954 = vadd.f32 0.0, %v4953
        %v4955 = vpop.f32.mrb[0].mxu0
        %v4956 = vpop.f32.mrb[0].mxu0
        %v4957 = vadd.f32 0.0, %v4956
        %v4958 = vpop.f32.mrb[0].mxu0
        %4959 = vmatprep.mubr.bf16.mxu0 0
        %4960 = vmatmul.mubr.bf16.gmra.mrb[0].mxu0 %v4870
        %v4961 = vpop.f32.mrb[0].mxu0
        %v4962 = vadd.f32 0.0, %v4961
        %v4963 = vpop.f32.mrb[0].mxu0
        %v4964 = vpop.f32.mrb[0].mxu0
        %v4965 = vadd.f32 0.0, %v4964
        %v4966 = vpop.f32.mrb[0].mxu0
        %4967 = vmatprep.mubr.bf16.mxu0 0
        %4968 = vmatmul.mubr.bf16.gmra.mrb[0].mxu0 %v4873
        %v4969 = vpop.f32.mrb[0].mxu0
        %v4970 = vadd.f32 0.0, %v4969
        %v4971 = vpop.f32.mrb[0].mxu0
        %v4972 = vpop.f32.mrb[0].mxu0
        %v4973 = vadd.f32 0.0, %v4972
        %v4974 = vpop.f32.mrb[0].mxu0
        %4975 = vmatprep.mubr.bf16.mxu0 0
        %4976 = vmatmul.mubr.bf16.gmra.mrb[0].mxu0 %v4876
        %v4977 = vpop.f32.mrb[0].mxu0
        %v4978 = vadd.f32 0.0, %v4977
        %v4979 = vpop.f32.mrb[0].mxu0
        %v4980 = vpop.f32.mrb[0].mxu0
        %v4981 = vadd.f32 0.0, %v4980
        %v4982 = vpop.f32.mrb[0].mxu0
        %4983 = vmatprep.mubr.bf16.mxu0 0
        %4984 = vmatmul.mubr.bf16.gmra.mrb[0].mxu0 %v4879
        %v4985 = vpop.f32.mrb[0].mxu0
        %v4986 = vadd.f32 0.0, %v4985
        %v4987 = vpop.f32.mrb[0].mxu0
        %v4988 = vpop.f32.mrb[0].mxu0
        %v4989 = vadd.f32 0.0, %v4988
        %v4990 = vpop.f32.mrb[0].mxu0
        %4991 = vmatprep.mubr.bf16.mxu0 0
        %4992 = vmatmul.mubr.bf16.gmra.mrb[0].mxu0 %v4882
        %v4993 = vpop.f32.mrb[0].mxu0
        %v4994 = vadd.f32 0.0, %v4993
        %v4995 = vpop.f32.mrb[0].mxu0
        %v4996 = vpop.f32.mrb[0].mxu0
        %v4997 = vadd.f32 0.0, %v4996
        %v4998 = vpop.f32.mrb[0].mxu0
        %4999 = vmatprep.mubr.bf16.mxu0 0
        %5000 = vmatmul.mubr.bf16.gmra.mrb[0].mxu0 %v4885
        %v5001 = vpop.f32.mrb[0].mxu0
        %v5002 = vadd.f32 0.0, %v5001
        %v5003 = vpop.f32.mrb[0].mxu0
        %v5004 = vpop.f32.mrb[0].mxu0
        %v5005 = vadd.f32 0.0, %v5004
        %v5006 = vpop.f32.mrb[0].mxu0
        %5007 = vdwg.mxu0
        %v5008 = vsel %vm2917, %v4946, -inf
        %v5009 = vsel %vm2918, %v4949, -inf
        %v5010 = vsel %vm2919, %v4954, -inf
        %v5011 = vsel %vm2920, %v4957, -inf
        %v5012 = vsel %vm2921, %v4962, -inf
        %v5013 = vsel %vm2922, %v4965, -inf
        %v5014 = vsel %vm2923, %v4970, -inf
        %v5015 = vsel %vm2924, %v4973, -inf
        %v5016 = vsel %vm2925, %v4978, -inf
        %v5017 = vsel %vm2926, %v4981, -inf
        %v5018 = vsel %vm2927, %v4986, -inf
        %v5019 = vsel %vm2928, %v4989, -inf
        %v5020 = vsel %vm2929, %v4994, -inf
        %v5021 = vsel %vm2930, %v4997, -inf
        %v5022 = vsel %vm2931, %v5002, -inf
        %v5023 = vsel %vm2932, %v5005, -inf
        %5024 = vmax.xlane.f32.xlu0 %v5008
        %v5025 = vpop.xlane.xlu0 %5024
        %5026 = vmax.xlane.f32.xlu0 %v5009
        %v5027 = vpop.xlane.xlu0 %5026
        %5028 = vmax.xlane.f32.xlu0 %v5010
        %v5029 = vpop.xlane.xlu0 %5028
        %5030 = vmax.xlane.f32.xlu0 %v5011
        %v5031 = vpop.xlane.xlu0 %5030
        %5032 = vmax.xlane.f32.xlu0 %v5012
        %v5033 = vpop.xlane.xlu0 %5032
        %5034 = vmax.xlane.f32.xlu0 %v5013
        %v5035 = vpop.xlane.xlu0 %5034
        %5036 = vmax.xlane.f32.xlu0 %v5014
        %v5037 = vpop.xlane.xlu0 %5036
        %5038 = vmax.xlane.f32.xlu0 %v5015
        %v5039 = vpop.xlane.xlu0 %5038
        %5040 = vmax.xlane.f32.xlu0 %v5016
        %v5041 = vpop.xlane.xlu0 %5040
        %5042 = vmax.xlane.f32.xlu0 %v5017
        %v5043 = vpop.xlane.xlu0 %5042
        %5044 = vmax.xlane.f32.xlu0 %v5018
        %v5045 = vpop.xlane.xlu0 %5044
        %5046 = vmax.xlane.f32.xlu0 %v5019
        %v5047 = vpop.xlane.xlu0 %5046
        %5048 = vmax.xlane.f32.xlu0 %v5020
        %v5049 = vpop.xlane.xlu0 %5048
        %5050 = vmax.xlane.f32.xlu0 %v5021
        %v5051 = vpop.xlane.xlu0 %5050
        %5052 = vmax.xlane.f32.xlu0 %v5022
        %v5053 = vpop.xlane.xlu0 %5052
        %5054 = vmax.xlane.f32.xlu0 %v5023
        %v5055 = vpop.xlane.xlu0 %5054
        %v5056 = vsub.f32 %v5008, %v5025
        %v5057 = vsub.f32 %v5009, %v5027
        %v5058 = vsub.f32 %v5010, %v5029
        %v5059 = vsub.f32 %v5011, %v5031
        %v5060 = vsub.f32 %v5012, %v5033
        %v5061 = vsub.f32 %v5013, %v5035
        %v5062 = vsub.f32 %v5014, %v5037
        %v5063 = vsub.f32 %v5015, %v5039
        %v5064 = vsub.f32 %v5016, %v5041
        %v5065 = vsub.f32 %v5017, %v5043
        %v5066 = vsub.f32 %v5018, %v5045
        %v5067 = vsub.f32 %v5019, %v5047
        %v5068 = vsub.f32 %v5020, %v5049
        %v5069 = vsub.f32 %v5021, %v5051
        %v5070 = vsub.f32 %v5022, %v5053
        %v5071 = vsub.f32 %v5023, %v5055
        %v5072 = vmul.f32 %v5056, 1.442695
        %v5073 = vpow.pop %v5072
        %v5074 = vmul.f32 %v5057, 1.442695
        %v5075 = vpow.pop %v5074
        %v5076 = vmul.f32 %v5058, 1.442695
        %v5077 = vpow.pop %v5076
        %v5078 = vmul.f32 %v5059, 1.442695
        %v5079 = vpow.pop %v5078
        %v5080 = vmul.f32 %v5060, 1.442695
        %v5081 = vpow.pop %v5080
        %v5082 = vmul.f32 %v5061, 1.442695
        %v5083 = vpow.pop %v5082
        %v5084 = vmul.f32 %v5062, 1.442695
        %v5085 = vpow.pop %v5084
        %v5086 = vmul.f32 %v5063, 1.442695
        %v5087 = vpow.pop %v5086
        %v5088 = vmul.f32 %v5064, 1.442695
        %v5089 = vpow.pop %v5088
        %v5090 = vmul.f32 %v5065, 1.442695
        %v5091 = vpow.pop %v5090
        %v5092 = vmul.f32 %v5066, 1.442695
        %v5093 = vpow.pop %v5092
        %v5094 = vmul.f32 %v5067, 1.442695
        %v5095 = vpow.pop %v5094
        %v5096 = vmul.f32 %v5068, 1.442695
        %v5097 = vpow.pop %v5096
        %v5098 = vmul.f32 %v5069, 1.442695
        %v5099 = vpow.pop %v5098
        %v5100 = vmul.f32 %v5070, 1.442695
        %v5101 = vpow.pop %v5100
        %v5102 = vmul.f32 %v5071, 1.442695
        %v5103 = vpow.pop %v5102
        %5104 = vadd.xlane.f32.xlu0 %v5073
        %v5105 = vpop.xlane.xlu0 %5104
        %5106 = vadd.xlane.f32.xlu0 %v5075
        %v5107 = vpop.xlane.xlu0 %5106
        %5108 = vadd.xlane.f32.xlu0 %v5077
        %v5109 = vpop.xlane.xlu0 %5108
        %5110 = vadd.xlane.f32.xlu0 %v5079
        %v5111 = vpop.xlane.xlu0 %5110
        %5112 = vadd.xlane.f32.xlu0 %v5081
        %v5113 = vpop.xlane.xlu0 %5112
        %5114 = vadd.xlane.f32.xlu0 %v5083
        %v5115 = vpop.xlane.xlu0 %5114
        %5116 = vadd.xlane.f32.xlu0 %v5085
        %v5117 = vpop.xlane.xlu0 %5116
        %5118 = vadd.xlane.f32.xlu0 %v5087
        %v5119 = vpop.xlane.xlu0 %5118
        %5120 = vadd.xlane.f32.xlu0 %v5089
        %v5121 = vpop.xlane.xlu0 %5120
        %5122 = vadd.xlane.f32.xlu0 %v5091
        %v5123 = vpop.xlane.xlu0 %5122
        %5124 = vadd.xlane.f32.xlu0 %v5093
        %v5125 = vpop.xlane.xlu0 %5124
        %5126 = vadd.xlane.f32.xlu0 %v5095
        %v5127 = vpop.xlane.xlu0 %5126
        %5128 = vadd.xlane.f32.xlu0 %v5097
        %v5129 = vpop.xlane.xlu0 %5128
        %5130 = vadd.xlane.f32.xlu0 %v5099
        %v5131 = vpop.xlane.xlu0 %5130
        %5132 = vadd.xlane.f32.xlu0 %v5101
        %v5133 = vpop.xlane.xlu0 %5132
        %5134 = vadd.xlane.f32.xlu0 %v5103
        %v5135 = vpop.xlane.xlu0 %5134
        %v5136 = vrcp.pop %v5105
        %v5137 = vrcp.pop %v5107
        %v5138 = vrcp.pop %v5109
        %v5139 = vrcp.pop %v5111
        %v5140 = vrcp.pop %v5113
        %v5141 = vrcp.pop %v5115
        %v5142 = vrcp.pop %v5117
        %v5143 = vrcp.pop %v5119
        %v5144 = vrcp.pop %v5121
        %v5145 = vrcp.pop %v5123
        %v5146 = vrcp.pop %v5125
        %v5147 = vrcp.pop %v5127
        %v5148 = vrcp.pop %v5129
        %v5149 = vrcp.pop %v5131
        %v5150 = vrcp.pop %v5133
        %v5151 = vrcp.pop %v5135
        %v5152 = vmul.f32 %v5073, %v5136
        %v5153 = vmul.f32 %v5075, %v5137
        %v5154 = vmul.f32 %v5077, %v5138
        %v5155 = vmul.f32 %v5079, %v5139
        %v5156 = vmul.f32 %v5081, %v5140
        %v5157 = vmul.f32 %v5083, %v5141
        %v5158 = vmul.f32 %v5085, %v5142
        %v5159 = vmul.f32 %v5087, %v5143
        %v5160 = vmul.f32 %v5089, %v5144
        %v5161 = vmul.f32 %v5091, %v5145
        %v5162 = vmul.f32 %v5093, %v5146
        %v5163 = vmul.f32 %v5095, %v5147
        %v5164 = vmul.f32 %v5097, %v5148
        %v5165 = vmul.f32 %v5099, %v5149
        %v5166 = vmul.f32 %v5101, %v5150
        %v5167 = vmul.f32 %v5103, %v5151
        %v5168 = vpack.c.bf16 %v5153, %v5152
        %v5169 = vpack.c.bf16 %v5155, %v5154
        %v5170 = vpack.c.bf16 %v5157, %v5156
        %v5171 = vpack.c.bf16 %v5159, %v5158
        %v5172 = vpack.c.bf16 %v5161, %v5160
        %v5173 = vpack.c.bf16 %v5163, %v5162
        %v5174 = vpack.c.bf16 %v5165, %v5164
        %v5175 = vpack.c.bf16 %v5167, %v5166
        %5176 = vmatprep.subr.bf16.mxu0 0
        %5177 = vmatpush1.bf16.msra.mxu0 %v2834
        %5178 = vmatprep.subr.bf16.mxu0 0
        %5179 = vmatpush1.bf16.msra.mxu0 %v2843
        %5180 = vmatprep.subr.bf16.mxu0 0
        %5181 = vmatpush1.bf16.msra.mxu0 %v2852
        %5182 = vmatprep.subr.bf16.mxu0 0
        %5183 = vmatpush1.bf16.msra.mxu0 %v2861
        %5184 = vmatprep.subr.bf16.mxu0 0
        %5185 = vmatpush1.bf16.msra.mxu0 %v2870
        %5186 = vmatprep.subr.bf16.mxu0 0
        %5187 = vmatpush1.bf16.msra.mxu0 %v2879
        %5188 = vmatprep.subr.bf16.mxu0 0
        %5189 = vmatpush1.bf16.msra.mxu0 %v2888
        %5190 = vmatprep.subr.bf16.mxu0 0
        %5191 = vmatpush1.bf16.msra.mxu0 %v2897
        %5192 = vmatprep.subr.bf16.mxu0 0
        %5193 = vmatpush1.bf16.msra.mxu0 0
        %5194 = vmatprep.subr.bf16.mxu0 0
        %5195 = vmatpush1.bf16.msra.mxu0 0
        %5196 = vmatprep.subr.bf16.mxu0 0
        %5197 = vmatpush1.bf16.msra.mxu0 0
        %5198 = vmatprep.subr.bf16.mxu0 0
        %5199 = vmatpush1.bf16.msra.mxu0 0
        %5200 = vmatprep.subr.bf16.mxu0 0
        %5201 = vmatpush1.bf16.msra.mxu0 0
        %5202 = vmatprep.subr.bf16.mxu0 0
        %5203 = vmatpush1.bf16.msra.mxu0 0
        %5204 = vmatprep.subr.bf16.mxu0 0
        %5205 = vmatpush1.bf16.msra.mxu0 0
        %5206 = vmatprep.subr.bf16.mxu0 0
        %5207 = vmatpush1.bf16.msra.mxu0 0
        %5208 = vmatprep.mubr.bf16.mxu0 0
        %5209 = vmatmul.mubr.bf16.gmra.mrb[0].mxu0 %v5168
        %v5210 = vpop.f32.mrb[0].mxu0
        %v5211 = vadd.f32 0.0, %v5210
        %v5212 = vpop.f32.mrb[0].mxu0
        %v5213 = vpop.f32.mrb[0].mxu0
        %v5214 = vadd.f32 0.0, %v5213
        %v5215 = vpop.f32.mrb[0].mxu0
        %5216 = vmatprep.mubr.bf16.mxu0 0
        %5217 = vmatmul.mubr.bf16.gmra.mrb[0].mxu0 %v5169
        %v5218 = vpop.f32.mrb[0].mxu0
        %v5219 = vadd.f32 0.0, %v5218
        %v5220 = vpop.f32.mrb[0].mxu0
        %v5221 = vpop.f32.mrb[0].mxu0
        %v5222 = vadd.f32 0.0, %v5221
        %v5223 = vpop.f32.mrb[0].mxu0
        %5224 = vmatprep.mubr.bf16.mxu0 0
        %5225 = vmatmul.mubr.bf16.gmra.mrb[0].mxu0 %v5170
        %v5226 = vpop.f32.mrb[0].mxu0
        %v5227 = vadd.f32 0.0, %v5226
        %v5228 = vpop.f32.mrb[0].mxu0
        %v5229 = vpop.f32.mrb[0].mxu0
        %v5230 = vadd.f32 0.0, %v5229
        %v5231 = vpop.f32.mrb[0].mxu0
        %5232 = vmatprep.mubr.bf16.mxu0 0
        %5233 = vmatmul.mubr.bf16.gmra.mrb[0].mxu0 %v5171
        %v5234 = vpop.f32.mrb[0].mxu0
        %v5235 = vadd.f32 0.0, %v5234
        %v5236 = vpop.f32.mrb[0].mxu0
        %v5237 = vpop.f32.mrb[0].mxu0
        %v5238 = vadd.f32 0.0, %v5237
        %v5239 = vpop.f32.mrb[0].mxu0
        %5240 = vmatprep.mubr.bf16.mxu0 0
        %5241 = vmatmul.mubr.bf16.gmra.mrb[0].mxu0 %v5172
        %v5242 = vpop.f32.mrb[0].mxu0
        %v5243 = vadd.f32 0.0, %v5242
        %v5244 = vpop.f32.mrb[0].mxu0
        %v5245 = vpop.f32.mrb[0].mxu0
        %v5246 = vadd.f32 0.0, %v5245
        %v5247 = vpop.f32.mrb[0].mxu0
        %5248 = vmatprep.mubr.bf16.mxu0 0
        %5249 = vmatmul.mubr.bf16.gmra.mrb[0].mxu0 %v5173
        %v5250 = vpop.f32.mrb[0].mxu0
        %v5251 = vadd.f32 0.0, %v5250
        %v5252 = vpop.f32.mrb[0].mxu0
        %v5253 = vpop.f32.mrb[0].mxu0
        %v5254 = vadd.f32 0.0, %v5253
        %v5255 = vpop.f32.mrb[0].mxu0
        %5256 = vmatprep.mubr.bf16.mxu0 0
        %5257 = vmatmul.mubr.bf16.gmra.mrb[0].mxu0 %v5174
        %v5258 = vpop.f32.mrb[0].mxu0
        %v5259 = vadd.f32 0.0, %v5258
        %v5260 = vpop.f32.mrb[0].mxu0
        %v5261 = vpop.f32.mrb[0].mxu0
        %v5262 = vadd.f32 0.0, %v5261
        %v5263 = vpop.f32.mrb[0].mxu0
        %5264 = vmatprep.mubr.bf16.mxu0 0
        %5265 = vmatmul.mubr.bf16.gmra.mrb[0].mxu0 %v5175
        %v5266 = vpop.f32.mrb[0].mxu0
        %v5267 = vadd.f32 0.0, %v5266
        %v5268 = vpop.f32.mrb[0].mxu0
        %v5269 = vpop.f32.mrb[0].mxu0
        %v5270 = vadd.f32 0.0, %v5269
        %v5271 = vpop.f32.mrb[0].mxu0
        %5272 = vdwg.mxu0
        %v5273 = vpack.c.bf16 %v5214, %v5211
        %v5274 = vpack.c.bf16 %v5222, %v5219
        %v5275 = vpack.c.bf16 %v5230, %v5227
        %v5276 = vpack.c.bf16 %v5238, %v5235
        %v5277 = vpack.c.bf16 %v5246, %v5243
        %v5278 = vpack.c.bf16 %v5254, %v5251
        %v5279 = vpack.c.bf16 %v5262, %v5259
        %v5280 = vpack.c.bf16 %v5270, %v5267
        %5281 = vst.msk [vmem:[#allocation2 + $0x10] sm:$0xff] %vm2933, %v5273
        %5282 = vst.msk [vmem:[#allocation2 + $0x28] sm:$0xff] %vm2933, %v5274
        %5283 = vst.msk [vmem:[#allocation2 + $0x40] sm:$0xff] %vm2933, %v5275
        %5284 = vst.msk [vmem:[#allocation2 + $0x58] sm:$0xff] %vm2933, %v5276
        %5285 = vst.msk [vmem:[#allocation2 + $0x70] sm:$0xff] %vm2933, %v5277
        %5286 = vst.msk [vmem:[#allocation2 + $0x88] sm:$0xff] %vm2933, %v5278
        %5287 = vst.msk [vmem:[#allocation2 + $0xa0] sm:$0xff] %vm2933, %v5279
        %5288 = vst.msk [vmem:[#allocation2 + $0xb8] sm:$0xff] %vm2933, %v5280
        %5297 = vrot.lane.b32.xlu0 %v2828, 64
        %v5298 = vpop.permute.xlu0 %5297
        %5299 = vrot.lane.b32.xlu0 %v2837, 64
        %v5300 = vpop.permute.xlu0 %5299
        %5301 = vrot.lane.b32.xlu0 %v2846, 64
        %v5302 = vpop.permute.xlu0 %5301
        %5303 = vrot.lane.b32.xlu0 %v2855, 64
        %v5304 = vpop.permute.xlu0 %5303
        %5305 = vrot.lane.b32.xlu0 %v2864, 64
        %v5306 = vpop.permute.xlu0 %5305
        %5307 = vrot.lane.b32.xlu0 %v2873, 64
        %v5308 = vpop.permute.xlu0 %5307
        %5309 = vrot.lane.b32.xlu0 %v2882, 64
        %v5310 = vpop.permute.xlu0 %5309
        %5311 = vrot.lane.b32.xlu0 %v2891, 64
        %v5312 = vpop.permute.xlu0 %5311
        %5321 = vrot.lane.b32.xlu0 %v2831, 64
        %v5322 = vpop.permute.xlu0 %5321
        %5323 = vrot.lane.b32.xlu0 %v2840, 64
        %v5324 = vpop.permute.xlu0 %5323
        %5325 = vrot.lane.b32.xlu0 %v2849, 64
        %v5326 = vpop.permute.xlu0 %5325
        %5327 = vrot.lane.b32.xlu0 %v2858, 64
        %v5328 = vpop.permute.xlu0 %5327
        %5329 = vrot.lane.b32.xlu0 %v2867, 64
        %v5330 = vpop.permute.xlu0 %5329
        %5331 = vrot.lane.b32.xlu0 %v2876, 64
        %v5332 = vpop.permute.xlu0 %5331
        %5333 = vrot.lane.b32.xlu0 %v2885, 64
        %v5334 = vpop.permute.xlu0 %5333
        %5335 = vrot.lane.b32.xlu0 %v2894, 64
        %v5336 = vpop.permute.xlu0 %5335
        %v5338 = vsel %vm2933, %v5298, 0
        %v5341 = vsel %vm2933, %v5300, 0
        %v5344 = vsel %vm2933, %v5302, 0
        %v5347 = vsel %vm2933, %v5304, 0
        %v5350 = vsel %vm2933, %v5306, 0
        %v5353 = vsel %vm2933, %v5308, 0
        %v5356 = vsel %vm2933, %v5310, 0
        %v5359 = vsel %vm2933, %v5312, 0
        %v5362 = vsel %vm2933, %v5322, 0
        %v5365 = vsel %vm2933, %v5324, 0
        %v5368 = vsel %vm2933, %v5326, 0
        %v5371 = vsel %vm2933, %v5328, 0
        %v5374 = vsel %vm2933, %v5330, 0
        %v5377 = vsel %vm2933, %v5332, 0
        %v5380 = vsel %vm2933, %v5334, 0
        %v5383 = vsel %vm2933, %v5336, 0
        %5385 = vmatprep.subr.bf16.mxu0 0
        %5386 = vmatpush1.bf16.xpose.msra.mxu0 %v5362
        %5387 = vmatprep.subr.bf16.mxu0 0
        %5388 = vmatpush1.bf16.xpose.msra.mxu0 %v5365
        %5389 = vmatprep.subr.bf16.mxu0 0
        %5390 = vmatpush1.bf16.xpose.msra.mxu0 %v5368
        %5391 = vmatprep.subr.bf16.mxu0 0
        %5392 = vmatpush1.bf16.xpose.msra.mxu0 %v5371
        %5393 = vmatprep.subr.bf16.mxu0 0
        %5394 = vmatpush1.bf16.xpose.msra.mxu0 %v5374
        %5395 = vmatprep.subr.bf16.mxu0 0
        %5396 = vmatpush1.bf16.xpose.msra.mxu0 %v5377
        %5397 = vmatprep.subr.bf16.mxu0 0
        %5398 = vmatpush1.bf16.xpose.msra.mxu0 %v5380
        %5399 = vmatprep.subr.bf16.mxu0 0
        %5400 = vmatpush1.bf16.xpose.msra.mxu0 %v5383
        %5401 = vmatprep.subr.bf16.mxu0 0
        %5402 = vmatpush1.bf16.xpose.msra.mxu0 0
        %5403 = vmatprep.subr.bf16.mxu0 0
        %5404 = vmatpush1.bf16.xpose.msra.mxu0 0
        %5405 = vmatprep.subr.bf16.mxu0 0
        %5406 = vmatpush1.bf16.xpose.msra.mxu0 0
        %5407 = vmatprep.subr.bf16.mxu0 0
        %5408 = vmatpush1.bf16.xpose.msra.mxu0 0
        %5409 = vmatprep.subr.bf16.mxu0 0
        %5410 = vmatpush1.bf16.xpose.msra.mxu0 0
        %5411 = vmatprep.subr.bf16.mxu0 0
        %5412 = vmatpush1.bf16.xpose.msra.mxu0 0
        %5413 = vmatprep.subr.bf16.mxu0 0
        %5414 = vmatpush1.bf16.xpose.msra.mxu0 0
        %5415 = vmatprep.subr.bf16.mxu0 0
        %5416 = vmatpush1.bf16.xpose.msra.mxu0 0
        %5417 = vmatprep.mubr.bf16.mxu0 0
        %5418 = vmatmul.mubr.bf16.gmra.mrb[0].mxu0 %v5338
        %v5419 = vpop.f32.mrb[0].mxu0
        %v5420 = vadd.f32 0.0, %v5419
        %v5421 = vpop.f32.mrb[0].mxu0
        %v5422 = vpop.f32.mrb[0].mxu0
        %v5423 = vadd.f32 0.0, %v5422
        %v5424 = vpop.f32.mrb[0].mxu0
        %5425 = vmatprep.mubr.bf16.mxu0 0
        %5426 = vmatmul.mubr.bf16.gmra.mrb[0].mxu0 %v5341
        %v5427 = vpop.f32.mrb[0].mxu0
        %v5428 = vadd.f32 0.0, %v5427
        %v5429 = vpop.f32.mrb[0].mxu0
        %v5430 = vpop.f32.mrb[0].mxu0
        %v5431 = vadd.f32 0.0, %v5430
        %v5432 = vpop.f32.mrb[0].mxu0
        %5433 = vmatprep.mubr.bf16.mxu0 0
        %5434 = vmatmul.mubr.bf16.gmra.mrb[0].mxu0 %v5344
        %v5435 = vpop.f32.mrb[0].mxu0
        %v5436 = vadd.f32 0.0, %v5435
        %v5437 = vpop.f32.mrb[0].mxu0
        %v5438 = vpop.f32.mrb[0].mxu0
        %v5439 = vadd.f32 0.0, %v5438
        %v5440 = vpop.f32.mrb[0].mxu0
        %5441 = vmatprep.mubr.bf16.mxu0 0
        %5442 = vmatmul.mubr.bf16.gmra.mrb[0].mxu0 %v5347
        %v5443 = vpop.f32.mrb[0].mxu0
        %v5444 = vadd.f32 0.0, %v5443
        %v5445 = vpop.f32.mrb[0].mxu0
        %v5446 = vpop.f32.mrb[0].mxu0
        %v5447 = vadd.f32 0.0, %v5446
        %v5448 = vpop.f32.mrb[0].mxu0
        %5449 = vmatprep.mubr.bf16.mxu0 0
        %5450 = vmatmul.mubr.bf16.gmra.mrb[0].mxu0 %v5350
        %v5451 = vpop.f32.mrb[0].mxu0
        %v5452 = vadd.f32 0.0, %v5451
        %v5453 = vpop.f32.mrb[0].mxu0
        %v5454 = vpop.f32.mrb[0].mxu0
        %v5455 = vadd.f32 0.0, %v5454
        %v5456 = vpop.f32.mrb[0].mxu0
        %5457 = vmatprep.mubr.bf16.mxu0 0
        %5458 = vmatmul.mubr.bf16.gmra.mrb[0].mxu0 %v5353
        %v5459 = vpop.f32.mrb[0].mxu0
        %v5460 = vadd.f32 0.0, %v5459
        %v5461 = vpop.f32.mrb[0].mxu0
        %v5462 = vpop.f32.mrb[0].mxu0
        %v5463 = vadd.f32 0.0, %v5462
        %v5464 = vpop.f32.mrb[0].mxu0
        %5465 = vmatprep.mubr.bf16.mxu0 0
        %5466 = vmatmul.mubr.bf16.gmra.mrb[0].mxu0 %v5356
        %v5467 = vpop.f32.mrb[0].mxu0
        %v5468 = vadd.f32 0.0, %v5467
        %v5469 = vpop.f32.mrb[0].mxu0
        %v5470 = vpop.f32.mrb[0].mxu0
        %v5471 = vadd.f32 0.0, %v5470
        %v5472 = vpop.f32.mrb[0].mxu0
        %5473 = vmatprep.mubr.bf16.mxu0 0
        %5474 = vmatmul.mubr.bf16.gmra.mrb[0].mxu0 %v5359
        %v5475 = vpop.f32.mrb[0].mxu0
        %v5476 = vadd.f32 0.0, %v5475
        %v5477 = vpop.f32.mrb[0].mxu0
        %v5478 = vpop.f32.mrb[0].mxu0
        %v5479 = vadd.f32 0.0, %v5478
        %v5480 = vpop.f32.mrb[0].mxu0
        %5481 = vdwg.mxu0
        %v5482 = vsel %vm2917, %v5420, -inf
        %v5483 = vsel %vm2918, %v5423, -inf
        %v5484 = vsel %vm2919, %v5428, -inf
        %v5485 = vsel %vm2920, %v5431, -inf
        %v5486 = vsel %vm2921, %v5436, -inf
        %v5487 = vsel %vm2922, %v5439, -inf
        %v5488 = vsel %vm2923, %v5444, -inf
        %v5489 = vsel %vm2924, %v5447, -inf
        %v5490 = vsel %vm2925, %v5452, -inf
        %v5491 = vsel %vm2926, %v5455, -inf
        %v5492 = vsel %vm2927, %v5460, -inf
        %v5493 = vsel %vm2928, %v5463, -inf
        %v5494 = vsel %vm2929, %v5468, -inf
        %v5495 = vsel %vm2930, %v5471, -inf
        %v5496 = vsel %vm2931, %v5476, -inf
        %v5497 = vsel %vm2932, %v5479, -inf
        %5498 = vmax.xlane.f32.xlu0 %v5482
        %v5499 = vpop.xlane.xlu0 %5498
        %5500 = vmax.xlane.f32.xlu0 %v5483
        %v5501 = vpop.xlane.xlu0 %5500
        %5502 = vmax.xlane.f32.xlu0 %v5484
        %v5503 = vpop.xlane.xlu0 %5502
        %5504 = vmax.xlane.f32.xlu0 %v5485
        %v5505 = vpop.xlane.xlu0 %5504
        %5506 = vmax.xlane.f32.xlu0 %v5486
        %v5507 = vpop.xlane.xlu0 %5506
        %5508 = vmax.xlane.f32.xlu0 %v5487
        %v5509 = vpop.xlane.xlu0 %5508
        %5510 = vmax.xlane.f32.xlu0 %v5488
        %v5511 = vpop.xlane.xlu0 %5510
        %5512 = vmax.xlane.f32.xlu0 %v5489
        %v5513 = vpop.xlane.xlu0 %5512
        %5514 = vmax.xlane.f32.xlu0 %v5490
        %v5515 = vpop.xlane.xlu0 %5514
        %5516 = vmax.xlane.f32.xlu0 %v5491
        %v5517 = vpop.xlane.xlu0 %5516
        %5518 = vmax.xlane.f32.xlu0 %v5492
        %v5519 = vpop.xlane.xlu0 %5518
        %5520 = vmax.xlane.f32.xlu0 %v5493
        %v5521 = vpop.xlane.xlu0 %5520
        %5522 = vmax.xlane.f32.xlu0 %v5494
        %v5523 = vpop.xlane.xlu0 %5522
        %5524 = vmax.xlane.f32.xlu0 %v5495
        %v5525 = vpop.xlane.xlu0 %5524
        %5526 = vmax.xlane.f32.xlu0 %v5496
        %v5527 = vpop.xlane.xlu0 %5526
        %5528 = vmax.xlane.f32.xlu0 %v5497
        %v5529 = vpop.xlane.xlu0 %5528
        %v5530 = vsub.f32 %v5482, %v5499
        %v5531 = vsub.f32 %v5483, %v5501
        %v5532 = vsub.f32 %v5484, %v5503
        %v5533 = vsub.f32 %v5485, %v5505
        %v5534 = vsub.f32 %v5486, %v5507
        %v5535 = vsub.f32 %v5487, %v5509
        %v5536 = vsub.f32 %v5488, %v5511
        %v5537 = vsub.f32 %v5489, %v5513
        %v5538 = vsub.f32 %v5490, %v5515
        %v5539 = vsub.f32 %v5491, %v5517
        %v5540 = vsub.f32 %v5492, %v5519
        %v5541 = vsub.f32 %v5493, %v5521
        %v5542 = vsub.f32 %v5494, %v5523
        %v5543 = vsub.f32 %v5495, %v5525
        %v5544 = vsub.f32 %v5496, %v5527
        %v5545 = vsub.f32 %v5497, %v5529
        %v5546 = vmul.f32 %v5530, 1.442695
        %v5547 = vpow.pop %v5546
        %v5548 = vmul.f32 %v5531, 1.442695
        %v5549 = vpow.pop %v5548
        %v5550 = vmul.f32 %v5532, 1.442695
        %v5551 = vpow.pop %v5550
        %v5552 = vmul.f32 %v5533, 1.442695
        %v5553 = vpow.pop %v5552
        %v5554 = vmul.f32 %v5534, 1.442695
        %v5555 = vpow.pop %v5554
        %v5556 = vmul.f32 %v5535, 1.442695
        %v5557 = vpow.pop %v5556
        %v5558 = vmul.f32 %v5536, 1.442695
        %v5559 = vpow.pop %v5558
        %v5560 = vmul.f32 %v5537, 1.442695
        %v5561 = vpow.pop %v5560
        %v5562 = vmul.f32 %v5538, 1.442695
        %v5563 = vpow.pop %v5562
        %v5564 = vmul.f32 %v5539, 1.442695
        %v5565 = vpow.pop %v5564
        %v5566 = vmul.f32 %v5540, 1.442695
        %v5567 = vpow.pop %v5566
        %v5568 = vmul.f32 %v5541, 1.442695
        %v5569 = vpow.pop %v5568
        %v5570 = vmul.f32 %v5542, 1.442695
        %v5571 = vpow.pop %v5570
        %v5572 = vmul.f32 %v5543, 1.442695
        %v5573 = vpow.pop %v5572
        %v5574 = vmul.f32 %v5544, 1.442695
        %v5575 = vpow.pop %v5574
        %v5576 = vmul.f32 %v5545, 1.442695
        %v5577 = vpow.pop %v5576
        %5578 = vadd.xlane.f32.xlu0 %v5547
        %v5579 = vpop.xlane.xlu0 %5578
        %5580 = vadd.xlane.f32.xlu0 %v5549
        %v5581 = vpop.xlane.xlu0 %5580
        %5582 = vadd.xlane.f32.xlu0 %v5551
        %v5583 = vpop.xlane.xlu0 %5582
        %5584 = vadd.xlane.f32.xlu0 %v5553
        %v5585 = vpop.xlane.xlu0 %5584
        %5586 = vadd.xlane.f32.xlu0 %v5555
        %v5587 = vpop.xlane.xlu0 %5586
        %5588 = vadd.xlane.f32.xlu0 %v5557
        %v5589 = vpop.xlane.xlu0 %5588
        %5590 = vadd.xlane.f32.xlu0 %v5559
        %v5591 = vpop.xlane.xlu0 %5590
        %5592 = vadd.xlane.f32.xlu0 %v5561
        %v5593 = vpop.xlane.xlu0 %5592
        %5594 = vadd.xlane.f32.xlu0 %v5563
        %v5595 = vpop.xlane.xlu0 %5594
        %5596 = vadd.xlane.f32.xlu0 %v5565
        %v5597 = vpop.xlane.xlu0 %5596
        %5598 = vadd.xlane.f32.xlu0 %v5567
        %v5599 = vpop.xlane.xlu0 %5598
        %5600 = vadd.xlane.f32.xlu0 %v5569
        %v5601 = vpop.xlane.xlu0 %5600
        %5602 = vadd.xlane.f32.xlu0 %v5571
        %v5603 = vpop.xlane.xlu0 %5602
        %5604 = vadd.xlane.f32.xlu0 %v5573
        %v5605 = vpop.xlane.xlu0 %5604
        %5606 = vadd.xlane.f32.xlu0 %v5575
        %v5607 = vpop.xlane.xlu0 %5606
        %5608 = vadd.xlane.f32.xlu0 %v5577
        %v5609 = vpop.xlane.xlu0 %5608
        %v5610 = vrcp.pop %v5579
        %v5611 = vrcp.pop %v5581
        %v5612 = vrcp.pop %v5583
        %v5613 = vrcp.pop %v5585
        %v5614 = vrcp.pop %v5587
        %v5615 = vrcp.pop %v5589
        %v5616 = vrcp.pop %v5591
        %v5617 = vrcp.pop %v5593
        %v5618 = vrcp.pop %v5595
        %v5619 = vrcp.pop %v5597
        %v5620 = vrcp.pop %v5599
        %v5621 = vrcp.pop %v5601
        %v5622 = vrcp.pop %v5603
        %v5623 = vrcp.pop %v5605
        %v5624 = vrcp.pop %v5607
        %v5625 = vrcp.pop %v5609
        %v5626 = vmul.f32 %v5547, %v5610
        %v5627 = vmul.f32 %v5549, %v5611
        %v5628 = vmul.f32 %v5551, %v5612
        %v5629 = vmul.f32 %v5553, %v5613
        %v5630 = vmul.f32 %v5555, %v5614
        %v5631 = vmul.f32 %v5557, %v5615
        %v5632 = vmul.f32 %v5559, %v5616
        %v5633 = vmul.f32 %v5561, %v5617
        %v5634 = vmul.f32 %v5563, %v5618
        %v5635 = vmul.f32 %v5565, %v5619
        %v5636 = vmul.f32 %v5567, %v5620
        %v5637 = vmul.f32 %v5569, %v5621
        %v5638 = vmul.f32 %v5571, %v5622
        %v5639 = vmul.f32 %v5573, %v5623
        %v5640 = vmul.f32 %v5575, %v5624
        %v5641 = vmul.f32 %v5577, %v5625
        %v5642 = vpack.c.bf16 %v5627, %v5626
        %v5643 = vpack.c.bf16 %v5629, %v5628
        %v5644 = vpack.c.bf16 %v5631, %v5630
        %v5645 = vpack.c.bf16 %v5633, %v5632
        %v5646 = vpack.c.bf16 %v5635, %v5634
        %v5647 = vpack.c.bf16 %v5637, %v5636
        %v5648 = vpack.c.bf16 %v5639, %v5638
        %v5649 = vpack.c.bf16 %v5641, %v5640
        %5658 = vrot.lane.b32.xlu0 %v2834, 64
        %v5659 = vpop.permute.xlu0 %5658
        %5660 = vrot.lane.b32.xlu0 %v2843, 64
        %v5661 = vpop.permute.xlu0 %5660
        %5662 = vrot.lane.b32.xlu0 %v2852, 64
        %v5663 = vpop.permute.xlu0 %5662
        %5664 = vrot.lane.b32.xlu0 %v2861, 64
        %v5665 = vpop.permute.xlu0 %5664
        %5666 = vrot.lane.b32.xlu0 %v2870, 64
        %v5667 = vpop.permute.xlu0 %5666
        %5668 = vrot.lane.b32.xlu0 %v2879, 64
        %v5669 = vpop.permute.xlu0 %5668
        %5670 = vrot.lane.b32.xlu0 %v2888, 64
        %v5671 = vpop.permute.xlu0 %5670
        %5672 = vrot.lane.b32.xlu0 %v2897, 64
        %v5673 = vpop.permute.xlu0 %5672
        %5682 = vmatprep.subr.bf16.mxu0 0
        %5683 = vmatpush1.bf16.msra.mxu0 %v5659
        %5684 = vmatprep.subr.bf16.mxu0 0
        %5685 = vmatpush1.bf16.msra.mxu0 %v5661
        %5686 = vmatprep.subr.bf16.mxu0 0
        %5687 = vmatpush1.bf16.msra.mxu0 %v5663
        %5688 = vmatprep.subr.bf16.mxu0 0
        %5689 = vmatpush1.bf16.msra.mxu0 %v5665
        %5690 = vmatprep.subr.bf16.mxu0 0
        %5691 = vmatpush1.bf16.msra.mxu0 %v5667
        %5692 = vmatprep.subr.bf16.mxu0 0
        %5693 = vmatpush1.bf16.msra.mxu0 %v5669
        %5694 = vmatprep.subr.bf16.mxu0 0
        %5695 = vmatpush1.bf16.msra.mxu0 %v5671
        %5696 = vmatprep.subr.bf16.mxu0 0
        %5697 = vmatpush1.bf16.msra.mxu0 %v5673
        %5698 = vmatprep.subr.bf16.mxu0 0
        %5699 = vmatpush1.bf16.msra.mxu0 0
        %5700 = vmatprep.subr.bf16.mxu0 0
        %5701 = vmatpush1.bf16.msra.mxu0 0
        %5702 = vmatprep.subr.bf16.mxu0 0
        %5703 = vmatpush1.bf16.msra.mxu0 0
        %5704 = vmatprep.subr.bf16.mxu0 0
        %5705 = vmatpush1.bf16.msra.mxu0 0
        %5706 = vmatprep.subr.bf16.mxu0 0
        %5707 = vmatpush1.bf16.msra.mxu0 0
        %5708 = vmatprep.subr.bf16.mxu0 0
        %5709 = vmatpush1.bf16.msra.mxu0 0
        %5710 = vmatprep.subr.bf16.mxu0 0
        %5711 = vmatpush1.bf16.msra.mxu0 0
        %5712 = vmatprep.subr.bf16.mxu0 0
        %5713 = vmatpush1.bf16.msra.mxu0 0
        %5714 = vmatprep.mubr.bf16.mxu0 0
        %5715 = vmatmul.mubr.bf16.gmra.mrb[0].mxu0 %v5642
        %v5716 = vpop.f32.mrb[0].mxu0
        %v5717 = vadd.f32 0.0, %v5716
        %v5718 = vpop.f32.mrb[0].mxu0
        %v5719 = vpop.f32.mrb[0].mxu0
        %v5720 = vadd.f32 0.0, %v5719
        %v5721 = vpop.f32.mrb[0].mxu0
        %5722 = vmatprep.mubr.bf16.mxu0 0
        %5723 = vmatmul.mubr.bf16.gmra.mrb[0].mxu0 %v5643
        %v5724 = vpop.f32.mrb[0].mxu0
        %v5725 = vadd.f32 0.0, %v5724
        %v5726 = vpop.f32.mrb[0].mxu0
        %v5727 = vpop.f32.mrb[0].mxu0
        %v5728 = vadd.f32 0.0, %v5727
        %v5729 = vpop.f32.mrb[0].mxu0
        %5730 = vmatprep.mubr.bf16.mxu0 0
        %5731 = vmatmul.mubr.bf16.gmra.mrb[0].mxu0 %v5644
        %v5732 = vpop.f32.mrb[0].mxu0
        %v5733 = vadd.f32 0.0, %v5732
        %v5734 = vpop.f32.mrb[0].mxu0
        %v5735 = vpop.f32.mrb[0].mxu0
        %v5736 = vadd.f32 0.0, %v5735
        %v5737 = vpop.f32.mrb[0].mxu0
        %5738 = vmatprep.mubr.bf16.mxu0 0
        %5739 = vmatmul.mubr.bf16.gmra.mrb[0].mxu0 %v5645
        %v5740 = vpop.f32.mrb[0].mxu0
        %v5741 = vadd.f32 0.0, %v5740
        %v5742 = vpop.f32.mrb[0].mxu0
        %v5743 = vpop.f32.mrb[0].mxu0
        %v5744 = vadd.f32 0.0, %v5743
        %v5745 = vpop.f32.mrb[0].mxu0
        %5746 = vmatprep.mubr.bf16.mxu0 0
        %5747 = vmatmul.mubr.bf16.gmra.mrb[0].mxu0 %v5646
        %v5748 = vpop.f32.mrb[0].mxu0
        %v5749 = vadd.f32 0.0, %v5748
        %v5750 = vpop.f32.mrb[0].mxu0
        %v5751 = vpop.f32.mrb[0].mxu0
        %v5752 = vadd.f32 0.0, %v5751
        %v5753 = vpop.f32.mrb[0].mxu0
        %5754 = vmatprep.mubr.bf16.mxu0 0
        %5755 = vmatmul.mubr.bf16.gmra.mrb[0].mxu0 %v5647
        %v5756 = vpop.f32.mrb[0].mxu0
        %v5757 = vadd.f32 0.0, %v5756
        %v5758 = vpop.f32.mrb[0].mxu0
        %v5759 = vpop.f32.mrb[0].mxu0
        %v5760 = vadd.f32 0.0, %v5759
        %v5761 = vpop.f32.mrb[0].mxu0
        %5762 = vmatprep.mubr.bf16.mxu0 0
        %5763 = vmatmul.mubr.bf16.gmra.mrb[0].mxu0 %v5648
        %v5764 = vpop.f32.mrb[0].mxu0
        %v5765 = vadd.f32 0.0, %v5764
        %v5766 = vpop.f32.mrb[0].mxu0
        %v5767 = vpop.f32.mrb[0].mxu0
        %v5768 = vadd.f32 0.0, %v5767
        %v5769 = vpop.f32.mrb[0].mxu0
        %5770 = vmatprep.mubr.bf16.mxu0 0
        %5771 = vmatmul.mubr.bf16.gmra.mrb[0].mxu0 %v5649
        %v5772 = vpop.f32.mrb[0].mxu0
        %v5773 = vadd.f32 0.0, %v5772
        %v5774 = vpop.f32.mrb[0].mxu0
        %v5775 = vpop.f32.mrb[0].mxu0
        %v5776 = vadd.f32 0.0, %v5775
        %v5777 = vpop.f32.mrb[0].mxu0
        %5778 = vdwg.mxu0
        %v5779 = vpack.c.bf16 %v5720, %v5717
        %v5780 = vpack.c.bf16 %v5728, %v5725
        %v5781 = vpack.c.bf16 %v5736, %v5733
        %v5782 = vpack.c.bf16 %v5744, %v5741
        %v5783 = vpack.c.bf16 %v5752, %v5749
        %v5784 = vpack.c.bf16 %v5760, %v5757
        %v5785 = vpack.c.bf16 %v5768, %v5765
        %v5786 = vpack.c.bf16 %v5776, %v5773
        %5795 = vrot.lane.b32.xlu0 %v5779, 64
        %v5796 = vpop.permute.xlu0 %5795
        %5797 = vrot.lane.b32.xlu0 %v5780, 64
        %v5798 = vpop.permute.xlu0 %5797
        %5799 = vrot.lane.b32.xlu0 %v5781, 64
        %v5800 = vpop.permute.xlu0 %5799
        %5801 = vrot.lane.b32.xlu0 %v5782, 64
        %v5802 = vpop.permute.xlu0 %5801
        %5803 = vrot.lane.b32.xlu0 %v5783, 64
        %v5804 = vpop.permute.xlu0 %5803
        %5805 = vrot.lane.b32.xlu0 %v5784, 64
        %v5806 = vpop.permute.xlu0 %5805
        %5807 = vrot.lane.b32.xlu0 %v5785, 64
        %v5808 = vpop.permute.xlu0 %5807
        %5809 = vrot.lane.b32.xlu0 %v5786, 64
        %v5810 = vpop.permute.xlu0 %5809
        %5819 = vst.msk [vmem:[#allocation2 + $0x10] sm:$0xff] %vm3890, %v5796
        %5820 = vst.msk [vmem:[#allocation2 + $0x28] sm:$0xff] %vm3890, %v5798
        %5821 = vst.msk [vmem:[#allocation2 + $0x40] sm:$0xff] %vm3890, %v5800
        %5822 = vst.msk [vmem:[#allocation2 + $0x58] sm:$0xff] %vm3890, %v5802
        %5823 = vst.msk [vmem:[#allocation2 + $0x70] sm:$0xff] %vm3890, %v5804
        %5824 = vst.msk [vmem:[#allocation2 + $0x88] sm:$0xff] %vm3890, %v5806
        %5825 = vst.msk [vmem:[#allocation2 + $0xa0] sm:$0xff] %vm3890, %v5808
        %5826 = vst.msk [vmem:[#allocation2 + $0xb8] sm:$0xff] %vm3890, %v5810
        %v5827 = vld [vmem:[#allocation2] sm:$0xff]
        %v5828 = vld [vmem:[#allocation2 + $0x8] sm:$0xff]
        %v5829 = vld [vmem:[#allocation2 + $0x10] sm:$0xff]
        %v5830 = vld [vmem:[#allocation2 + $0x18] sm:$0xff]
        %v5831 = vld [vmem:[#allocation2 + $0x20] sm:$0xff]
        %v5832 = vld [vmem:[#allocation2 + $0x28] sm:$0xff]
        %v5833 = vld [vmem:[#allocation2 + $0x30] sm:$0xff]
        %v5834 = vld [vmem:[#allocation2 + $0x38] sm:$0xff]
        %v5835 = vld [vmem:[#allocation2 + $0x40] sm:$0xff]
        %v5836 = vld [vmem:[#allocation2 + $0x48] sm:$0xff]
        %v5837 = vld [vmem:[#allocation2 + $0x50] sm:$0xff]
        %v5838 = vld [vmem:[#allocation2 + $0x58] sm:$0xff]
        %v5839 = vld [vmem:[#allocation2 + $0x60] sm:$0xff]
        %v5840 = vld [vmem:[#allocation2 + $0x68] sm:$0xff]
        %v5841 = vld [vmem:[#allocation2 + $0x70] sm:$0xff]
        %v5842 = vld [vmem:[#allocation2 + $0x78] sm:$0xff]
        %v5843 = vld [vmem:[#allocation2 + $0x80] sm:$0xff]
        %v5844 = vld [vmem:[#allocation2 + $0x88] sm:$0xff]
        %v5845 = vld [vmem:[#allocation2 + $0x90] sm:$0xff]
        %v5846 = vld [vmem:[#allocation2 + $0x98] sm:$0xff]
        %v5847 = vld [vmem:[#allocation2 + $0xa0] sm:$0xff]
        %v5848 = vld [vmem:[#allocation2 + $0xa8] sm:$0xff]
        %v5849 = vld [vmem:[#allocation2 + $0xb0] sm:$0xff]
        %v5850 = vld [vmem:[#allocation2 + $0xb8] sm:$0xff]
        %v5851 = vld [vmem:[%s2] sm:$0xff]
        %v5852 = vld [vmem:[%s2 + $0x8] sm:$0xf]
        %v5853 = vld [vmem:[%s2 + $0xc] sm:$0xff]
        %v5854 = vld [vmem:[%s2 + $0x14] sm:$0xf]
        %v5855 = vld [vmem:[%s2 + $0x18] sm:$0xff]
        %v5856 = vld [vmem:[%s2 + $0x20] sm:$0xf]
        %v5857 = vld [vmem:[%s2 + $0x24] sm:$0xff]
        %v5858 = vld [vmem:[%s2 + $0x2c] sm:$0xf]
        %v5859 = vld [vmem:[%s2 + $0x30] sm:$0xff]
        %v5860 = vld [vmem:[%s2 + $0x38] sm:$0xf]
        %v5861 = vld [vmem:[%s2 + $0x3c] sm:$0xff]
        %v5862 = vld [vmem:[%s2 + $0x44] sm:$0xf]
        %v5863 = vld [vmem:[%s2 + $0x48] sm:$0xff]
        %v5864 = vld [vmem:[%s2 + $0x50] sm:$0xf]
        %v5865 = vld [vmem:[%s2 + $0x54] sm:$0xff]
        %v5866 = vld [vmem:[%s2 + $0x5c] sm:$0xf]
        %v5867 = vld [vmem:[%s2 + $0x60] sm:$0xff]
        %v5868 = vld [vmem:[%s2 + $0x68] sm:$0xf]
        %v5869 = vld [vmem:[%s2 + $0x6c] sm:$0xff]
        %v5870 = vld [vmem:[%s2 + $0x74] sm:$0xf]
        %v5871 = vld [vmem:[%s2 + $0x78] sm:$0xff]
        %v5872 = vld [vmem:[%s2 + $0x80] sm:$0xf]
        %v5873 = vld [vmem:[%s2 + $0x84] sm:$0xff]
        %v5874 = vld [vmem:[%s2 + $0x8c] sm:$0xf]
        %v5875 = vld [vmem:[%s2 + $0x90] sm:$0xff]
        %v5876 = vld [vmem:[%s2 + $0x98] sm:$0xf]
        %v5877 = vld [vmem:[%s2 + $0x9c] sm:$0xff]
        %v5878 = vld [vmem:[%s2 + $0xa4] sm:$0xf]
        %v5879 = vld [vmem:[%s2 + $0xa8] sm:$0xff]
        %v5880 = vld [vmem:[%s2 + $0xb0] sm:$0xf]
        %v5881 = vld [vmem:[%s2 + $0xb4] sm:$0xff]
        %v5882 = vld [vmem:[%s2 + $0xbc] sm:$0xf]
        %v5883 = vld [vmem:[%s2 + $0xc0] sm:$0xff]
        %v5884 = vld [vmem:[%s2 + $0xc8] sm:$0xf]
        %v5885 = vld [vmem:[%s2 + $0xcc] sm:$0xff]
        %v5886 = vld [vmem:[%s2 + $0xd4] sm:$0xf]
        %v5887 = vld [vmem:[%s2 + $0xd8] sm:$0xff]
        %v5888 = vld [vmem:[%s2 + $0xe0] sm:$0xf]
        %v5889 = vld [vmem:[%s2 + $0xe4] sm:$0xff]
        %v5890 = vld [vmem:[%s2 + $0xec] sm:$0xf]
        %v5891 = vld [vmem:[%s2 + $0xf0] sm:$0xff]
        %v5892 = vld [vmem:[%s2 + $0xf8] sm:$0xf]
        %v5893 = vld [vmem:[%s2 + $0xfc] sm:$0xff]
        %v5894 = vld [vmem:[%s2 + $0x104] sm:$0xf]
        %v5895 = vld [vmem:[%s2 + $0x108] sm:$0xff]
        %v5896 = vld [vmem:[%s2 + $0x110] sm:$0xf]
        %v5897 = vld [vmem:[%s2 + $0x114] sm:$0xff]
        %v5898 = vld [vmem:[%s2 + $0x11c] sm:$0xf]
        %v5899 = vld [vmem:[%s2 + $0x120] sm:$0xff]
        %v5900 = vld [vmem:[%s2 + $0x128] sm:$0xf]
        %v5901 = vld [vmem:[%s2 + $0x12c] sm:$0xff]
        %v5902 = vld [vmem:[%s2 + $0x134] sm:$0xf]
        %v5903 = vld [vmem:[%s2 + $0x138] sm:$0xff]
        %v5904 = vld [vmem:[%s2 + $0x140] sm:$0xf]
        %v5905 = vld [vmem:[%s2 + $0x144] sm:$0xff]
        %v5906 = vld [vmem:[%s2 + $0x14c] sm:$0xf]
        %v5907 = vld [vmem:[%s2 + $0x150] sm:$0xff]
        %v5908 = vld [vmem:[%s2 + $0x158] sm:$0xf]
        %v5909 = vld [vmem:[%s2 + $0x15c] sm:$0xff]
        %v5910 = vld [vmem:[%s2 + $0x164] sm:$0xf]
        %v5911 = vld [vmem:[%s2 + $0x168] sm:$0xff]
        %v5912 = vld [vmem:[%s2 + $0x170] sm:$0xf]
        %v5913 = vld [vmem:[%s2 + $0x174] sm:$0xff]
        %v5914 = vld [vmem:[%s2 + $0x17c] sm:$0xf]
        %v5915 = vld [vmem:[%s2 + $0x180] sm:$0xff]
        %v5916 = vld [vmem:[%s2 + $0x188] sm:$0xf]
        %v5917 = vld [vmem:[%s2 + $0x18c] sm:$0xff]
        %v5918 = vld [vmem:[%s2 + $0x194] sm:$0xf]
        %v5919 = vld [vmem:[%s2 + $0x198] sm:$0xff]
        %v5920 = vld [vmem:[%s2 + $0x1a0] sm:$0xf]
        %v5921 = vld [vmem:[%s2 + $0x1a4] sm:$0xff]
        %v5922 = vld [vmem:[%s2 + $0x1ac] sm:$0xf]
        %v5923 = vld [vmem:[%s2 + $0x1b0] sm:$0xff]
        %v5924 = vld [vmem:[%s2 + $0x1b8] sm:$0xf]
        %v5925 = vld [vmem:[%s2 + $0x1bc] sm:$0xff]
        %v5926 = vld [vmem:[%s2 + $0x1c4] sm:$0xf]
        %v5927 = vld [vmem:[%s2 + $0x1c8] sm:$0xff]
        %v5928 = vld [vmem:[%s2 + $0x1d0] sm:$0xf]
        %v5929 = vld [vmem:[%s2 + $0x1d4] sm:$0xff]
        %v5930 = vld [vmem:[%s2 + $0x1dc] sm:$0xf]
        %v5931 = vld [vmem:[%s2 + $0x1e0] sm:$0xff]
        %v5932 = vld [vmem:[%s2 + $0x1e8] sm:$0xf]
        %v5933 = vld [vmem:[%s2 + $0x1ec] sm:$0xff]
        %v5934 = vld [vmem:[%s2 + $0x1f4] sm:$0xf]
        %v5935 = vld [vmem:[%s2 + $0x1f8] sm:$0xff]
        %v5936 = vld [vmem:[%s2 + $0x200] sm:$0xf]
        %v5937 = vld [vmem:[%s2 + $0x204] sm:$0xff]
        %v5938 = vld [vmem:[%s2 + $0x20c] sm:$0xf]
        %v5939 = vld [vmem:[%s2 + $0x210] sm:$0xff]
        %v5940 = vld [vmem:[%s2 + $0x218] sm:$0xf]
        %v5941 = vld [vmem:[%s2 + $0x21c] sm:$0xff]
        %v5942 = vld [vmem:[%s2 + $0x224] sm:$0xf]
        %v5943 = vld [vmem:[%s2 + $0x228] sm:$0xff]
        %v5944 = vld [vmem:[%s2 + $0x230] sm:$0xf]
        %v5945 = vld [vmem:[%s2 + $0x234] sm:$0xff]
        %v5946 = vld [vmem:[%s2 + $0x23c] sm:$0xf]
        %v5947 = vld [vmem:[%s3] sm:$0x7]
        %v5949 = vlaneseq
        %v5950 = vshrl.u32 %v5949, 7
        %v5951 = vsub.s32 0, %v5950
        %v5952 = vrot.slane %v5947, %v5951
        %v5953 = vlaneseq
        %v5954 = vshrl.u32 %v5953, 7
        %v5955 = vsub.s32 1, %v5954
        %v5956 = vrot.slane %v5947, %v5955
        %v5957 = vlaneseq
        %v5958 = vshrl.u32 %v5957, 7
        %v5959 = vsub.s32 2, %v5958
        %v5960 = vrot.slane %v5947, %v5959
        %v6060 = vunpack.c.l.b16 %v5851
        %v6061 = vunpack.c.h.b16 %v5851
        %v6062 = vunpack.c.l.b16 %v5852
        %v6063 = vunpack.c.l.b16 %v5853
        %v6064 = vunpack.c.h.b16 %v5853
        %v6065 = vunpack.c.l.b16 %v5854
        %v6066 = vunpack.c.l.b16 %v5855
        %v6067 = vunpack.c.h.b16 %v5855
        %v6068 = vunpack.c.l.b16 %v5856
        %v6069 = vunpack.c.l.b16 %v5857
        %v6070 = vunpack.c.h.b16 %v5857
        %v6071 = vunpack.c.l.b16 %v5858
        %v6072 = vunpack.c.l.b16 %v5859
        %v6073 = vunpack.c.h.b16 %v5859
        %v6074 = vunpack.c.l.b16 %v5860
        %v6075 = vunpack.c.l.b16 %v5861
        %v6076 = vunpack.c.h.b16 %v5861
        %v6077 = vunpack.c.l.b16 %v5862
        %v6078 = vunpack.c.l.b16 %v5863
        %v6079 = vunpack.c.h.b16 %v5863
        %v6080 = vunpack.c.l.b16 %v5864
        %v6081 = vunpack.c.l.b16 %v5865
        %v6082 = vunpack.c.h.b16 %v5865
        %v6083 = vunpack.c.l.b16 %v5866
        %v6084 = vunpack.c.l.b16 %v5867
        %v6085 = vunpack.c.h.b16 %v5867
        %v6086 = vunpack.c.l.b16 %v5868
        %v6087 = vunpack.c.l.b16 %v5869
        %v6088 = vunpack.c.h.b16 %v5869
        %v6089 = vunpack.c.l.b16 %v5870
        %v6090 = vunpack.c.l.b16 %v5871
        %v6091 = vunpack.c.h.b16 %v5871
        %v6092 = vunpack.c.l.b16 %v5872
        %v6093 = vunpack.c.l.b16 %v5873
        %v6094 = vunpack.c.h.b16 %v5873
        %v6095 = vunpack.c.l.b16 %v5874
        %v6096 = vunpack.c.l.b16 %v5875
        %v6097 = vunpack.c.h.b16 %v5875
        %v6098 = vunpack.c.l.b16 %v5876
        %v6099 = vunpack.c.l.b16 %v5877
        %v6100 = vunpack.c.h.b16 %v5877
        %v6101 = vunpack.c.l.b16 %v5878
        %v6102 = vunpack.c.l.b16 %v5879
        %v6103 = vunpack.c.h.b16 %v5879
        %v6104 = vunpack.c.l.b16 %v5880
        %v6105 = vunpack.c.l.b16 %v5881
        %v6106 = vunpack.c.h.b16 %v5881
        %v6107 = vunpack.c.l.b16 %v5882
        %v6108 = vunpack.c.l.b16 %v5883
        %v6109 = vunpack.c.h.b16 %v5883
        %v6110 = vunpack.c.l.b16 %v5884
        %v6111 = vunpack.c.l.b16 %v5885
        %v6112 = vunpack.c.h.b16 %v5885
        %v6113 = vunpack.c.l.b16 %v5886
        %v6114 = vunpack.c.l.b16 %v5887
        %v6115 = vunpack.c.h.b16 %v5887
        %v6116 = vunpack.c.l.b16 %v5888
        %v6117 = vunpack.c.l.b16 %v5889
        %v6118 = vunpack.c.h.b16 %v5889
        %v6119 = vunpack.c.l.b16 %v5890
        %v6120 = vunpack.c.l.b16 %v5891
        %v6121 = vunpack.c.h.b16 %v5891
        %v6122 = vunpack.c.l.b16 %v5892
        %v6123 = vunpack.c.l.b16 %v5893
        %v6124 = vunpack.c.h.b16 %v5893
        %v6125 = vunpack.c.l.b16 %v5894
        %v6126 = vunpack.c.l.b16 %v5895
        %v6127 = vunpack.c.h.b16 %v5895
        %v6128 = vunpack.c.l.b16 %v5896
        %v6129 = vunpack.c.l.b16 %v5897
        %v6130 = vunpack.c.h.b16 %v5897
        %v6131 = vunpack.c.l.b16 %v5898
        %v6132 = vunpack.c.l.b16 %v5899
        %v6133 = vunpack.c.h.b16 %v5899
        %v6134 = vunpack.c.l.b16 %v5900
        %v6135 = vunpack.c.l.b16 %v5901
        %v6136 = vunpack.c.h.b16 %v5901
        %v6137 = vunpack.c.l.b16 %v5902
        %v6138 = vunpack.c.l.b16 %v5903
        %v6139 = vunpack.c.h.b16 %v5903
        %v6140 = vunpack.c.l.b16 %v5904
        %v6141 = vunpack.c.l.b16 %v5905
        %v6142 = vunpack.c.h.b16 %v5905
        %v6143 = vunpack.c.l.b16 %v5906
        %v6144 = vunpack.c.l.b16 %v5907
        %v6145 = vunpack.c.h.b16 %v5907
        %v6146 = vunpack.c.l.b16 %v5908
        %v6147 = vunpack.c.l.b16 %v5909
        %v6148 = vunpack.c.h.b16 %v5909
        %v6149 = vunpack.c.l.b16 %v5910
        %v6150 = vunpack.c.l.b16 %v5911
        %v6151 = vunpack.c.h.b16 %v5911
        %v6152 = vunpack.c.l.b16 %v5912
        %v6153 = vunpack.c.l.b16 %v5913
        %v6154 = vunpack.c.h.b16 %v5913
        %v6155 = vunpack.c.l.b16 %v5914
        %v6156 = vunpack.c.l.b16 %v5915
        %v6157 = vunpack.c.h.b16 %v5915
        %v6158 = vunpack.c.l.b16 %v5916
        %v6159 = vunpack.c.l.b16 %v5917
        %v6160 = vunpack.c.h.b16 %v5917
        %v6161 = vunpack.c.l.b16 %v5918
        %v6162 = vunpack.c.l.b16 %v5919
        %v6163 = vunpack.c.h.b16 %v5919
        %v6164 = vunpack.c.l.b16 %v5920
        %v6165 = vunpack.c.l.b16 %v5921
        %v6166 = vunpack.c.h.b16 %v5921
        %v6167 = vunpack.c.l.b16 %v5922
        %v6168 = vunpack.c.l.b16 %v5923
        %v6169 = vunpack.c.h.b16 %v5923
        %v6170 = vunpack.c.l.b16 %v5924
        %v6171 = vunpack.c.l.b16 %v5925
        %v6172 = vunpack.c.h.b16 %v5925
        %v6173 = vunpack.c.l.b16 %v5926
        %v6174 = vunpack.c.l.b16 %v5927
        %v6175 = vunpack.c.h.b16 %v5927
        %v6176 = vunpack.c.l.b16 %v5928
        %v6177 = vunpack.c.l.b16 %v5929
        %v6178 = vunpack.c.h.b16 %v5929
        %v6179 = vunpack.c.l.b16 %v5930
        %v6180 = vunpack.c.l.b16 %v5931
        %v6181 = vunpack.c.h.b16 %v5931
        %v6182 = vunpack.c.l.b16 %v5932
        %v6183 = vunpack.c.l.b16 %v5933
        %v6184 = vunpack.c.h.b16 %v5933
        %v6185 = vunpack.c.l.b16 %v5934
        %v6186 = vunpack.c.l.b16 %v5935
        %v6187 = vunpack.c.h.b16 %v5935
        %v6188 = vunpack.c.l.b16 %v5936
        %v6189 = vunpack.c.l.b16 %v5937
        %v6190 = vunpack.c.h.b16 %v5937
        %v6191 = vunpack.c.l.b16 %v5938
        %v6192 = vunpack.c.l.b16 %v5939
        %v6193 = vunpack.c.h.b16 %v5939
        %v6194 = vunpack.c.l.b16 %v5940
        %v6195 = vunpack.c.l.b16 %v5941
        %v6196 = vunpack.c.h.b16 %v5941
        %v6197 = vunpack.c.l.b16 %v5942
        %v6198 = vunpack.c.l.b16 %v5943
        %v6199 = vunpack.c.h.b16 %v5943
        %v6200 = vunpack.c.l.b16 %v5944
        %v6201 = vunpack.c.l.b16 %v5945
        %v6202 = vunpack.c.h.b16 %v5945
        %v6203 = vunpack.c.l.b16 %v5946
        %v6204 = vpack.c.b16 %v6063, %v6060
        %v6205 = vpack.c.b16 %v6064, %v6061
        %v6206 = vpack.c.b16 %v6065, %v6062
        %v6207 = vpack.c.b16 %v6069, %v6066
        %v6208 = vpack.c.b16 %v6070, %v6067
        %v6209 = vpack.c.b16 %v6071, %v6068
        %v6210 = vpack.c.b16 %v6075, %v6072
        %v6211 = vpack.c.b16 %v6076, %v6073
        %v6212 = vpack.c.b16 %v6077, %v6074
        %v6213 = vpack.c.b16 %v6081, %v6078
        %v6214 = vpack.c.b16 %v6082, %v6079
        %v6215 = vpack.c.b16 %v6083, %v6080
        %v6216 = vpack.c.b16 %v6087, %v6084
        %v6217 = vpack.c.b16 %v6088, %v6085
        %v6218 = vpack.c.b16 %v6089, %v6086
        %v6219 = vpack.c.b16 %v6093, %v6090
        %v6220 = vpack.c.b16 %v6094, %v6091
        %v6221 = vpack.c.b16 %v6095, %v6092
        %v6222 = vpack.c.b16 %v6099, %v6096
        %v6223 = vpack.c.b16 %v6100, %v6097
        %v6224 = vpack.c.b16 %v6101, %v6098
        %v6225 = vpack.c.b16 %v6105, %v6102
        %v6226 = vpack.c.b16 %v6106, %v6103
        %v6227 = vpack.c.b16 %v6107, %v6104
        %v6228 = vpack.c.b16 %v6111, %v6108
        %v6229 = vpack.c.b16 %v6112, %v6109
        %v6230 = vpack.c.b16 %v6113, %v6110
        %v6231 = vpack.c.b16 %v6117, %v6114
        %v6232 = vpack.c.b16 %v6118, %v6115
        %v6233 = vpack.c.b16 %v6119, %v6116
        %v6234 = vpack.c.b16 %v6123, %v6120
        %v6235 = vpack.c.b16 %v6124, %v6121
        %v6236 = vpack.c.b16 %v6125, %v6122
        %v6237 = vpack.c.b16 %v6129, %v6126
        %v6238 = vpack.c.b16 %v6130, %v6127
        %v6239 = vpack.c.b16 %v6131, %v6128
        %v6240 = vpack.c.b16 %v6135, %v6132
        %v6241 = vpack.c.b16 %v6136, %v6133
        %v6242 = vpack.c.b16 %v6137, %v6134
        %v6243 = vpack.c.b16 %v6141, %v6138
        %v6244 = vpack.c.b16 %v6142, %v6139
        %v6245 = vpack.c.b16 %v6143, %v6140
        %v6246 = vpack.c.b16 %v6147, %v6144
        %v6247 = vpack.c.b16 %v6148, %v6145
        %v6248 = vpack.c.b16 %v6149, %v6146
        %v6249 = vpack.c.b16 %v6153, %v6150
        %v6250 = vpack.c.b16 %v6154, %v6151
        %v6251 = vpack.c.b16 %v6155, %v6152
        %v6252 = vpack.c.b16 %v6159, %v6156
        %v6253 = vpack.c.b16 %v6160, %v6157
        %v6254 = vpack.c.b16 %v6161, %v6158
        %v6255 = vpack.c.b16 %v6165, %v6162
        %v6256 = vpack.c.b16 %v6166, %v6163
        %v6257 = vpack.c.b16 %v6167, %v6164
        %v6258 = vpack.c.b16 %v6171, %v6168
        %v6259 = vpack.c.b16 %v6172, %v6169
        %v6260 = vpack.c.b16 %v6173, %v6170
        %v6261 = vpack.c.b16 %v6177, %v6174
        %v6262 = vpack.c.b16 %v6178, %v6175
        %v6263 = vpack.c.b16 %v6179, %v6176
        %v6264 = vpack.c.b16 %v6183, %v6180
        %v6265 = vpack.c.b16 %v6184, %v6181
        %v6266 = vpack.c.b16 %v6185, %v6182
        %v6267 = vpack.c.b16 %v6189, %v6186
        %v6268 = vpack.c.b16 %v6190, %v6187
        %v6269 = vpack.c.b16 %v6191, %v6188
        %v6270 = vpack.c.b16 %v6195, %v6192
        %v6271 = vpack.c.b16 %v6196, %v6193
        %v6272 = vpack.c.b16 %v6197, %v6194
        %v6273 = vpack.c.b16 %v6201, %v6198
        %v6274 = vpack.c.b16 %v6202, %v6199
        %v6275 = vpack.c.b16 %v6203, %v6200
        %6348 = vmatprep.subr.bf16.mxu0 %v6205
        %6349 = vmatpush1.bf16.msra.mxu0 %v6204
        %6350 = vmatprep.subr.bf16.mxu0 %v6208
        %6351 = vmatpush1.bf16.msra.mxu0 %v6207
        %6352 = vmatprep.subr.bf16.mxu0 %v6211
        %6353 = vmatpush1.bf16.msra.mxu0 %v6210
        %6354 = vmatprep.subr.bf16.mxu0 %v6214
        %6355 = vmatpush1.bf16.msra.mxu0 %v6213
        %6356 = vmatprep.subr.bf16.mxu0 %v6217
        %6357 = vmatpush1.bf16.msra.mxu0 %v6216
        %6358 = vmatprep.subr.bf16.mxu0 %v6220
        %6359 = vmatpush1.bf16.msra.mxu0 %v6219
        %6360 = vmatprep.subr.bf16.mxu0 %v6223
        %6361 = vmatpush1.bf16.msra.mxu0 %v6222
        %6362 = vmatprep.subr.bf16.mxu0 %v6226
        %6363 = vmatpush1.bf16.msra.mxu0 %v6225
        %6364 = vmatprep.subr.bf16.mxu0 %v6229
        %6365 = vmatpush1.bf16.msra.mxu0 %v6228
        %6366 = vmatprep.subr.bf16.mxu0 %v6232
        %6367 = vmatpush1.bf16.msra.mxu0 %v6231
        %6368 = vmatprep.subr.bf16.mxu0 %v6235
        %6369 = vmatpush1.bf16.msra.mxu0 %v6234
        %6370 = vmatprep.subr.bf16.mxu0 %v6238
        %6371 = vmatpush1.bf16.msra.mxu0 %v6237
        %6372 = vmatprep.subr.bf16.mxu0 %v6241
        %6373 = vmatpush1.bf16.msra.mxu0 %v6240
        %6374 = vmatprep.subr.bf16.mxu0 %v6244
        %6375 = vmatpush1.bf16.msra.mxu0 %v6243
        %6376 = vmatprep.subr.bf16.mxu0 %v6247
        %6377 = vmatpush1.bf16.msra.mxu0 %v6246
        %6378 = vmatprep.subr.bf16.mxu0 %v6250
        %6379 = vmatpush1.bf16.msra.mxu0 %v6249
        %6380 = vmatprep.mubr.bf16.mxu0 %v5828
        %6381 = vmatmul.mubr.bf16.gmra.mrb[0].mxu0 %v5827
        %v6382 = vpop.f32.mrb[0].mxu0
        %v6383 = vadd.f32 %v5952, %v6382
        %v6384 = vpop.f32.mrb[0].mxu0
        %v6385 = vadd.f32 %v5956, %v6384
        %v6386 = vpop.f32.mrb[0].mxu0
        %v6387 = vadd.f32 %v5952, %v6386
        %v6388 = vpop.f32.mrb[0].mxu0
        %v6389 = vadd.f32 %v5956, %v6388
        %6390 = vmatprep.mubr.bf16.mxu0 %v5831
        %6391 = vmatmul.mubr.bf16.gmra.mrb[0].mxu0 %v5830
        %v6392 = vpop.f32.mrb[0].mxu0
        %v6393 = vadd.f32 %v5952, %v6392
        %v6394 = vpop.f32.mrb[0].mxu0
        %v6395 = vadd.f32 %v5956, %v6394
        %v6396 = vpop.f32.mrb[0].mxu0
        %v6397 = vadd.f32 %v5952, %v6396
        %v6398 = vpop.f32.mrb[0].mxu0
        %v6399 = vadd.f32 %v5956, %v6398
        %6400 = vmatprep.mubr.bf16.mxu0 %v5834
        %6401 = vmatmul.mubr.bf16.gmra.mrb[0].mxu0 %v5833
        %v6402 = vpop.f32.mrb[0].mxu0
        %v6403 = vadd.f32 %v5952, %v6402
        %v6404 = vpop.f32.mrb[0].mxu0
        %v6405 = vadd.f32 %v5956, %v6404
        %v6406 = vpop.f32.mrb[0].mxu0
        %v6407 = vadd.f32 %v5952, %v6406
        %v6408 = vpop.f32.mrb[0].mxu0
        %v6409 = vadd.f32 %v5956, %v6408
        %6410 = vmatprep.mubr.bf16.mxu0 %v5837
        %6411 = vmatmul.mubr.bf16.gmra.mrb[0].mxu0 %v5836
        %v6412 = vpop.f32.mrb[0].mxu0
        %v6413 = vadd.f32 %v5952, %v6412
        %v6414 = vpop.f32.mrb[0].mxu0
        %v6415 = vadd.f32 %v5956, %v6414
        %v6416 = vpop.f32.mrb[0].mxu0
        %v6417 = vadd.f32 %v5952, %v6416
        %v6418 = vpop.f32.mrb[0].mxu0
        %v6419 = vadd.f32 %v5956, %v6418
        %6420 = vmatprep.mubr.bf16.mxu0 %v5840
        %6421 = vmatmul.mubr.bf16.gmra.mrb[0].mxu0 %v5839
        %v6422 = vpop.f32.mrb[0].mxu0
        %v6423 = vadd.f32 %v5952, %v6422
        %v6424 = vpop.f32.mrb[0].mxu0
        %v6425 = vadd.f32 %v5956, %v6424
        %v6426 = vpop.f32.mrb[0].mxu0
        %v6427 = vadd.f32 %v5952, %v6426
        %v6428 = vpop.f32.mrb[0].mxu0
        %v6429 = vadd.f32 %v5956, %v6428
        %6430 = vmatprep.mubr.bf16.mxu0 %v5843
        %6431 = vmatmul.mubr.bf16.gmra.mrb[0].mxu0 %v5842
        %v6432 = vpop.f32.mrb[0].mxu0
        %v6433 = vadd.f32 %v5952, %v6432
        %v6434 = vpop.f32.mrb[0].mxu0
        %v6435 = vadd.f32 %v5956, %v6434
        %v6436 = vpop.f32.mrb[0].mxu0
        %v6437 = vadd.f32 %v5952, %v6436
        %v6438 = vpop.f32.mrb[0].mxu0
        %v6439 = vadd.f32 %v5956, %v6438
        %6440 = vmatprep.mubr.bf16.mxu0 %v5846
        %6441 = vmatmul.mubr.bf16.gmra.mrb[0].mxu0 %v5845
        %v6442 = vpop.f32.mrb[0].mxu0
        %v6443 = vadd.f32 %v5952, %v6442
        %v6444 = vpop.f32.mrb[0].mxu0
        %v6445 = vadd.f32 %v5956, %v6444
        %v6446 = vpop.f32.mrb[0].mxu0
        %v6447 = vadd.f32 %v5952, %v6446
        %v6448 = vpop.f32.mrb[0].mxu0
        %v6449 = vadd.f32 %v5956, %v6448
        %6450 = vmatprep.mubr.bf16.mxu0 %v5849
        %6451 = vmatmul.mubr.bf16.gmra.mrb[0].mxu0 %v5848
        %v6452 = vpop.f32.mrb[0].mxu0
        %v6453 = vadd.f32 %v5952, %v6452
        %v6454 = vpop.f32.mrb[0].mxu0
        %v6455 = vadd.f32 %v5956, %v6454
        %v6456 = vpop.f32.mrb[0].mxu0
        %v6457 = vadd.f32 %v5952, %v6456
        %v6458 = vpop.f32.mrb[0].mxu0
        %v6459 = vadd.f32 %v5956, %v6458
        %6460 = vdwg.mxu0
        %6461 = vmatprep.subr.bf16.mxu0 %v6253
        %6462 = vmatpush1.bf16.msra.mxu0 %v6252
        %6463 = vmatprep.subr.bf16.mxu0 %v6256
        %6464 = vmatpush1.bf16.msra.mxu0 %v6255
        %6465 = vmatprep.subr.bf16.mxu0 %v6259
        %6466 = vmatpush1.bf16.msra.mxu0 %v6258
        %6467 = vmatprep.subr.bf16.mxu0 %v6262
        %6468 = vmatpush1.bf16.msra.mxu0 %v6261
        %6469 = vmatprep.subr.bf16.mxu0 %v6265
        %6470 = vmatpush1.bf16.msra.mxu0 %v6264
        %6471 = vmatprep.subr.bf16.mxu0 %v6268
        %6472 = vmatpush1.bf16.msra.mxu0 %v6267
        %6473 = vmatprep.subr.bf16.mxu0 %v6271
        %6474 = vmatpush1.bf16.msra.mxu0 %v6270
        %6475 = vmatprep.subr.bf16.mxu0 %v6274
        %6476 = vmatpush1.bf16.msra.mxu0 %v6273
        %6477 = vmatprep.subr.bf16.mxu0 0
        %6478 = vmatpush1.bf16.msra.mxu0 0
        %6479 = vmatprep.subr.bf16.mxu0 0
        %6480 = vmatpush1.bf16.msra.mxu0 0
        %6481 = vmatprep.subr.bf16.mxu0 0
        %6482 = vmatpush1.bf16.msra.mxu0 0
        %6483 = vmatprep.subr.bf16.mxu0 0
        %6484 = vmatpush1.bf16.msra.mxu0 0
        %6485 = vmatprep.subr.bf16.mxu0 0
        %6486 = vmatpush1.bf16.msra.mxu0 0
        %6487 = vmatprep.subr.bf16.mxu0 0
        %6488 = vmatpush1.bf16.msra.mxu0 0
        %6489 = vmatprep.subr.bf16.mxu0 0
        %6490 = vmatpush1.bf16.msra.mxu0 0
        %6491 = vmatprep.subr.bf16.mxu0 0
        %6492 = vmatpush1.bf16.msra.mxu0 0
        %6493 = vmatprep.mubr.bf16.mxu0 0
        %6494 = vmatmul.mubr.bf16.gmra.mrb[0].mxu0 %v5829
        %v6495 = vpop.f32.mrb[0].mxu0
        %v6496 = vadd.f32 %v6383, %v6495
        %v6497 = vpop.f32.mrb[0].mxu0
        %v6498 = vadd.f32 %v6385, %v6497
        %v6499 = vpop.f32.mrb[0].mxu0
        %v6500 = vadd.f32 %v6387, %v6499
        %v6501 = vpop.f32.mrb[0].mxu0
        %v6502 = vadd.f32 %v6389, %v6501
        %6503 = vmatprep.mubr.bf16.mxu0 0
        %6504 = vmatmul.mubr.bf16.gmra.mrb[0].mxu0 %v5832
        %v6505 = vpop.f32.mrb[0].mxu0
        %v6506 = vadd.f32 %v6393, %v6505
        %v6507 = vpop.f32.mrb[0].mxu0
        %v6508 = vadd.f32 %v6395, %v6507
        %v6509 = vpop.f32.mrb[0].mxu0
        %v6510 = vadd.f32 %v6397, %v6509
        %v6511 = vpop.f32.mrb[0].mxu0
        %v6512 = vadd.f32 %v6399, %v6511
        %6513 = vmatprep.mubr.bf16.mxu0 0
        %6514 = vmatmul.mubr.bf16.gmra.mrb[0].mxu0 %v5835
        %v6515 = vpop.f32.mrb[0].mxu0
        %v6516 = vadd.f32 %v6403, %v6515
        %v6517 = vpop.f32.mrb[0].mxu0
        %v6518 = vadd.f32 %v6405, %v6517
        %v6519 = vpop.f32.mrb[0].mxu0
        %v6520 = vadd.f32 %v6407, %v6519
        %v6521 = vpop.f32.mrb[0].mxu0
        %v6522 = vadd.f32 %v6409, %v6521
        %6523 = vmatprep.mubr.bf16.mxu0 0
        %6524 = vmatmul.mubr.bf16.gmra.mrb[0].mxu0 %v5838
        %v6525 = vpop.f32.mrb[0].mxu0
        %v6526 = vadd.f32 %v6413, %v6525
        %v6527 = vpop.f32.mrb[0].mxu0
        %v6528 = vadd.f32 %v6415, %v6527
        %v6529 = vpop.f32.mrb[0].mxu0
        %v6530 = vadd.f32 %v6417, %v6529
        %v6531 = vpop.f32.mrb[0].mxu0
        %v6532 = vadd.f32 %v6419, %v6531
        %6533 = vmatprep.mubr.bf16.mxu0 0
        %6534 = vmatmul.mubr.bf16.gmra.mrb[0].mxu0 %v5841
        %v6535 = vpop.f32.mrb[0].mxu0
        %v6536 = vadd.f32 %v6423, %v6535
        %v6537 = vpop.f32.mrb[0].mxu0
        %v6538 = vadd.f32 %v6425, %v6537
        %v6539 = vpop.f32.mrb[0].mxu0
        %v6540 = vadd.f32 %v6427, %v6539
        %v6541 = vpop.f32.mrb[0].mxu0
        %v6542 = vadd.f32 %v6429, %v6541
        %6543 = vmatprep.mubr.bf16.mxu0 0
        %6544 = vmatmul.mubr.bf16.gmra.mrb[0].mxu0 %v5844
        %v6545 = vpop.f32.mrb[0].mxu0
        %v6546 = vadd.f32 %v6433, %v6545
        %v6547 = vpop.f32.mrb[0].mxu0
        %v6548 = vadd.f32 %v6435, %v6547
        %v6549 = vpop.f32.mrb[0].mxu0
        %v6550 = vadd.f32 %v6437, %v6549
        %v6551 = vpop.f32.mrb[0].mxu0
        %v6552 = vadd.f32 %v6439, %v6551
        %6553 = vmatprep.mubr.bf16.mxu0 0
        %6554 = vmatmul.mubr.bf16.gmra.mrb[0].mxu0 %v5847
        %v6555 = vpop.f32.mrb[0].mxu0
        %v6556 = vadd.f32 %v6443, %v6555
        %v6557 = vpop.f32.mrb[0].mxu0
        %v6558 = vadd.f32 %v6445, %v6557
        %v6559 = vpop.f32.mrb[0].mxu0
        %v6560 = vadd.f32 %v6447, %v6559
        %v6561 = vpop.f32.mrb[0].mxu0
        %v6562 = vadd.f32 %v6449, %v6561
        %6563 = vmatprep.mubr.bf16.mxu0 0
        %6564 = vmatmul.mubr.bf16.gmra.mrb[0].mxu0 %v5850
        %v6565 = vpop.f32.mrb[0].mxu0
        %v6566 = vadd.f32 %v6453, %v6565
        %v6567 = vpop.f32.mrb[0].mxu0
        %v6568 = vadd.f32 %v6455, %v6567
        %v6569 = vpop.f32.mrb[0].mxu0
        %v6570 = vadd.f32 %v6457, %v6569
        %v6571 = vpop.f32.mrb[0].mxu0
        %v6572 = vadd.f32 %v6459, %v6571
        %6573 = vdwg.mxu0
        %6574 = vmatprep.subr.bf16.mxu0 0
        %6575 = vmatpush1.bf16.msra.mxu0 %v6206
        %6576 = vmatprep.subr.bf16.mxu0 0
        %6577 = vmatpush1.bf16.msra.mxu0 %v6209
        %6578 = vmatprep.subr.bf16.mxu0 0
        %6579 = vmatpush1.bf16.msra.mxu0 %v6212
        %6580 = vmatprep.subr.bf16.mxu0 0
        %6581 = vmatpush1.bf16.msra.mxu0 %v6215
        %6582 = vmatprep.subr.bf16.mxu0 0
        %6583 = vmatpush1.bf16.msra.mxu0 %v6218
        %6584 = vmatprep.subr.bf16.mxu0 0
        %6585 = vmatpush1.bf16.msra.mxu0 %v6221
        %6586 = vmatprep.subr.bf16.mxu0 0
        %6587 = vmatpush1.bf16.msra.mxu0 %v6224
        %6588 = vmatprep.subr.bf16.mxu0 0
        %6589 = vmatpush1.bf16.msra.mxu0 %v6227
        %6590 = vmatprep.subr.bf16.mxu0 0
        %6591 = vmatpush1.bf16.msra.mxu0 %v6230
        %6592 = vmatprep.subr.bf16.mxu0 0
        %6593 = vmatpush1.bf16.msra.mxu0 %v6233
        %6594 = vmatprep.subr.bf16.mxu0 0
        %6595 = vmatpush1.bf16.msra.mxu0 %v6236
        %6596 = vmatprep.subr.bf16.mxu0 0
        %6597 = vmatpush1.bf16.msra.mxu0 %v6239
        %6598 = vmatprep.subr.bf16.mxu0 0
        %6599 = vmatpush1.bf16.msra.mxu0 %v6242
        %6600 = vmatprep.subr.bf16.mxu0 0
        %6601 = vmatpush1.bf16.msra.mxu0 %v6245
        %6602 = vmatprep.subr.bf16.mxu0 0
        %6603 = vmatpush1.bf16.msra.mxu0 %v6248
        %6604 = vmatprep.subr.bf16.mxu0 0
        %6605 = vmatpush1.bf16.msra.mxu0 %v6251
        %6606 = vmatprep.mubr.bf16.mxu0 %v5828
        %6607 = vmatmul.mubr.bf16.gmra.mrb[0].mxu0 %v5827
        %v6608 = vpop.f32.mrb[0].mxu0
        %v6609 = vadd.f32 %v5960, %v6608
        %v6610 = vpop.f32.mrb[0].mxu0
        %v6611 = vpop.f32.mrb[0].mxu0
        %v6612 = vadd.f32 %v5960, %v6611
        %v6613 = vpop.f32.mrb[0].mxu0
        %6614 = vmatprep.mubr.bf16.mxu0 %v5831
        %6615 = vmatmul.mubr.bf16.gmra.mrb[0].mxu0 %v5830
        %v6616 = vpop.f32.mrb[0].mxu0
        %v6617 = vadd.f32 %v5960, %v6616
        %v6618 = vpop.f32.mrb[0].mxu0
        %v6619 = vpop.f32.mrb[0].mxu0
        %v6620 = vadd.f32 %v5960, %v6619
        %v6621 = vpop.f32.mrb[0].mxu0
        %6622 = vmatprep.mubr.bf16.mxu0 %v5834
        %6623 = vmatmul.mubr.bf16.gmra.mrb[0].mxu0 %v5833
        %v6624 = vpop.f32.mrb[0].mxu0
        %v6625 = vadd.f32 %v5960, %v6624
        %v6626 = vpop.f32.mrb[0].mxu0
        %v6627 = vpop.f32.mrb[0].mxu0
        %v6628 = vadd.f32 %v5960, %v6627
        %v6629 = vpop.f32.mrb[0].mxu0
        %6630 = vmatprep.mubr.bf16.mxu0 %v5837
        %6631 = vmatmul.mubr.bf16.gmra.mrb[0].mxu0 %v5836
        %v6632 = vpop.f32.mrb[0].mxu0
        %v6633 = vadd.f32 %v5960, %v6632
        %v6634 = vpop.f32.mrb[0].mxu0
        %v6635 = vpop.f32.mrb[0].mxu0
        %v6636 = vadd.f32 %v5960, %v6635
        %v6637 = vpop.f32.mrb[0].mxu0
        %6638 = vmatprep.mubr.bf16.mxu0 %v5840
        %6639 = vmatmul.mubr.bf16.gmra.mrb[0].mxu0 %v5839
        %v6640 = vpop.f32.mrb[0].mxu0
        %v6641 = vadd.f32 %v5960, %v6640
        %v6642 = vpop.f32.mrb[0].mxu0
        %v6643 = vpop.f32.mrb[0].mxu0
        %v6644 = vadd.f32 %v5960, %v6643
        %v6645 = vpop.f32.mrb[0].mxu0
        %6646 = vmatprep.mubr.bf16.mxu0 %v5843
        %6647 = vmatmul.mubr.bf16.gmra.mrb[0].mxu0 %v5842
        %v6648 = vpop.f32.mrb[0].mxu0
        %v6649 = vadd.f32 %v5960, %v6648
        %v6650 = vpop.f32.mrb[0].mxu0
        %v6651 = vpop.f32.mrb[0].mxu0
        %v6652 = vadd.f32 %v5960, %v6651
        %v6653 = vpop.f32.mrb[0].mxu0
        %6654 = vmatprep.mubr.bf16.mxu0 %v5846
        %6655 = vmatmul.mubr.bf16.gmra.mrb[0].mxu0 %v5845
        %v6656 = vpop.f32.mrb[0].mxu0
        %v6657 = vadd.f32 %v5960, %v6656
        %v6658 = vpop.f32.mrb[0].mxu0
        %v6659 = vpop.f32.mrb[0].mxu0
        %v6660 = vadd.f32 %v5960, %v6659
        %v6661 = vpop.f32.mrb[0].mxu0
        %6662 = vmatprep.mubr.bf16.mxu0 %v5849
        %6663 = vmatmul.mubr.bf16.gmra.mrb[0].mxu0 %v5848
        %v6664 = vpop.f32.mrb[0].mxu0
        %v6665 = vadd.f32 %v5960, %v6664
        %v6666 = vpop.f32.mrb[0].mxu0
        %v6667 = vpop.f32.mrb[0].mxu0
        %v6668 = vadd.f32 %v5960, %v6667
        %v6669 = vpop.f32.mrb[0].mxu0
        %6670 = vdwg.mxu0
        %6671 = vmatprep.subr.bf16.mxu0 0
        %6672 = vmatpush1.bf16.msra.mxu0 %v6254
        %6673 = vmatprep.subr.bf16.mxu0 0
        %6674 = vmatpush1.bf16.msra.mxu0 %v6257
        %6675 = vmatprep.subr.bf16.mxu0 0
        %6676 = vmatpush1.bf16.msra.mxu0 %v6260
        %6677 = vmatprep.subr.bf16.mxu0 0
        %6678 = vmatpush1.bf16.msra.mxu0 %v6263
        %6679 = vmatprep.subr.bf16.mxu0 0
        %6680 = vmatpush1.bf16.msra.mxu0 %v6266
        %6681 = vmatprep.subr.bf16.mxu0 0
        %6682 = vmatpush1.bf16.msra.mxu0 %v6269
        %6683 = vmatprep.subr.bf16.mxu0 0
        %6684 = vmatpush1.bf16.msra.mxu0 %v6272
        %6685 = vmatprep.subr.bf16.mxu0 0
        %6686 = vmatpush1.bf16.msra.mxu0 %v6275
        %6687 = vmatprep.subr.bf16.mxu0 0
        %6688 = vmatpush1.bf16.msra.mxu0 0
        %6689 = vmatprep.subr.bf16.mxu0 0
        %6690 = vmatpush1.bf16.msra.mxu0 0
        %6691 = vmatprep.subr.bf16.mxu0 0
        %6692 = vmatpush1.bf16.msra.mxu0 0
        %6693 = vmatprep.subr.bf16.mxu0 0
        %6694 = vmatpush1.bf16.msra.mxu0 0
        %6695 = vmatprep.subr.bf16.mxu0 0
        %6696 = vmatpush1.bf16.msra.mxu0 0
        %6697 = vmatprep.subr.bf16.mxu0 0
        %6698 = vmatpush1.bf16.msra.mxu0 0
        %6699 = vmatprep.subr.bf16.mxu0 0
        %6700 = vmatpush1.bf16.msra.mxu0 0
        %6701 = vmatprep.subr.bf16.mxu0 0
        %6702 = vmatpush1.bf16.msra.mxu0 0
        %6703 = vmatprep.mubr.bf16.mxu0 0
        %6704 = vmatmul.mubr.bf16.gmra.mrb[0].mxu0 %v5829
        %v6705 = vpop.f32.mrb[0].mxu0
        %v6706 = vadd.f32 %v6609, %v6705
        %v6707 = vpop.f32.mrb[0].mxu0
        %v6708 = vpop.f32.mrb[0].mxu0
        %v6709 = vadd.f32 %v6612, %v6708
        %v6710 = vpop.f32.mrb[0].mxu0
        %6711 = vmatprep.mubr.bf16.mxu0 0
        %6712 = vmatmul.mubr.bf16.gmra.mrb[0].mxu0 %v5832
        %v6713 = vpop.f32.mrb[0].mxu0
        %v6714 = vadd.f32 %v6617, %v6713
        %v6715 = vpop.f32.mrb[0].mxu0
        %v6716 = vpop.f32.mrb[0].mxu0
        %v6717 = vadd.f32 %v6620, %v6716
        %v6718 = vpop.f32.mrb[0].mxu0
        %6719 = vmatprep.mubr.bf16.mxu0 0
        %6720 = vmatmul.mubr.bf16.gmra.mrb[0].mxu0 %v5835
        %v6721 = vpop.f32.mrb[0].mxu0
        %v6722 = vadd.f32 %v6625, %v6721
        %v6723 = vpop.f32.mrb[0].mxu0
        %v6724 = vpop.f32.mrb[0].mxu0
        %v6725 = vadd.f32 %v6628, %v6724
        %v6726 = vpop.f32.mrb[0].mxu0
        %6727 = vmatprep.mubr.bf16.mxu0 0
        %6728 = vmatmul.mubr.bf16.gmra.mrb[0].mxu0 %v5838
        %v6729 = vpop.f32.mrb[0].mxu0
        %v6730 = vadd.f32 %v6633, %v6729
        %v6731 = vpop.f32.mrb[0].mxu0
        %v6732 = vpop.f32.mrb[0].mxu0
        %v6733 = vadd.f32 %v6636, %v6732
        %v6734 = vpop.f32.mrb[0].mxu0
        %6735 = vmatprep.mubr.bf16.mxu0 0
        %6736 = vmatmul.mubr.bf16.gmra.mrb[0].mxu0 %v5841
        %v6737 = vpop.f32.mrb[0].mxu0
        %v6738 = vadd.f32 %v6641, %v6737
        %v6739 = vpop.f32.mrb[0].mxu0
        %v6740 = vpop.f32.mrb[0].mxu0
        %v6741 = vadd.f32 %v6644, %v6740
        %v6742 = vpop.f32.mrb[0].mxu0
        %6743 = vmatprep.mubr.bf16.mxu0 0
        %6744 = vmatmul.mubr.bf16.gmra.mrb[0].mxu0 %v5844
        %v6745 = vpop.f32.mrb[0].mxu0
        %v6746 = vadd.f32 %v6649, %v6745
        %v6747 = vpop.f32.mrb[0].mxu0
        %v6748 = vpop.f32.mrb[0].mxu0
        %v6749 = vadd.f32 %v6652, %v6748
        %v6750 = vpop.f32.mrb[0].mxu0
        %6751 = vmatprep.mubr.bf16.mxu0 0
        %6752 = vmatmul.mubr.bf16.gmra.mrb[0].mxu0 %v5847
        %v6753 = vpop.f32.mrb[0].mxu0
        %v6754 = vadd.f32 %v6657, %v6753
        %v6755 = vpop.f32.mrb[0].mxu0
        %v6756 = vpop.f32.mrb[0].mxu0
        %v6757 = vadd.f32 %v6660, %v6756
        %v6758 = vpop.f32.mrb[0].mxu0
        %6759 = vmatprep.mubr.bf16.mxu0 0
        %6760 = vmatmul.mubr.bf16.gmra.mrb[0].mxu0 %v5850
        %v6761 = vpop.f32.mrb[0].mxu0
        %v6762 = vadd.f32 %v6665, %v6761
        %v6763 = vpop.f32.mrb[0].mxu0
        %v6764 = vpop.f32.mrb[0].mxu0
        %v6765 = vadd.f32 %v6668, %v6764
        %v6766 = vpop.f32.mrb[0].mxu0
        %6767 = vdwg.mxu0
        %v6768 = vadd.f32 %v6496, %v6498
        %v6769 = vadd.f32 %v6768, %v6706
        %6770 = vadd.xlane.f32.xlu0 %v6769
        %v6771 = vpop.xlane.xlu0 %6770
        %v6772 = vadd.f32 %v6500, %v6502
        %v6773 = vadd.f32 %v6772, %v6709
        %6774 = vadd.xlane.f32.xlu0 %v6773
        %v6775 = vpop.xlane.xlu0 %6774
        %v6776 = vadd.f32 %v6506, %v6508
        %v6777 = vadd.f32 %v6776, %v6714
        %6778 = vadd.xlane.f32.xlu0 %v6777
        %v6779 = vpop.xlane.xlu0 %6778
        %v6780 = vadd.f32 %v6510, %v6512
        %v6781 = vadd.f32 %v6780, %v6717
        %6782 = vadd.xlane.f32.xlu0 %v6781
        %v6783 = vpop.xlane.xlu0 %6782
        %v6784 = vadd.f32 %v6516, %v6518
        %v6785 = vadd.f32 %v6784, %v6722
        %6786 = vadd.xlane.f32.xlu0 %v6785
        %v6787 = vpop.xlane.xlu0 %6786
        %v6788 = vadd.f32 %v6520, %v6522
        %v6789 = vadd.f32 %v6788, %v6725
        %6790 = vadd.xlane.f32.xlu0 %v6789
        %v6791 = vpop.xlane.xlu0 %6790
        %v6792 = vadd.f32 %v6526, %v6528
        %v6793 = vadd.f32 %v6792, %v6730
        %6794 = vadd.xlane.f32.xlu0 %v6793
        %v6795 = vpop.xlane.xlu0 %6794
        %v6796 = vadd.f32 %v6530, %v6532
        %v6797 = vadd.f32 %v6796, %v6733
        %6798 = vadd.xlane.f32.xlu0 %v6797
        %v6799 = vpop.xlane.xlu0 %6798
        %v6800 = vadd.f32 %v6536, %v6538
        %v6801 = vadd.f32 %v6800, %v6738
        %6802 = vadd.xlane.f32.xlu0 %v6801
        %v6803 = vpop.xlane.xlu0 %6802
        %v6804 = vadd.f32 %v6540, %v6542
        %v6805 = vadd.f32 %v6804, %v6741
        %6806 = vadd.xlane.f32.xlu0 %v6805
        %v6807 = vpop.xlane.xlu0 %6806
        %v6808 = vadd.f32 %v6546, %v6548
        %v6809 = vadd.f32 %v6808, %v6746
        %6810 = vadd.xlane.f32.xlu0 %v6809
        %v6811 = vpop.xlane.xlu0 %6810
        %v6812 = vadd.f32 %v6550, %v6552
        %v6813 = vadd.f32 %v6812, %v6749
        %6814 = vadd.xlane.f32.xlu0 %v6813
        %v6815 = vpop.xlane.xlu0 %6814
        %v6816 = vadd.f32 %v6556, %v6558
        %v6817 = vadd.f32 %v6816, %v6754
        %6818 = vadd.xlane.f32.xlu0 %v6817
        %v6819 = vpop.xlane.xlu0 %6818
        %v6820 = vadd.f32 %v6560, %v6562
        %v6821 = vadd.f32 %v6820, %v6757
        %6822 = vadd.xlane.f32.xlu0 %v6821
        %v6823 = vpop.xlane.xlu0 %6822
        %v6824 = vadd.f32 %v6566, %v6568
        %v6825 = vadd.f32 %v6824, %v6762
        %6826 = vadd.xlane.f32.xlu0 %v6825
        %v6827 = vpop.xlane.xlu0 %6826
        %v6828 = vadd.f32 %v6570, %v6572
        %v6829 = vadd.f32 %v6828, %v6765
        %6830 = vadd.xlane.f32.xlu0 %v6829
        %v6831 = vpop.xlane.xlu0 %6830
        %v6832 = vrcp.pop 384.0
        %v6833 = vmul.f32 %v6771, %v6832
        %v6834 = vmul.f32 %v6775, %v6832
        %v6835 = vmul.f32 %v6779, %v6832
        %v6836 = vmul.f32 %v6783, %v6832
        %v6837 = vmul.f32 %v6787, %v6832
        %v6838 = vmul.f32 %v6791, %v6832
        %v6839 = vmul.f32 %v6795, %v6832
        %v6840 = vmul.f32 %v6799, %v6832
        %v6841 = vmul.f32 %v6803, %v6832
        %v6842 = vmul.f32 %v6807, %v6832
        %v6843 = vmul.f32 %v6811, %v6832
        %v6844 = vmul.f32 %v6815, %v6832
        %v6845 = vmul.f32 %v6819, %v6832
        %v6846 = vmul.f32 %v6823, %v6832
        %v6847 = vmul.f32 %v6827, %v6832
        %v6848 = vmul.f32 %v6831, %v6832
        %v6849 = vmul.f32 %v6496, %v6496
        %v6850 = vmul.f32 %v6498, %v6498
        %v6851 = vmul.f32 %v6706, %v6706
        %v6852 = vmul.f32 %v6500, %v6500
        %v6853 = vmul.f32 %v6502, %v6502
        %v6854 = vmul.f32 %v6709, %v6709
        %v6855 = vmul.f32 %v6506, %v6506
        %v6856 = vmul.f32 %v6508, %v6508
        %v6857 = vmul.f32 %v6714, %v6714
        %v6858 = vmul.f32 %v6510, %v6510
        %v6859 = vmul.f32 %v6512, %v6512
        %v6860 = vmul.f32 %v6717, %v6717
        %v6861 = vmul.f32 %v6516, %v6516
        %v6862 = vmul.f32 %v6518, %v6518
        %v6863 = vmul.f32 %v6722, %v6722
        %v6864 = vmul.f32 %v6520, %v6520
        %v6865 = vmul.f32 %v6522, %v6522
        %v6866 = vmul.f32 %v6725, %v6725
        %v6867 = vmul.f32 %v6526, %v6526
        %v6868 = vmul.f32 %v6528, %v6528
        %v6869 = vmul.f32 %v6730, %v6730
        %v6870 = vmul.f32 %v6530, %v6530
        %v6871 = vmul.f32 %v6532, %v6532
        %v6872 = vmul.f32 %v6733, %v6733
        %v6873 = vmul.f32 %v6536, %v6536
        %v6874 = vmul.f32 %v6538, %v6538
        %v6875 = vmul.f32 %v6738, %v6738
        %v6876 = vmul.f32 %v6540, %v6540
        %v6877 = vmul.f32 %v6542, %v6542
        %v6878 = vmul.f32 %v6741, %v6741
        %v6879 = vmul.f32 %v6546, %v6546
        %v6880 = vmul.f32 %v6548, %v6548
        %v6881 = vmul.f32 %v6746, %v6746
        %v6882 = vmul.f32 %v6550, %v6550
        %v6883 = vmul.f32 %v6552, %v6552
        %v6884 = vmul.f32 %v6749, %v6749
        %v6885 = vmul.f32 %v6556, %v6556
        %v6886 = vmul.f32 %v6558, %v6558
        %v6887 = vmul.f32 %v6754, %v6754
        %v6888 = vmul.f32 %v6560, %v6560
        %v6889 = vmul.f32 %v6562, %v6562
        %v6890 = vmul.f32 %v6757, %v6757
        %v6891 = vmul.f32 %v6566, %v6566
        %v6892 = vmul.f32 %v6568, %v6568
        %v6893 = vmul.f32 %v6762, %v6762
        %v6894 = vmul.f32 %v6570, %v6570
        %v6895 = vmul.f32 %v6572, %v6572
        %v6896 = vmul.f32 %v6765, %v6765
        %v6897 = vadd.f32 %v6849, %v6850
        %v6898 = vadd.f32 %v6897, %v6851
        %6899 = vadd.xlane.f32.xlu0 %v6898
        %v6900 = vpop.xlane.xlu0 %6899
        %v6901 = vadd.f32 %v6852, %v6853
        %v6902 = vadd.f32 %v6901, %v6854
        %6903 = vadd.xlane.f32.xlu0 %v6902
        %v6904 = vpop.xlane.xlu0 %6903
        %v6905 = vadd.f32 %v6855, %v6856
        %v6906 = vadd.f32 %v6905, %v6857
        %6907 = vadd.xlane.f32.xlu0 %v6906
        %v6908 = vpop.xlane.xlu0 %6907
        %v6909 = vadd.f32 %v6858, %v6859
        %v6910 = vadd.f32 %v6909, %v6860
        %6911 = vadd.xlane.f32.xlu0 %v6910
        %v6912 = vpop.xlane.xlu0 %6911
        %v6913 = vadd.f32 %v6861, %v6862
        %v6914 = vadd.f32 %v6913, %v6863
        %6915 = vadd.xlane.f32.xlu0 %v6914
        %v6916 = vpop.xlane.xlu0 %6915
        %v6917 = vadd.f32 %v6864, %v6865
        %v6918 = vadd.f32 %v6917, %v6866
        %6919 = vadd.xlane.f32.xlu0 %v6918
        %v6920 = vpop.xlane.xlu0 %6919
        %v6921 = vadd.f32 %v6867, %v6868
        %v6922 = vadd.f32 %v6921, %v6869
        %6923 = vadd.xlane.f32.xlu0 %v6922
        %v6924 = vpop.xlane.xlu0 %6923
        %v6925 = vadd.f32 %v6870, %v6871
        %v6926 = vadd.f32 %v6925, %v6872
        %6927 = vadd.xlane.f32.xlu0 %v6926
        %v6928 = vpop.xlane.xlu0 %6927
        %v6929 = vadd.f32 %v6873, %v6874
        %v6930 = vadd.f32 %v6929, %v6875
        %6931 = vadd.xlane.f32.xlu0 %v6930
        %v6932 = vpop.xlane.xlu0 %6931
        %v6933 = vadd.f32 %v6876, %v6877
        %v6934 = vadd.f32 %v6933, %v6878
        %6935 = vadd.xlane.f32.xlu0 %v6934
        %v6936 = vpop.xlane.xlu0 %6935
        %v6937 = vadd.f32 %v6879, %v6880
        %v6938 = vadd.f32 %v6937, %v6881
        %6939 = vadd.xlane.f32.xlu0 %v6938
        %v6940 = vpop.xlane.xlu0 %6939
        %v6941 = vadd.f32 %v6882, %v6883
        %v6942 = vadd.f32 %v6941, %v6884
        %6943 = vadd.xlane.f32.xlu0 %v6942
        %v6944 = vpop.xlane.xlu0 %6943
        %v6945 = vadd.f32 %v6885, %v6886
        %v6946 = vadd.f32 %v6945, %v6887
        %6947 = vadd.xlane.f32.xlu0 %v6946
        %v6948 = vpop.xlane.xlu0 %6947
        %v6949 = vadd.f32 %v6888, %v6889
        %v6950 = vadd.f32 %v6949, %v6890
        %6951 = vadd.xlane.f32.xlu0 %v6950
        %v6952 = vpop.xlane.xlu0 %6951
        %v6953 = vadd.f32 %v6891, %v6892
        %v6954 = vadd.f32 %v6953, %v6893
        %6955 = vadd.xlane.f32.xlu0 %v6954
        %v6956 = vpop.xlane.xlu0 %6955
        %v6957 = vadd.f32 %v6894, %v6895
        %v6958 = vadd.f32 %v6957, %v6896
        %6959 = vadd.xlane.f32.xlu0 %v6958
        %v6960 = vpop.xlane.xlu0 %6959
        %v6961 = vmul.f32 %v6900, %v6832
        %v6962 = vmul.f32 %v6904, %v6832
        %v6963 = vmul.f32 %v6908, %v6832
        %v6964 = vmul.f32 %v6912, %v6832
        %v6965 = vmul.f32 %v6916, %v6832
        %v6966 = vmul.f32 %v6920, %v6832
        %v6967 = vmul.f32 %v6924, %v6832
        %v6968 = vmul.f32 %v6928, %v6832
        %v6969 = vmul.f32 %v6932, %v6832
        %v6970 = vmul.f32 %v6936, %v6832
        %v6971 = vmul.f32 %v6940, %v6832
        %v6972 = vmul.f32 %v6944, %v6832
        %v6973 = vmul.f32 %v6948, %v6832
        %v6974 = vmul.f32 %v6952, %v6832
        %v6975 = vmul.f32 %v6956, %v6832
        %v6976 = vmul.f32 %v6960, %v6832
        %v6977 = vmul.f32 %v6833, %v6833
        %v6978 = vmul.f32 %v6834, %v6834
        %v6979 = vmul.f32 %v6835, %v6835
        %v6980 = vmul.f32 %v6836, %v6836
        %v6981 = vmul.f32 %v6837, %v6837
        %v6982 = vmul.f32 %v6838, %v6838
        %v6983 = vmul.f32 %v6839, %v6839
        %v6984 = vmul.f32 %v6840, %v6840
        %v6985 = vmul.f32 %v6841, %v6841
        %v6986 = vmul.f32 %v6842, %v6842
        %v6987 = vmul.f32 %v6843, %v6843
        %v6988 = vmul.f32 %v6844, %v6844
        %v6989 = vmul.f32 %v6845, %v6845
        %v6990 = vmul.f32 %v6846, %v6846
        %v6991 = vmul.f32 %v6847, %v6847
        %v6992 = vmul.f32 %v6848, %v6848
        %v6993 = vsub.f32 %v6961, %v6977
        %v6994 = vsub.f32 %v6962, %v6978
        %v6995 = vsub.f32 %v6963, %v6979
        %v6996 = vsub.f32 %v6964, %v6980
        %v6997 = vsub.f32 %v6965, %v6981
        %v6998 = vsub.f32 %v6966, %v6982
        %v6999 = vsub.f32 %v6967, %v6983
        %v7000 = vsub.f32 %v6968, %v6984
        %v7001 = vsub.f32 %v6969, %v6985
        %v7002 = vsub.f32 %v6970, %v6986
        %v7003 = vsub.f32 %v6971, %v6987
        %v7004 = vsub.f32 %v6972, %v6988
        %v7005 = vsub.f32 %v6973, %v6989
        %v7006 = vsub.f32 %v6974, %v6990
        %v7007 = vsub.f32 %v6975, %v6991
        %v7008 = vsub.f32 %v6976, %v6992
        %v7009 = vsub.f32 %v6496, %v6833
        %v7010 = vsub.f32 %v6498, %v6833
        %v7011 = vsub.f32 %v6706, %v6833
        %v7012 = vsub.f32 %v6500, %v6834
        %v7013 = vsub.f32 %v6502, %v6834
        %v7014 = vsub.f32 %v6709, %v6834
        %v7015 = vsub.f32 %v6506, %v6835
        %v7016 = vsub.f32 %v6508, %v6835
        %v7017 = vsub.f32 %v6714, %v6835
        %v7018 = vsub.f32 %v6510, %v6836
        %v7019 = vsub.f32 %v6512, %v6836
        %v7020 = vsub.f32 %v6717, %v6836
        %v7021 = vsub.f32 %v6516, %v6837
        %v7022 = vsub.f32 %v6518, %v6837
        %v7023 = vsub.f32 %v6722, %v6837
        %v7024 = vsub.f32 %v6520, %v6838
        %v7025 = vsub.f32 %v6522, %v6838
        %v7026 = vsub.f32 %v6725, %v6838
        %v7027 = vsub.f32 %v6526, %v6839
        %v7028 = vsub.f32 %v6528, %v6839
        %v7029 = vsub.f32 %v6730, %v6839
        %v7030 = vsub.f32 %v6530, %v6840
        %v7031 = vsub.f32 %v6532, %v6840
        %v7032 = vsub.f32 %v6733, %v6840
        %v7033 = vsub.f32 %v6536, %v6841
        %v7034 = vsub.f32 %v6538, %v6841
        %v7035 = vsub.f32 %v6738, %v6841
        %v7036 = vsub.f32 %v6540, %v6842
        %v7037 = vsub.f32 %v6542, %v6842
        %v7038 = vsub.f32 %v6741, %v6842
        %v7039 = vsub.f32 %v6546, %v6843
        %v7040 = vsub.f32 %v6548, %v6843
        %v7041 = vsub.f32 %v6746, %v6843
        %v7042 = vsub.f32 %v6550, %v6844
        %v7043 = vsub.f32 %v6552, %v6844
        %v7044 = vsub.f32 %v6749, %v6844
        %v7045 = vsub.f32 %v6556, %v6845
        %v7046 = vsub.f32 %v6558, %v6845
        %v7047 = vsub.f32 %v6754, %v6845
        %v7048 = vsub.f32 %v6560, %v6846
        %v7049 = vsub.f32 %v6562, %v6846
        %v7050 = vsub.f32 %v6757, %v6846
        %v7051 = vsub.f32 %v6566, %v6847
        %v7052 = vsub.f32 %v6568, %v6847
        %v7053 = vsub.f32 %v6762, %v6847
        %v7054 = vsub.f32 %v6570, %v6848
        %v7055 = vsub.f32 %v6572, %v6848
        %v7056 = vsub.f32 %v6765, %v6848
        %v7057 = vadd.f32 %v6993, 1e-05
        %v7058 = vadd.f32 %v6994, 1e-05
        %v7059 = vadd.f32 %v6995, 1e-05
        %v7060 = vadd.f32 %v6996, 1e-05
        %v7061 = vadd.f32 %v6997, 1e-05
        %v7062 = vadd.f32 %v6998, 1e-05
        %v7063 = vadd.f32 %v6999, 1e-05
        %v7064 = vadd.f32 %v7000, 1e-05
        %v7065 = vadd.f32 %v7001, 1e-05
        %v7066 = vadd.f32 %v7002, 1e-05
        %v7067 = vadd.f32 %v7003, 1e-05
        %v7068 = vadd.f32 %v7004, 1e-05
        %v7069 = vadd.f32 %v7005, 1e-05
        %v7070 = vadd.f32 %v7006, 1e-05
        %v7071 = vadd.f32 %v7007, 1e-05
        %v7072 = vadd.f32 %v7008, 1e-05
        %v7073 = vrsqrt.pop %v7057
        %v7074 = vrsqrt.pop %v7058
        %v7075 = vrsqrt.pop %v7059
        %v7076 = vrsqrt.pop %v7060
        %v7077 = vrsqrt.pop %v7061
        %v7078 = vrsqrt.pop %v7062
        %v7079 = vrsqrt.pop %v7063
        %v7080 = vrsqrt.pop %v7064
        %v7081 = vrsqrt.pop %v7065
        %v7082 = vrsqrt.pop %v7066
        %v7083 = vrsqrt.pop %v7067
        %v7084 = vrsqrt.pop %v7068
        %v7085 = vrsqrt.pop %v7069
        %v7086 = vrsqrt.pop %v7070
        %v7087 = vrsqrt.pop %v7071
        %v7088 = vrsqrt.pop %v7072
        %v7089 = vmul.f32 %v7009, %v7073
        %v7090 = vmul.f32 %v7010, %v7073
        %v7091 = vmul.f32 %v7011, %v7073
        %v7092 = vmul.f32 %v7012, %v7074
        %v7093 = vmul.f32 %v7013, %v7074
        %v7094 = vmul.f32 %v7014, %v7074
        %v7095 = vmul.f32 %v7015, %v7075
        %v7096 = vmul.f32 %v7016, %v7075
        %v7097 = vmul.f32 %v7017, %v7075
        %v7098 = vmul.f32 %v7018, %v7076
        %v7099 = vmul.f32 %v7019, %v7076
        %v7100 = vmul.f32 %v7020, %v7076
        %v7101 = vmul.f32 %v7021, %v7077
        %v7102 = vmul.f32 %v7022, %v7077
        %v7103 = vmul.f32 %v7023, %v7077
        %v7104 = vmul.f32 %v7024, %v7078
        %v7105 = vmul.f32 %v7025, %v7078
        %v7106 = vmul.f32 %v7026, %v7078
        %v7107 = vmul.f32 %v7027, %v7079
        %v7108 = vmul.f32 %v7028, %v7079
        %v7109 = vmul.f32 %v7029, %v7079
        %v7110 = vmul.f32 %v7030, %v7080
        %v7111 = vmul.f32 %v7031, %v7080
        %v7112 = vmul.f32 %v7032, %v7080
        %v7113 = vmul.f32 %v7033, %v7081
        %v7114 = vmul.f32 %v7034, %v7081
        %v7115 = vmul.f32 %v7035, %v7081
        %v7116 = vmul.f32 %v7036, %v7082
        %v7117 = vmul.f32 %v7037, %v7082
        %v7118 = vmul.f32 %v7038, %v7082
        %v7119 = vmul.f32 %v7039, %v7083
        %v7120 = vmul.f32 %v7040, %v7083
        %v7121 = vmul.f32 %v7041, %v7083
        %v7122 = vmul.f32 %v7042, %v7084
        %v7123 = vmul.f32 %v7043, %v7084
        %v7124 = vmul.f32 %v7044, %v7084
        %v7125 = vmul.f32 %v7045, %v7085
        %v7126 = vmul.f32 %v7046, %v7085
        %v7127 = vmul.f32 %v7047, %v7085
        %v7128 = vmul.f32 %v7048, %v7086
        %v7129 = vmul.f32 %v7049, %v7086
        %v7130 = vmul.f32 %v7050, %v7086
        %v7131 = vmul.f32 %v7051, %v7087
        %v7132 = vmul.f32 %v7052, %v7087
        %v7133 = vmul.f32 %v7053, %v7087
        %v7134 = vmul.f32 %v7054, %v7088
        %v7135 = vmul.f32 %v7055, %v7088
        %v7136 = vmul.f32 %v7056, %v7088
        %v7137 = vld [vmem:[%s4] sm:$0x7]
        %v7139 = vlaneseq
        %v7140 = vshrl.u32 %v7139, 7
        %v7141 = vsub.s32 0, %v7140
        %v7142 = vrot.slane %v7137, %v7141
        %v7143 = vlaneseq
        %v7144 = vshrl.u32 %v7143, 7
        %v7145 = vsub.s32 1, %v7144
        %v7146 = vrot.slane %v7137, %v7145
        %v7147 = vlaneseq
        %v7148 = vshrl.u32 %v7147, 7
        %v7149 = vsub.s32 2, %v7148
        %v7150 = vrot.slane %v7137, %v7149
        %v7154 = vmul.f32 %v7089, %v7142
        %v7155 = vmul.f32 %v7090, %v7146
        %v7156 = vmul.f32 %v7091, %v7150
        %v7157 = vmul.f32 %v7092, %v7142
        %v7158 = vmul.f32 %v7093, %v7146
        %v7159 = vmul.f32 %v7094, %v7150
        %v7160 = vmul.f32 %v7095, %v7142
        %v7161 = vmul.f32 %v7096, %v7146
        %v7162 = vmul.f32 %v7097, %v7150
        %v7163 = vmul.f32 %v7098, %v7142
        %v7164 = vmul.f32 %v7099, %v7146
        %v7165 = vmul.f32 %v7100, %v7150
        %v7166 = vmul.f32 %v7101, %v7142
        %v7167 = vmul.f32 %v7102, %v7146
        %v7168 = vmul.f32 %v7103, %v7150
        %v7169 = vmul.f32 %v7104, %v7142
        %v7170 = vmul.f32 %v7105, %v7146
        %v7171 = vmul.f32 %v7106, %v7150
        %v7172 = vmul.f32 %v7107, %v7142
        %v7173 = vmul.f32 %v7108, %v7146
        %v7174 = vmul.f32 %v7109, %v7150
        %v7175 = vmul.f32 %v7110, %v7142
        %v7176 = vmul.f32 %v7111, %v7146
        %v7177 = vmul.f32 %v7112, %v7150
        %v7178 = vmul.f32 %v7113, %v7142
        %v7179 = vmul.f32 %v7114, %v7146
        %v7180 = vmul.f32 %v7115, %v7150
        %v7181 = vmul.f32 %v7116, %v7142
        %v7182 = vmul.f32 %v7117, %v7146
        %v7183 = vmul.f32 %v7118, %v7150
        %v7184 = vmul.f32 %v7119, %v7142
        %v7185 = vmul.f32 %v7120, %v7146
        %v7186 = vmul.f32 %v7121, %v7150
        %v7187 = vmul.f32 %v7122, %v7142
        %v7188 = vmul.f32 %v7123, %v7146
        %v7189 = vmul.f32 %v7124, %v7150
        %v7190 = vmul.f32 %v7125, %v7142
        %v7191 = vmul.f32 %v7126, %v7146
        %v7192 = vmul.f32 %v7127, %v7150
        %v7193 = vmul.f32 %v7128, %v7142
        %v7194 = vmul.f32 %v7129, %v7146
        %v7195 = vmul.f32 %v7130, %v7150
        %v7196 = vmul.f32 %v7131, %v7142
        %v7197 = vmul.f32 %v7132, %v7146
        %v7198 = vmul.f32 %v7133, %v7150
        %v7199 = vmul.f32 %v7134, %v7142
        %v7200 = vmul.f32 %v7135, %v7146
        %v7201 = vmul.f32 %v7136, %v7150
        %7202 = vst [vmem:[%s217] sm:$0xff] %v7154
        %7203 = vst [vmem:[%s217 + $0x8] sm:$0xff] %v7155
        %7204 = vst [vmem:[%s217 + $0x10] sm:$0xff] %v7156
        %7205 = vst [vmem:[%s217 + $0x18] sm:$0xff] %v7157
        %7206 = vst [vmem:[%s217 + $0x20] sm:$0xff] %v7158
        %7207 = vst [vmem:[%s217 + $0x28] sm:$0xff] %v7159
        %7208 = vst [vmem:[%s217 + $0x30] sm:$0xff] %v7160
        %7209 = vst [vmem:[%s217 + $0x38] sm:$0xff] %v7161
        %7210 = vst [vmem:[%s217 + $0x40] sm:$0xff] %v7162
        %7211 = vst [vmem:[%s217 + $0x48] sm:$0xff] %v7163
        %7212 = vst [vmem:[%s217 + $0x50] sm:$0xff] %v7164
        %7213 = vst [vmem:[%s217 + $0x58] sm:$0xff] %v7165
        %7214 = vst [vmem:[%s217 + $0x60] sm:$0xff] %v7166
        %7215 = vst [vmem:[%s217 + $0x68] sm:$0xff] %v7167
        %7216 = vst [vmem:[%s217 + $0x70] sm:$0xff] %v7168
        %7217 = vst [vmem:[%s217 + $0x78] sm:$0xff] %v7169
        %7218 = vst [vmem:[%s217 + $0x80] sm:$0xff] %v7170
        %7219 = vst [vmem:[%s217 + $0x88] sm:$0xff] %v7171
        %7220 = vst [vmem:[%s217 + $0x90] sm:$0xff] %v7172
        %7221 = vst [vmem:[%s217 + $0x98] sm:$0xff] %v7173
        %7222 = vst [vmem:[%s217 + $0xa0] sm:$0xff] %v7174
        %7223 = vst [vmem:[%s217 + $0xa8] sm:$0xff] %v7175
        %7224 = vst [vmem:[%s217 + $0xb0] sm:$0xff] %v7176
        %7225 = vst [vmem:[%s217 + $0xb8] sm:$0xff] %v7177
        %7226 = vst [vmem:[%s217 + $0xc0] sm:$0xff] %v7178
        %7227 = vst [vmem:[%s217 + $0xc8] sm:$0xff] %v7179
        %7228 = vst [vmem:[%s217 + $0xd0] sm:$0xff] %v7180
        %7229 = vst [vmem:[%s217 + $0xd8] sm:$0xff] %v7181
        %7230 = vst [vmem:[%s217 + $0xe0] sm:$0xff] %v7182
        %7231 = vst [vmem:[%s217 + $0xe8] sm:$0xff] %v7183
        %7232 = vst [vmem:[%s217 + $0xf0] sm:$0xff] %v7184
        %7233 = vst [vmem:[%s217 + $0xf8] sm:$0xff] %v7185
        %7234 = vst [vmem:[%s217 + $0x100] sm:$0xff] %v7186
        %7235 = vst [vmem:[%s217 + $0x108] sm:$0xff] %v7187
        %7236 = vst [vmem:[%s217 + $0x110] sm:$0xff] %v7188
        %7237 = vst [vmem:[%s217 + $0x118] sm:$0xff] %v7189
        %7238 = vst [vmem:[%s217 + $0x120] sm:$0xff] %v7190
        %7239 = vst [vmem:[%s217 + $0x128] sm:$0xff] %v7191
        %7240 = vst [vmem:[%s217 + $0x130] sm:$0xff] %v7192
        %7241 = vst [vmem:[%s217 + $0x138] sm:$0xff] %v7193
        %7242 = vst [vmem:[%s217 + $0x140] sm:$0xff] %v7194
        %7243 = vst [vmem:[%s217 + $0x148] sm:$0xff] %v7195
        %7244 = vst [vmem:[%s217 + $0x150] sm:$0xff] %v7196
        %7245 = vst [vmem:[%s217 + $0x158] sm:$0xff] %v7197
        %7246 = vst [vmem:[%s217 + $0x160] sm:$0xff] %v7198
        %7247 = vst [vmem:[%s217 + $0x168] sm:$0xff] %v7199
        %7248 = vst [vmem:[%s217 + $0x170] sm:$0xff] %v7200
        %7249 = vst [vmem:[%s217 + $0x178] sm:$0xff] %v7201
        %s7250 = sand.u32 %s137, 1
        %s7251 = scalar_lea.sflag [#allocation4], %s7250
        %s7252 = sand.u32 %s137, 1
        %s7253 = smul.addr %s7252, 384
        %s7254 = scalar_lea.vmem [#allocation3], %s7253
        // Predicated region
        $region41: #{multi_head_attention.1} parent=39 // pred_check
          %p7255 = pneg %p147
        $region42: #{multi_head_attention.1} parent=39 // pred_check_branch
          %7257 = sbr.rel (%p7255) target = $region44
        $region43: #{multi_head_attention.1} parent=39 // pred_region
          %s7259 = ssub.s32 6144, 6144
          %7260 = vsyncadd %s7251, %s7259
          %s7261 = smul.addr %s19, 48
          %s7262 = smul.addr %s7261, 128
          %s7263 = scalar_lea.hbm %s5, %s7262
          %s7264 = sshll.u32 %s7254, 4
          %s7265 = int_to_ptr.vmem [resolvable:$true] %s7264
          %7270 = dma.vmem_to_hbm [thread:$0]  %s7265, 6144, %s7263, %s7251, 384, 384, 24
        $region44: #{multi_head_attention.1} parent=39 // pred_fallthru
          _
      $region40: #{multi_head_attention.1} parent=5 // pred_fallthru
        _
      %p7271 = scmp.le.s32.totalorder 2, %s14
      // Predicated region
      $region45: #{multi_head_attention.1} parent=5 // pred_check
        %p7272 = pneg %p7271
      $region46: #{multi_head_attention.1} parent=5 // pred_check_branch
        %7274 = sbr.rel (%p7272) target = $region48
      $region47: #{multi_head_attention.1} parent=5 // pred_region
        %s7275 = ssub.s32 %s14, 2
        // Predicated region
        $region49: #{multi_head_attention.1} parent=47 // pred_check
          %p7276 = pneg %p153
        $region50: #{multi_head_attention.1} parent=47 // pred_check_branch
          %7278 = sbr.rel (%p7276) target = $region52
        $region51: #{multi_head_attention.1} parent=47 // pred_region
          %s7279 = sand.u32 %s138, 1
          %s7280 = scalar_lea.sflag [#allocation4], %s7279
          %s7281 = sand.u32 %s138, 1
          %s7282 = smul.addr %s7281, 384
          %s7283 = scalar_lea.vmem [#allocation3], %s7282
          %7284 = dma.done %s7280, 6144
        $region52: #{multi_head_attention.1} parent=47 // pred_fallthru
          _
      $region48: #{multi_head_attention.1} parent=5 // pred_fallthru
        _
    $region6: #{multi_head_attention.1} parent=1 // loop_footer
      %s18 = sadd.s32 1, %s14
    $region7: #{multi_head_attention.1} parent=1 // loop_footer_branch
      %13 = sbr.rel target = $region3
    $region8: #{multi_head_attention.1} parent=1 // loop_exit
      _
    %7285 = vsyncpa [#allocation4], 1
    %s7286 = scalar_lea.sflag [#allocation4], 1
    %7287 = vsyncpa %s7286, 1

</llo_original>
